<compile_context>
chip_gen: v6e
topology: v6e:2x2x1
jax: 0.10.0
libtpu: 0.0.40
codegen_flags: <defaults>
</compile_context>

<pallas_src>
import jax
import jax.numpy as jnp
from jax.experimental import pallas as pl
from jax.experimental.pallas import tpu as pltpu

BN_EPS = 1e-5
LANE = 128
_TAPS = tuple((dy, dx) for dy in range(3) for dx in range(3))


def _rup(x, m):
    return (x + m - 1) // m * m


def _row_stats(acc):
    # acc: (M, C) f32 -> (2, C) [sum ; sum of squares]
    ssum = jnp.sum(acc, axis=0, keepdims=True)
    ssq = jnp.sum(acc * acc, axis=0, keepdims=True)
    return jnp.concatenate([ssum, ssq], axis=0)


# ---------------------------------------------------------------------------
# Pallas kernels
# ---------------------------------------------------------------------------
def make_conv1_kernel(Ho, Wo, Cin_p, Cout_p, stride, proj):
    """conv1 (3x3, pad=1, stride) [+ 1x1 projection conv] + BN partial stats."""
    M = Ho * Wo

    def kernel(*refs):
        if proj:
            xp_ref, w1_ref, ws_ref, y1_ref, ysc_ref, s1_ref, ssc_ref = refs
        else:
            xp_ref, w1_ref, y1_ref, s1_ref = refs

        if stride == 1:
            def get_tap(dy, dx):
                return xp_ref[0, dy:dy + Ho, dx:dx + Wo, :]          # (Ho, Wo, Cin_p) bf16
        else:
            # TODO(synk): stride>1 path uses strided value slicing; if a Mosaic version
            # rejects it, pre-split the s*s phases in the JAX wrapper instead.
            x_full = xp_ref[0]

            def get_tap(dy, dx):
                return x_full[dy:dy + stride * (Ho - 1) + 1:stride,
                              dx:dx + stride * (Wo - 1) + 1:stride, :]

        acc = jnp.zeros((M, Cout_p), jnp.float32)
        for t, (dy, dx) in enumerate(_TAPS):
            tap = get_tap(dy, dx).reshape(M, Cin_p)                  # bf16
            acc = acc + jnp.dot(tap, w1_ref[t], preferred_element_type=jnp.float32)
        y1_ref[0] = acc.reshape(Ho, Wo, Cout_p)
        s1_ref[0] = _row_stats(acc)

        if proj:
            # 1x1 shortcut conv: centre tap of the padded slab == x[::stride, ::stride]
            xc = get_tap(1, 1).reshape(M, Cin_p)
            rsc = jnp.dot(xc, ws_ref[...], preferred_element_type=jnp.float32)
            ysc_ref[0] = rsc.reshape(Ho, Wo, Cout_p)
            ssc_ref[0] = _row_stats(rsc)

    return kernel


def make_conv2_kernel(Ho, Wo, Cout_p):
    """bn1-apply + ReLU fused with conv2 (3x3, pad=1, stride=1) + BN partial stats.

    h1 = relu(bn1(y1)) never leaves VMEM: it is written (with its halo) into a scratch
    buffer and the 9 conv2 taps are gathered from that scratch.
    """
    M = Ho * Wo

    def kernel(y1_ref, bn1_ref, w2_ref, y2_ref, s2_ref, hpad_ref):
        bnv = bn1_ref[...]                                           # (2, Cout_p) f32
        scale = bnv[0:1, :].reshape(1, 1, Cout_p)
        shift = bnv[1:2, :].reshape(1, 1, Cout_p)
        h1 = jnp.maximum(y1_ref[0] * scale + shift, 0.0)             # f32 (Ho, Wo, C)

        hpad_ref[...] = jnp.zeros_like(hpad_ref)                     # zero halo
        hpad_ref[1:Ho + 1, 1:Wo + 1, :] = h1

        acc = jnp.zeros((M, Cout_p), jnp.float32)
        for t, (dy, dx) in enumerate(_TAPS):
            tap = hpad_ref[dy:dy + Ho, dx:dx + Wo, :].astype(jnp.bfloat16).reshape(M, Cout_p)
            acc = acc + jnp.dot(tap, w2_ref[t], preferred_element_type=jnp.float32)
        y2_ref[0] = acc.reshape(Ho, Wo, Cout_p)
        s2_ref[0] = _row_stats(acc)

    return kernel


def make_final_kernel(Ho, Wo, Cout_p, proj):
    """bn2-apply (+ shortcut bn-apply) + residual add + ReLU."""

    def kernel(*refs):
        if proj:
            y2_ref, bn2_ref, ysc_ref, bns_ref, o_ref = refs
        else:
            y2_ref, bn2_ref, res_ref, o_ref = refs

        b2 = bn2_ref[...]
        out = (y2_ref[0] * b2[0:1, :].reshape(1, 1, Cout_p)
               + b2[1:2, :].reshape(1, 1, Cout_p))
        if proj:
            bs = bns_ref[...]
            res = (ysc_ref[0] * bs[0:1, :].reshape(1, 1, Cout_p)
                   + bs[1:2, :].reshape(1, 1, Cout_p))
        else:
            res = res_ref[0]
        o_ref[0] = jnp.maximum(out + res, 0.0)

    return kernel


# ---------------------------------------------------------------------------
# Pure-JAX glue: parameter packing, BN stat folding, forward wrapper
# ---------------------------------------------------------------------------
def init_params(key, in_ch, out_ch, stride):
    ks = jax.random.split(key, 12)
    p = {
        "w1": 0.1 * jax.random.normal(ks[0], (out_ch, in_ch, 3, 3), jnp.float32),
        "b1": 0.1 * jax.random.normal(ks[1], (out_ch,), jnp.float32),
        "g1": 1.0 + 0.1 * jax.random.normal(ks[2], (out_ch,), jnp.float32),
        "be1": 0.1 * jax.random.normal(ks[3], (out_ch,), jnp.float32),
        "w2": 0.1 * jax.random.normal(ks[4], (out_ch, out_ch, 3, 3), jnp.float32),
        "b2": 0.1 * jax.random.normal(ks[5], (out_ch,), jnp.float32),
        "g2": 1.0 + 0.1 * jax.random.normal(ks[6], (out_ch,), jnp.float32),
        "be2": 0.1 * jax.random.normal(ks[7], (out_ch,), jnp.float32),
    }
    if stride != 1 or out_ch != in_ch:
        p["ws"] = 0.1 * jax.random.normal(ks[8], (out_ch, in_ch, 1, 1), jnp.float32)
        p["bs"] = 0.1 * jax.random.normal(ks[9], (out_ch,), jnp.float32)
        p["gs"] = 1.0 + 0.1 * jax.random.normal(ks[10], (out_ch,), jnp.float32)
        p["bes"] = 0.1 * jax.random.normal(ks[11], (out_ch,), jnp.float32)
    return p


def pack_params(params, in_ch, out_ch, stride):
    """One-time weight re-layout: tap-major matrices, channels padded to 128, bf16.

    Conv biases are intentionally NOT packed: they cancel exactly under the
    batch-statistic BatchNorm that follows every conv (dead work otherwise).
    """
    cin_p = _rup(in_ch, LANE)
    cout_p = _rup(out_ch, LANE)
    proj = (stride != 1) or (out_ch != in_ch)

    def pad_c(v):  # (out_ch,) -> (cout_p,)
        return jnp.pad(v, (0, cout_p - out_ch)).astype(jnp.float32)

    w1 = jnp.transpose(params["w1"], (2, 3, 1, 0))                       # (3,3,I,O)
    w1 = jnp.pad(w1, ((0, 0), (0, 0), (0, cin_p - in_ch), (0, cout_p - out_ch)))
    w2 = jnp.transpose(params["w2"], (2, 3, 1, 0))                       # (3,3,O,O)
    w2 = jnp.pad(w2, ((0, 0), (0, 0), (0, cout_p - out_ch), (0, cout_p - out_ch)))

    packed = {
        "w1": w1.reshape(9, cin_p, cout_p).astype(jnp.bfloat16),
        "w2": w2.reshape(9, cout_p, cout_p).astype(jnp.bfloat16),
        "g1": pad_c(params["g1"]), "be1": pad_c(params["be1"]),
        "g2": pad_c(params["g2"]), "be2": pad_c(params["be2"]),
    }
    if proj:
        ws = params["ws"][:, :, 0, 0].T                                  # (I, O)
        packed["ws"] = jnp.pad(ws, ((0, cin_p - in_ch), (0, cout_p - out_ch))).astype(jnp.bfloat16)
        packed["gs"] = pad_c(params["gs"])
        packed["bes"] = pad_c(params["bes"])
    return packed


def _scale_shift(stats, count, gamma_p, beta_p):
    """Fold per-image partial (sum, sumsq) into BN scale/shift: y = x*scale + shift."""
    s = jnp.sum(stats, axis=0)                       # (2, Cp): reduce over images
    mean = s[0] / count
    var = jnp.maximum(s[1] / count - mean * mean, 0.0)
    scale = gamma_p * jax.lax.rsqrt(var + BN_EPS)
    shift = beta_p - mean * scale
    return jnp.stack([scale, shift], axis=0)         # (2, Cp) f32


def resnet_forward(packed, x_nchw, in_ch, out_ch, stride=1):
    x = jnp.transpose(x_nchw, (0, 2, 3, 1)).astype(jnp.float32)          # NCHW -> NHWC
    N, H, W, _ = x.shape
    cin_p = packed["w1"].shape[1]
    cout_p = packed["w1"].shape[2]
    proj = "ws" in packed
    Ho = (H - 1) // stride + 1
    Wo = (W - 1) // stride + 1
    Hp, Wp = H + 2, W + 2

    cparams = pltpu.CompilerParams(
        dimension_semantics=("parallel",),            # shards grid over v7x's 2 TCs
        vmem_limit_bytes=48 * 1024 * 1024)            # v7x-safe (<64 MiB physical)

    # lane-dense channel pad + 3x3 halo pad; bf16 for the MXU inputs.
    x_c = jnp.pad(x, ((0, 0), (0, 0), (0, 0), (0, cin_p - in_ch)))       # f32 (residual)
    x_p = jnp.pad(x_c, ((0, 0), (1, 1), (1, 1), (0, 0))).astype(jnp.bfloat16)

    # ---- call A: conv1 (+ projection 1x1 conv) + per-image BN partial stats ----
    in_specs = [pl.BlockSpec((1, Hp, Wp, cin_p), lambda n: (n, 0, 0, 0)),
                pl.BlockSpec((9, cin_p, cout_p), lambda n: (0, 0, 0))]
    args = [x_p, packed["w1"]]
    out_shape = [jax.ShapeDtypeStruct((N, Ho, Wo, cout_p), jnp.float32)]
    out_specs = [pl.BlockSpec((1, Ho, Wo, cout_p), lambda n: (n, 0, 0, 0))]
    if proj:
        in_specs.append(pl.BlockSpec((cin_p, cout_p), lambda n: (0, 0)))
        args.append(packed["ws"])
        out_shape.append(jax.ShapeDtypeStruct((N, Ho, Wo, cout_p), jnp.float32))
        out_specs.append(pl.BlockSpec((1, Ho, Wo, cout_p), lambda n: (n, 0, 0, 0)))
    for _ in range(2 if proj else 1):
        out_shape.append(jax.ShapeDtypeStruct((N, 2, cout_p), jnp.float32))
        out_specs.append(pl.BlockSpec((1, 2, cout_p), lambda n: (n, 0, 0)))

    res_a = pl.pallas_call(
        make_conv1_kernel(Ho, Wo, cin_p, cout_p, stride, proj),
        out_shape=tuple(out_shape), grid=(N,),
        in_specs=in_specs, out_specs=tuple(out_specs),
        compiler_params=cparams,
    )(*args)
    if proj:
        y1, ysc, s1, ssc = res_a
    else:
        y1, s1 = res_a

    cnt = jnp.float32(N * Ho * Wo)
    bn1 = _scale_shift(s1, cnt, packed["g1"], packed["be1"])

    # ---- call B: bn1+relu fused with conv2 tap gather (h1 never touches HBM) ----
    y2, s2 = pl.pallas_call(
        make_conv2_kernel(Ho, Wo, cout_p),
        out_shape=(jax.ShapeDtypeStruct((N, Ho, Wo, cout_p), jnp.float32),
                   jax.ShapeDtypeStruct((N, 2, cout_p), jnp.float32)),
        grid=(N,),
        in_specs=[pl.BlockSpec((1, Ho, Wo, cout_p), lambda n: (n, 0, 0, 0)),
                  pl.BlockSpec((2, cout_p), lambda n: (0, 0)),
                  pl.BlockSpec((9, cout_p, cout_p), lambda n: (0, 0, 0))],
        out_specs=(pl.BlockSpec((1, Ho, Wo, cout_p), lambda n: (n, 0, 0, 0)),
                   pl.BlockSpec((1, 2, cout_p), lambda n: (n, 0, 0))),
        scratch_shapes=[pltpu.VMEM((Ho + 2, Wo + 2, cout_p), jnp.float32)],
        compiler_params=cparams,
    )(y1, bn1, packed["w2"])

    bn2 = _scale_shift(s2, cnt, packed["g2"], packed["be2"])

    # ---- call C: bn2-apply (+ shortcut bn) + residual add + relu ----
    if proj:
        bns = _scale_shift(ssc, cnt, packed["gs"], packed["bes"])
        in_specs_c = [pl.BlockSpec((1, Ho, Wo, cout_p), lambda n: (n, 0, 0, 0)),
                      pl.BlockSpec((2, cout_p), lambda n: (0, 0)),
                      pl.BlockSpec((1, Ho, Wo, cout_p), lambda n: (n, 0, 0, 0)),
                      pl.BlockSpec((2, cout_p), lambda n: (0, 0))]
        args_c = (y2, bn2, ysc, bns)
    else:
        in_specs_c = [pl.BlockSpec((1, Ho, Wo, cout_p), lambda n: (n, 0, 0, 0)),
                      pl.BlockSpec((2, cout_p), lambda n: (0, 0)),
                      pl.BlockSpec((1, H, W, cout_p), lambda n: (n, 0, 0, 0))]
        args_c = (y2, bn2, x_c)

    out_full = pl.pallas_call(
        make_final_kernel(Ho, Wo, cout_p, proj),
        out_shape=jax.ShapeDtypeStruct((N, Ho, Wo, cout_p), jnp.float32),
        grid=(N,), in_specs=in_specs_c,
        out_specs=pl.BlockSpec((1, Ho, Wo, cout_p), lambda n: (n, 0, 0, 0)),
        compiler_params=cparams,
    )(*args_c)

    out = out_full[..., :out_ch]                                         # drop lane pad
    return jnp.transpose(out, (0, 3, 1, 2))                              # NHWC -> NCHW


# ---------------------------------------------------------------------------
# Pure-JAX reference (conv WITH bias, batch-stat BN) for numerical check
# ---------------------------------------------------------------------------
def reference_forward(params, x, in_ch, out_ch, stride):
    def conv(x, w, b, s, pad):
        y = jax.lax.conv_general_dilated(
            x, w, (s, s), ((pad, pad), (pad, pad)),
            dimension_numbers=("NCHW", "OIHW", "NCHW"))
        return y + b.reshape(1, -1, 1, 1)

    def bn(x, g, be):
        m = jnp.mean(x, axis=(0, 2, 3), keepdims=True)
        v = jnp.mean((x - m) ** 2, axis=(0, 2, 3), keepdims=True)
        return (x - m) * jax.lax.rsqrt(v + BN_EPS) * g.reshape(1, -1, 1, 1) + be.reshape(1, -1, 1, 1)

    if stride != 1 or out_ch != in_ch:
        residual = bn(conv(x, params["ws"], params["bs"], stride, 0), params["gs"], params["bes"])
    else:
        residual = x
    out = jnp.maximum(bn(conv(x, params["w1"], params["b1"], stride, 1), params["g1"], params["be1"]), 0.0)
    out = bn(conv(out, params["w2"], params["b2"], 1, 1), params["g2"], params["be2"])
    return jnp.maximum(out + residual, 0.0)


if __name__ == "__main__":
    key = jax.random.PRNGKey(0)
    kx, kp, kx2, kp2 = jax.random.split(key, 4)
    fwd = jax.jit(resnet_forward, static_argnums=(2, 3, 4))

    # projection-shortcut path (out_channels != in_channels)
    N, Cin, H, W = 2, 4, 16, 16
    Cout, stride = 8, 1
    x = jax.random.normal(kx, (N, Cin, H, W), jnp.float32)
    params = init_params(kp, Cin, Cout, stride)
    packed = pack_params(params, Cin, Cout, stride)
    out = jax.block_until_ready(fwd(packed, x, Cin, Cout, stride))
    assert out.shape == (N, Cout, H, W), out.shape
    ref = reference_forward(params, x, Cin, Cout, stride)
    err = float(jnp.max(jnp.abs(out - ref)))
    assert jnp.allclose(out, ref, atol=5e-2, rtol=5e-2), err   # bf16 MXU inputs vs f32 ref

    # identity-shortcut path (in == out, stride 1)
    C2 = 8
    x2 = jax.random.normal(kx2, (N, C2, H, W), jnp.float32)
    params2 = init_params(kp2, C2, C2, 1)
    packed2 = pack_params(params2, C2, C2, 1)
    out2 = jax.block_until_ready(fwd(packed2, x2, C2, C2, 1))
    ref2 = reference_forward(params2, x2, C2, C2, 1)
    err2 = float(jnp.max(jnp.abs(out2 - ref2)))
    assert jnp.allclose(out2, ref2, atol=5e-2, rtol=5e-2), err2

    # TODO(synk): BatchNorm running-stat updates (training-time side effect) are not
    # reproduced; forward math uses batch statistics exactly like nn.BatchNorm2d.train().
    print("KERNEL_OK")
</pallas_src>

<mosaic_0001>
module attributes {stable_mosaic.version = 11 : i64} {
  func.func @kernel(%arg0: i32, %arg1: memref<1x18x18x128xbf16, #tpu.memory_space<vmem>>, %arg2: memref<9x128x128xbf16, #tpu.memory_space<vmem>>, %arg3: memref<128x128xbf16, #tpu.memory_space<vmem>>, %arg4: memref<1x16x16x128xf32, #tpu.memory_space<vmem>>, %arg5: memref<1x16x16x128xf32, #tpu.memory_space<vmem>>, %arg6: memref<1x2x128xf32, #tpu.memory_space<vmem>>, %arg7: memref<1x2x128xf32, #tpu.memory_space<vmem>>) attributes {dimension_semantics = [#tpu.dimension_semantics<parallel>], iteration_bounds = array<i64: 2>, scalar_prefetch = 0 : i64, scratch_operands = 0 : i64, tpu.core_type = #tpu.core_type<tc>, window_params = [{transform_indices = @transform_0, window_bounds = array<i64: 1, 18, 18, 128>}, {pipeline_mode = #tpu.pipeline_mode<synchronous>, transform_indices = @transform_1, window_bounds = array<i64: 9, 128, 128>}, {pipeline_mode = #tpu.pipeline_mode<synchronous>, transform_indices = @transform_2, window_bounds = array<i64: 128, 128>}, {transform_indices = @transform_3, window_bounds = array<i64: 1, 16, 16, 128>}, {transform_indices = @transform_4, window_bounds = array<i64: 1, 16, 16, 128>}, {transform_indices = @transform_5, window_bounds = array<i64: 1, 2, 128>}, {transform_indices = @transform_6, window_bounds = array<i64: 1, 2, 128>}]} {
    %cst = arith.constant 0.000000e+00 : f32
    %0 = vector.broadcast %cst : f32 to vector<256x128xf32>
    %c0 = arith.constant 0 : index
    %c0_0 = arith.constant 0 : index
    %c0_1 = arith.constant 0 : index
    %c0_2 = arith.constant 0 : index
    %1 = vector.load %arg1[%c0, %c0_0, %c0_1, %c0_2] : memref<1x18x18x128xbf16, #tpu.memory_space<vmem>>, vector<1x16x16x128xbf16>
    %2 = vector.shape_cast %1 : vector<1x16x16x128xbf16> to vector<16x16x128xbf16>
    %3 = vector.shape_cast %2 : vector<16x16x128xbf16> to vector<256x128xbf16>
    %c0_3 = arith.constant 0 : index
    %c0_4 = arith.constant 0 : index
    %c0_5 = arith.constant 0 : index
    %4 = vector.load %arg2[%c0_3, %c0_4, %c0_5] : memref<9x128x128xbf16, #tpu.memory_space<vmem>>, vector<1x128x128xbf16>
    %5 = vector.shape_cast %4 : vector<1x128x128xbf16> to vector<128x128xbf16>
    %cst_6 = arith.constant dense<0.000000e+00> : vector<256x128xf32>
    %6 = tpu.matmul %3, %5, %cst_6 {dimension_numbers = #tpu.dot_dimension_numbers<[1], [0], [0], [1], [0, 0, 1, 1], [], []>} : vector<256x128xbf16>, vector<128x128xbf16>, vector<256x128xf32> -> vector<256x128xf32>
    %7 = arith.addf %0, %6 : vector<256x128xf32>
    %c0_7 = arith.constant 0 : index
    %c0_8 = arith.constant 0 : index
    %c1 = arith.constant 1 : index
    %c0_9 = arith.constant 0 : index
    %8 = vector.load %arg1[%c0_7, %c0_8, %c1, %c0_9] : memref<1x18x18x128xbf16, #tpu.memory_space<vmem>>, vector<1x16x16x128xbf16>
    %9 = vector.shape_cast %8 : vector<1x16x16x128xbf16> to vector<16x16x128xbf16>
    %10 = vector.shape_cast %9 : vector<16x16x128xbf16> to vector<256x128xbf16>
    %c1_10 = arith.constant 1 : index
    %c0_11 = arith.constant 0 : index
    %c0_12 = arith.constant 0 : index
    %11 = vector.load %arg2[%c1_10, %c0_11, %c0_12] : memref<9x128x128xbf16, #tpu.memory_space<vmem>>, vector<1x128x128xbf16>
    %12 = vector.shape_cast %11 : vector<1x128x128xbf16> to vector<128x128xbf16>
    %cst_13 = arith.constant dense<0.000000e+00> : vector<256x128xf32>
    %13 = tpu.matmul %10, %12, %cst_13 {dimension_numbers = #tpu.dot_dimension_numbers<[1], [0], [0], [1], [0, 0, 1, 1], [], []>} : vector<256x128xbf16>, vector<128x128xbf16>, vector<256x128xf32> -> vector<256x128xf32>
    %14 = arith.addf %7, %13 : vector<256x128xf32>
    %c0_14 = arith.constant 0 : index
    %c0_15 = arith.constant 0 : index
    %c2 = arith.constant 2 : index
    %c0_16 = arith.constant 0 : index
    %15 = vector.load %arg1[%c0_14, %c0_15, %c2, %c0_16] : memref<1x18x18x128xbf16, #tpu.memory_space<vmem>>, vector<1x16x16x128xbf16>
    %16 = vector.shape_cast %15 : vector<1x16x16x128xbf16> to vector<16x16x128xbf16>
    %17 = vector.shape_cast %16 : vector<16x16x128xbf16> to vector<256x128xbf16>
    %c2_17 = arith.constant 2 : index
    %c0_18 = arith.constant 0 : index
    %c0_19 = arith.constant 0 : index
    %18 = vector.load %arg2[%c2_17, %c0_18, %c0_19] : memref<9x128x128xbf16, #tpu.memory_space<vmem>>, vector<1x128x128xbf16>
    %19 = vector.shape_cast %18 : vector<1x128x128xbf16> to vector<128x128xbf16>
    %cst_20 = arith.constant dense<0.000000e+00> : vector<256x128xf32>
    %20 = tpu.matmul %17, %19, %cst_20 {dimension_numbers = #tpu.dot_dimension_numbers<[1], [0], [0], [1], [0, 0, 1, 1], [], []>} : vector<256x128xbf16>, vector<128x128xbf16>, vector<256x128xf32> -> vector<256x128xf32>
    %21 = arith.addf %14, %20 : vector<256x128xf32>
    %c0_21 = arith.constant 0 : index
    %c1_22 = arith.constant 1 : index
    %c0_23 = arith.constant 0 : index
    %c0_24 = arith.constant 0 : index
    %22 = vector.load %arg1[%c0_21, %c1_22, %c0_23, %c0_24] : memref<1x18x18x128xbf16, #tpu.memory_space<vmem>>, vector<1x16x16x128xbf16>
    %23 = vector.shape_cast %22 : vector<1x16x16x128xbf16> to vector<16x16x128xbf16>
    %24 = vector.shape_cast %23 : vector<16x16x128xbf16> to vector<256x128xbf16>
    %c3 = arith.constant 3 : index
    %c0_25 = arith.constant 0 : index
    %c0_26 = arith.constant 0 : index
    %25 = vector.load %arg2[%c3, %c0_25, %c0_26] : memref<9x128x128xbf16, #tpu.memory_space<vmem>>, vector<1x128x128xbf16>
    %26 = vector.shape_cast %25 : vector<1x128x128xbf16> to vector<128x128xbf16>
    %cst_27 = arith.constant dense<0.000000e+00> : vector<256x128xf32>
    %27 = tpu.matmul %24, %26, %cst_27 {dimension_numbers = #tpu.dot_dimension_numbers<[1], [0], [0], [1], [0, 0, 1, 1], [], []>} : vector<256x128xbf16>, vector<128x128xbf16>, vector<256x128xf32> -> vector<256x128xf32>
    %28 = arith.addf %21, %27 : vector<256x128xf32>
    %c0_28 = arith.constant 0 : index
    %c1_29 = arith.constant 1 : index
    %c1_30 = arith.constant 1 : index
    %c0_31 = arith.constant 0 : index
    %29 = vector.load %arg1[%c0_28, %c1_29, %c1_30, %c0_31] : memref<1x18x18x128xbf16, #tpu.memory_space<vmem>>, vector<1x16x16x128xbf16>
    %30 = vector.shape_cast %29 : vector<1x16x16x128xbf16> to vector<16x16x128xbf16>
    %31 = vector.shape_cast %30 : vector<16x16x128xbf16> to vector<256x128xbf16>
    %c4 = arith.constant 4 : index
    %c0_32 = arith.constant 0 : index
    %c0_33 = arith.constant 0 : index
    %32 = vector.load %arg2[%c4, %c0_32, %c0_33] : memref<9x128x128xbf16, #tpu.memory_space<vmem>>, vector<1x128x128xbf16>
    %33 = vector.shape_cast %32 : vector<1x128x128xbf16> to vector<128x128xbf16>
    %cst_34 = arith.constant dense<0.000000e+00> : vector<256x128xf32>
    %34 = tpu.matmul %31, %33, %cst_34 {dimension_numbers = #tpu.dot_dimension_numbers<[1], [0], [0], [1], [0, 0, 1, 1], [], []>} : vector<256x128xbf16>, vector<128x128xbf16>, vector<256x128xf32> -> vector<256x128xf32>
    %35 = arith.addf %28, %34 : vector<256x128xf32>
    %c0_35 = arith.constant 0 : index
    %c1_36 = arith.constant 1 : index
    %c2_37 = arith.constant 2 : index
    %c0_38 = arith.constant 0 : index
    %36 = vector.load %arg1[%c0_35, %c1_36, %c2_37, %c0_38] : memref<1x18x18x128xbf16, #tpu.memory_space<vmem>>, vector<1x16x16x128xbf16>
    %37 = vector.shape_cast %36 : vector<1x16x16x128xbf16> to vector<16x16x128xbf16>
    %38 = vector.shape_cast %37 : vector<16x16x128xbf16> to vector<256x128xbf16>
    %c5 = arith.constant 5 : index
    %c0_39 = arith.constant 0 : index
    %c0_40 = arith.constant 0 : index
    %39 = vector.load %arg2[%c5, %c0_39, %c0_40] : memref<9x128x128xbf16, #tpu.memory_space<vmem>>, vector<1x128x128xbf16>
    %40 = vector.shape_cast %39 : vector<1x128x128xbf16> to vector<128x128xbf16>
    %cst_41 = arith.constant dense<0.000000e+00> : vector<256x128xf32>
    %41 = tpu.matmul %38, %40, %cst_41 {dimension_numbers = #tpu.dot_dimension_numbers<[1], [0], [0], [1], [0, 0, 1, 1], [], []>} : vector<256x128xbf16>, vector<128x128xbf16>, vector<256x128xf32> -> vector<256x128xf32>
    %42 = arith.addf %35, %41 : vector<256x128xf32>
    %c0_42 = arith.constant 0 : index
    %c2_43 = arith.constant 2 : index
    %c0_44 = arith.constant 0 : index
    %c0_45 = arith.constant 0 : index
    %43 = vector.load %arg1[%c0_42, %c2_43, %c0_44, %c0_45] : memref<1x18x18x128xbf16, #tpu.memory_space<vmem>>, vector<1x16x16x128xbf16>
    %44 = vector.shape_cast %43 : vector<1x16x16x128xbf16> to vector<16x16x128xbf16>
    %45 = vector.shape_cast %44 : vector<16x16x128xbf16> to vector<256x128xbf16>
    %c6 = arith.constant 6 : index
    %c0_46 = arith.constant 0 : index
    %c0_47 = arith.constant 0 : index
    %46 = vector.load %arg2[%c6, %c0_46, %c0_47] : memref<9x128x128xbf16, #tpu.memory_space<vmem>>, vector<1x128x128xbf16>
    %47 = vector.shape_cast %46 : vector<1x128x128xbf16> to vector<128x128xbf16>
    %cst_48 = arith.constant dense<0.000000e+00> : vector<256x128xf32>
    %48 = tpu.matmul %45, %47, %cst_48 {dimension_numbers = #tpu.dot_dimension_numbers<[1], [0], [0], [1], [0, 0, 1, 1], [], []>} : vector<256x128xbf16>, vector<128x128xbf16>, vector<256x128xf32> -> vector<256x128xf32>
    %49 = arith.addf %42, %48 : vector<256x128xf32>
    %c0_49 = arith.constant 0 : index
    %c2_50 = arith.constant 2 : index
    %c1_51 = arith.constant 1 : index
    %c0_52 = arith.constant 0 : index
    %50 = vector.load %arg1[%c0_49, %c2_50, %c1_51, %c0_52] : memref<1x18x18x128xbf16, #tpu.memory_space<vmem>>, vector<1x16x16x128xbf16>
    %51 = vector.shape_cast %50 : vector<1x16x16x128xbf16> to vector<16x16x128xbf16>
    %52 = vector.shape_cast %51 : vector<16x16x128xbf16> to vector<256x128xbf16>
    %c7 = arith.constant 7 : index
    %c0_53 = arith.constant 0 : index
    %c0_54 = arith.constant 0 : index
    %53 = vector.load %arg2[%c7, %c0_53, %c0_54] : memref<9x128x128xbf16, #tpu.memory_space<vmem>>, vector<1x128x128xbf16>
    %54 = vector.shape_cast %53 : vector<1x128x128xbf16> to vector<128x128xbf16>
    %cst_55 = arith.constant dense<0.000000e+00> : vector<256x128xf32>
    %55 = tpu.matmul %52, %54, %cst_55 {dimension_numbers = #tpu.dot_dimension_numbers<[1], [0], [0], [1], [0, 0, 1, 1], [], []>} : vector<256x128xbf16>, vector<128x128xbf16>, vector<256x128xf32> -> vector<256x128xf32>
    %56 = arith.addf %49, %55 : vector<256x128xf32>
    %c0_56 = arith.constant 0 : index
    %c2_57 = arith.constant 2 : index
    %c2_58 = arith.constant 2 : index
    %c0_59 = arith.constant 0 : index
    %57 = vector.load %arg1[%c0_56, %c2_57, %c2_58, %c0_59] : memref<1x18x18x128xbf16, #tpu.memory_space<vmem>>, vector<1x16x16x128xbf16>
    %58 = vector.shape_cast %57 : vector<1x16x16x128xbf16> to vector<16x16x128xbf16>
    %59 = vector.shape_cast %58 : vector<16x16x128xbf16> to vector<256x128xbf16>
    %c8 = arith.constant 8 : index
    %c0_60 = arith.constant 0 : index
    %c0_61 = arith.constant 0 : index
    %60 = vector.load %arg2[%c8, %c0_60, %c0_61] : memref<9x128x128xbf16, #tpu.memory_space<vmem>>, vector<1x128x128xbf16>
    %61 = vector.shape_cast %60 : vector<1x128x128xbf16> to vector<128x128xbf16>
    %cst_62 = arith.constant dense<0.000000e+00> : vector<256x128xf32>
    %62 = tpu.matmul %59, %61, %cst_62 {dimension_numbers = #tpu.dot_dimension_numbers<[1], [0], [0], [1], [0, 0, 1, 1], [], []>} : vector<256x128xbf16>, vector<128x128xbf16>, vector<256x128xf32> -> vector<256x128xf32>
    %63 = arith.addf %56, %62 : vector<256x128xf32>
    %64 = vector.shape_cast %63 : vector<256x128xf32> to vector<16x16x128xf32>
    %c0_63 = arith.constant 0 : index
    %c0_64 = arith.constant 0 : index
    %c0_65 = arith.constant 0 : index
    %c0_66 = arith.constant 0 : index
    %65 = vector.load %arg4[%c0_63, %c0_64, %c0_65, %c0_66] : memref<1x16x16x128xf32, #tpu.memory_space<vmem>>, vector<1x16x16x128xf32>
    %66 = vector.shape_cast %65 : vector<1x16x16x128xf32> to vector<16x16x128xf32>
    %67 = vector.shape_cast %64 : vector<16x16x128xf32> to vector<1x16x16x128xf32>
    tpu.vector_store %arg4[%c0_63, %c0_64, %c0_65, %c0_66], %67 {strides = array<i32>} : memref<1x16x16x128xf32, #tpu.memory_space<vmem>>, vector<1x16x16x128xf32>,
    %cst_67 = arith.constant dense<0.000000e+00> : vector<128xf32>
    %68 = vector.multi_reduction <add>, %63, %cst_67 [0] : vector<256x128xf32> to vector<128xf32>
    %69 = vector.shape_cast %68 : vector<128xf32> to vector<1x128xf32>
    %70 = arith.mulf %63, %63 : vector<256x128xf32>
    %cst_68 = arith.constant dense<0.000000e+00> : vector<128xf32>
    %71 = vector.multi_reduction <add>, %70, %cst_68 [0] : vector<256x128xf32> to vector<128xf32>
    %72 = vector.shape_cast %71 : vector<128xf32> to vector<1x128xf32>
    %73 = tpu.concatenate %69, %72 in 0 : vector<1x128xf32>, vector<1x128xf32> -> vector<2x128xf32>
    %c0_69 = arith.constant 0 : index
    %c0_70 = arith.constant 0 : index
    %c0_71 = arith.constant 0 : index
    %74 = vector.load %arg6[%c0_69, %c0_70, %c0_71] : memref<1x2x128xf32, #tpu.memory_space<vmem>>, vector<1x2x128xf32>
    %75 = vector.shape_cast %74 : vector<1x2x128xf32> to vector<2x128xf32>
    %76 = vector.shape_cast %73 : vector<2x128xf32> to vector<1x2x128xf32>
    tpu.vector_store %arg6[%c0_69, %c0_70, %c0_71], %76 {strides = array<i32>} : memref<1x2x128xf32, #tpu.memory_space<vmem>>, vector<1x2x128xf32>,
    %c0_72 = arith.constant 0 : index
    %c1_73 = arith.constant 1 : index
    %c1_74 = arith.constant 1 : index
    %c0_75 = arith.constant 0 : index
    %77 = vector.load %arg1[%c0_72, %c1_73, %c1_74, %c0_75] : memref<1x18x18x128xbf16, #tpu.memory_space<vmem>>, vector<1x16x16x128xbf16>
    %78 = vector.shape_cast %77 : vector<1x16x16x128xbf16> to vector<16x16x128xbf16>
    %79 = vector.shape_cast %78 : vector<16x16x128xbf16> to vector<256x128xbf16>
    %c0_76 = arith.constant 0 : index
    %c0_77 = arith.constant 0 : index
    %80 = vector.load %arg3[%c0_76, %c0_77] : memref<128x128xbf16, #tpu.memory_space<vmem>>, vector<128x128xbf16>
    %cst_78 = arith.constant dense<0.000000e+00> : vector<256x128xf32>
    %81 = tpu.matmul %79, %80, %cst_78 {dimension_numbers = #tpu.dot_dimension_numbers<[1], [0], [0], [1], [0, 0, 1, 1], [], []>} : vector<256x128xbf16>, vector<128x128xbf16>, vector<256x128xf32> -> vector<256x128xf32>
    %82 = vector.shape_cast %81 : vector<256x128xf32> to vector<16x16x128xf32>
    %c0_79 = arith.constant 0 : index
    %c0_80 = arith.constant 0 : index
    %c0_81 = arith.constant 0 : index
    %c0_82 = arith.constant 0 : index
    %83 = vector.load %arg5[%c0_79, %c0_80, %c0_81, %c0_82] : memref<1x16x16x128xf32, #tpu.memory_space<vmem>>, vector<1x16x16x128xf32>
    %84 = vector.shape_cast %83 : vector<1x16x16x128xf32> to vector<16x16x128xf32>
    %85 = vector.shape_cast %82 : vector<16x16x128xf32> to vector<1x16x16x128xf32>
    tpu.vector_store %arg5[%c0_79, %c0_80, %c0_81, %c0_82], %85 {strides = array<i32>} : memref<1x16x16x128xf32, #tpu.memory_space<vmem>>, vector<1x16x16x128xf32>,
    %cst_83 = arith.constant dense<0.000000e+00> : vector<128xf32>
    %86 = vector.multi_reduction <add>, %81, %cst_83 [0] : vector<256x128xf32> to vector<128xf32>
    %87 = vector.shape_cast %86 : vector<128xf32> to vector<1x128xf32>
    %88 = arith.mulf %81, %81 : vector<256x128xf32>
    %cst_84 = arith.constant dense<0.000000e+00> : vector<128xf32>
    %89 = vector.multi_reduction <add>, %88, %cst_84 [0] : vector<256x128xf32> to vector<128xf32>
    %90 = vector.shape_cast %89 : vector<128xf32> to vector<1x128xf32>
    %91 = tpu.concatenate %87, %90 in 0 : vector<1x128xf32>, vector<1x128xf32> -> vector<2x128xf32>
    %c0_85 = arith.constant 0 : index
    %c0_86 = arith.constant 0 : index
    %c0_87 = arith.constant 0 : index
    %92 = vector.load %arg7[%c0_85, %c0_86, %c0_87] : memref<1x2x128xf32, #tpu.memory_space<vmem>>, vector<1x2x128xf32>
    %93 = vector.shape_cast %92 : vector<1x2x128xf32> to vector<2x128xf32>
    %94 = vector.shape_cast %91 : vector<2x128xf32> to vector<1x2x128xf32>
    tpu.vector_store %arg7[%c0_85, %c0_86, %c0_87], %94 {strides = array<i32>} : memref<1x2x128xf32, #tpu.memory_space<vmem>>, vector<1x2x128xf32>,
    return
  }
  func.func @transform_0(%arg0: i32) -> (i32, i32, i32, i32) {
    %c0_i32 = arith.constant 0 : i32
    %c0_i32_0 = arith.constant 0 : i32
    %c0_i32_1 = arith.constant 0 : i32
    %c0_i32_2 = arith.constant 0 : i32
    return %arg0, %c0_i32, %c0_i32_0, %c0_i32_1 : i32, i32, i32, i32
  }
  func.func @transform_1(%arg0: i32) -> (i32, i32, i32) {
    %c0_i32 = arith.constant 0 : i32
    %c0_i32_0 = arith.constant 0 : i32
    %c0_i32_1 = arith.constant 0 : i32
    %c0_i32_2 = arith.constant 0 : i32
    return %c0_i32, %c0_i32_0, %c0_i32_1 : i32, i32, i32
  }
  func.func @transform_2(%arg0: i32) -> (i32, i32) {
    %c0_i32 = arith.constant 0 : i32
    %c0_i32_0 = arith.constant 0 : i32
    %c0_i32_1 = arith.constant 0 : i32
    return %c0_i32, %c0_i32_0 : i32, i32
  }
  func.func @transform_3(%arg0: i32) -> (i32, i32, i32, i32) {
    %c0_i32 = arith.constant 0 : i32
    %c0_i32_0 = arith.constant 0 : i32
    %c0_i32_1 = arith.constant 0 : i32
    %c0_i32_2 = arith.constant 0 : i32
    return %arg0, %c0_i32, %c0_i32_0, %c0_i32_1 : i32, i32, i32, i32
  }
  func.func @transform_4(%arg0: i32) -> (i32, i32, i32, i32) {
    %c0_i32 = arith.constant 0 : i32
    %c0_i32_0 = arith.constant 0 : i32
    %c0_i32_1 = arith.constant 0 : i32
    %c0_i32_2 = arith.constant 0 : i32
    return %arg0, %c0_i32, %c0_i32_0, %c0_i32_1 : i32, i32, i32, i32
  }
  func.func @transform_5(%arg0: i32) -> (i32, i32, i32) {
    %c0_i32 = arith.constant 0 : i32
    %c0_i32_0 = arith.constant 0 : i32
    %c0_i32_1 = arith.constant 0 : i32
    return %arg0, %c0_i32, %c0_i32_0 : i32, i32, i32
  }
  func.func @transform_6(%arg0: i32) -> (i32, i32, i32) {
    %c0_i32 = arith.constant 0 : i32
    %c0_i32_0 = arith.constant 0 : i32
    %c0_i32_1 = arith.constant 0 : i32
    return %arg0, %c0_i32, %c0_i32_0 : i32, i32, i32
  }
}

module attributes {stable_mosaic.version = 11 : i64} {
  func.func @kernel(%arg0: i32, %arg1: memref<1x16x16x128xf32, #tpu.memory_space<vmem>>, %arg2: memref<2x128xf32, #tpu.memory_space<vmem>>, %arg3: memref<9x128x128xbf16, #tpu.memory_space<vmem>>, %arg4: memref<1x16x16x128xf32, #tpu.memory_space<vmem>>, %arg5: memref<1x2x128xf32, #tpu.memory_space<vmem>>, %arg6: memref<18x18x128xf32, #tpu.memory_space<vmem>>) attributes {dimension_semantics = [#tpu.dimension_semantics<parallel>], iteration_bounds = array<i64: 2>, scalar_prefetch = 0 : i64, scratch_operands = 1 : i64, tpu.core_type = #tpu.core_type<tc>, window_params = [{transform_indices = @transform_0, window_bounds = array<i64: 1, 16, 16, 128>}, {pipeline_mode = #tpu.pipeline_mode<synchronous>, transform_indices = @transform_1, window_bounds = array<i64: 2, 128>}, {pipeline_mode = #tpu.pipeline_mode<synchronous>, transform_indices = @transform_2, window_bounds = array<i64: 9, 128, 128>}, {transform_indices = @transform_3, window_bounds = array<i64: 1, 16, 16, 128>}, {transform_indices = @transform_4, window_bounds = array<i64: 1, 2, 128>}]} {
    %c0 = arith.constant 0 : index
    %c0_0 = arith.constant 0 : index
    %0 = vector.load %arg2[%c0, %c0_0] : memref<2x128xf32, #tpu.memory_space<vmem>>, vector<2x128xf32>
    %1 = vector.extract_strided_slice %0 {offsets = [0, 0], sizes = [1, 128], strides = [1, 1]} : vector<2x128xf32> to vector<1x128xf32>
    %2 = vector.shape_cast %1 : vector<1x128xf32> to vector<1x1x128xf32>
    %3 = vector.extract_strided_slice %0 {offsets = [1, 0], sizes = [1, 128], strides = [1, 1]} : vector<2x128xf32> to vector<1x128xf32>
    %4 = vector.shape_cast %3 : vector<1x128xf32> to vector<1x1x128xf32>
    %c0_1 = arith.constant 0 : index
    %c0_2 = arith.constant 0 : index
    %c0_3 = arith.constant 0 : index
    %c0_4 = arith.constant 0 : index
    %5 = vector.load %arg1[%c0_1, %c0_2, %c0_3, %c0_4] : memref<1x16x16x128xf32, #tpu.memory_space<vmem>>, vector<1x16x16x128xf32>
    %6 = vector.shape_cast %5 : vector<1x16x16x128xf32> to vector<16x16x128xf32>
    %7 = vector.broadcast %2 : vector<1x1x128xf32> to vector<16x16x128xf32>
    %8 = arith.mulf %6, %7 : vector<16x16x128xf32>
    %9 = vector.broadcast %4 : vector<1x1x128xf32> to vector<16x16x128xf32>
    %10 = arith.addf %8, %9 : vector<16x16x128xf32>
    %cst = arith.constant 0.000000e+00 : f32
    %11 = vector.broadcast %cst : f32 to vector<16x16x128xf32>
    %12 = arith.maximumf %10, %11 : vector<16x16x128xf32>
    %cst_5 = arith.constant 0.000000e+00 : f32
    %13 = vector.broadcast %cst_5 : f32 to vector<18x18x128xf32>
    %c0_6 = arith.constant 0 : index
    %c0_7 = arith.constant 0 : index
    %c0_8 = arith.constant 0 : index
    %14 = vector.load %arg6[%c0_6, %c0_7, %c0_8] : memref<18x18x128xf32, #tpu.memory_space<vmem>>, vector<18x18x128xf32>
    tpu.vector_store %arg6[%c0_6, %c0_7, %c0_8], %13 {strides = array<i32>} : memref<18x18x128xf32, #tpu.memory_space<vmem>>, vector<18x18x128xf32>,
    %c1 = arith.constant 1 : index
    %c1_9 = arith.constant 1 : index
    %c0_10 = arith.constant 0 : index
    %15 = vector.load %arg6[%c1, %c1_9, %c0_10] : memref<18x18x128xf32, #tpu.memory_space<vmem>>, vector<16x16x128xf32>
    tpu.vector_store %arg6[%c1, %c1_9, %c0_10], %12 {strides = array<i32>} : memref<18x18x128xf32, #tpu.memory_space<vmem>>, vector<16x16x128xf32>,
    %cst_11 = arith.constant 0.000000e+00 : f32
    %16 = vector.broadcast %cst_11 : f32 to vector<256x128xf32>
    %c0_12 = arith.constant 0 : index
    %c0_13 = arith.constant 0 : index
    %c0_14 = arith.constant 0 : index
    %17 = vector.load %arg6[%c0_12, %c0_13, %c0_14] : memref<18x18x128xf32, #tpu.memory_space<vmem>>, vector<16x16x128xf32>
    %18 = arith.truncf %17 : vector<16x16x128xf32> to vector<16x16x128xbf16>
    %19 = vector.shape_cast %18 : vector<16x16x128xbf16> to vector<256x128xbf16>
    %c0_15 = arith.constant 0 : index
    %c0_16 = arith.constant 0 : index
    %c0_17 = arith.constant 0 : index
    %20 = vector.load %arg3[%c0_15, %c0_16, %c0_17] : memref<9x128x128xbf16, #tpu.memory_space<vmem>>, vector<1x128x128xbf16>
    %21 = vector.shape_cast %20 : vector<1x128x128xbf16> to vector<128x128xbf16>
    %cst_18 = arith.constant dense<0.000000e+00> : vector<256x128xf32>
    %22 = tpu.matmul %19, %21, %cst_18 {dimension_numbers = #tpu.dot_dimension_numbers<[1], [0], [0], [1], [0, 0, 1, 1], [], []>} : vector<256x128xbf16>, vector<128x128xbf16>, vector<256x128xf32> -> vector<256x128xf32>
    %23 = arith.addf %16, %22 : vector<256x128xf32>
    %c0_19 = arith.constant 0 : index
    %c1_20 = arith.constant 1 : index
    %c0_21 = arith.constant 0 : index
    %24 = vector.load %arg6[%c0_19, %c1_20, %c0_21] : memref<18x18x128xf32, #tpu.memory_space<vmem>>, vector<16x16x128xf32>
    %25 = arith.truncf %24 : vector<16x16x128xf32> to vector<16x16x128xbf16>
    %26 = vector.shape_cast %25 : vector<16x16x128xbf16> to vector<256x128xbf16>
    %c1_22 = arith.constant 1 : index
    %c0_23 = arith.constant 0 : index
    %c0_24 = arith.constant 0 : index
    %27 = vector.load %arg3[%c1_22, %c0_23, %c0_24] : memref<9x128x128xbf16, #tpu.memory_space<vmem>>, vector<1x128x128xbf16>
    %28 = vector.shape_cast %27 : vector<1x128x128xbf16> to vector<128x128xbf16>
    %cst_25 = arith.constant dense<0.000000e+00> : vector<256x128xf32>
    %29 = tpu.matmul %26, %28, %cst_25 {dimension_numbers = #tpu.dot_dimension_numbers<[1], [0], [0], [1], [0, 0, 1, 1], [], []>} : vector<256x128xbf16>, vector<128x128xbf16>, vector<256x128xf32> -> vector<256x128xf32>
    %30 = arith.addf %23, %29 : vector<256x128xf32>
    %c0_26 = arith.constant 0 : index
    %c2 = arith.constant 2 : index
    %c0_27 = arith.constant 0 : index
    %31 = vector.load %arg6[%c0_26, %c2, %c0_27] : memref<18x18x128xf32, #tpu.memory_space<vmem>>, vector<16x16x128xf32>
    %32 = arith.truncf %31 : vector<16x16x128xf32> to vector<16x16x128xbf16>
    %33 = vector.shape_cast %32 : vector<16x16x128xbf16> to vector<256x128xbf16>
    %c2_28 = arith.constant 2 : index
    %c0_29 = arith.constant 0 : index
    %c0_30 = arith.constant 0 : index
    %34 = vector.load %arg3[%c2_28, %c0_29, %c0_30] : memref<9x128x128xbf16, #tpu.memory_space<vmem>>, vector<1x128x128xbf16>
    %35 = vector.shape_cast %34 : vector<1x128x128xbf16> to vector<128x128xbf16>
    %cst_31 = arith.constant dense<0.000000e+00> : vector<256x128xf32>
    %36 = tpu.matmul %33, %35, %cst_31 {dimension_numbers = #tpu.dot_dimension_numbers<[1], [0], [0], [1], [0, 0, 1, 1], [], []>} : vector<256x128xbf16>, vector<128x128xbf16>, vector<256x128xf32> -> vector<256x128xf32>
    %37 = arith.addf %30, %36 : vector<256x128xf32>
    %c1_32 = arith.constant 1 : index
    %c0_33 = arith.constant 0 : index
    %c0_34 = arith.constant 0 : index
    %38 = vector.load %arg6[%c1_32, %c0_33, %c0_34] : memref<18x18x128xf32, #tpu.memory_space<vmem>>, vector<16x16x128xf32>
    %39 = arith.truncf %38 : vector<16x16x128xf32> to vector<16x16x128xbf16>
    %40 = vector.shape_cast %39 : vector<16x16x128xbf16> to vector<256x128xbf16>
    %c3 = arith.constant 3 : index
    %c0_35 = arith.constant 0 : index
    %c0_36 = arith.constant 0 : index
    %41 = vector.load %arg3[%c3, %c0_35, %c0_36] : memref<9x128x128xbf16, #tpu.memory_space<vmem>>, vector<1x128x128xbf16>
    %42 = vector.shape_cast %41 : vector<1x128x128xbf16> to vector<128x128xbf16>
    %cst_37 = arith.constant dense<0.000000e+00> : vector<256x128xf32>
    %43 = tpu.matmul %40, %42, %cst_37 {dimension_numbers = #tpu.dot_dimension_numbers<[1], [0], [0], [1], [0, 0, 1, 1], [], []>} : vector<256x128xbf16>, vector<128x128xbf16>, vector<256x128xf32> -> vector<256x128xf32>
    %44 = arith.addf %37, %43 : vector<256x128xf32>
    %c1_38 = arith.constant 1 : index
    %c1_39 = arith.constant 1 : index
    %c0_40 = arith.constant 0 : index
    %45 = vector.load %arg6[%c1_38, %c1_39, %c0_40] : memref<18x18x128xf32, #tpu.memory_space<vmem>>, vector<16x16x128xf32>
    %46 = arith.truncf %45 : vector<16x16x128xf32> to vector<16x16x128xbf16>
    %47 = vector.shape_cast %46 : vector<16x16x128xbf16> to vector<256x128xbf16>
    %c4 = arith.constant 4 : index
    %c0_41 = arith.constant 0 : index
    %c0_42 = arith.constant 0 : index
    %48 = vector.load %arg3[%c4, %c0_41, %c0_42] : memref<9x128x128xbf16, #tpu.memory_space<vmem>>, vector<1x128x128xbf16>
    %49 = vector.shape_cast %48 : vector<1x128x128xbf16> to vector<128x128xbf16>
    %cst_43 = arith.constant dense<0.000000e+00> : vector<256x128xf32>
    %50 = tpu.matmul %47, %49, %cst_43 {dimension_numbers = #tpu.dot_dimension_numbers<[1], [0], [0], [1], [0, 0, 1, 1], [], []>} : vector<256x128xbf16>, vector<128x128xbf16>, vector<256x128xf32> -> vector<256x128xf32>
    %51 = arith.addf %44, %50 : vector<256x128xf32>
    %c1_44 = arith.constant 1 : index
    %c2_45 = arith.constant 2 : index
    %c0_46 = arith.constant 0 : index
    %52 = vector.load %arg6[%c1_44, %c2_45, %c0_46] : memref<18x18x128xf32, #tpu.memory_space<vmem>>, vector<16x16x128xf32>
    %53 = arith.truncf %52 : vector<16x16x128xf32> to vector<16x16x128xbf16>
    %54 = vector.shape_cast %53 : vector<16x16x128xbf16> to vector<256x128xbf16>
    %c5 = arith.constant 5 : index
    %c0_47 = arith.constant 0 : index
    %c0_48 = arith.constant 0 : index
    %55 = vector.load %arg3[%c5, %c0_47, %c0_48] : memref<9x128x128xbf16, #tpu.memory_space<vmem>>, vector<1x128x128xbf16>
    %56 = vector.shape_cast %55 : vector<1x128x128xbf16> to vector<128x128xbf16>
    %cst_49 = arith.constant dense<0.000000e+00> : vector<256x128xf32>
    %57 = tpu.matmul %54, %56, %cst_49 {dimension_numbers = #tpu.dot_dimension_numbers<[1], [0], [0], [1], [0, 0, 1, 1], [], []>} : vector<256x128xbf16>, vector<128x128xbf16>, vector<256x128xf32> -> vector<256x128xf32>
    %58 = arith.addf %51, %57 : vector<256x128xf32>
    %c2_50 = arith.constant 2 : index
    %c0_51 = arith.constant 0 : index
    %c0_52 = arith.constant 0 : index
    %59 = vector.load %arg6[%c2_50, %c0_51, %c0_52] : memref<18x18x128xf32, #tpu.memory_space<vmem>>, vector<16x16x128xf32>
    %60 = arith.truncf %59 : vector<16x16x128xf32> to vector<16x16x128xbf16>
    %61 = vector.shape_cast %60 : vector<16x16x128xbf16> to vector<256x128xbf16>
    %c6 = arith.constant 6 : index
    %c0_53 = arith.constant 0 : index
    %c0_54 = arith.constant 0 : index
    %62 = vector.load %arg3[%c6, %c0_53, %c0_54] : memref<9x128x128xbf16, #tpu.memory_space<vmem>>, vector<1x128x128xbf16>
    %63 = vector.shape_cast %62 : vector<1x128x128xbf16> to vector<128x128xbf16>
    %cst_55 = arith.constant dense<0.000000e+00> : vector<256x128xf32>
    %64 = tpu.matmul %61, %63, %cst_55 {dimension_numbers = #tpu.dot_dimension_numbers<[1], [0], [0], [1], [0, 0, 1, 1], [], []>} : vector<256x128xbf16>, vector<128x128xbf16>, vector<256x128xf32> -> vector<256x128xf32>
    %65 = arith.addf %58, %64 : vector<256x128xf32>
    %c2_56 = arith.constant 2 : index
    %c1_57 = arith.constant 1 : index
    %c0_58 = arith.constant 0 : index
    %66 = vector.load %arg6[%c2_56, %c1_57, %c0_58] : memref<18x18x128xf32, #tpu.memory_space<vmem>>, vector<16x16x128xf32>
    %67 = arith.truncf %66 : vector<16x16x128xf32> to vector<16x16x128xbf16>
    %68 = vector.shape_cast %67 : vector<16x16x128xbf16> to vector<256x128xbf16>
    %c7 = arith.constant 7 : index
    %c0_59 = arith.constant 0 : index
    %c0_60 = arith.constant 0 : index
    %69 = vector.load %arg3[%c7, %c0_59, %c0_60] : memref<9x128x128xbf16, #tpu.memory_space<vmem>>, vector<1x128x128xbf16>
    %70 = vector.shape_cast %69 : vector<1x128x128xbf16> to vector<128x128xbf16>
    %cst_61 = arith.constant dense<0.000000e+00> : vector<256x128xf32>
    %71 = tpu.matmul %68, %70, %cst_61 {dimension_numbers = #tpu.dot_dimension_numbers<[1], [0], [0], [1], [0, 0, 1, 1], [], []>} : vector<256x128xbf16>, vector<128x128xbf16>, vector<256x128xf32> -> vector<256x128xf32>
    %72 = arith.addf %65, %71 : vector<256x128xf32>
    %c2_62 = arith.constant 2 : index
    %c2_63 = arith.constant 2 : index
    %c0_64 = arith.constant 0 : index
    %73 = vector.load %arg6[%c2_62, %c2_63, %c0_64] : memref<18x18x128xf32, #tpu.memory_space<vmem>>, vector<16x16x128xf32>
    %74 = arith.truncf %73 : vector<16x16x128xf32> to vector<16x16x128xbf16>
    %75 = vector.shape_cast %74 : vector<16x16x128xbf16> to vector<256x128xbf16>
    %c8 = arith.constant 8 : index
    %c0_65 = arith.constant 0 : index
    %c0_66 = arith.constant 0 : index
    %76 = vector.load %arg3[%c8, %c0_65, %c0_66] : memref<9x128x128xbf16, #tpu.memory_space<vmem>>, vector<1x128x128xbf16>
    %77 = vector.shape_cast %76 : vector<1x128x128xbf16> to vector<128x128xbf16>
    %cst_67 = arith.constant dense<0.000000e+00> : vector<256x128xf32>
    %78 = tpu.matmul %75, %77, %cst_67 {dimension_numbers = #tpu.dot_dimension_numbers<[1], [0], [0], [1], [0, 0, 1, 1], [], []>} : vector<256x128xbf16>, vector<128x128xbf16>, vector<256x128xf32> -> vector<256x128xf32>
    %79 = arith.addf %72, %78 : vector<256x128xf32>
    %80 = vector.shape_cast %79 : vector<256x128xf32> to vector<16x16x128xf32>
    %c0_68 = arith.constant 0 : index
    %c0_69 = arith.constant 0 : index
    %c0_70 = arith.constant 0 : index
    %c0_71 = arith.constant 0 : index
    %81 = vector.load %arg4[%c0_68, %c0_69, %c0_70, %c0_71] : memref<1x16x16x128xf32, #tpu.memory_space<vmem>>, vector<1x16x16x128xf32>
    %82 = vector.shape_cast %81 : vector<1x16x16x128xf32> to vector<16x16x128xf32>
    %83 = vector.shape_cast %80 : vector<16x16x128xf32> to vector<1x16x16x128xf32>
    tpu.vector_store %arg4[%c0_68, %c0_69, %c0_70, %c0_71], %83 {strides = array<i32>} : memref<1x16x16x128xf32, #tpu.memory_space<vmem>>, vector<1x16x16x128xf32>,
    %cst_72 = arith.constant dense<0.000000e+00> : vector<128xf32>
    %84 = vector.multi_reduction <add>, %79, %cst_72 [0] : vector<256x128xf32> to vector<128xf32>
    %85 = vector.shape_cast %84 : vector<128xf32> to vector<1x128xf32>
    %86 = arith.mulf %79, %79 : vector<256x128xf32>
    %cst_73 = arith.constant dense<0.000000e+00> : vector<128xf32>
    %87 = vector.multi_reduction <add>, %86, %cst_73 [0] : vector<256x128xf32> to vector<128xf32>
    %88 = vector.shape_cast %87 : vector<128xf32> to vector<1x128xf32>
    %89 = tpu.concatenate %85, %88 in 0 : vector<1x128xf32>, vector<1x128xf32> -> vector<2x128xf32>
    %c0_74 = arith.constant 0 : index
    %c0_75 = arith.constant 0 : index
    %c0_76 = arith.constant 0 : index
    %90 = vector.load %arg5[%c0_74, %c0_75, %c0_76] : memref<1x2x128xf32, #tpu.memory_space<vmem>>, vector<1x2x128xf32>
    %91 = vector.shape_cast %90 : vector<1x2x128xf32> to vector<2x128xf32>
    %92 = vector.shape_cast %89 : vector<2x128xf32> to vector<1x2x128xf32>
    tpu.vector_store %arg5[%c0_74, %c0_75, %c0_76], %92 {strides = array<i32>} : memref<1x2x128xf32, #tpu.memory_space<vmem>>, vector<1x2x128xf32>,
    return
  }
  func.func @transform_0(%arg0: i32) -> (i32, i32, i32, i32) {
    %c0_i32 = arith.constant 0 : i32
    %c0_i32_0 = arith.constant 0 : i32
    %c0_i32_1 = arith.constant 0 : i32
    %c0_i32_2 = arith.constant 0 : i32
    return %arg0, %c0_i32, %c0_i32_0, %c0_i32_1 : i32, i32, i32, i32
  }
  func.func @transform_1(%arg0: i32) -> (i32, i32) {
    %c0_i32 = arith.constant 0 : i32
    %c0_i32_0 = arith.constant 0 : i32
    %c0_i32_1 = arith.constant 0 : i32
    return %c0_i32, %c0_i32_0 : i32, i32
  }
  func.func @transform_2(%arg0: i32) -> (i32, i32, i32) {
    %c0_i32 = arith.constant 0 : i32
    %c0_i32_0 = arith.constant 0 : i32
    %c0_i32_1 = arith.constant 0 : i32
    %c0_i32_2 = arith.constant 0 : i32
    return %c0_i32, %c0_i32_0, %c0_i32_1 : i32, i32, i32
  }
  func.func @transform_3(%arg0: i32) -> (i32, i32, i32, i32) {
    %c0_i32 = arith.constant 0 : i32
    %c0_i32_0 = arith.constant 0 : i32
    %c0_i32_1 = arith.constant 0 : i32
    %c0_i32_2 = arith.constant 0 : i32
    return %arg0, %c0_i32, %c0_i32_0, %c0_i32_1 : i32, i32, i32, i32
  }
  func.func @transform_4(%arg0: i32) -> (i32, i32, i32) {
    %c0_i32 = arith.constant 0 : i32
    %c0_i32_0 = arith.constant 0 : i32
    %c0_i32_1 = arith.constant 0 : i32
    return %arg0, %c0_i32, %c0_i32_0 : i32, i32, i32
  }
}

module attributes {stable_mosaic.version = 11 : i64} {
  func.func @kernel(%arg0: i32, %arg1: memref<1x16x16x128xf32, #tpu.memory_space<vmem>>, %arg2: memref<2x128xf32, #tpu.memory_space<vmem>>, %arg3: memref<1x16x16x128xf32, #tpu.memory_space<vmem>>, %arg4: memref<2x128xf32, #tpu.memory_space<vmem>>, %arg5: memref<1x16x16x128xf32, #tpu.memory_space<vmem>>) attributes {dimension_semantics = [#tpu.dimension_semantics<parallel>], iteration_bounds = array<i64: 2>, scalar_prefetch = 0 : i64, scratch_operands = 0 : i64, tpu.core_type = #tpu.core_type<tc>, window_params = [{transform_indices = @transform_0, window_bounds = array<i64: 1, 16, 16, 128>}, {pipeline_mode = #tpu.pipeline_mode<synchronous>, transform_indices = @transform_1, window_bounds = array<i64: 2, 128>}, {transform_indices = @transform_2, window_bounds = array<i64: 1, 16, 16, 128>}, {pipeline_mode = #tpu.pipeline_mode<synchronous>, transform_indices = @transform_3, window_bounds = array<i64: 2, 128>}, {transform_indices = @transform_4, window_bounds = array<i64: 1, 16, 16, 128>}]} {
    %c0 = arith.constant 0 : index
    %c0_0 = arith.constant 0 : index
    %0 = vector.load %arg2[%c0, %c0_0] : memref<2x128xf32, #tpu.memory_space<vmem>>, vector<2x128xf32>
    %c0_1 = arith.constant 0 : index
    %c0_2 = arith.constant 0 : index
    %c0_3 = arith.constant 0 : index
    %c0_4 = arith.constant 0 : index
    %1 = vector.load %arg1[%c0_1, %c0_2, %c0_3, %c0_4] : memref<1x16x16x128xf32, #tpu.memory_space<vmem>>, vector<1x16x16x128xf32>
    %2 = vector.shape_cast %1 : vector<1x16x16x128xf32> to vector<16x16x128xf32>
    %3 = vector.extract_strided_slice %0 {offsets = [0, 0], sizes = [1, 128], strides = [1, 1]} : vector<2x128xf32> to vector<1x128xf32>
    %4 = vector.shape_cast %3 : vector<1x128xf32> to vector<1x1x128xf32>
    %5 = vector.broadcast %4 : vector<1x1x128xf32> to vector<16x16x128xf32>
    %6 = arith.mulf %2, %5 : vector<16x16x128xf32>
    %7 = vector.extract_strided_slice %0 {offsets = [1, 0], sizes = [1, 128], strides = [1, 1]} : vector<2x128xf32> to vector<1x128xf32>
    %8 = vector.shape_cast %7 : vector<1x128xf32> to vector<1x1x128xf32>
    %9 = vector.broadcast %8 : vector<1x1x128xf32> to vector<16x16x128xf32>
    %10 = arith.addf %6, %9 : vector<16x16x128xf32>
    %c0_5 = arith.constant 0 : index
    %c0_6 = arith.constant 0 : index
    %11 = vector.load %arg4[%c0_5, %c0_6] : memref<2x128xf32, #tpu.memory_space<vmem>>, vector<2x128xf32>
    %c0_7 = arith.constant 0 : index
    %c0_8 = arith.constant 0 : index
    %c0_9 = arith.constant 0 : index
    %c0_10 = arith.constant 0 : index
    %12 = vector.load %arg3[%c0_7, %c0_8, %c0_9, %c0_10] : memref<1x16x16x128xf32, #tpu.memory_space<vmem>>, vector<1x16x16x128xf32>
    %13 = vector.shape_cast %12 : vector<1x16x16x128xf32> to vector<16x16x128xf32>
    %14 = vector.extract_strided_slice %11 {offsets = [0, 0], sizes = [1, 128], strides = [1, 1]} : vector<2x128xf32> to vector<1x128xf32>
    %15 = vector.shape_cast %14 : vector<1x128xf32> to vector<1x1x128xf32>
    %16 = vector.broadcast %15 : vector<1x1x128xf32> to vector<16x16x128xf32>
    %17 = arith.mulf %13, %16 : vector<16x16x128xf32>
    %18 = vector.extract_strided_slice %11 {offsets = [1, 0], sizes = [1, 128], strides = [1, 1]} : vector<2x128xf32> to vector<1x128xf32>
    %19 = vector.shape_cast %18 : vector<1x128xf32> to vector<1x1x128xf32>
    %20 = vector.broadcast %19 : vector<1x1x128xf32> to vector<16x16x128xf32>
    %21 = arith.addf %17, %20 : vector<16x16x128xf32>
    %22 = arith.addf %10, %21 : vector<16x16x128xf32>
    %cst = arith.constant 0.000000e+00 : f32
    %23 = vector.broadcast %cst : f32 to vector<16x16x128xf32>
    %24 = arith.maximumf %22, %23 : vector<16x16x128xf32>
    %c0_11 = arith.constant 0 : index
    %c0_12 = arith.constant 0 : index
    %c0_13 = arith.constant 0 : index
    %c0_14 = arith.constant 0 : index
    %25 = vector.load %arg5[%c0_11, %c0_12, %c0_13, %c0_14] : memref<1x16x16x128xf32, #tpu.memory_space<vmem>>, vector<1x16x16x128xf32>
    %26 = vector.shape_cast %25 : vector<1x16x16x128xf32> to vector<16x16x128xf32>
    %27 = vector.shape_cast %24 : vector<16x16x128xf32> to vector<1x16x16x128xf32>
    tpu.vector_store %arg5[%c0_11, %c0_12, %c0_13, %c0_14], %27 {strides = array<i32>} : memref<1x16x16x128xf32, #tpu.memory_space<vmem>>, vector<1x16x16x128xf32>,
    return
  }
  func.func @transform_0(%arg0: i32) -> (i32, i32, i32, i32) {
    %c0_i32 = arith.constant 0 : i32
    %c0_i32_0 = arith.constant 0 : i32
    %c0_i32_1 = arith.constant 0 : i32
    %c0_i32_2 = arith.constant 0 : i32
    return %arg0, %c0_i32, %c0_i32_0, %c0_i32_1 : i32, i32, i32, i32
  }
  func.func @transform_1(%arg0: i32) -> (i32, i32) {
    %c0_i32 = arith.constant 0 : i32
    %c0_i32_0 = arith.constant 0 : i32
    %c0_i32_1 = arith.constant 0 : i32
    return %c0_i32, %c0_i32_0 : i32, i32
  }
  func.func @transform_2(%arg0: i32) -> (i32, i32, i32, i32) {
    %c0_i32 = arith.constant 0 : i32
    %c0_i32_0 = arith.constant 0 : i32
    %c0_i32_1 = arith.constant 0 : i32
    %c0_i32_2 = arith.constant 0 : i32
    return %arg0, %c0_i32, %c0_i32_0, %c0_i32_1 : i32, i32, i32, i32
  }
  func.func @transform_3(%arg0: i32) -> (i32, i32) {
    %c0_i32 = arith.constant 0 : i32
    %c0_i32_0 = arith.constant 0 : i32
    %c0_i32_1 = arith.constant 0 : i32
    return %c0_i32, %c0_i32_0 : i32, i32
  }
  func.func @transform_4(%arg0: i32) -> (i32, i32, i32, i32) {
    %c0_i32 = arith.constant 0 : i32
    %c0_i32_0 = arith.constant 0 : i32
    %c0_i32_1 = arith.constant 0 : i32
    %c0_i32_2 = arith.constant 0 : i32
    return %arg0, %c0_i32, %c0_i32_0, %c0_i32_1 : i32, i32, i32, i32
  }
}

</mosaic_0001>

<llo_original>
// kernel: resnet_forward.5
$region0: #{resnet_forward.5}
  #allocation0 [shape = 'u32[]', space=smem, size = 0x4, offset = 0x4, fixed_abs, tag = 'smem constant byte address 0x4 - core index']
  #allocation1 [shape = 'u32[144,128]{1,0:T(1,128)}', space=vmem, size = 0x12000, scoped, tag = 'internal scratch']
  %s0 = inlined_call_operand.vmem [shape: f32[2,16,16,128], index: 0, kind: input, shape index: {}]
  %s1 = inlined_call_operand.vmem [shape: f32[2,128], index: 1, kind: input, shape index: {}]
  %s2 = inlined_call_operand.vmem [shape: f32[2,16,16,128], index: 2, kind: input, shape index: {}]
  %s3 = inlined_call_operand.vmem [shape: f32[2,128], index: 3, kind: input, shape index: {}]
  %s4 = inlined_call_operand.vmem [shape: f32[2,16,16,128], index: 4, kind: output, shape index: {}]
  %s5 = sld [smem:[#allocation0]]
  $region49: #{resnet_forward.5} parent=0
    _
  %s7 = ssub.s32 1, %s5
  %s8 = scalar_select 0, %s7, %s5
  loop: start=0, step=1, limit=4
  $region2: #{resnet_forward.5} parent=0 // loop_pre_header
    _
  $region3: #{resnet_forward.5} parent=0 // loop_header
    %s10 = sphi 0, %s14
    %p11 = scmp.ge.s32.totalorder %s10, 4
    %s20 = sphi 0, %s22
    %s23 = sphi 0, %s20
    %s24 = sphi 0, %s23
    %s40 = sphi 0, %s24
    %s44 = sphi 0, %s44
    %s46 = sphi 0, %s44
    %s47 = sphi 0, %s46
    %s61 = sphi 0, %s47
    %s67 = sphi 0, %s69
    %s70 = sphi 0, %s67
    %s71 = sphi 0, %s70
    %s87 = sphi 0, %s71
    %s91 = sphi 0, %s91
    %s93 = sphi 0, %s91
    %s94 = sphi 0, %s93
    %s108 = sphi 0, %s94
    %s114 = sphi 0, %s116
    %s117 = sphi 0, %s114
    %s118 = sphi 0, %s117
    %s134 = sphi 0, %s118
  $region4: #{resnet_forward.5} parent=0 // loop_header_branch
    %13 = sbr.rel (%p11) target = $region8
  $region5: #{resnet_forward.5} parent=0 // loop_body
    %s15 = ssub.s32 %s10, 1
    %s16 = ssub.s32 %s10, 2
    %s17 = sadd.s32 %s10, 1
    %s18 = ssub.s32 %s10, %s17
    %p19 = scmp.eq.s32.totalorder %s18, 0
    %s21 = sadd.s32 %s20, 1
    %s22 = scalar_select %p19, %s20, %s21
    %p25 = pneg %p19
    %p26 = scmp.eq.s32.totalorder %s10, 1
    %p27 = por %p25, %p26
    %p28 = scmp.ne.s32.totalorder %s20, %s23
    %p29 = scmp.eq.s32.totalorder %s10, 0
    %p30 = por %p28, %p29
    %p31 = scmp.ne.s32.totalorder %s20, %s23
    %p32 = scmp.eq.s32.totalorder %s15, 1
    %p33 = por %p31, %p32
    %p34 = scmp.ne.s32.totalorder %s23, %s24
    %p35 = scmp.eq.s32.totalorder %s15, 0
    %p36 = por %p34, %p35
    %p37 = scmp.ne.s32.totalorder %s23, %s24
    %p38 = scmp.eq.s32.totalorder %s16, 1
    %p39 = por %p37, %p38
    %p41 = scmp.ne.s32.totalorder %s24, %s40
    %p42 = scmp.eq.s32.totalorder %s16, 0
    %p43 = por %p41, %p42
    %s45 = sadd.s32 %s44, 1
    %p48 = scmp.eq.s32.totalorder %s10, 1
    %p49 = scmp.ne.s32.totalorder %s44, %s46
    %p50 = scmp.eq.s32.totalorder %s10, 0
    %p51 = por %p49, %p50
    %p52 = scmp.ne.s32.totalorder %s44, %s46
    %p53 = scmp.eq.s32.totalorder %s15, 1
    %p54 = por %p52, %p53
    %p55 = scmp.ne.s32.totalorder %s46, %s47
    %p56 = scmp.eq.s32.totalorder %s15, 0
    %p57 = por %p55, %p56
    %p58 = scmp.ne.s32.totalorder %s46, %s47
    %p59 = scmp.eq.s32.totalorder %s16, 1
    %p60 = por %p58, %p59
    %p62 = scmp.ne.s32.totalorder %s47, %s61
    %p63 = scmp.eq.s32.totalorder %s16, 0
    %p64 = por %p62, %p63
    %s65 = ssub.s32 %s10, %s17
    %p66 = scmp.eq.s32.totalorder %s65, 0
    %s68 = sadd.s32 %s67, 1
    %s69 = scalar_select %p66, %s67, %s68
    %p72 = pneg %p66
    %p73 = scmp.eq.s32.totalorder %s10, 1
    %p74 = por %p72, %p73
    %p75 = scmp.ne.s32.totalorder %s67, %s70
    %p76 = scmp.eq.s32.totalorder %s10, 0
    %p77 = por %p75, %p76
    %p78 = scmp.ne.s32.totalorder %s67, %s70
    %p79 = scmp.eq.s32.totalorder %s15, 1
    %p80 = por %p78, %p79
    %p81 = scmp.ne.s32.totalorder %s70, %s71
    %p82 = scmp.eq.s32.totalorder %s15, 0
    %p83 = por %p81, %p82
    %p84 = scmp.ne.s32.totalorder %s70, %s71
    %p85 = scmp.eq.s32.totalorder %s16, 1
    %p86 = por %p84, %p85
    %p88 = scmp.ne.s32.totalorder %s71, %s87
    %p89 = scmp.eq.s32.totalorder %s16, 0
    %p90 = por %p88, %p89
    %s92 = sadd.s32 %s91, 1
    %p95 = scmp.eq.s32.totalorder %s10, 1
    %p96 = scmp.ne.s32.totalorder %s91, %s93
    %p97 = scmp.eq.s32.totalorder %s10, 0
    %p98 = por %p96, %p97
    %p99 = scmp.ne.s32.totalorder %s91, %s93
    %p100 = scmp.eq.s32.totalorder %s15, 1
    %p101 = por %p99, %p100
    %p102 = scmp.ne.s32.totalorder %s93, %s94
    %p103 = scmp.eq.s32.totalorder %s15, 0
    %p104 = por %p102, %p103
    %p105 = scmp.ne.s32.totalorder %s93, %s94
    %p106 = scmp.eq.s32.totalorder %s16, 1
    %p107 = por %p105, %p106
    %p109 = scmp.ne.s32.totalorder %s94, %s108
    %p110 = scmp.eq.s32.totalorder %s16, 0
    %p111 = por %p109, %p110
    %s112 = ssub.s32 %s10, %s17
    %p113 = scmp.eq.s32.totalorder %s112, 0
    %s115 = sadd.s32 %s114, 1
    %s116 = scalar_select %p113, %s114, %s115
    %p119 = pneg %p113
    %p120 = scmp.eq.s32.totalorder %s10, 1
    %p121 = por %p119, %p120
    %p122 = scmp.ne.s32.totalorder %s114, %s117
    %p123 = scmp.eq.s32.totalorder %s10, 0
    %p124 = por %p122, %p123
    %p125 = scmp.ne.s32.totalorder %s114, %s117
    %p126 = scmp.eq.s32.totalorder %s15, 1
    %p127 = por %p125, %p126
    %p128 = scmp.ne.s32.totalorder %s117, %s118
    %p129 = scmp.eq.s32.totalorder %s15, 0
    %p130 = por %p128, %p129
    %p131 = scmp.ne.s32.totalorder %s117, %s118
    %p132 = scmp.eq.s32.totalorder %s16, 1
    %p133 = por %p131, %p132
    %p135 = scmp.ne.s32.totalorder %s118, %s134
    %p136 = scmp.eq.s32.totalorder %s16, 0
    %p137 = por %p135, %p136
    %p138 = scmp.le.s32.totalorder 1, %s10
    %p139 = scmp.lt.s32.totalorder %s10, 3
    %p140 = pnand %p138, %p139
    %p141 = pneg %p140
    // Predicated region
    $region9: #{resnet_forward.5} parent=5 // pred_check
      _
    $region10: #{resnet_forward.5} parent=5 // pred_check_branch
      %143 = sbr.rel (%p140) target = $region12
    $region11: #{resnet_forward.5} parent=5 // pred_region
      %s144 = ssub.s32 %s10, 1
      // Predicated region
      $region13: #{resnet_forward.5} parent=11 // pred_check
        %p145 = pneg %p57
      $region14: #{resnet_forward.5} parent=11 // pred_check_branch
        %147 = sbr.rel (%p145) target = $region16
      $region15: #{resnet_forward.5} parent=11 // pred_region
        _
      $region16: #{resnet_forward.5} parent=11 // pred_fallthru
        _
      // Predicated region
      $region17: #{resnet_forward.5} parent=11 // pred_check
        %p148 = pneg %p104
      $region18: #{resnet_forward.5} parent=11 // pred_check_branch
        %150 = sbr.rel (%p148) target = $region20
      $region19: #{resnet_forward.5} parent=11 // pred_region
        _
      $region20: #{resnet_forward.5} parent=11 // pred_fallthru
        _
    $region12: #{resnet_forward.5} parent=5 // pred_fallthru
      _
    %p151 = scmp.lt.s32.totalorder %s10, 2
    // Predicated region
    $region21: #{resnet_forward.5} parent=5 // pred_check
      %p152 = pneg %p151
    $region22: #{resnet_forward.5} parent=5 // pred_check_branch
      %154 = sbr.rel (%p152) target = $region24
    $region23: #{resnet_forward.5} parent=5 // pred_region
      // Predicated region
      $region25: #{resnet_forward.5} parent=23 // pred_check
        %p155 = pneg %p30
      $region26: #{resnet_forward.5} parent=23 // pred_check_branch
        %157 = sbr.rel (%p155) target = $region28
      $region27: #{resnet_forward.5} parent=23 // pred_region
        %p158 = scmp.lt.s32.totalorder %s10, 1
        %s159 = scalar_select %p158, %s10, 1
        %s160 = smul.addr %s159, 32
        %s161 = smul.addr %s160, 8
        %s162 = scalar_lea.vmem %s0, %s161
      $region28: #{resnet_forward.5} parent=23 // pred_fallthru
        _
      // Predicated region
      $region29: #{resnet_forward.5} parent=23 // pred_check
        %p163 = pneg %p77
      $region30: #{resnet_forward.5} parent=23 // pred_check_branch
        %165 = sbr.rel (%p163) target = $region32
      $region31: #{resnet_forward.5} parent=23 // pred_region
        %p166 = scmp.lt.s32.totalorder %s10, 1
        %s167 = scalar_select %p166, %s10, 1
        %s168 = smul.addr %s167, 32
        %s169 = smul.addr %s168, 8
        %s170 = scalar_lea.vmem %s2, %s169
      $region32: #{resnet_forward.5} parent=23 // pred_fallthru
        _
    $region24: #{resnet_forward.5} parent=5 // pred_fallthru
      _
    %p171 = scmp.le.s32.totalorder 1, %s10
    %p172 = scmp.lt.s32.totalorder %s10, 3
    %p173 = pnand %p171, %p172
    %p174 = pneg %p173
    // Predicated region
    $region33: #{resnet_forward.5} parent=5 // pred_check
      _
    $region34: #{resnet_forward.5} parent=5 // pred_check_branch
      %176 = sbr.rel (%p173) target = $region36
    $region35: #{resnet_forward.5} parent=5 // pred_region
      %s177 = ssub.s32 %s10, 1
      %p178 = scmp.lt.s32.totalorder %s15, 1
      %s179 = scalar_select %p178, %s15, 1
      %s180 = smul.addr %s179, 32
      %s181 = smul.addr %s180, 8
      %s182 = scalar_lea.vmem %s0, %s181
      %p183 = pneg %p36
      %p184 = pneg %p33
      %p185 = pneg %p57
      %p186 = pneg %p54
      %p187 = scmp.lt.s32.totalorder %s15, 1
      %s188 = scalar_select %p187, %s15, 1
      %s189 = smul.addr %s188, 32
      %s190 = smul.addr %s189, 8
      %s191 = scalar_lea.vmem %s2, %s190
      %p192 = pneg %p83
      %p193 = pneg %p80
      %p194 = pneg %p104
      %p195 = pneg %p101
      %p196 = pneg %p130
      %p197 = pneg %p127
      %p198 = scmp.lt.s32.totalorder %s15, 1
      %s199 = scalar_select %p198, %s15, 1
      %s200 = smul.addr %s199, 32
      %s201 = smul.addr %s200, 8
      %s202 = scalar_lea.vmem %s4, %s201
      %p203 = scmp.lt.s32.totalorder %s15, 1
      %s204 = scalar_select %p203, %s15, 1
      %s205 = smul.addr %s204, 32
      %s206 = smul.addr %s205, 8
      %s207 = scalar_lea.vmem %s0, %s206
      %p208 = scmp.lt.s32.totalorder %s15, 1
      %s209 = scalar_select %p208, %s15, 1
      %s210 = smul.addr %s209, 32
      %s211 = smul.addr %s210, 8
      %s212 = scalar_lea.vmem %s2, %s211
      %p213 = scmp.lt.s32.totalorder %s15, 1
      %s214 = scalar_select %p213, %s15, 1
      %s215 = smul.addr %s214, 32
      %s216 = smul.addr %s215, 8
      %s217 = scalar_lea.vmem %s4, %s216
      %v218 = vld [vmem:[%s1] sm:$0x3]
      %v219 = vld [vmem:[%s207] sm:$0xff]
      %v220 = vld [vmem:[%s207 + $0x8] sm:$0xff]
      %v221 = vld [vmem:[%s207 + $0x10] sm:$0xff]
      %v222 = vld [vmem:[%s207 + $0x18] sm:$0xff]
      %v223 = vld [vmem:[%s207 + $0x20] sm:$0xff]
      %v224 = vld [vmem:[%s207 + $0x28] sm:$0xff]
      %v225 = vld [vmem:[%s207 + $0x30] sm:$0xff]
      %v226 = vld [vmem:[%s207 + $0x38] sm:$0xff]
      %v227 = vld [vmem:[%s207 + $0x40] sm:$0xff]
      %v228 = vld [vmem:[%s207 + $0x48] sm:$0xff]
      %v229 = vld [vmem:[%s207 + $0x50] sm:$0xff]
      %v230 = vld [vmem:[%s207 + $0x58] sm:$0xff]
      %v231 = vld [vmem:[%s207 + $0x60] sm:$0xff]
      %v232 = vld [vmem:[%s207 + $0x68] sm:$0xff]
      %v233 = vld [vmem:[%s207 + $0x70] sm:$0xff]
      %v234 = vld [vmem:[%s207 + $0x78] sm:$0xff]
      %v235 = vld [vmem:[%s207 + $0x80] sm:$0xff]
      %v236 = vld [vmem:[%s207 + $0x88] sm:$0xff]
      %v237 = vld [vmem:[%s207 + $0x90] sm:$0xff]
      %v238 = vld [vmem:[%s207 + $0x98] sm:$0xff]
      %v239 = vld [vmem:[%s207 + $0xa0] sm:$0xff]
      %v240 = vld [vmem:[%s207 + $0xa8] sm:$0xff]
      %v241 = vld [vmem:[%s207 + $0xb0] sm:$0xff]
      %v242 = vld [vmem:[%s207 + $0xb8] sm:$0xff]
      %v243 = vld [vmem:[%s207 + $0xc0] sm:$0xff]
      %v244 = vld [vmem:[%s207 + $0xc8] sm:$0xff]
      %v245 = vld [vmem:[%s207 + $0xd0] sm:$0xff]
      %v246 = vld [vmem:[%s207 + $0xd8] sm:$0xff]
      %v247 = vld [vmem:[%s207 + $0xe0] sm:$0xff]
      %v248 = vld [vmem:[%s207 + $0xe8] sm:$0xff]
      %v249 = vld [vmem:[%s207 + $0xf0] sm:$0xff]
      %v250 = vld [vmem:[%s207 + $0xf8] sm:$0xff]
      %v251 = vlaneseq
      %v252 = vshrl.u32 %v251, 7
      %v253 = vsub.s32 0, %v252
      %v254 = vrot.slane %v218, %v253
      %v255 = vmul.f32 %v219, %v254
      %v256 = vmul.f32 %v220, %v254
      %v257 = vmul.f32 %v221, %v254
      %v258 = vmul.f32 %v222, %v254
      %v259 = vmul.f32 %v223, %v254
      %v260 = vmul.f32 %v224, %v254
      %v261 = vmul.f32 %v225, %v254
      %v262 = vmul.f32 %v226, %v254
      %v263 = vmul.f32 %v227, %v254
      %v264 = vmul.f32 %v228, %v254
      %v265 = vmul.f32 %v229, %v254
      %v266 = vmul.f32 %v230, %v254
      %v267 = vmul.f32 %v231, %v254
      %v268 = vmul.f32 %v232, %v254
      %v269 = vmul.f32 %v233, %v254
      %v270 = vmul.f32 %v234, %v254
      %v271 = vmul.f32 %v235, %v254
      %v272 = vmul.f32 %v236, %v254
      %v273 = vmul.f32 %v237, %v254
      %v274 = vmul.f32 %v238, %v254
      %v275 = vmul.f32 %v239, %v254
      %v276 = vmul.f32 %v240, %v254
      %v277 = vmul.f32 %v241, %v254
      %v278 = vmul.f32 %v242, %v254
      %v279 = vmul.f32 %v243, %v254
      %v280 = vmul.f32 %v244, %v254
      %v281 = vmul.f32 %v245, %v254
      %v282 = vmul.f32 %v246, %v254
      %v283 = vmul.f32 %v247, %v254
      %v284 = vmul.f32 %v248, %v254
      %v285 = vmul.f32 %v249, %v254
      %v286 = vmul.f32 %v250, %v254
      %v287 = vlaneseq
      %v288 = vshrl.u32 %v287, 7
      %v289 = vsub.s32 1, %v288
      %v290 = vrot.slane %v218, %v289
      %v291 = vadd.f32 %v255, %v290
      %v292 = vadd.f32 %v256, %v290
      %v293 = vadd.f32 %v257, %v290
      %v294 = vadd.f32 %v258, %v290
      %v295 = vadd.f32 %v259, %v290
      %v296 = vadd.f32 %v260, %v290
      %v297 = vadd.f32 %v261, %v290
      %v298 = vadd.f32 %v262, %v290
      %v299 = vadd.f32 %v263, %v290
      %v300 = vadd.f32 %v264, %v290
      %v301 = vadd.f32 %v265, %v290
      %v302 = vadd.f32 %v266, %v290
      %v303 = vadd.f32 %v267, %v290
      %v304 = vadd.f32 %v268, %v290
      %v305 = vadd.f32 %v269, %v290
      %v306 = vadd.f32 %v270, %v290
      %v307 = vadd.f32 %v271, %v290
      %v308 = vadd.f32 %v272, %v290
      %v309 = vadd.f32 %v273, %v290
      %v310 = vadd.f32 %v274, %v290
      %v311 = vadd.f32 %v275, %v290
      %v312 = vadd.f32 %v276, %v290
      %v313 = vadd.f32 %v277, %v290
      %v314 = vadd.f32 %v278, %v290
      %v315 = vadd.f32 %v279, %v290
      %v316 = vadd.f32 %v280, %v290
      %v317 = vadd.f32 %v281, %v290
      %v318 = vadd.f32 %v282, %v290
      %v319 = vadd.f32 %v283, %v290
      %v320 = vadd.f32 %v284, %v290
      %v321 = vadd.f32 %v285, %v290
      %v322 = vadd.f32 %v286, %v290
      %v323 = vld [vmem:[%s3] sm:$0x3]
      %v324 = vld [vmem:[%s212] sm:$0xff]
      %v325 = vld [vmem:[%s212 + $0x8] sm:$0xff]
      %v326 = vld [vmem:[%s212 + $0x10] sm:$0xff]
      %v327 = vld [vmem:[%s212 + $0x18] sm:$0xff]
      %v328 = vld [vmem:[%s212 + $0x20] sm:$0xff]
      %v329 = vld [vmem:[%s212 + $0x28] sm:$0xff]
      %v330 = vld [vmem:[%s212 + $0x30] sm:$0xff]
      %v331 = vld [vmem:[%s212 + $0x38] sm:$0xff]
      %v332 = vld [vmem:[%s212 + $0x40] sm:$0xff]
      %v333 = vld [vmem:[%s212 + $0x48] sm:$0xff]
      %v334 = vld [vmem:[%s212 + $0x50] sm:$0xff]
      %v335 = vld [vmem:[%s212 + $0x58] sm:$0xff]
      %v336 = vld [vmem:[%s212 + $0x60] sm:$0xff]
      %v337 = vld [vmem:[%s212 + $0x68] sm:$0xff]
      %v338 = vld [vmem:[%s212 + $0x70] sm:$0xff]
      %v339 = vld [vmem:[%s212 + $0x78] sm:$0xff]
      %v340 = vld [vmem:[%s212 + $0x80] sm:$0xff]
      %v341 = vld [vmem:[%s212 + $0x88] sm:$0xff]
      %v342 = vld [vmem:[%s212 + $0x90] sm:$0xff]
      %v343 = vld [vmem:[%s212 + $0x98] sm:$0xff]
      %v344 = vld [vmem:[%s212 + $0xa0] sm:$0xff]
      %v345 = vld [vmem:[%s212 + $0xa8] sm:$0xff]
      %v346 = vld [vmem:[%s212 + $0xb0] sm:$0xff]
      %v347 = vld [vmem:[%s212 + $0xb8] sm:$0xff]
      %v348 = vld [vmem:[%s212 + $0xc0] sm:$0xff]
      %v349 = vld [vmem:[%s212 + $0xc8] sm:$0xff]
      %v350 = vld [vmem:[%s212 + $0xd0] sm:$0xff]
      %v351 = vld [vmem:[%s212 + $0xd8] sm:$0xff]
      %v352 = vld [vmem:[%s212 + $0xe0] sm:$0xff]
      %v353 = vld [vmem:[%s212 + $0xe8] sm:$0xff]
      %v354 = vld [vmem:[%s212 + $0xf0] sm:$0xff]
      %v355 = vld [vmem:[%s212 + $0xf8] sm:$0xff]
      %v356 = vlaneseq
      %v357 = vshrl.u32 %v356, 7
      %v358 = vsub.s32 0, %v357
      %v359 = vrot.slane %v323, %v358
      %v360 = vmul.f32 %v324, %v359
      %v361 = vmul.f32 %v325, %v359
      %v362 = vmul.f32 %v326, %v359
      %v363 = vmul.f32 %v327, %v359
      %v364 = vmul.f32 %v328, %v359
      %v365 = vmul.f32 %v329, %v359
      %v366 = vmul.f32 %v330, %v359
      %v367 = vmul.f32 %v331, %v359
      %v368 = vmul.f32 %v332, %v359
      %v369 = vmul.f32 %v333, %v359
      %v370 = vmul.f32 %v334, %v359
      %v371 = vmul.f32 %v335, %v359
      %v372 = vmul.f32 %v336, %v359
      %v373 = vmul.f32 %v337, %v359
      %v374 = vmul.f32 %v338, %v359
      %v375 = vmul.f32 %v339, %v359
      %v376 = vmul.f32 %v340, %v359
      %v377 = vmul.f32 %v341, %v359
      %v378 = vmul.f32 %v342, %v359
      %v379 = vmul.f32 %v343, %v359
      %v380 = vmul.f32 %v344, %v359
      %v381 = vmul.f32 %v345, %v359
      %v382 = vmul.f32 %v346, %v359
      %v383 = vmul.f32 %v347, %v359
      %v384 = vmul.f32 %v348, %v359
      %v385 = vmul.f32 %v349, %v359
      %v386 = vmul.f32 %v350, %v359
      %v387 = vmul.f32 %v351, %v359
      %v388 = vmul.f32 %v352, %v359
      %v389 = vmul.f32 %v353, %v359
      %v390 = vmul.f32 %v354, %v359
      %v391 = vmul.f32 %v355, %v359
      %v392 = vlaneseq
      %v393 = vshrl.u32 %v392, 7
      %v394 = vsub.s32 1, %v393
      %v395 = vrot.slane %v323, %v394
      %v396 = vadd.f32 %v360, %v395
      %v397 = vadd.f32 %v361, %v395
      %v398 = vadd.f32 %v362, %v395
      %v399 = vadd.f32 %v363, %v395
      %v400 = vadd.f32 %v364, %v395
      %v401 = vadd.f32 %v365, %v395
      %v402 = vadd.f32 %v366, %v395
      %v403 = vadd.f32 %v367, %v395
      %v404 = vadd.f32 %v368, %v395
      %v405 = vadd.f32 %v369, %v395
      %v406 = vadd.f32 %v370, %v395
      %v407 = vadd.f32 %v371, %v395
      %v408 = vadd.f32 %v372, %v395
      %v409 = vadd.f32 %v373, %v395
      %v410 = vadd.f32 %v374, %v395
      %v411 = vadd.f32 %v375, %v395
      %v412 = vadd.f32 %v376, %v395
      %v413 = vadd.f32 %v377, %v395
      %v414 = vadd.f32 %v378, %v395
      %v415 = vadd.f32 %v379, %v395
      %v416 = vadd.f32 %v380, %v395
      %v417 = vadd.f32 %v381, %v395
      %v418 = vadd.f32 %v382, %v395
      %v419 = vadd.f32 %v383, %v395
      %v420 = vadd.f32 %v384, %v395
      %v421 = vadd.f32 %v385, %v395
      %v422 = vadd.f32 %v386, %v395
      %v423 = vadd.f32 %v387, %v395
      %v424 = vadd.f32 %v388, %v395
      %v425 = vadd.f32 %v389, %v395
      %v426 = vadd.f32 %v390, %v395
      %v427 = vadd.f32 %v391, %v395
      %v428 = vadd.f32 %v291, %v396
      %v429 = vadd.f32 %v292, %v397
      %v430 = vadd.f32 %v293, %v398
      %v431 = vadd.f32 %v294, %v399
      %v432 = vadd.f32 %v295, %v400
      %v433 = vadd.f32 %v296, %v401
      %v434 = vadd.f32 %v297, %v402
      %v435 = vadd.f32 %v298, %v403
      %v436 = vadd.f32 %v299, %v404
      %v437 = vadd.f32 %v300, %v405
      %v438 = vadd.f32 %v301, %v406
      %v439 = vadd.f32 %v302, %v407
      %v440 = vadd.f32 %v303, %v408
      %v441 = vadd.f32 %v304, %v409
      %v442 = vadd.f32 %v305, %v410
      %v443 = vadd.f32 %v306, %v411
      %v444 = vadd.f32 %v307, %v412
      %v445 = vadd.f32 %v308, %v413
      %v446 = vadd.f32 %v309, %v414
      %v447 = vadd.f32 %v310, %v415
      %v448 = vadd.f32 %v311, %v416
      %v449 = vadd.f32 %v312, %v417
      %v450 = vadd.f32 %v313, %v418
      %v451 = vadd.f32 %v314, %v419
      %v452 = vadd.f32 %v315, %v420
      %v453 = vadd.f32 %v316, %v421
      %v454 = vadd.f32 %v317, %v422
      %v455 = vadd.f32 %v318, %v423
      %v456 = vadd.f32 %v319, %v424
      %v457 = vadd.f32 %v320, %v425
      %v458 = vadd.f32 %v321, %v426
      %v459 = vadd.f32 %v322, %v427
      %v460 = vmax.f32 %v428, 0.0
      %v461 = vmax.f32 %v429, 0.0
      %v462 = vmax.f32 %v430, 0.0
      %v463 = vmax.f32 %v431, 0.0
      %v464 = vmax.f32 %v432, 0.0
      %v465 = vmax.f32 %v433, 0.0
      %v466 = vmax.f32 %v434, 0.0
      %v467 = vmax.f32 %v435, 0.0
      %v468 = vmax.f32 %v436, 0.0
      %v469 = vmax.f32 %v437, 0.0
      %v470 = vmax.f32 %v438, 0.0
      %v471 = vmax.f32 %v439, 0.0
      %v472 = vmax.f32 %v440, 0.0
      %v473 = vmax.f32 %v441, 0.0
      %v474 = vmax.f32 %v442, 0.0
      %v475 = vmax.f32 %v443, 0.0
      %v476 = vmax.f32 %v444, 0.0
      %v477 = vmax.f32 %v445, 0.0
      %v478 = vmax.f32 %v446, 0.0
      %v479 = vmax.f32 %v447, 0.0
      %v480 = vmax.f32 %v448, 0.0
      %v481 = vmax.f32 %v449, 0.0
      %v482 = vmax.f32 %v450, 0.0
      %v483 = vmax.f32 %v451, 0.0
      %v484 = vmax.f32 %v452, 0.0
      %v485 = vmax.f32 %v453, 0.0
      %v486 = vmax.f32 %v454, 0.0
      %v487 = vmax.f32 %v455, 0.0
      %v488 = vmax.f32 %v456, 0.0
      %v489 = vmax.f32 %v457, 0.0
      %v490 = vmax.f32 %v458, 0.0
      %v491 = vmax.f32 %v459, 0.0
      %492 = vst [vmem:[%s217] sm:$0xff] %v460
      %493 = vst [vmem:[%s217 + $0x8] sm:$0xff] %v461
      %494 = vst [vmem:[%s217 + $0x10] sm:$0xff] %v462
      %495 = vst [vmem:[%s217 + $0x18] sm:$0xff] %v463
      %496 = vst [vmem:[%s217 + $0x20] sm:$0xff] %v464
      %497 = vst [vmem:[%s217 + $0x28] sm:$0xff] %v465
      %498 = vst [vmem:[%s217 + $0x30] sm:$0xff] %v466
      %499 = vst [vmem:[%s217 + $0x38] sm:$0xff] %v467
      %500 = vst [vmem:[%s217 + $0x40] sm:$0xff] %v468
      %501 = vst [vmem:[%s217 + $0x48] sm:$0xff] %v469
      %502 = vst [vmem:[%s217 + $0x50] sm:$0xff] %v470
      %503 = vst [vmem:[%s217 + $0x58] sm:$0xff] %v471
      %504 = vst [vmem:[%s217 + $0x60] sm:$0xff] %v472
      %505 = vst [vmem:[%s217 + $0x68] sm:$0xff] %v473
      %506 = vst [vmem:[%s217 + $0x70] sm:$0xff] %v474
      %507 = vst [vmem:[%s217 + $0x78] sm:$0xff] %v475
      %508 = vst [vmem:[%s217 + $0x80] sm:$0xff] %v476
      %509 = vst [vmem:[%s217 + $0x88] sm:$0xff] %v477
      %510 = vst [vmem:[%s217 + $0x90] sm:$0xff] %v478
      %511 = vst [vmem:[%s217 + $0x98] sm:$0xff] %v479
      %512 = vst [vmem:[%s217 + $0xa0] sm:$0xff] %v480
      %513 = vst [vmem:[%s217 + $0xa8] sm:$0xff] %v481
      %514 = vst [vmem:[%s217 + $0xb0] sm:$0xff] %v482
      %515 = vst [vmem:[%s217 + $0xb8] sm:$0xff] %v483
      %516 = vst [vmem:[%s217 + $0xc0] sm:$0xff] %v484
      %517 = vst [vmem:[%s217 + $0xc8] sm:$0xff] %v485
      %518 = vst [vmem:[%s217 + $0xd0] sm:$0xff] %v486
      %519 = vst [vmem:[%s217 + $0xd8] sm:$0xff] %v487
      %520 = vst [vmem:[%s217 + $0xe0] sm:$0xff] %v488
      %521 = vst [vmem:[%s217 + $0xe8] sm:$0xff] %v489
      %522 = vst [vmem:[%s217 + $0xf0] sm:$0xff] %v490
      %523 = vst [vmem:[%s217 + $0xf8] sm:$0xff] %v491
      %p524 = scmp.lt.s32.totalorder %s15, 1
      %s525 = scalar_select %p524, %s15, 1
      %s526 = smul.addr %s525, 32
      %s527 = smul.addr %s526, 8
      %s528 = scalar_lea.vmem %s4, %s527
      // Predicated region
      $region37: #{resnet_forward.5} parent=35 // pred_check
        %p529 = pneg %p127
      $region38: #{resnet_forward.5} parent=35 // pred_check_branch
        %531 = sbr.rel (%p529) target = $region40
      $region39: #{resnet_forward.5} parent=35 // pred_region
        _
      $region40: #{resnet_forward.5} parent=35 // pred_fallthru
        _
    $region36: #{resnet_forward.5} parent=5 // pred_fallthru
      _
    %p532 = scmp.le.s32.totalorder 2, %s10
    // Predicated region
    $region41: #{resnet_forward.5} parent=5 // pred_check
      %p533 = pneg %p532
    $region42: #{resnet_forward.5} parent=5 // pred_check_branch
      %535 = sbr.rel (%p533) target = $region44
    $region43: #{resnet_forward.5} parent=5 // pred_region
      %s536 = ssub.s32 %s10, 2
      // Predicated region
      $region45: #{resnet_forward.5} parent=43 // pred_check
        %p537 = pneg %p133
      $region46: #{resnet_forward.5} parent=43 // pred_check_branch
        %539 = sbr.rel (%p537) target = $region48
      $region47: #{resnet_forward.5} parent=43 // pred_region
        %p540 = scmp.lt.s32.totalorder %s16, 1
        %s541 = scalar_select %p540, %s16, 1
        %s542 = smul.addr %s541, 32
        %s543 = smul.addr %s542, 8
        %s544 = scalar_lea.vmem %s4, %s543
      $region48: #{resnet_forward.5} parent=43 // pred_fallthru
        _
    $region44: #{resnet_forward.5} parent=5 // pred_fallthru
      _
  $region6: #{resnet_forward.5} parent=0 // loop_footer
    %s14 = sadd.s32 1, %s10
  $region7: #{resnet_forward.5} parent=0 // loop_footer_branch
    %9 = sbr.rel target = $region3
  $region8: #{resnet_forward.5} parent=0 // loop_exit
    _

// kernel: resnet_forward.4
$region0: #{resnet_forward.4}
  #allocation0 [shape = 'u32[]', space=smem, size = 0x4, offset = 0x4, fixed_abs, tag = 'smem constant byte address 0x4 - core index']
  #allocation1 [shape = 'u32[144,128]{1,0:T(1,128)}', space=vmem, size = 0x12000, scoped, tag = 'internal scratch']
  #allocation2 [shape = 'f32[18,18,128]{2,1,0:T(8,128)}', space=vmem, size = 0x36000, scoped, tag = 'scratch operand']
  %s0 = inlined_call_operand.vmem [shape: f32[2,16,16,128], index: 0, kind: input, shape index: {}]
  %s1 = inlined_call_operand.vmem [shape: f32[2,128], index: 1, kind: input, shape index: {}]
  %s2 = inlined_call_operand.vmem [shape: bf16[9,128,128], index: 2, kind: input, shape index: {}]
  %s3 = inlined_call_operand.vmem [shape: f32[2,16,16,128], index: 3, kind: output, shape index: {0}]
  %s4 = inlined_call_operand.vmem [shape: f32[2,2,128], index: 4, kind: output, shape index: {1}]
  %5 = xla_tuple %s3, %s4
  %s6 = sld [smem:[#allocation0]]
  $region53: #{resnet_forward.4} parent=0
    _
  %s8 = ssub.s32 1, %s6
  %s9 = scalar_select 0, %s8, %s6
  loop: start=0, step=1, limit=4
  $region2: #{resnet_forward.4} parent=0 // loop_pre_header
    _
  $region3: #{resnet_forward.4} parent=0 // loop_header
    %s11 = sphi 0, %s15
    %p12 = scmp.ge.s32.totalorder %s11, 4
    %s21 = sphi 0, %s23
    %s24 = sphi 0, %s21
    %s25 = sphi 0, %s24
    %s41 = sphi 0, %s25
    %s45 = sphi 0, %s45
    %s47 = sphi 0, %s45
    %s48 = sphi 0, %s47
    %s62 = sphi 0, %s48
    %s66 = sphi 0, %s66
    %s68 = sphi 0, %s66
    %s69 = sphi 0, %s68
    %s83 = sphi 0, %s69
    %s89 = sphi 0, %s91
    %s92 = sphi 0, %s89
    %s93 = sphi 0, %s92
    %s109 = sphi 0, %s93
    %s115 = sphi 0, %s117
    %s118 = sphi 0, %s115
    %s119 = sphi 0, %s118
    %s135 = sphi 0, %s119
  $region4: #{resnet_forward.4} parent=0 // loop_header_branch
    %14 = sbr.rel (%p12) target = $region8
  $region5: #{resnet_forward.4} parent=0 // loop_body
    %s16 = ssub.s32 %s11, 1
    %s17 = ssub.s32 %s11, 2
    %s18 = sadd.s32 %s11, 1
    %s19 = ssub.s32 %s11, %s18
    %p20 = scmp.eq.s32.totalorder %s19, 0
    %s22 = sadd.s32 %s21, 1
    %s23 = scalar_select %p20, %s21, %s22
    %p26 = pneg %p20
    %p27 = scmp.eq.s32.totalorder %s11, 1
    %p28 = por %p26, %p27
    %p29 = scmp.ne.s32.totalorder %s21, %s24
    %p30 = scmp.eq.s32.totalorder %s11, 0
    %p31 = por %p29, %p30
    %p32 = scmp.ne.s32.totalorder %s21, %s24
    %p33 = scmp.eq.s32.totalorder %s16, 1
    %p34 = por %p32, %p33
    %p35 = scmp.ne.s32.totalorder %s24, %s25
    %p36 = scmp.eq.s32.totalorder %s16, 0
    %p37 = por %p35, %p36
    %p38 = scmp.ne.s32.totalorder %s24, %s25
    %p39 = scmp.eq.s32.totalorder %s17, 1
    %p40 = por %p38, %p39
    %p42 = scmp.ne.s32.totalorder %s25, %s41
    %p43 = scmp.eq.s32.totalorder %s17, 0
    %p44 = por %p42, %p43
    %s46 = sadd.s32 %s45, 1
    %p49 = scmp.eq.s32.totalorder %s11, 1
    %p50 = scmp.ne.s32.totalorder %s45, %s47
    %p51 = scmp.eq.s32.totalorder %s11, 0
    %p52 = por %p50, %p51
    %p53 = scmp.ne.s32.totalorder %s45, %s47
    %p54 = scmp.eq.s32.totalorder %s16, 1
    %p55 = por %p53, %p54
    %p56 = scmp.ne.s32.totalorder %s47, %s48
    %p57 = scmp.eq.s32.totalorder %s16, 0
    %p58 = por %p56, %p57
    %p59 = scmp.ne.s32.totalorder %s47, %s48
    %p60 = scmp.eq.s32.totalorder %s17, 1
    %p61 = por %p59, %p60
    %p63 = scmp.ne.s32.totalorder %s48, %s62
    %p64 = scmp.eq.s32.totalorder %s17, 0
    %p65 = por %p63, %p64
    %s67 = sadd.s32 %s66, 1
    %p70 = scmp.eq.s32.totalorder %s11, 1
    %p71 = scmp.ne.s32.totalorder %s66, %s68
    %p72 = scmp.eq.s32.totalorder %s11, 0
    %p73 = por %p71, %p72
    %p74 = scmp.ne.s32.totalorder %s66, %s68
    %p75 = scmp.eq.s32.totalorder %s16, 1
    %p76 = por %p74, %p75
    %p77 = scmp.ne.s32.totalorder %s68, %s69
    %p78 = scmp.eq.s32.totalorder %s16, 0
    %p79 = por %p77, %p78
    %p80 = scmp.ne.s32.totalorder %s68, %s69
    %p81 = scmp.eq.s32.totalorder %s17, 1
    %p82 = por %p80, %p81
    %p84 = scmp.ne.s32.totalorder %s69, %s83
    %p85 = scmp.eq.s32.totalorder %s17, 0
    %p86 = por %p84, %p85
    %s87 = ssub.s32 %s11, %s18
    %p88 = scmp.eq.s32.totalorder %s87, 0
    %s90 = sadd.s32 %s89, 1
    %s91 = scalar_select %p88, %s89, %s90
    %p94 = pneg %p88
    %p95 = scmp.eq.s32.totalorder %s11, 1
    %p96 = por %p94, %p95
    %p97 = scmp.ne.s32.totalorder %s89, %s92
    %p98 = scmp.eq.s32.totalorder %s11, 0
    %p99 = por %p97, %p98
    %p100 = scmp.ne.s32.totalorder %s89, %s92
    %p101 = scmp.eq.s32.totalorder %s16, 1
    %p102 = por %p100, %p101
    %p103 = scmp.ne.s32.totalorder %s92, %s93
    %p104 = scmp.eq.s32.totalorder %s16, 0
    %p105 = por %p103, %p104
    %p106 = scmp.ne.s32.totalorder %s92, %s93
    %p107 = scmp.eq.s32.totalorder %s17, 1
    %p108 = por %p106, %p107
    %p110 = scmp.ne.s32.totalorder %s93, %s109
    %p111 = scmp.eq.s32.totalorder %s17, 0
    %p112 = por %p110, %p111
    %s113 = ssub.s32 %s11, %s18
    %p114 = scmp.eq.s32.totalorder %s113, 0
    %s116 = sadd.s32 %s115, 1
    %s117 = scalar_select %p114, %s115, %s116
    %p120 = pneg %p114
    %p121 = scmp.eq.s32.totalorder %s11, 1
    %p122 = por %p120, %p121
    %p123 = scmp.ne.s32.totalorder %s115, %s118
    %p124 = scmp.eq.s32.totalorder %s11, 0
    %p125 = por %p123, %p124
    %p126 = scmp.ne.s32.totalorder %s115, %s118
    %p127 = scmp.eq.s32.totalorder %s16, 1
    %p128 = por %p126, %p127
    %p129 = scmp.ne.s32.totalorder %s118, %s119
    %p130 = scmp.eq.s32.totalorder %s16, 0
    %p131 = por %p129, %p130
    %p132 = scmp.ne.s32.totalorder %s118, %s119
    %p133 = scmp.eq.s32.totalorder %s17, 1
    %p134 = por %p132, %p133
    %p136 = scmp.ne.s32.totalorder %s119, %s135
    %p137 = scmp.eq.s32.totalorder %s17, 0
    %p138 = por %p136, %p137
    %p139 = scmp.le.s32.totalorder 1, %s11
    %p140 = scmp.lt.s32.totalorder %s11, 3
    %p141 = pnand %p139, %p140
    %p142 = pneg %p141
    // Predicated region
    $region9: #{resnet_forward.4} parent=5 // pred_check
      _
    $region10: #{resnet_forward.4} parent=5 // pred_check_branch
      %144 = sbr.rel (%p141) target = $region12
    $region11: #{resnet_forward.4} parent=5 // pred_region
      %s145 = ssub.s32 %s11, 1
      // Predicated region
      $region13: #{resnet_forward.4} parent=11 // pred_check
        %p146 = pneg %p58
      $region14: #{resnet_forward.4} parent=11 // pred_check_branch
        %148 = sbr.rel (%p146) target = $region16
      $region15: #{resnet_forward.4} parent=11 // pred_region
        _
      $region16: #{resnet_forward.4} parent=11 // pred_fallthru
        _
      // Predicated region
      $region17: #{resnet_forward.4} parent=11 // pred_check
        %p149 = pneg %p79
      $region18: #{resnet_forward.4} parent=11 // pred_check_branch
        %151 = sbr.rel (%p149) target = $region20
      $region19: #{resnet_forward.4} parent=11 // pred_region
        _
      $region20: #{resnet_forward.4} parent=11 // pred_fallthru
        _
    $region12: #{resnet_forward.4} parent=5 // pred_fallthru
      _
    %p152 = scmp.lt.s32.totalorder %s11, 2
    // Predicated region
    $region21: #{resnet_forward.4} parent=5 // pred_check
      %p153 = pneg %p152
    $region22: #{resnet_forward.4} parent=5 // pred_check_branch
      %155 = sbr.rel (%p153) target = $region24
    $region23: #{resnet_forward.4} parent=5 // pred_region
      // Predicated region
      $region25: #{resnet_forward.4} parent=23 // pred_check
        %p156 = pneg %p31
      $region26: #{resnet_forward.4} parent=23 // pred_check_branch
        %158 = sbr.rel (%p156) target = $region28
      $region27: #{resnet_forward.4} parent=23 // pred_region
        %p159 = scmp.lt.s32.totalorder %s11, 1
        %s160 = scalar_select %p159, %s11, 1
        %s161 = smul.addr %s160, 32
        %s162 = smul.addr %s161, 8
        %s163 = scalar_lea.vmem %s0, %s162
      $region28: #{resnet_forward.4} parent=23 // pred_fallthru
        _
    $region24: #{resnet_forward.4} parent=5 // pred_fallthru
      _
    %p164 = scmp.le.s32.totalorder 1, %s11
    %p165 = scmp.lt.s32.totalorder %s11, 3
    %p166 = pnand %p164, %p165
    %p167 = pneg %p166
    // Predicated region
    $region29: #{resnet_forward.4} parent=5 // pred_check
      _
    $region30: #{resnet_forward.4} parent=5 // pred_check_branch
      %169 = sbr.rel (%p166) target = $region32
    $region31: #{resnet_forward.4} parent=5 // pred_region
      %s170 = ssub.s32 %s11, 1
      %p171 = scmp.lt.s32.totalorder %s16, 1
      %s172 = scalar_select %p171, %s16, 1
      %s173 = smul.addr %s172, 32
      %s174 = smul.addr %s173, 8
      %s175 = scalar_lea.vmem %s0, %s174
      %p176 = pneg %p37
      %p177 = pneg %p34
      %p178 = pneg %p58
      %p179 = pneg %p55
      %p180 = pneg %p79
      %p181 = pneg %p76
      %p182 = pneg %p105
      %p183 = pneg %p102
      %p184 = scmp.lt.s32.totalorder %s16, 1
      %s185 = scalar_select %p184, %s16, 1
      %s186 = smul.addr %s185, 32
      %s187 = smul.addr %s186, 8
      %s188 = scalar_lea.vmem %s3, %s187
      %p189 = pneg %p131
      %p190 = pneg %p128
      %p191 = scmp.lt.s32.totalorder %s16, 1
      %s192 = scalar_select %p191, %s16, 1
      %s193 = smul.addr %s192, 2
      %s194 = scalar_lea.vmem %s4, %s193
      %p195 = scmp.lt.s32.totalorder %s16, 1
      %s196 = scalar_select %p195, %s16, 1
      %s197 = smul.addr %s196, 32
      %s198 = smul.addr %s197, 8
      %s199 = scalar_lea.vmem %s0, %s198
      %p200 = scmp.lt.s32.totalorder %s16, 1
      %s201 = scalar_select %p200, %s16, 1
      %s202 = smul.addr %s201, 32
      %s203 = smul.addr %s202, 8
      %s204 = scalar_lea.vmem %s3, %s203
      %p205 = scmp.lt.s32.totalorder %s16, 1
      %s206 = scalar_select %p205, %s16, 1
      %s207 = smul.addr %s206, 2
      %s208 = scalar_lea.vmem %s4, %s207
      %v210 = vld [vmem:[%s1] sm:$0x3]
      %v211 = vld [vmem:[%s199] sm:$0xff]
      %v212 = vld [vmem:[%s199 + $0x8] sm:$0xff]
      %v213 = vld [vmem:[%s199 + $0x10] sm:$0xff]
      %v214 = vld [vmem:[%s199 + $0x18] sm:$0xff]
      %v215 = vld [vmem:[%s199 + $0x20] sm:$0xff]
      %v216 = vld [vmem:[%s199 + $0x28] sm:$0xff]
      %v217 = vld [vmem:[%s199 + $0x30] sm:$0xff]
      %v218 = vld [vmem:[%s199 + $0x38] sm:$0xff]
      %v219 = vld [vmem:[%s199 + $0x40] sm:$0xff]
      %v220 = vld [vmem:[%s199 + $0x48] sm:$0xff]
      %v221 = vld [vmem:[%s199 + $0x50] sm:$0xff]
      %v222 = vld [vmem:[%s199 + $0x58] sm:$0xff]
      %v223 = vld [vmem:[%s199 + $0x60] sm:$0xff]
      %v224 = vld [vmem:[%s199 + $0x68] sm:$0xff]
      %v225 = vld [vmem:[%s199 + $0x70] sm:$0xff]
      %v226 = vld [vmem:[%s199 + $0x78] sm:$0xff]
      %v227 = vld [vmem:[%s199 + $0x80] sm:$0xff]
      %v228 = vld [vmem:[%s199 + $0x88] sm:$0xff]
      %v229 = vld [vmem:[%s199 + $0x90] sm:$0xff]
      %v230 = vld [vmem:[%s199 + $0x98] sm:$0xff]
      %v231 = vld [vmem:[%s199 + $0xa0] sm:$0xff]
      %v232 = vld [vmem:[%s199 + $0xa8] sm:$0xff]
      %v233 = vld [vmem:[%s199 + $0xb0] sm:$0xff]
      %v234 = vld [vmem:[%s199 + $0xb8] sm:$0xff]
      %v235 = vld [vmem:[%s199 + $0xc0] sm:$0xff]
      %v236 = vld [vmem:[%s199 + $0xc8] sm:$0xff]
      %v237 = vld [vmem:[%s199 + $0xd0] sm:$0xff]
      %v238 = vld [vmem:[%s199 + $0xd8] sm:$0xff]
      %v239 = vld [vmem:[%s199 + $0xe0] sm:$0xff]
      %v240 = vld [vmem:[%s199 + $0xe8] sm:$0xff]
      %v241 = vld [vmem:[%s199 + $0xf0] sm:$0xff]
      %v242 = vld [vmem:[%s199 + $0xf8] sm:$0xff]
      %v243 = vlaneseq
      %v244 = vshrl.u32 %v243, 7
      %v245 = vsub.s32 0, %v244
      %v246 = vrot.slane %v210, %v245
      %v247 = vmul.f32 %v211, %v246
      %v248 = vmul.f32 %v212, %v246
      %v249 = vmul.f32 %v213, %v246
      %v250 = vmul.f32 %v214, %v246
      %v251 = vmul.f32 %v215, %v246
      %v252 = vmul.f32 %v216, %v246
      %v253 = vmul.f32 %v217, %v246
      %v254 = vmul.f32 %v218, %v246
      %v255 = vmul.f32 %v219, %v246
      %v256 = vmul.f32 %v220, %v246
      %v257 = vmul.f32 %v221, %v246
      %v258 = vmul.f32 %v222, %v246
      %v259 = vmul.f32 %v223, %v246
      %v260 = vmul.f32 %v224, %v246
      %v261 = vmul.f32 %v225, %v246
      %v262 = vmul.f32 %v226, %v246
      %v263 = vmul.f32 %v227, %v246
      %v264 = vmul.f32 %v228, %v246
      %v265 = vmul.f32 %v229, %v246
      %v266 = vmul.f32 %v230, %v246
      %v267 = vmul.f32 %v231, %v246
      %v268 = vmul.f32 %v232, %v246
      %v269 = vmul.f32 %v233, %v246
      %v270 = vmul.f32 %v234, %v246
      %v271 = vmul.f32 %v235, %v246
      %v272 = vmul.f32 %v236, %v246
      %v273 = vmul.f32 %v237, %v246
      %v274 = vmul.f32 %v238, %v246
      %v275 = vmul.f32 %v239, %v246
      %v276 = vmul.f32 %v240, %v246
      %v277 = vmul.f32 %v241, %v246
      %v278 = vmul.f32 %v242, %v246
      %v279 = vlaneseq
      %v280 = vshrl.u32 %v279, 7
      %v281 = vsub.s32 1, %v280
      %v282 = vrot.slane %v210, %v281
      %v283 = vadd.f32 %v247, %v282
      %v284 = vadd.f32 %v248, %v282
      %v285 = vadd.f32 %v249, %v282
      %v286 = vadd.f32 %v250, %v282
      %v287 = vadd.f32 %v251, %v282
      %v288 = vadd.f32 %v252, %v282
      %v289 = vadd.f32 %v253, %v282
      %v290 = vadd.f32 %v254, %v282
      %v291 = vadd.f32 %v255, %v282
      %v292 = vadd.f32 %v256, %v282
      %v293 = vadd.f32 %v257, %v282
      %v294 = vadd.f32 %v258, %v282
      %v295 = vadd.f32 %v259, %v282
      %v296 = vadd.f32 %v260, %v282
      %v297 = vadd.f32 %v261, %v282
      %v298 = vadd.f32 %v262, %v282
      %v299 = vadd.f32 %v263, %v282
      %v300 = vadd.f32 %v264, %v282
      %v301 = vadd.f32 %v265, %v282
      %v302 = vadd.f32 %v266, %v282
      %v303 = vadd.f32 %v267, %v282
      %v304 = vadd.f32 %v268, %v282
      %v305 = vadd.f32 %v269, %v282
      %v306 = vadd.f32 %v270, %v282
      %v307 = vadd.f32 %v271, %v282
      %v308 = vadd.f32 %v272, %v282
      %v309 = vadd.f32 %v273, %v282
      %v310 = vadd.f32 %v274, %v282
      %v311 = vadd.f32 %v275, %v282
      %v312 = vadd.f32 %v276, %v282
      %v313 = vadd.f32 %v277, %v282
      %v314 = vadd.f32 %v278, %v282
      %v315 = vmax.f32 %v283, 0.0
      %v316 = vmax.f32 %v284, 0.0
      %v317 = vmax.f32 %v285, 0.0
      %v318 = vmax.f32 %v286, 0.0
      %v319 = vmax.f32 %v287, 0.0
      %v320 = vmax.f32 %v288, 0.0
      %v321 = vmax.f32 %v289, 0.0
      %v322 = vmax.f32 %v290, 0.0
      %v323 = vmax.f32 %v291, 0.0
      %v324 = vmax.f32 %v292, 0.0
      %v325 = vmax.f32 %v293, 0.0
      %v326 = vmax.f32 %v294, 0.0
      %v327 = vmax.f32 %v295, 0.0
      %v328 = vmax.f32 %v296, 0.0
      %v329 = vmax.f32 %v297, 0.0
      %v330 = vmax.f32 %v298, 0.0
      %v331 = vmax.f32 %v299, 0.0
      %v332 = vmax.f32 %v300, 0.0
      %v333 = vmax.f32 %v301, 0.0
      %v334 = vmax.f32 %v302, 0.0
      %v335 = vmax.f32 %v303, 0.0
      %v336 = vmax.f32 %v304, 0.0
      %v337 = vmax.f32 %v305, 0.0
      %v338 = vmax.f32 %v306, 0.0
      %v339 = vmax.f32 %v307, 0.0
      %v340 = vmax.f32 %v308, 0.0
      %v341 = vmax.f32 %v309, 0.0
      %v342 = vmax.f32 %v310, 0.0
      %v343 = vmax.f32 %v311, 0.0
      %v344 = vmax.f32 %v312, 0.0
      %v345 = vmax.f32 %v313, 0.0
      %v346 = vmax.f32 %v314, 0.0
      %347 = vst [vmem:[#allocation2] sm:$0xff] 0.0
      %348 = vst [vmem:[#allocation2 + $0x8] sm:$0xff] 0.0
      %349 = vst [vmem:[#allocation2 + $0x10] sm:$0x3] 0.0
      %350 = vst [vmem:[#allocation2 + $0x18] sm:$0xff] 0.0
      %351 = vst [vmem:[#allocation2 + $0x20] sm:$0xff] 0.0
      %352 = vst [vmem:[#allocation2 + $0x28] sm:$0x3] 0.0
      %353 = vst [vmem:[#allocation2 + $0x30] sm:$0xff] 0.0
      %354 = vst [vmem:[#allocation2 + $0x38] sm:$0xff] 0.0
      %355 = vst [vmem:[#allocation2 + $0x40] sm:$0x3] 0.0
      %356 = vst [vmem:[#allocation2 + $0x48] sm:$0xff] 0.0
      %357 = vst [vmem:[#allocation2 + $0x50] sm:$0xff] 0.0
      %358 = vst [vmem:[#allocation2 + $0x58] sm:$0x3] 0.0
      %359 = vst [vmem:[#allocation2 + $0x60] sm:$0xff] 0.0
      %360 = vst [vmem:[#allocation2 + $0x68] sm:$0xff] 0.0
      %361 = vst [vmem:[#allocation2 + $0x70] sm:$0x3] 0.0
      %362 = vst [vmem:[#allocation2 + $0x78] sm:$0xff] 0.0
      %363 = vst [vmem:[#allocation2 + $0x80] sm:$0xff] 0.0
      %364 = vst [vmem:[#allocation2 + $0x88] sm:$0x3] 0.0
      %365 = vst [vmem:[#allocation2 + $0x90] sm:$0xff] 0.0
      %366 = vst [vmem:[#allocation2 + $0x98] sm:$0xff] 0.0
      %367 = vst [vmem:[#allocation2 + $0xa0] sm:$0x3] 0.0
      %368 = vst [vmem:[#allocation2 + $0xa8] sm:$0xff] 0.0
      %369 = vst [vmem:[#allocation2 + $0xb0] sm:$0xff] 0.0
      %370 = vst [vmem:[#allocation2 + $0xb8] sm:$0x3] 0.0
      %371 = vst [vmem:[#allocation2 + $0xc0] sm:$0xff] 0.0
      %372 = vst [vmem:[#allocation2 + $0xc8] sm:$0xff] 0.0
      %373 = vst [vmem:[#allocation2 + $0xd0] sm:$0x3] 0.0
      %374 = vst [vmem:[#allocation2 + $0xd8] sm:$0xff] 0.0
      %375 = vst [vmem:[#allocation2 + $0xe0] sm:$0xff] 0.0
      %376 = vst [vmem:[#allocation2 + $0xe8] sm:$0x3] 0.0
      %377 = vst [vmem:[#allocation2 + $0xf0] sm:$0xff] 0.0
      %378 = vst [vmem:[#allocation2 + $0xf8] sm:$0xff] 0.0
      %379 = vst [vmem:[#allocation2 + $0x100] sm:$0x3] 0.0
      %380 = vst [vmem:[#allocation2 + $0x108] sm:$0xff] 0.0
      %381 = vst [vmem:[#allocation2 + $0x110] sm:$0xff] 0.0
      %382 = vst [vmem:[#allocation2 + $0x118] sm:$0x3] 0.0
      %383 = vst [vmem:[#allocation2 + $0x120] sm:$0xff] 0.0
      %384 = vst [vmem:[#allocation2 + $0x128] sm:$0xff] 0.0
      %385 = vst [vmem:[#allocation2 + $0x130] sm:$0x3] 0.0
      %386 = vst [vmem:[#allocation2 + $0x138] sm:$0xff] 0.0
      %387 = vst [vmem:[#allocation2 + $0x140] sm:$0xff] 0.0
      %388 = vst [vmem:[#allocation2 + $0x148] sm:$0x3] 0.0
      %389 = vst [vmem:[#allocation2 + $0x150] sm:$0xff] 0.0
      %390 = vst [vmem:[#allocation2 + $0x158] sm:$0xff] 0.0
      %391 = vst [vmem:[#allocation2 + $0x160] sm:$0x3] 0.0
      %392 = vst [vmem:[#allocation2 + $0x168] sm:$0xff] 0.0
      %393 = vst [vmem:[#allocation2 + $0x170] sm:$0xff] 0.0
      %394 = vst [vmem:[#allocation2 + $0x178] sm:$0x3] 0.0
      %395 = vst [vmem:[#allocation2 + $0x180] sm:$0xff] 0.0
      %396 = vst [vmem:[#allocation2 + $0x188] sm:$0xff] 0.0
      %397 = vst [vmem:[#allocation2 + $0x190] sm:$0x3] 0.0
      %398 = vst [vmem:[#allocation2 + $0x198] sm:$0xff] 0.0
      %399 = vst [vmem:[#allocation2 + $0x1a0] sm:$0xff] 0.0
      %400 = vst [vmem:[#allocation2 + $0x1a8] sm:$0x3] 0.0
      %s401 = scalar_lea.vmem [#allocation2], 24
      %402 = vst [vmem:[%s401 + $0x1] sm:$0xff] %v315
      %403 = vst [vmem:[%s401 + $0x9] sm:$0xff] %v316
      %404 = vst [vmem:[%s401 + $0x19] sm:$0xff] %v317
      %405 = vst [vmem:[%s401 + $0x21] sm:$0xff] %v318
      %406 = vst [vmem:[%s401 + $0x31] sm:$0xff] %v319
      %407 = vst [vmem:[%s401 + $0x39] sm:$0xff] %v320
      %408 = vst [vmem:[%s401 + $0x49] sm:$0xff] %v321
      %409 = vst [vmem:[%s401 + $0x51] sm:$0xff] %v322
      %410 = vst [vmem:[%s401 + $0x61] sm:$0xff] %v323
      %411 = vst [vmem:[%s401 + $0x69] sm:$0xff] %v324
      %412 = vst [vmem:[%s401 + $0x79] sm:$0xff] %v325
      %413 = vst [vmem:[%s401 + $0x81] sm:$0xff] %v326
      %414 = vst [vmem:[%s401 + $0x91] sm:$0xff] %v327
      %415 = vst [vmem:[%s401 + $0x99] sm:$0xff] %v328
      %416 = vst [vmem:[%s401 + $0xa9] sm:$0xff] %v329
      %417 = vst [vmem:[%s401 + $0xb1] sm:$0xff] %v330
      %418 = vst [vmem:[%s401 + $0xc1] sm:$0xff] %v331
      %419 = vst [vmem:[%s401 + $0xc9] sm:$0xff] %v332
      %420 = vst [vmem:[%s401 + $0xd9] sm:$0xff] %v333
      %421 = vst [vmem:[%s401 + $0xe1] sm:$0xff] %v334
      %422 = vst [vmem:[%s401 + $0xf1] sm:$0xff] %v335
      %423 = vst [vmem:[%s401 + $0xf9] sm:$0xff] %v336
      %424 = vst [vmem:[%s401 + $0x109] sm:$0xff] %v337
      %425 = vst [vmem:[%s401 + $0x111] sm:$0xff] %v338
      %426 = vst [vmem:[%s401 + $0x121] sm:$0xff] %v339
      %427 = vst [vmem:[%s401 + $0x129] sm:$0xff] %v340
      %428 = vst [vmem:[%s401 + $0x139] sm:$0xff] %v341
      %429 = vst [vmem:[%s401 + $0x141] sm:$0xff] %v342
      %430 = vst [vmem:[%s401 + $0x151] sm:$0xff] %v343
      %431 = vst [vmem:[%s401 + $0x159] sm:$0xff] %v344
      %432 = vst [vmem:[%s401 + $0x169] sm:$0xff] %v345
      %433 = vst [vmem:[%s401 + $0x171] sm:$0xff] %v346
      %v434 = vld [vmem:[#allocation2] sm:$0xff]
      %v435 = vld [vmem:[#allocation2 + $0x8] sm:$0xff]
      %v436 = vld [vmem:[#allocation2 + $0x18] sm:$0xff]
      %v437 = vld [vmem:[#allocation2 + $0x20] sm:$0xff]
      %v438 = vld [vmem:[#allocation2 + $0x30] sm:$0xff]
      %v439 = vld [vmem:[#allocation2 + $0x38] sm:$0xff]
      %v440 = vld [vmem:[#allocation2 + $0x48] sm:$0xff]
      %v441 = vld [vmem:[#allocation2 + $0x50] sm:$0xff]
      %v442 = vld [vmem:[#allocation2 + $0x60] sm:$0xff]
      %v443 = vld [vmem:[#allocation2 + $0x68] sm:$0xff]
      %v444 = vld [vmem:[#allocation2 + $0x78] sm:$0xff]
      %v445 = vld [vmem:[#allocation2 + $0x80] sm:$0xff]
      %v446 = vld [vmem:[#allocation2 + $0x90] sm:$0xff]
      %v447 = vld [vmem:[#allocation2 + $0x98] sm:$0xff]
      %v448 = vld [vmem:[#allocation2 + $0xa8] sm:$0xff]
      %v449 = vld [vmem:[#allocation2 + $0xb0] sm:$0xff]
      %v450 = vld [vmem:[#allocation2 + $0xc0] sm:$0xff]
      %v451 = vld [vmem:[#allocation2 + $0xc8] sm:$0xff]
      %v452 = vld [vmem:[#allocation2 + $0xd8] sm:$0xff]
      %v453 = vld [vmem:[#allocation2 + $0xe0] sm:$0xff]
      %v454 = vld [vmem:[#allocation2 + $0xf0] sm:$0xff]
      %v455 = vld [vmem:[#allocation2 + $0xf8] sm:$0xff]
      %v456 = vld [vmem:[#allocation2 + $0x108] sm:$0xff]
      %v457 = vld [vmem:[#allocation2 + $0x110] sm:$0xff]
      %v458 = vld [vmem:[#allocation2 + $0x120] sm:$0xff]
      %v459 = vld [vmem:[#allocation2 + $0x128] sm:$0xff]
      %v460 = vld [vmem:[#allocation2 + $0x138] sm:$0xff]
      %v461 = vld [vmem:[#allocation2 + $0x140] sm:$0xff]
      %v462 = vld [vmem:[#allocation2 + $0x150] sm:$0xff]
      %v463 = vld [vmem:[#allocation2 + $0x158] sm:$0xff]
      %v464 = vld [vmem:[#allocation2 + $0x168] sm:$0xff]
      %v465 = vld [vmem:[#allocation2 + $0x170] sm:$0xff]
      %v466 = vpack.c.bf16 %v435, %v434
      %v467 = vpack.c.bf16 %v437, %v436
      %v468 = vpack.c.bf16 %v439, %v438
      %v469 = vpack.c.bf16 %v441, %v440
      %v470 = vpack.c.bf16 %v443, %v442
      %v471 = vpack.c.bf16 %v445, %v444
      %v472 = vpack.c.bf16 %v447, %v446
      %v473 = vpack.c.bf16 %v449, %v448
      %v474 = vpack.c.bf16 %v451, %v450
      %v475 = vpack.c.bf16 %v453, %v452
      %v476 = vpack.c.bf16 %v455, %v454
      %v477 = vpack.c.bf16 %v457, %v456
      %v478 = vpack.c.bf16 %v459, %v458
      %v479 = vpack.c.bf16 %v461, %v460
      %v480 = vpack.c.bf16 %v463, %v462
      %v481 = vpack.c.bf16 %v465, %v464
      %v482 = vld [vmem:[%s2] sm:$0xf]
      %v483 = vld [vmem:[%s2 + $0x4] sm:$0xf]
      %v484 = vld [vmem:[%s2 + $0x8] sm:$0xf]
      %v485 = vld [vmem:[%s2 + $0xc] sm:$0xf]
      %v486 = vld [vmem:[%s2 + $0x10] sm:$0xf]
      %v487 = vld [vmem:[%s2 + $0x14] sm:$0xf]
      %v488 = vld [vmem:[%s2 + $0x18] sm:$0xf]
      %v489 = vld [vmem:[%s2 + $0x1c] sm:$0xf]
      %v490 = vld [vmem:[%s2 + $0x20] sm:$0xf]
      %v491 = vld [vmem:[%s2 + $0x24] sm:$0xf]
      %v492 = vld [vmem:[%s2 + $0x28] sm:$0xf]
      %v493 = vld [vmem:[%s2 + $0x2c] sm:$0xf]
      %v494 = vld [vmem:[%s2 + $0x30] sm:$0xf]
      %v495 = vld [vmem:[%s2 + $0x34] sm:$0xf]
      %v496 = vld [vmem:[%s2 + $0x38] sm:$0xf]
      %v497 = vld [vmem:[%s2 + $0x3c] sm:$0xf]
      %v498 = vld [vmem:[#allocation2 + $0x1] sm:$0xff]
      %v499 = vld [vmem:[#allocation2 + $0x9] sm:$0xff]
      %v500 = vld [vmem:[#allocation2 + $0x19] sm:$0xff]
      %v501 = vld [vmem:[#allocation2 + $0x21] sm:$0xff]
      %v502 = vld [vmem:[#allocation2 + $0x31] sm:$0xff]
      %v503 = vld [vmem:[#allocation2 + $0x39] sm:$0xff]
      %v504 = vld [vmem:[#allocation2 + $0x49] sm:$0xff]
      %v505 = vld [vmem:[#allocation2 + $0x51] sm:$0xff]
      %v506 = vld [vmem:[#allocation2 + $0x61] sm:$0xff]
      %v507 = vld [vmem:[#allocation2 + $0x69] sm:$0xff]
      %v508 = vld [vmem:[#allocation2 + $0x79] sm:$0xff]
      %v509 = vld [vmem:[#allocation2 + $0x81] sm:$0xff]
      %v510 = vld [vmem:[#allocation2 + $0x91] sm:$0xff]
      %v511 = vld [vmem:[#allocation2 + $0x99] sm:$0xff]
      %v512 = vld [vmem:[#allocation2 + $0xa9] sm:$0xff]
      %v513 = vld [vmem:[#allocation2 + $0xb1] sm:$0xff]
      %v514 = vld [vmem:[#allocation2 + $0xc1] sm:$0xff]
      %v515 = vld [vmem:[#allocation2 + $0xc9] sm:$0xff]
      %v516 = vld [vmem:[#allocation2 + $0xd9] sm:$0xff]
      %v517 = vld [vmem:[#allocation2 + $0xe1] sm:$0xff]
      %v518 = vld [vmem:[#allocation2 + $0xf1] sm:$0xff]
      %v519 = vld [vmem:[#allocation2 + $0xf9] sm:$0xff]
      %v520 = vld [vmem:[#allocation2 + $0x109] sm:$0xff]
      %v521 = vld [vmem:[#allocation2 + $0x111] sm:$0xff]
      %v522 = vld [vmem:[#allocation2 + $0x121] sm:$0xff]
      %v523 = vld [vmem:[#allocation2 + $0x129] sm:$0xff]
      %v524 = vld [vmem:[#allocation2 + $0x139] sm:$0xff]
      %v525 = vld [vmem:[#allocation2 + $0x141] sm:$0xff]
      %v526 = vld [vmem:[#allocation2 + $0x151] sm:$0xff]
      %v527 = vld [vmem:[#allocation2 + $0x159] sm:$0xff]
      %v528 = vld [vmem:[#allocation2 + $0x169] sm:$0xff]
      %v529 = vld [vmem:[#allocation2 + $0x171] sm:$0xff]
      %v530 = vpack.c.bf16 %v499, %v498
      %v531 = vpack.c.bf16 %v501, %v500
      %v532 = vpack.c.bf16 %v503, %v502
      %v533 = vpack.c.bf16 %v505, %v504
      %v534 = vpack.c.bf16 %v507, %v506
      %v535 = vpack.c.bf16 %v509, %v508
      %v536 = vpack.c.bf16 %v511, %v510
      %v537 = vpack.c.bf16 %v513, %v512
      %v538 = vpack.c.bf16 %v515, %v514
      %v539 = vpack.c.bf16 %v517, %v516
      %v540 = vpack.c.bf16 %v519, %v518
      %v541 = vpack.c.bf16 %v521, %v520
      %v542 = vpack.c.bf16 %v523, %v522
      %v543 = vpack.c.bf16 %v525, %v524
      %v544 = vpack.c.bf16 %v527, %v526
      %v545 = vpack.c.bf16 %v529, %v528
      %s546 = scalar_lea.vmem %s2, 64
      %v547 = vld [vmem:[%s546] sm:$0xf]
      %v548 = vld [vmem:[%s546 + $0x4] sm:$0xf]
      %v549 = vld [vmem:[%s546 + $0x8] sm:$0xf]
      %v550 = vld [vmem:[%s546 + $0xc] sm:$0xf]
      %v551 = vld [vmem:[%s546 + $0x10] sm:$0xf]
      %v552 = vld [vmem:[%s546 + $0x14] sm:$0xf]
      %v553 = vld [vmem:[%s546 + $0x18] sm:$0xf]
      %v554 = vld [vmem:[%s546 + $0x1c] sm:$0xf]
      %v555 = vld [vmem:[%s546 + $0x20] sm:$0xf]
      %v556 = vld [vmem:[%s546 + $0x24] sm:$0xf]
      %v557 = vld [vmem:[%s546 + $0x28] sm:$0xf]
      %v558 = vld [vmem:[%s546 + $0x2c] sm:$0xf]
      %v559 = vld [vmem:[%s546 + $0x30] sm:$0xf]
      %v560 = vld [vmem:[%s546 + $0x34] sm:$0xf]
      %v561 = vld [vmem:[%s546 + $0x38] sm:$0xf]
      %v562 = vld [vmem:[%s546 + $0x3c] sm:$0xf]
      %v579 = vunpack.c.l.b16 %v547
      %v580 = vunpack.c.l.b16 %v548
      %v581 = vunpack.c.l.b16 %v549
      %v582 = vunpack.c.l.b16 %v550
      %v583 = vunpack.c.l.b16 %v551
      %v584 = vunpack.c.l.b16 %v552
      %v585 = vunpack.c.l.b16 %v553
      %v586 = vunpack.c.l.b16 %v554
      %v587 = vunpack.c.l.b16 %v555
      %v588 = vunpack.c.l.b16 %v556
      %v589 = vunpack.c.l.b16 %v557
      %v590 = vunpack.c.l.b16 %v558
      %v591 = vunpack.c.l.b16 %v559
      %v592 = vunpack.c.l.b16 %v560
      %v593 = vunpack.c.l.b16 %v561
      %v594 = vunpack.c.l.b16 %v562
      %v595 = vpack.c.b16 %v580, %v579
      %v596 = vpack.c.b16 %v582, %v581
      %v597 = vpack.c.b16 %v584, %v583
      %v598 = vpack.c.b16 %v586, %v585
      %v599 = vpack.c.b16 %v588, %v587
      %v600 = vpack.c.b16 %v590, %v589
      %v601 = vpack.c.b16 %v592, %v591
      %v602 = vpack.c.b16 %v594, %v593
      %611 = vmatprep.subr.bf16.mxu0 0
      %612 = vmatpush1.bf16.msra.mxu0 %v602
      %613 = vmatprep.subr.bf16.mxu0 0
      %614 = vmatpush1.bf16.msra.mxu0 %v601
      %615 = vmatprep.subr.bf16.mxu0 0
      %616 = vmatpush1.bf16.msra.mxu0 %v600
      %617 = vmatprep.subr.bf16.mxu0 0
      %618 = vmatpush1.bf16.msra.mxu0 %v599
      %619 = vmatprep.subr.bf16.mxu0 0
      %620 = vmatpush1.bf16.msra.mxu0 %v598
      %621 = vmatprep.subr.bf16.mxu0 0
      %622 = vmatpush1.bf16.msra.mxu0 %v597
      %623 = vmatprep.subr.bf16.mxu0 0
      %624 = vmatpush1.bf16.msra.mxu0 %v596
      %625 = vmatprep.subr.bf16.mxu0 0
      %626 = vmatpush1.bf16.msra.mxu0 %v595
      %627 = vmatprep.subr.bf16.mxu0 0
      %628 = vmatpush2.bf16.msra.mxu0 0
      %629 = vmatprep.subr.bf16.mxu0 0
      %630 = vmatpush2.bf16.msra.mxu0 0
      %631 = vmatprep.subr.bf16.mxu0 0
      %632 = vmatpush2.bf16.msra.mxu0 0
      %633 = vmatprep.subr.bf16.mxu0 0
      %634 = vmatpush2.bf16.msra.mxu0 0
      %635 = vmatprep.subr.bf16.mxu0 0
      %636 = vmatpush2.bf16.msra.mxu0 0
      %637 = vmatprep.subr.bf16.mxu0 0
      %638 = vmatpush2.bf16.msra.mxu0 0
      %639 = vmatprep.subr.bf16.mxu0 0
      %640 = vmatpush2.bf16.msra.mxu0 0
      %641 = vmatprep.subr.bf16.mxu0 0
      %642 = vmatpush2.bf16.msra.mxu0 0
      %643 = vmatprep.mubr.bf16.mxu0 0
      %644 = vmatmul.mubr.bf16.gmra.mxu0 %v530
      %v645 = vpop.f32.mrf.mxu0
      %v646 = vadd.f32 0.0, %v645
      %v647 = vpop.f32.mrf.mxu0
      %v648 = vpop.f32.mrf.mxu0
      %v649 = vadd.f32 0.0, %v648
      %v650 = vpop.f32.mrf.mxu0
      %651 = vmatprep.mubr.bf16.mxu0 0
      %652 = vmatmul.mubr.bf16.gmra.mxu0 %v531
      %v653 = vpop.f32.mrf.mxu0
      %v654 = vadd.f32 0.0, %v653
      %v655 = vpop.f32.mrf.mxu0
      %v656 = vpop.f32.mrf.mxu0
      %v657 = vadd.f32 0.0, %v656
      %v658 = vpop.f32.mrf.mxu0
      %659 = vmatprep.mubr.bf16.mxu0 0
      %660 = vmatmul.mubr.bf16.gmra.mxu0 %v532
      %v661 = vpop.f32.mrf.mxu0
      %v662 = vadd.f32 0.0, %v661
      %v663 = vpop.f32.mrf.mxu0
      %v664 = vpop.f32.mrf.mxu0
      %v665 = vadd.f32 0.0, %v664
      %v666 = vpop.f32.mrf.mxu0
      %667 = vmatprep.mubr.bf16.mxu0 0
      %668 = vmatmul.mubr.bf16.gmra.mxu0 %v533
      %v669 = vpop.f32.mrf.mxu0
      %v670 = vadd.f32 0.0, %v669
      %v671 = vpop.f32.mrf.mxu0
      %v672 = vpop.f32.mrf.mxu0
      %v673 = vadd.f32 0.0, %v672
      %v674 = vpop.f32.mrf.mxu0
      %675 = vmatprep.mubr.bf16.mxu0 0
      %676 = vmatmul.mubr.bf16.gmra.mxu0 %v534
      %v677 = vpop.f32.mrf.mxu0
      %v678 = vadd.f32 0.0, %v677
      %v679 = vpop.f32.mrf.mxu0
      %v680 = vpop.f32.mrf.mxu0
      %v681 = vadd.f32 0.0, %v680
      %v682 = vpop.f32.mrf.mxu0
      %683 = vmatprep.mubr.bf16.mxu0 0
      %684 = vmatmul.mubr.bf16.gmra.mxu0 %v535
      %v685 = vpop.f32.mrf.mxu0
      %v686 = vadd.f32 0.0, %v685
      %v687 = vpop.f32.mrf.mxu0
      %v688 = vpop.f32.mrf.mxu0
      %v689 = vadd.f32 0.0, %v688
      %v690 = vpop.f32.mrf.mxu0
      %691 = vmatprep.mubr.bf16.mxu0 0
      %692 = vmatmul.mubr.bf16.gmra.mxu0 %v536
      %v693 = vpop.f32.mrf.mxu0
      %v694 = vadd.f32 0.0, %v693
      %v695 = vpop.f32.mrf.mxu0
      %v696 = vpop.f32.mrf.mxu0
      %v697 = vadd.f32 0.0, %v696
      %v698 = vpop.f32.mrf.mxu0
      %699 = vmatprep.mubr.bf16.mxu0 0
      %700 = vmatmul.mubr.bf16.gmra.mxu0 %v537
      %v701 = vpop.f32.mrf.mxu0
      %v702 = vadd.f32 0.0, %v701
      %v703 = vpop.f32.mrf.mxu0
      %v704 = vpop.f32.mrf.mxu0
      %v705 = vadd.f32 0.0, %v704
      %v706 = vpop.f32.mrf.mxu0
      %707 = vmatprep.mubr.bf16.mxu0 0
      %708 = vmatmul.mubr.bf16.gmra.mxu0 %v538
      %v709 = vpop.f32.mrf.mxu0
      %v710 = vadd.f32 0.0, %v709
      %v711 = vpop.f32.mrf.mxu0
      %v712 = vpop.f32.mrf.mxu0
      %v713 = vadd.f32 0.0, %v712
      %v714 = vpop.f32.mrf.mxu0
      %715 = vmatprep.mubr.bf16.mxu0 0
      %716 = vmatmul.mubr.bf16.gmra.mxu0 %v539
      %v717 = vpop.f32.mrf.mxu0
      %v718 = vadd.f32 0.0, %v717
      %v719 = vpop.f32.mrf.mxu0
      %v720 = vpop.f32.mrf.mxu0
      %v721 = vadd.f32 0.0, %v720
      %v722 = vpop.f32.mrf.mxu0
      %723 = vmatprep.mubr.bf16.mxu0 0
      %724 = vmatmul.mubr.bf16.gmra.mxu0 %v540
      %v725 = vpop.f32.mrf.mxu0
      %v726 = vadd.f32 0.0, %v725
      %v727 = vpop.f32.mrf.mxu0
      %v728 = vpop.f32.mrf.mxu0
      %v729 = vadd.f32 0.0, %v728
      %v730 = vpop.f32.mrf.mxu0
      %731 = vmatprep.mubr.bf16.mxu0 0
      %732 = vmatmul.mubr.bf16.gmra.mxu0 %v541
      %v733 = vpop.f32.mrf.mxu0
      %v734 = vadd.f32 0.0, %v733
      %v735 = vpop.f32.mrf.mxu0
      %v736 = vpop.f32.mrf.mxu0
      %v737 = vadd.f32 0.0, %v736
      %v738 = vpop.f32.mrf.mxu0
      %739 = vmatprep.mubr.bf16.mxu0 0
      %740 = vmatmul.mubr.bf16.gmra.mxu0 %v542
      %v741 = vpop.f32.mrf.mxu0
      %v742 = vadd.f32 0.0, %v741
      %v743 = vpop.f32.mrf.mxu0
      %v744 = vpop.f32.mrf.mxu0
      %v745 = vadd.f32 0.0, %v744
      %v746 = vpop.f32.mrf.mxu0
      %747 = vmatprep.mubr.bf16.mxu0 0
      %748 = vmatmul.mubr.bf16.gmra.mxu0 %v543
      %v749 = vpop.f32.mrf.mxu0
      %v750 = vadd.f32 0.0, %v749
      %v751 = vpop.f32.mrf.mxu0
      %v752 = vpop.f32.mrf.mxu0
      %v753 = vadd.f32 0.0, %v752
      %v754 = vpop.f32.mrf.mxu0
      %755 = vmatprep.mubr.bf16.mxu0 0
      %756 = vmatmul.mubr.bf16.gmra.mxu0 %v544
      %v757 = vpop.f32.mrf.mxu0
      %v758 = vadd.f32 0.0, %v757
      %v759 = vpop.f32.mrf.mxu0
      %v760 = vpop.f32.mrf.mxu0
      %v761 = vadd.f32 0.0, %v760
      %v762 = vpop.f32.mrf.mxu0
      %763 = vmatprep.mubr.bf16.mxu0 0
      %764 = vmatmul.mubr.bf16.gmra.mxu0 %v545
      %v765 = vpop.f32.mrf.mxu0
      %v766 = vadd.f32 0.0, %v765
      %v767 = vpop.f32.mrf.mxu0
      %v768 = vpop.f32.mrf.mxu0
      %v769 = vadd.f32 0.0, %v768
      %v770 = vpop.f32.mrf.mxu0
      %771 = vdwg.mxu0
      %v788 = vunpack.c.l.b16 %v482
      %v789 = vunpack.c.l.b16 %v483
      %v790 = vunpack.c.l.b16 %v484
      %v791 = vunpack.c.l.b16 %v485
      %v792 = vunpack.c.l.b16 %v486
      %v793 = vunpack.c.l.b16 %v487
      %v794 = vunpack.c.l.b16 %v488
      %v795 = vunpack.c.l.b16 %v489
      %v796 = vunpack.c.l.b16 %v490
      %v797 = vunpack.c.l.b16 %v491
      %v798 = vunpack.c.l.b16 %v492
      %v799 = vunpack.c.l.b16 %v493
      %v800 = vunpack.c.l.b16 %v494
      %v801 = vunpack.c.l.b16 %v495
      %v802 = vunpack.c.l.b16 %v496
      %v803 = vunpack.c.l.b16 %v497
      %v804 = vpack.c.b16 %v789, %v788
      %v805 = vpack.c.b16 %v791, %v790
      %v806 = vpack.c.b16 %v793, %v792
      %v807 = vpack.c.b16 %v795, %v794
      %v808 = vpack.c.b16 %v797, %v796
      %v809 = vpack.c.b16 %v799, %v798
      %v810 = vpack.c.b16 %v801, %v800
      %v811 = vpack.c.b16 %v803, %v802
      %820 = vmatprep.subr.bf16.mxu0 0
      %821 = vmatpush1.bf16.msra.mxu0 %v811
      %822 = vmatprep.subr.bf16.mxu0 0
      %823 = vmatpush1.bf16.msra.mxu0 %v810
      %824 = vmatprep.subr.bf16.mxu0 0
      %825 = vmatpush1.bf16.msra.mxu0 %v809
      %826 = vmatprep.subr.bf16.mxu0 0
      %827 = vmatpush1.bf16.msra.mxu0 %v808
      %828 = vmatprep.subr.bf16.mxu0 0
      %829 = vmatpush1.bf16.msra.mxu0 %v807
      %830 = vmatprep.subr.bf16.mxu0 0
      %831 = vmatpush1.bf16.msra.mxu0 %v806
      %832 = vmatprep.subr.bf16.mxu0 0
      %833 = vmatpush1.bf16.msra.mxu0 %v805
      %834 = vmatprep.subr.bf16.mxu0 0
      %835 = vmatpush1.bf16.msra.mxu0 %v804
      %836 = vmatprep.subr.bf16.mxu0 0
      %837 = vmatpush2.bf16.msra.mxu0 0
      %838 = vmatprep.subr.bf16.mxu0 0
      %839 = vmatpush2.bf16.msra.mxu0 0
      %840 = vmatprep.subr.bf16.mxu0 0
      %841 = vmatpush2.bf16.msra.mxu0 0
      %842 = vmatprep.subr.bf16.mxu0 0
      %843 = vmatpush2.bf16.msra.mxu0 0
      %844 = vmatprep.subr.bf16.mxu0 0
      %845 = vmatpush2.bf16.msra.mxu0 0
      %846 = vmatprep.subr.bf16.mxu0 0
      %847 = vmatpush2.bf16.msra.mxu0 0
      %848 = vmatprep.subr.bf16.mxu0 0
      %849 = vmatpush2.bf16.msra.mxu0 0
      %850 = vmatprep.subr.bf16.mxu0 0
      %851 = vmatpush2.bf16.msra.mxu0 0
      %852 = vmatprep.mubr.bf16.mxu0 0
      %853 = vmatmul.mubr.bf16.gmra.mxu0 %v466
      %v854 = vpop.f32.mrf.mxu0
      %v855 = vadd.f32 %v646, %v854
      %v856 = vpop.f32.mrf.mxu0
      %v857 = vpop.f32.mrf.mxu0
      %v858 = vadd.f32 %v649, %v857
      %v859 = vpop.f32.mrf.mxu0
      %860 = vmatprep.mubr.bf16.mxu0 0
      %861 = vmatmul.mubr.bf16.gmra.mxu0 %v467
      %v862 = vpop.f32.mrf.mxu0
      %v863 = vadd.f32 %v654, %v862
      %v864 = vpop.f32.mrf.mxu0
      %v865 = vpop.f32.mrf.mxu0
      %v866 = vadd.f32 %v657, %v865
      %v867 = vpop.f32.mrf.mxu0
      %868 = vmatprep.mubr.bf16.mxu0 0
      %869 = vmatmul.mubr.bf16.gmra.mxu0 %v468
      %v870 = vpop.f32.mrf.mxu0
      %v871 = vadd.f32 %v662, %v870
      %v872 = vpop.f32.mrf.mxu0
      %v873 = vpop.f32.mrf.mxu0
      %v874 = vadd.f32 %v665, %v873
      %v875 = vpop.f32.mrf.mxu0
      %876 = vmatprep.mubr.bf16.mxu0 0
      %877 = vmatmul.mubr.bf16.gmra.mxu0 %v469
      %v878 = vpop.f32.mrf.mxu0
      %v879 = vadd.f32 %v670, %v878
      %v880 = vpop.f32.mrf.mxu0
      %v881 = vpop.f32.mrf.mxu0
      %v882 = vadd.f32 %v673, %v881
      %v883 = vpop.f32.mrf.mxu0
      %884 = vmatprep.mubr.bf16.mxu0 0
      %885 = vmatmul.mubr.bf16.gmra.mxu0 %v470
      %v886 = vpop.f32.mrf.mxu0
      %v887 = vadd.f32 %v678, %v886
      %v888 = vpop.f32.mrf.mxu0
      %v889 = vpop.f32.mrf.mxu0
      %v890 = vadd.f32 %v681, %v889
      %v891 = vpop.f32.mrf.mxu0
      %892 = vmatprep.mubr.bf16.mxu0 0
      %893 = vmatmul.mubr.bf16.gmra.mxu0 %v471
      %v894 = vpop.f32.mrf.mxu0
      %v895 = vadd.f32 %v686, %v894
      %v896 = vpop.f32.mrf.mxu0
      %v897 = vpop.f32.mrf.mxu0
      %v898 = vadd.f32 %v689, %v897
      %v899 = vpop.f32.mrf.mxu0
      %900 = vmatprep.mubr.bf16.mxu0 0
      %901 = vmatmul.mubr.bf16.gmra.mxu0 %v472
      %v902 = vpop.f32.mrf.mxu0
      %v903 = vadd.f32 %v694, %v902
      %v904 = vpop.f32.mrf.mxu0
      %v905 = vpop.f32.mrf.mxu0
      %v906 = vadd.f32 %v697, %v905
      %v907 = vpop.f32.mrf.mxu0
      %908 = vmatprep.mubr.bf16.mxu0 0
      %909 = vmatmul.mubr.bf16.gmra.mxu0 %v473
      %v910 = vpop.f32.mrf.mxu0
      %v911 = vadd.f32 %v702, %v910
      %v912 = vpop.f32.mrf.mxu0
      %v913 = vpop.f32.mrf.mxu0
      %v914 = vadd.f32 %v705, %v913
      %v915 = vpop.f32.mrf.mxu0
      %916 = vmatprep.mubr.bf16.mxu0 0
      %917 = vmatmul.mubr.bf16.gmra.mxu0 %v474
      %v918 = vpop.f32.mrf.mxu0
      %v919 = vadd.f32 %v710, %v918
      %v920 = vpop.f32.mrf.mxu0
      %v921 = vpop.f32.mrf.mxu0
      %v922 = vadd.f32 %v713, %v921
      %v923 = vpop.f32.mrf.mxu0
      %924 = vmatprep.mubr.bf16.mxu0 0
      %925 = vmatmul.mubr.bf16.gmra.mxu0 %v475
      %v926 = vpop.f32.mrf.mxu0
      %v927 = vadd.f32 %v718, %v926
      %v928 = vpop.f32.mrf.mxu0
      %v929 = vpop.f32.mrf.mxu0
      %v930 = vadd.f32 %v721, %v929
      %v931 = vpop.f32.mrf.mxu0
      %932 = vmatprep.mubr.bf16.mxu0 0
      %933 = vmatmul.mubr.bf16.gmra.mxu0 %v476
      %v934 = vpop.f32.mrf.mxu0
      %v935 = vadd.f32 %v726, %v934
      %v936 = vpop.f32.mrf.mxu0
      %v937 = vpop.f32.mrf.mxu0
      %v938 = vadd.f32 %v729, %v937
      %v939 = vpop.f32.mrf.mxu0
      %940 = vmatprep.mubr.bf16.mxu0 0
      %941 = vmatmul.mubr.bf16.gmra.mxu0 %v477
      %v942 = vpop.f32.mrf.mxu0
      %v943 = vadd.f32 %v734, %v942
      %v944 = vpop.f32.mrf.mxu0
      %v945 = vpop.f32.mrf.mxu0
      %v946 = vadd.f32 %v737, %v945
      %v947 = vpop.f32.mrf.mxu0
      %948 = vmatprep.mubr.bf16.mxu0 0
      %949 = vmatmul.mubr.bf16.gmra.mxu0 %v478
      %v950 = vpop.f32.mrf.mxu0
      %v951 = vadd.f32 %v742, %v950
      %v952 = vpop.f32.mrf.mxu0
      %v953 = vpop.f32.mrf.mxu0
      %v954 = vadd.f32 %v745, %v953
      %v955 = vpop.f32.mrf.mxu0
      %956 = vmatprep.mubr.bf16.mxu0 0
      %957 = vmatmul.mubr.bf16.gmra.mxu0 %v479
      %v958 = vpop.f32.mrf.mxu0
      %v959 = vadd.f32 %v750, %v958
      %v960 = vpop.f32.mrf.mxu0
      %v961 = vpop.f32.mrf.mxu0
      %v962 = vadd.f32 %v753, %v961
      %v963 = vpop.f32.mrf.mxu0
      %964 = vmatprep.mubr.bf16.mxu0 0
      %965 = vmatmul.mubr.bf16.gmra.mxu0 %v480
      %v966 = vpop.f32.mrf.mxu0
      %v967 = vadd.f32 %v758, %v966
      %v968 = vpop.f32.mrf.mxu0
      %v969 = vpop.f32.mrf.mxu0
      %v970 = vadd.f32 %v761, %v969
      %v971 = vpop.f32.mrf.mxu0
      %972 = vmatprep.mubr.bf16.mxu0 0
      %973 = vmatmul.mubr.bf16.gmra.mxu0 %v481
      %v974 = vpop.f32.mrf.mxu0
      %v975 = vadd.f32 %v766, %v974
      %v976 = vpop.f32.mrf.mxu0
      %v977 = vpop.f32.mrf.mxu0
      %v978 = vadd.f32 %v769, %v977
      %v979 = vpop.f32.mrf.mxu0
      %980 = vdwg.mxu0
      %v981 = vld [vmem:[#allocation2 + $0x2] sm:$0xff]
      %v982 = vld [vmem:[#allocation2 + $0xa] sm:$0xff]
      %v983 = vld [vmem:[#allocation2 + $0x1a] sm:$0xff]
      %v984 = vld [vmem:[#allocation2 + $0x22] sm:$0xff]
      %v985 = vld [vmem:[#allocation2 + $0x32] sm:$0xff]
      %v986 = vld [vmem:[#allocation2 + $0x3a] sm:$0xff]
      %v987 = vld [vmem:[#allocation2 + $0x4a] sm:$0xff]
      %v988 = vld [vmem:[#allocation2 + $0x52] sm:$0xff]
      %v989 = vld [vmem:[#allocation2 + $0x62] sm:$0xff]
      %v990 = vld [vmem:[#allocation2 + $0x6a] sm:$0xff]
      %v991 = vld [vmem:[#allocation2 + $0x7a] sm:$0xff]
      %v992 = vld [vmem:[#allocation2 + $0x82] sm:$0xff]
      %v993 = vld [vmem:[#allocation2 + $0x92] sm:$0xff]
      %v994 = vld [vmem:[#allocation2 + $0x9a] sm:$0xff]
      %v995 = vld [vmem:[#allocation2 + $0xaa] sm:$0xff]
      %v996 = vld [vmem:[#allocation2 + $0xb2] sm:$0xff]
      %v997 = vld [vmem:[#allocation2 + $0xc2] sm:$0xff]
      %v998 = vld [vmem:[#allocation2 + $0xca] sm:$0xff]
      %v999 = vld [vmem:[#allocation2 + $0xda] sm:$0xff]
      %v1000 = vld [vmem:[#allocation2 + $0xe2] sm:$0xff]
      %v1001 = vld [vmem:[#allocation2 + $0xf2] sm:$0xff]
      %v1002 = vld [vmem:[#allocation2 + $0xfa] sm:$0xff]
      %v1003 = vld [vmem:[#allocation2 + $0x10a] sm:$0xff]
      %v1004 = vld [vmem:[#allocation2 + $0x112] sm:$0xff]
      %v1005 = vld [vmem:[#allocation2 + $0x122] sm:$0xff]
      %v1006 = vld [vmem:[#allocation2 + $0x12a] sm:$0xff]
      %v1007 = vld [vmem:[#allocation2 + $0x13a] sm:$0xff]
      %v1008 = vld [vmem:[#allocation2 + $0x142] sm:$0xff]
      %v1009 = vld [vmem:[#allocation2 + $0x152] sm:$0xff]
      %v1010 = vld [vmem:[#allocation2 + $0x15a] sm:$0xff]
      %v1011 = vld [vmem:[#allocation2 + $0x16a] sm:$0xff]
      %v1012 = vld [vmem:[#allocation2 + $0x172] sm:$0xff]
      %v1013 = vpack.c.bf16 %v982, %v981
      %v1014 = vpack.c.bf16 %v984, %v983
      %v1015 = vpack.c.bf16 %v986, %v985
      %v1016 = vpack.c.bf16 %v988, %v987
      %v1017 = vpack.c.bf16 %v990, %v989
      %v1018 = vpack.c.bf16 %v992, %v991
      %v1019 = vpack.c.bf16 %v994, %v993
      %v1020 = vpack.c.bf16 %v996, %v995
      %v1021 = vpack.c.bf16 %v998, %v997
      %v1022 = vpack.c.bf16 %v1000, %v999
      %v1023 = vpack.c.bf16 %v1002, %v1001
      %v1024 = vpack.c.bf16 %v1004, %v1003
      %v1025 = vpack.c.bf16 %v1006, %v1005
      %v1026 = vpack.c.bf16 %v1008, %v1007
      %v1027 = vpack.c.bf16 %v1010, %v1009
      %v1028 = vpack.c.bf16 %v1012, %v1011
      %s1029 = scalar_lea.vmem %s2, 128
      %v1030 = vld [vmem:[%s1029] sm:$0xf]
      %v1031 = vld [vmem:[%s1029 + $0x4] sm:$0xf]
      %v1032 = vld [vmem:[%s1029 + $0x8] sm:$0xf]
      %v1033 = vld [vmem:[%s1029 + $0xc] sm:$0xf]
      %v1034 = vld [vmem:[%s1029 + $0x10] sm:$0xf]
      %v1035 = vld [vmem:[%s1029 + $0x14] sm:$0xf]
      %v1036 = vld [vmem:[%s1029 + $0x18] sm:$0xf]
      %v1037 = vld [vmem:[%s1029 + $0x1c] sm:$0xf]
      %v1038 = vld [vmem:[%s1029 + $0x20] sm:$0xf]
      %v1039 = vld [vmem:[%s1029 + $0x24] sm:$0xf]
      %v1040 = vld [vmem:[%s1029 + $0x28] sm:$0xf]
      %v1041 = vld [vmem:[%s1029 + $0x2c] sm:$0xf]
      %v1042 = vld [vmem:[%s1029 + $0x30] sm:$0xf]
      %v1043 = vld [vmem:[%s1029 + $0x34] sm:$0xf]
      %v1044 = vld [vmem:[%s1029 + $0x38] sm:$0xf]
      %v1045 = vld [vmem:[%s1029 + $0x3c] sm:$0xf]
      %v1062 = vunpack.c.l.b16 %v1030
      %v1063 = vunpack.c.l.b16 %v1031
      %v1064 = vunpack.c.l.b16 %v1032
      %v1065 = vunpack.c.l.b16 %v1033
      %v1066 = vunpack.c.l.b16 %v1034
      %v1067 = vunpack.c.l.b16 %v1035
      %v1068 = vunpack.c.l.b16 %v1036
      %v1069 = vunpack.c.l.b16 %v1037
      %v1070 = vunpack.c.l.b16 %v1038
      %v1071 = vunpack.c.l.b16 %v1039
      %v1072 = vunpack.c.l.b16 %v1040
      %v1073 = vunpack.c.l.b16 %v1041
      %v1074 = vunpack.c.l.b16 %v1042
      %v1075 = vunpack.c.l.b16 %v1043
      %v1076 = vunpack.c.l.b16 %v1044
      %v1077 = vunpack.c.l.b16 %v1045
      %v1078 = vpack.c.b16 %v1063, %v1062
      %v1079 = vpack.c.b16 %v1065, %v1064
      %v1080 = vpack.c.b16 %v1067, %v1066
      %v1081 = vpack.c.b16 %v1069, %v1068
      %v1082 = vpack.c.b16 %v1071, %v1070
      %v1083 = vpack.c.b16 %v1073, %v1072
      %v1084 = vpack.c.b16 %v1075, %v1074
      %v1085 = vpack.c.b16 %v1077, %v1076
      %1094 = vmatprep.subr.bf16.mxu0 0
      %1095 = vmatpush1.bf16.msra.mxu0 %v1085
      %1096 = vmatprep.subr.bf16.mxu0 0
      %1097 = vmatpush1.bf16.msra.mxu0 %v1084
      %1098 = vmatprep.subr.bf16.mxu0 0
      %1099 = vmatpush1.bf16.msra.mxu0 %v1083
      %1100 = vmatprep.subr.bf16.mxu0 0
      %1101 = vmatpush1.bf16.msra.mxu0 %v1082
      %1102 = vmatprep.subr.bf16.mxu0 0
      %1103 = vmatpush1.bf16.msra.mxu0 %v1081
      %1104 = vmatprep.subr.bf16.mxu0 0
      %1105 = vmatpush1.bf16.msra.mxu0 %v1080
      %1106 = vmatprep.subr.bf16.mxu0 0
      %1107 = vmatpush1.bf16.msra.mxu0 %v1079
      %1108 = vmatprep.subr.bf16.mxu0 0
      %1109 = vmatpush1.bf16.msra.mxu0 %v1078
      %1110 = vmatprep.subr.bf16.mxu0 0
      %1111 = vmatpush2.bf16.msra.mxu0 0
      %1112 = vmatprep.subr.bf16.mxu0 0
      %1113 = vmatpush2.bf16.msra.mxu0 0
      %1114 = vmatprep.subr.bf16.mxu0 0
      %1115 = vmatpush2.bf16.msra.mxu0 0
      %1116 = vmatprep.subr.bf16.mxu0 0
      %1117 = vmatpush2.bf16.msra.mxu0 0
      %1118 = vmatprep.subr.bf16.mxu0 0
      %1119 = vmatpush2.bf16.msra.mxu0 0
      %1120 = vmatprep.subr.bf16.mxu0 0
      %1121 = vmatpush2.bf16.msra.mxu0 0
      %1122 = vmatprep.subr.bf16.mxu0 0
      %1123 = vmatpush2.bf16.msra.mxu0 0
      %1124 = vmatprep.subr.bf16.mxu0 0
      %1125 = vmatpush2.bf16.msra.mxu0 0
      %1126 = vmatprep.mubr.bf16.mxu0 0
      %1127 = vmatmul.mubr.bf16.gmra.mxu0 %v1013
      %v1128 = vpop.f32.mrf.mxu0
      %v1129 = vadd.f32 0.0, %v1128
      %v1130 = vpop.f32.mrf.mxu0
      %v1131 = vpop.f32.mrf.mxu0
      %v1132 = vadd.f32 0.0, %v1131
      %v1133 = vpop.f32.mrf.mxu0
      %1134 = vmatprep.mubr.bf16.mxu0 0
      %1135 = vmatmul.mubr.bf16.gmra.mxu0 %v1014
      %v1136 = vpop.f32.mrf.mxu0
      %v1137 = vadd.f32 0.0, %v1136
      %v1138 = vpop.f32.mrf.mxu0
      %v1139 = vpop.f32.mrf.mxu0
      %v1140 = vadd.f32 0.0, %v1139
      %v1141 = vpop.f32.mrf.mxu0
      %1142 = vmatprep.mubr.bf16.mxu0 0
      %1143 = vmatmul.mubr.bf16.gmra.mxu0 %v1015
      %v1144 = vpop.f32.mrf.mxu0
      %v1145 = vadd.f32 0.0, %v1144
      %v1146 = vpop.f32.mrf.mxu0
      %v1147 = vpop.f32.mrf.mxu0
      %v1148 = vadd.f32 0.0, %v1147
      %v1149 = vpop.f32.mrf.mxu0
      %1150 = vmatprep.mubr.bf16.mxu0 0
      %1151 = vmatmul.mubr.bf16.gmra.mxu0 %v1016
      %v1152 = vpop.f32.mrf.mxu0
      %v1153 = vadd.f32 0.0, %v1152
      %v1154 = vpop.f32.mrf.mxu0
      %v1155 = vpop.f32.mrf.mxu0
      %v1156 = vadd.f32 0.0, %v1155
      %v1157 = vpop.f32.mrf.mxu0
      %1158 = vmatprep.mubr.bf16.mxu0 0
      %1159 = vmatmul.mubr.bf16.gmra.mxu0 %v1017
      %v1160 = vpop.f32.mrf.mxu0
      %v1161 = vadd.f32 0.0, %v1160
      %v1162 = vpop.f32.mrf.mxu0
      %v1163 = vpop.f32.mrf.mxu0
      %v1164 = vadd.f32 0.0, %v1163
      %v1165 = vpop.f32.mrf.mxu0
      %1166 = vmatprep.mubr.bf16.mxu0 0
      %1167 = vmatmul.mubr.bf16.gmra.mxu0 %v1018
      %v1168 = vpop.f32.mrf.mxu0
      %v1169 = vadd.f32 0.0, %v1168
      %v1170 = vpop.f32.mrf.mxu0
      %v1171 = vpop.f32.mrf.mxu0
      %v1172 = vadd.f32 0.0, %v1171
      %v1173 = vpop.f32.mrf.mxu0
      %1174 = vmatprep.mubr.bf16.mxu0 0
      %1175 = vmatmul.mubr.bf16.gmra.mxu0 %v1019
      %v1176 = vpop.f32.mrf.mxu0
      %v1177 = vadd.f32 0.0, %v1176
      %v1178 = vpop.f32.mrf.mxu0
      %v1179 = vpop.f32.mrf.mxu0
      %v1180 = vadd.f32 0.0, %v1179
      %v1181 = vpop.f32.mrf.mxu0
      %1182 = vmatprep.mubr.bf16.mxu0 0
      %1183 = vmatmul.mubr.bf16.gmra.mxu0 %v1020
      %v1184 = vpop.f32.mrf.mxu0
      %v1185 = vadd.f32 0.0, %v1184
      %v1186 = vpop.f32.mrf.mxu0
      %v1187 = vpop.f32.mrf.mxu0
      %v1188 = vadd.f32 0.0, %v1187
      %v1189 = vpop.f32.mrf.mxu0
      %1190 = vmatprep.mubr.bf16.mxu0 0
      %1191 = vmatmul.mubr.bf16.gmra.mxu0 %v1021
      %v1192 = vpop.f32.mrf.mxu0
      %v1193 = vadd.f32 0.0, %v1192
      %v1194 = vpop.f32.mrf.mxu0
      %v1195 = vpop.f32.mrf.mxu0
      %v1196 = vadd.f32 0.0, %v1195
      %v1197 = vpop.f32.mrf.mxu0
      %1198 = vmatprep.mubr.bf16.mxu0 0
      %1199 = vmatmul.mubr.bf16.gmra.mxu0 %v1022
      %v1200 = vpop.f32.mrf.mxu0
      %v1201 = vadd.f32 0.0, %v1200
      %v1202 = vpop.f32.mrf.mxu0
      %v1203 = vpop.f32.mrf.mxu0
      %v1204 = vadd.f32 0.0, %v1203
      %v1205 = vpop.f32.mrf.mxu0
      %1206 = vmatprep.mubr.bf16.mxu0 0
      %1207 = vmatmul.mubr.bf16.gmra.mxu0 %v1023
      %v1208 = vpop.f32.mrf.mxu0
      %v1209 = vadd.f32 0.0, %v1208
      %v1210 = vpop.f32.mrf.mxu0
      %v1211 = vpop.f32.mrf.mxu0
      %v1212 = vadd.f32 0.0, %v1211
      %v1213 = vpop.f32.mrf.mxu0
      %1214 = vmatprep.mubr.bf16.mxu0 0
      %1215 = vmatmul.mubr.bf16.gmra.mxu0 %v1024
      %v1216 = vpop.f32.mrf.mxu0
      %v1217 = vadd.f32 0.0, %v1216
      %v1218 = vpop.f32.mrf.mxu0
      %v1219 = vpop.f32.mrf.mxu0
      %v1220 = vadd.f32 0.0, %v1219
      %v1221 = vpop.f32.mrf.mxu0
      %1222 = vmatprep.mubr.bf16.mxu0 0
      %1223 = vmatmul.mubr.bf16.gmra.mxu0 %v1025
      %v1224 = vpop.f32.mrf.mxu0
      %v1225 = vadd.f32 0.0, %v1224
      %v1226 = vpop.f32.mrf.mxu0
      %v1227 = vpop.f32.mrf.mxu0
      %v1228 = vadd.f32 0.0, %v1227
      %v1229 = vpop.f32.mrf.mxu0
      %1230 = vmatprep.mubr.bf16.mxu0 0
      %1231 = vmatmul.mubr.bf16.gmra.mxu0 %v1026
      %v1232 = vpop.f32.mrf.mxu0
      %v1233 = vadd.f32 0.0, %v1232
      %v1234 = vpop.f32.mrf.mxu0
      %v1235 = vpop.f32.mrf.mxu0
      %v1236 = vadd.f32 0.0, %v1235
      %v1237 = vpop.f32.mrf.mxu0
      %1238 = vmatprep.mubr.bf16.mxu0 0
      %1239 = vmatmul.mubr.bf16.gmra.mxu0 %v1027
      %v1240 = vpop.f32.mrf.mxu0
      %v1241 = vadd.f32 0.0, %v1240
      %v1242 = vpop.f32.mrf.mxu0
      %v1243 = vpop.f32.mrf.mxu0
      %v1244 = vadd.f32 0.0, %v1243
      %v1245 = vpop.f32.mrf.mxu0
      %1246 = vmatprep.mubr.bf16.mxu0 0
      %1247 = vmatmul.mubr.bf16.gmra.mxu0 %v1028
      %v1248 = vpop.f32.mrf.mxu0
      %v1249 = vadd.f32 0.0, %v1248
      %v1250 = vpop.f32.mrf.mxu0
      %v1251 = vpop.f32.mrf.mxu0
      %v1252 = vadd.f32 0.0, %v1251
      %v1253 = vpop.f32.mrf.mxu0
      %1254 = vdwg.mxu0
      %v1255 = vadd.f32 %v855, %v1129
      %v1256 = vadd.f32 %v858, %v1132
      %v1257 = vadd.f32 %v863, %v1137
      %v1258 = vadd.f32 %v866, %v1140
      %v1259 = vadd.f32 %v871, %v1145
      %v1260 = vadd.f32 %v874, %v1148
      %v1261 = vadd.f32 %v879, %v1153
      %v1262 = vadd.f32 %v882, %v1156
      %v1263 = vadd.f32 %v887, %v1161
      %v1264 = vadd.f32 %v890, %v1164
      %v1265 = vadd.f32 %v895, %v1169
      %v1266 = vadd.f32 %v898, %v1172
      %v1267 = vadd.f32 %v903, %v1177
      %v1268 = vadd.f32 %v906, %v1180
      %v1269 = vadd.f32 %v911, %v1185
      %v1270 = vadd.f32 %v914, %v1188
      %v1271 = vadd.f32 %v919, %v1193
      %v1272 = vadd.f32 %v922, %v1196
      %v1273 = vadd.f32 %v927, %v1201
      %v1274 = vadd.f32 %v930, %v1204
      %v1275 = vadd.f32 %v935, %v1209
      %v1276 = vadd.f32 %v938, %v1212
      %v1277 = vadd.f32 %v943, %v1217
      %v1278 = vadd.f32 %v946, %v1220
      %v1279 = vadd.f32 %v951, %v1225
      %v1280 = vadd.f32 %v954, %v1228
      %v1281 = vadd.f32 %v959, %v1233
      %v1282 = vadd.f32 %v962, %v1236
      %v1283 = vadd.f32 %v967, %v1241
      %v1284 = vadd.f32 %v970, %v1244
      %v1285 = vadd.f32 %v975, %v1249
      %v1286 = vadd.f32 %v978, %v1252
      %v1287 = vld [vmem:[%s401] sm:$0xff]
      %v1288 = vld [vmem:[%s401 + $0x8] sm:$0xff]
      %v1289 = vld [vmem:[%s401 + $0x18] sm:$0xff]
      %v1290 = vld [vmem:[%s401 + $0x20] sm:$0xff]
      %v1291 = vld [vmem:[%s401 + $0x30] sm:$0xff]
      %v1292 = vld [vmem:[%s401 + $0x38] sm:$0xff]
      %v1293 = vld [vmem:[%s401 + $0x48] sm:$0xff]
      %v1294 = vld [vmem:[%s401 + $0x50] sm:$0xff]
      %v1295 = vld [vmem:[%s401 + $0x60] sm:$0xff]
      %v1296 = vld [vmem:[%s401 + $0x68] sm:$0xff]
      %v1297 = vld [vmem:[%s401 + $0x78] sm:$0xff]
      %v1298 = vld [vmem:[%s401 + $0x80] sm:$0xff]
      %v1299 = vld [vmem:[%s401 + $0x90] sm:$0xff]
      %v1300 = vld [vmem:[%s401 + $0x98] sm:$0xff]
      %v1301 = vld [vmem:[%s401 + $0xa8] sm:$0xff]
      %v1302 = vld [vmem:[%s401 + $0xb0] sm:$0xff]
      %v1303 = vld [vmem:[%s401 + $0xc0] sm:$0xff]
      %v1304 = vld [vmem:[%s401 + $0xc8] sm:$0xff]
      %v1305 = vld [vmem:[%s401 + $0xd8] sm:$0xff]
      %v1306 = vld [vmem:[%s401 + $0xe0] sm:$0xff]
      %v1307 = vld [vmem:[%s401 + $0xf0] sm:$0xff]
      %v1308 = vld [vmem:[%s401 + $0xf8] sm:$0xff]
      %v1309 = vld [vmem:[%s401 + $0x108] sm:$0xff]
      %v1310 = vld [vmem:[%s401 + $0x110] sm:$0xff]
      %v1311 = vld [vmem:[%s401 + $0x120] sm:$0xff]
      %v1312 = vld [vmem:[%s401 + $0x128] sm:$0xff]
      %v1313 = vld [vmem:[%s401 + $0x138] sm:$0xff]
      %v1314 = vld [vmem:[%s401 + $0x140] sm:$0xff]
      %v1315 = vld [vmem:[%s401 + $0x150] sm:$0xff]
      %v1316 = vld [vmem:[%s401 + $0x158] sm:$0xff]
      %v1317 = vld [vmem:[%s401 + $0x168] sm:$0xff]
      %v1318 = vld [vmem:[%s401 + $0x170] sm:$0xff]
      %v1319 = vpack.c.bf16 %v1288, %v1287
      %v1320 = vpack.c.bf16 %v1290, %v1289
      %v1321 = vpack.c.bf16 %v1292, %v1291
      %v1322 = vpack.c.bf16 %v1294, %v1293
      %v1323 = vpack.c.bf16 %v1296, %v1295
      %v1324 = vpack.c.bf16 %v1298, %v1297
      %v1325 = vpack.c.bf16 %v1300, %v1299
      %v1326 = vpack.c.bf16 %v1302, %v1301
      %v1327 = vpack.c.bf16 %v1304, %v1303
      %v1328 = vpack.c.bf16 %v1306, %v1305
      %v1329 = vpack.c.bf16 %v1308, %v1307
      %v1330 = vpack.c.bf16 %v1310, %v1309
      %v1331 = vpack.c.bf16 %v1312, %v1311
      %v1332 = vpack.c.bf16 %v1314, %v1313
      %v1333 = vpack.c.bf16 %v1316, %v1315
      %v1334 = vpack.c.bf16 %v1318, %v1317
      %s1335 = scalar_lea.vmem %s2, 192
      %v1336 = vld [vmem:[%s1335] sm:$0xf]
      %v1337 = vld [vmem:[%s1335 + $0x4] sm:$0xf]
      %v1338 = vld [vmem:[%s1335 + $0x8] sm:$0xf]
      %v1339 = vld [vmem:[%s1335 + $0xc] sm:$0xf]
      %v1340 = vld [vmem:[%s1335 + $0x10] sm:$0xf]
      %v1341 = vld [vmem:[%s1335 + $0x14] sm:$0xf]
      %v1342 = vld [vmem:[%s1335 + $0x18] sm:$0xf]
      %v1343 = vld [vmem:[%s1335 + $0x1c] sm:$0xf]
      %v1344 = vld [vmem:[%s1335 + $0x20] sm:$0xf]
      %v1345 = vld [vmem:[%s1335 + $0x24] sm:$0xf]
      %v1346 = vld [vmem:[%s1335 + $0x28] sm:$0xf]
      %v1347 = vld [vmem:[%s1335 + $0x2c] sm:$0xf]
      %v1348 = vld [vmem:[%s1335 + $0x30] sm:$0xf]
      %v1349 = vld [vmem:[%s1335 + $0x34] sm:$0xf]
      %v1350 = vld [vmem:[%s1335 + $0x38] sm:$0xf]
      %v1351 = vld [vmem:[%s1335 + $0x3c] sm:$0xf]
      %v1368 = vunpack.c.l.b16 %v1336
      %v1369 = vunpack.c.l.b16 %v1337
      %v1370 = vunpack.c.l.b16 %v1338
      %v1371 = vunpack.c.l.b16 %v1339
      %v1372 = vunpack.c.l.b16 %v1340
      %v1373 = vunpack.c.l.b16 %v1341
      %v1374 = vunpack.c.l.b16 %v1342
      %v1375 = vunpack.c.l.b16 %v1343
      %v1376 = vunpack.c.l.b16 %v1344
      %v1377 = vunpack.c.l.b16 %v1345
      %v1378 = vunpack.c.l.b16 %v1346
      %v1379 = vunpack.c.l.b16 %v1347
      %v1380 = vunpack.c.l.b16 %v1348
      %v1381 = vunpack.c.l.b16 %v1349
      %v1382 = vunpack.c.l.b16 %v1350
      %v1383 = vunpack.c.l.b16 %v1351
      %v1384 = vpack.c.b16 %v1369, %v1368
      %v1385 = vpack.c.b16 %v1371, %v1370
      %v1386 = vpack.c.b16 %v1373, %v1372
      %v1387 = vpack.c.b16 %v1375, %v1374
      %v1388 = vpack.c.b16 %v1377, %v1376
      %v1389 = vpack.c.b16 %v1379, %v1378
      %v1390 = vpack.c.b16 %v1381, %v1380
      %v1391 = vpack.c.b16 %v1383, %v1382
      %1400 = vmatprep.subr.bf16.mxu0 0
      %1401 = vmatpush1.bf16.msra.mxu0 %v1391
      %1402 = vmatprep.subr.bf16.mxu0 0
      %1403 = vmatpush1.bf16.msra.mxu0 %v1390
      %1404 = vmatprep.subr.bf16.mxu0 0
      %1405 = vmatpush1.bf16.msra.mxu0 %v1389
      %1406 = vmatprep.subr.bf16.mxu0 0
      %1407 = vmatpush1.bf16.msra.mxu0 %v1388
      %1408 = vmatprep.subr.bf16.mxu0 0
      %1409 = vmatpush1.bf16.msra.mxu0 %v1387
      %1410 = vmatprep.subr.bf16.mxu0 0
      %1411 = vmatpush1.bf16.msra.mxu0 %v1386
      %1412 = vmatprep.subr.bf16.mxu0 0
      %1413 = vmatpush1.bf16.msra.mxu0 %v1385
      %1414 = vmatprep.subr.bf16.mxu0 0
      %1415 = vmatpush1.bf16.msra.mxu0 %v1384
      %1416 = vmatprep.subr.bf16.mxu0 0
      %1417 = vmatpush2.bf16.msra.mxu0 0
      %1418 = vmatprep.subr.bf16.mxu0 0
      %1419 = vmatpush2.bf16.msra.mxu0 0
      %1420 = vmatprep.subr.bf16.mxu0 0
      %1421 = vmatpush2.bf16.msra.mxu0 0
      %1422 = vmatprep.subr.bf16.mxu0 0
      %1423 = vmatpush2.bf16.msra.mxu0 0
      %1424 = vmatprep.subr.bf16.mxu0 0
      %1425 = vmatpush2.bf16.msra.mxu0 0
      %1426 = vmatprep.subr.bf16.mxu0 0
      %1427 = vmatpush2.bf16.msra.mxu0 0
      %1428 = vmatprep.subr.bf16.mxu0 0
      %1429 = vmatpush2.bf16.msra.mxu0 0
      %1430 = vmatprep.subr.bf16.mxu0 0
      %1431 = vmatpush2.bf16.msra.mxu0 0
      %1432 = vmatprep.mubr.bf16.mxu0 0
      %1433 = vmatmul.mubr.bf16.gmra.mxu0 %v1319
      %v1434 = vpop.f32.mrf.mxu0
      %v1435 = vadd.f32 0.0, %v1434
      %v1436 = vpop.f32.mrf.mxu0
      %v1437 = vpop.f32.mrf.mxu0
      %v1438 = vadd.f32 0.0, %v1437
      %v1439 = vpop.f32.mrf.mxu0
      %1440 = vmatprep.mubr.bf16.mxu0 0
      %1441 = vmatmul.mubr.bf16.gmra.mxu0 %v1320
      %v1442 = vpop.f32.mrf.mxu0
      %v1443 = vadd.f32 0.0, %v1442
      %v1444 = vpop.f32.mrf.mxu0
      %v1445 = vpop.f32.mrf.mxu0
      %v1446 = vadd.f32 0.0, %v1445
      %v1447 = vpop.f32.mrf.mxu0
      %1448 = vmatprep.mubr.bf16.mxu0 0
      %1449 = vmatmul.mubr.bf16.gmra.mxu0 %v1321
      %v1450 = vpop.f32.mrf.mxu0
      %v1451 = vadd.f32 0.0, %v1450
      %v1452 = vpop.f32.mrf.mxu0
      %v1453 = vpop.f32.mrf.mxu0
      %v1454 = vadd.f32 0.0, %v1453
      %v1455 = vpop.f32.mrf.mxu0
      %1456 = vmatprep.mubr.bf16.mxu0 0
      %1457 = vmatmul.mubr.bf16.gmra.mxu0 %v1322
      %v1458 = vpop.f32.mrf.mxu0
      %v1459 = vadd.f32 0.0, %v1458
      %v1460 = vpop.f32.mrf.mxu0
      %v1461 = vpop.f32.mrf.mxu0
      %v1462 = vadd.f32 0.0, %v1461
      %v1463 = vpop.f32.mrf.mxu0
      %1464 = vmatprep.mubr.bf16.mxu0 0
      %1465 = vmatmul.mubr.bf16.gmra.mxu0 %v1323
      %v1466 = vpop.f32.mrf.mxu0
      %v1467 = vadd.f32 0.0, %v1466
      %v1468 = vpop.f32.mrf.mxu0
      %v1469 = vpop.f32.mrf.mxu0
      %v1470 = vadd.f32 0.0, %v1469
      %v1471 = vpop.f32.mrf.mxu0
      %1472 = vmatprep.mubr.bf16.mxu0 0
      %1473 = vmatmul.mubr.bf16.gmra.mxu0 %v1324
      %v1474 = vpop.f32.mrf.mxu0
      %v1475 = vadd.f32 0.0, %v1474
      %v1476 = vpop.f32.mrf.mxu0
      %v1477 = vpop.f32.mrf.mxu0
      %v1478 = vadd.f32 0.0, %v1477
      %v1479 = vpop.f32.mrf.mxu0
      %1480 = vmatprep.mubr.bf16.mxu0 0
      %1481 = vmatmul.mubr.bf16.gmra.mxu0 %v1325
      %v1482 = vpop.f32.mrf.mxu0
      %v1483 = vadd.f32 0.0, %v1482
      %v1484 = vpop.f32.mrf.mxu0
      %v1485 = vpop.f32.mrf.mxu0
      %v1486 = vadd.f32 0.0, %v1485
      %v1487 = vpop.f32.mrf.mxu0
      %1488 = vmatprep.mubr.bf16.mxu0 0
      %1489 = vmatmul.mubr.bf16.gmra.mxu0 %v1326
      %v1490 = vpop.f32.mrf.mxu0
      %v1491 = vadd.f32 0.0, %v1490
      %v1492 = vpop.f32.mrf.mxu0
      %v1493 = vpop.f32.mrf.mxu0
      %v1494 = vadd.f32 0.0, %v1493
      %v1495 = vpop.f32.mrf.mxu0
      %1496 = vmatprep.mubr.bf16.mxu0 0
      %1497 = vmatmul.mubr.bf16.gmra.mxu0 %v1327
      %v1498 = vpop.f32.mrf.mxu0
      %v1499 = vadd.f32 0.0, %v1498
      %v1500 = vpop.f32.mrf.mxu0
      %v1501 = vpop.f32.mrf.mxu0
      %v1502 = vadd.f32 0.0, %v1501
      %v1503 = vpop.f32.mrf.mxu0
      %1504 = vmatprep.mubr.bf16.mxu0 0
      %1505 = vmatmul.mubr.bf16.gmra.mxu0 %v1328
      %v1506 = vpop.f32.mrf.mxu0
      %v1507 = vadd.f32 0.0, %v1506
      %v1508 = vpop.f32.mrf.mxu0
      %v1509 = vpop.f32.mrf.mxu0
      %v1510 = vadd.f32 0.0, %v1509
      %v1511 = vpop.f32.mrf.mxu0
      %1512 = vmatprep.mubr.bf16.mxu0 0
      %1513 = vmatmul.mubr.bf16.gmra.mxu0 %v1329
      %v1514 = vpop.f32.mrf.mxu0
      %v1515 = vadd.f32 0.0, %v1514
      %v1516 = vpop.f32.mrf.mxu0
      %v1517 = vpop.f32.mrf.mxu0
      %v1518 = vadd.f32 0.0, %v1517
      %v1519 = vpop.f32.mrf.mxu0
      %1520 = vmatprep.mubr.bf16.mxu0 0
      %1521 = vmatmul.mubr.bf16.gmra.mxu0 %v1330
      %v1522 = vpop.f32.mrf.mxu0
      %v1523 = vadd.f32 0.0, %v1522
      %v1524 = vpop.f32.mrf.mxu0
      %v1525 = vpop.f32.mrf.mxu0
      %v1526 = vadd.f32 0.0, %v1525
      %v1527 = vpop.f32.mrf.mxu0
      %1528 = vmatprep.mubr.bf16.mxu0 0
      %1529 = vmatmul.mubr.bf16.gmra.mxu0 %v1331
      %v1530 = vpop.f32.mrf.mxu0
      %v1531 = vadd.f32 0.0, %v1530
      %v1532 = vpop.f32.mrf.mxu0
      %v1533 = vpop.f32.mrf.mxu0
      %v1534 = vadd.f32 0.0, %v1533
      %v1535 = vpop.f32.mrf.mxu0
      %1536 = vmatprep.mubr.bf16.mxu0 0
      %1537 = vmatmul.mubr.bf16.gmra.mxu0 %v1332
      %v1538 = vpop.f32.mrf.mxu0
      %v1539 = vadd.f32 0.0, %v1538
      %v1540 = vpop.f32.mrf.mxu0
      %v1541 = vpop.f32.mrf.mxu0
      %v1542 = vadd.f32 0.0, %v1541
      %v1543 = vpop.f32.mrf.mxu0
      %1544 = vmatprep.mubr.bf16.mxu0 0
      %1545 = vmatmul.mubr.bf16.gmra.mxu0 %v1333
      %v1546 = vpop.f32.mrf.mxu0
      %v1547 = vadd.f32 0.0, %v1546
      %v1548 = vpop.f32.mrf.mxu0
      %v1549 = vpop.f32.mrf.mxu0
      %v1550 = vadd.f32 0.0, %v1549
      %v1551 = vpop.f32.mrf.mxu0
      %1552 = vmatprep.mubr.bf16.mxu0 0
      %1553 = vmatmul.mubr.bf16.gmra.mxu0 %v1334
      %v1554 = vpop.f32.mrf.mxu0
      %v1555 = vadd.f32 0.0, %v1554
      %v1556 = vpop.f32.mrf.mxu0
      %v1557 = vpop.f32.mrf.mxu0
      %v1558 = vadd.f32 0.0, %v1557
      %v1559 = vpop.f32.mrf.mxu0
      %1560 = vdwg.mxu0
      %v1561 = vadd.f32 %v1255, %v1435
      %v1562 = vadd.f32 %v1256, %v1438
      %v1563 = vadd.f32 %v1257, %v1443
      %v1564 = vadd.f32 %v1258, %v1446
      %v1565 = vadd.f32 %v1259, %v1451
      %v1566 = vadd.f32 %v1260, %v1454
      %v1567 = vadd.f32 %v1261, %v1459
      %v1568 = vadd.f32 %v1262, %v1462
      %v1569 = vadd.f32 %v1263, %v1467
      %v1570 = vadd.f32 %v1264, %v1470
      %v1571 = vadd.f32 %v1265, %v1475
      %v1572 = vadd.f32 %v1266, %v1478
      %v1573 = vadd.f32 %v1267, %v1483
      %v1574 = vadd.f32 %v1268, %v1486
      %v1575 = vadd.f32 %v1269, %v1491
      %v1576 = vadd.f32 %v1270, %v1494
      %v1577 = vadd.f32 %v1271, %v1499
      %v1578 = vadd.f32 %v1272, %v1502
      %v1579 = vadd.f32 %v1273, %v1507
      %v1580 = vadd.f32 %v1274, %v1510
      %v1581 = vadd.f32 %v1275, %v1515
      %v1582 = vadd.f32 %v1276, %v1518
      %v1583 = vadd.f32 %v1277, %v1523
      %v1584 = vadd.f32 %v1278, %v1526
      %v1585 = vadd.f32 %v1279, %v1531
      %v1586 = vadd.f32 %v1280, %v1534
      %v1587 = vadd.f32 %v1281, %v1539
      %v1588 = vadd.f32 %v1282, %v1542
      %v1589 = vadd.f32 %v1283, %v1547
      %v1590 = vadd.f32 %v1284, %v1550
      %v1591 = vadd.f32 %v1285, %v1555
      %v1592 = vadd.f32 %v1286, %v1558
      %v1593 = vld [vmem:[%s401 + $0x1] sm:$0xff]
      %v1594 = vld [vmem:[%s401 + $0x9] sm:$0xff]
      %v1595 = vld [vmem:[%s401 + $0x19] sm:$0xff]
      %v1596 = vld [vmem:[%s401 + $0x21] sm:$0xff]
      %v1597 = vld [vmem:[%s401 + $0x31] sm:$0xff]
      %v1598 = vld [vmem:[%s401 + $0x39] sm:$0xff]
      %v1599 = vld [vmem:[%s401 + $0x49] sm:$0xff]
      %v1600 = vld [vmem:[%s401 + $0x51] sm:$0xff]
      %v1601 = vld [vmem:[%s401 + $0x61] sm:$0xff]
      %v1602 = vld [vmem:[%s401 + $0x69] sm:$0xff]
      %v1603 = vld [vmem:[%s401 + $0x79] sm:$0xff]
      %v1604 = vld [vmem:[%s401 + $0x81] sm:$0xff]
      %v1605 = vld [vmem:[%s401 + $0x91] sm:$0xff]
      %v1606 = vld [vmem:[%s401 + $0x99] sm:$0xff]
      %v1607 = vld [vmem:[%s401 + $0xa9] sm:$0xff]
      %v1608 = vld [vmem:[%s401 + $0xb1] sm:$0xff]
      %v1609 = vld [vmem:[%s401 + $0xc1] sm:$0xff]
      %v1610 = vld [vmem:[%s401 + $0xc9] sm:$0xff]
      %v1611 = vld [vmem:[%s401 + $0xd9] sm:$0xff]
      %v1612 = vld [vmem:[%s401 + $0xe1] sm:$0xff]
      %v1613 = vld [vmem:[%s401 + $0xf1] sm:$0xff]
      %v1614 = vld [vmem:[%s401 + $0xf9] sm:$0xff]
      %v1615 = vld [vmem:[%s401 + $0x109] sm:$0xff]
      %v1616 = vld [vmem:[%s401 + $0x111] sm:$0xff]
      %v1617 = vld [vmem:[%s401 + $0x121] sm:$0xff]
      %v1618 = vld [vmem:[%s401 + $0x129] sm:$0xff]
      %v1619 = vld [vmem:[%s401 + $0x139] sm:$0xff]
      %v1620 = vld [vmem:[%s401 + $0x141] sm:$0xff]
      %v1621 = vld [vmem:[%s401 + $0x151] sm:$0xff]
      %v1622 = vld [vmem:[%s401 + $0x159] sm:$0xff]
      %v1623 = vld [vmem:[%s401 + $0x169] sm:$0xff]
      %v1624 = vld [vmem:[%s401 + $0x171] sm:$0xff]
      %v1625 = vpack.c.bf16 %v1594, %v1593
      %v1626 = vpack.c.bf16 %v1596, %v1595
      %v1627 = vpack.c.bf16 %v1598, %v1597
      %v1628 = vpack.c.bf16 %v1600, %v1599
      %v1629 = vpack.c.bf16 %v1602, %v1601
      %v1630 = vpack.c.bf16 %v1604, %v1603
      %v1631 = vpack.c.bf16 %v1606, %v1605
      %v1632 = vpack.c.bf16 %v1608, %v1607
      %v1633 = vpack.c.bf16 %v1610, %v1609
      %v1634 = vpack.c.bf16 %v1612, %v1611
      %v1635 = vpack.c.bf16 %v1614, %v1613
      %v1636 = vpack.c.bf16 %v1616, %v1615
      %v1637 = vpack.c.bf16 %v1618, %v1617
      %v1638 = vpack.c.bf16 %v1620, %v1619
      %v1639 = vpack.c.bf16 %v1622, %v1621
      %v1640 = vpack.c.bf16 %v1624, %v1623
      %s1641 = scalar_lea.vmem %s2, 256
      %v1642 = vld [vmem:[%s1641] sm:$0xf]
      %v1643 = vld [vmem:[%s1641 + $0x4] sm:$0xf]
      %v1644 = vld [vmem:[%s1641 + $0x8] sm:$0xf]
      %v1645 = vld [vmem:[%s1641 + $0xc] sm:$0xf]
      %v1646 = vld [vmem:[%s1641 + $0x10] sm:$0xf]
      %v1647 = vld [vmem:[%s1641 + $0x14] sm:$0xf]
      %v1648 = vld [vmem:[%s1641 + $0x18] sm:$0xf]
      %v1649 = vld [vmem:[%s1641 + $0x1c] sm:$0xf]
      %v1650 = vld [vmem:[%s1641 + $0x20] sm:$0xf]
      %v1651 = vld [vmem:[%s1641 + $0x24] sm:$0xf]
      %v1652 = vld [vmem:[%s1641 + $0x28] sm:$0xf]
      %v1653 = vld [vmem:[%s1641 + $0x2c] sm:$0xf]
      %v1654 = vld [vmem:[%s1641 + $0x30] sm:$0xf]
      %v1655 = vld [vmem:[%s1641 + $0x34] sm:$0xf]
      %v1656 = vld [vmem:[%s1641 + $0x38] sm:$0xf]
      %v1657 = vld [vmem:[%s1641 + $0x3c] sm:$0xf]
      %v1674 = vunpack.c.l.b16 %v1642
      %v1675 = vunpack.c.l.b16 %v1643
      %v1676 = vunpack.c.l.b16 %v1644
      %v1677 = vunpack.c.l.b16 %v1645
      %v1678 = vunpack.c.l.b16 %v1646
      %v1679 = vunpack.c.l.b16 %v1647
      %v1680 = vunpack.c.l.b16 %v1648
      %v1681 = vunpack.c.l.b16 %v1649
      %v1682 = vunpack.c.l.b16 %v1650
      %v1683 = vunpack.c.l.b16 %v1651
      %v1684 = vunpack.c.l.b16 %v1652
      %v1685 = vunpack.c.l.b16 %v1653
      %v1686 = vunpack.c.l.b16 %v1654
      %v1687 = vunpack.c.l.b16 %v1655
      %v1688 = vunpack.c.l.b16 %v1656
      %v1689 = vunpack.c.l.b16 %v1657
      %v1690 = vpack.c.b16 %v1675, %v1674
      %v1691 = vpack.c.b16 %v1677, %v1676
      %v1692 = vpack.c.b16 %v1679, %v1678
      %v1693 = vpack.c.b16 %v1681, %v1680
      %v1694 = vpack.c.b16 %v1683, %v1682
      %v1695 = vpack.c.b16 %v1685, %v1684
      %v1696 = vpack.c.b16 %v1687, %v1686
      %v1697 = vpack.c.b16 %v1689, %v1688
      %1706 = vmatprep.subr.bf16.mxu0 0
      %1707 = vmatpush1.bf16.msra.mxu0 %v1697
      %1708 = vmatprep.subr.bf16.mxu0 0
      %1709 = vmatpush1.bf16.msra.mxu0 %v1696
      %1710 = vmatprep.subr.bf16.mxu0 0
      %1711 = vmatpush1.bf16.msra.mxu0 %v1695
      %1712 = vmatprep.subr.bf16.mxu0 0
      %1713 = vmatpush1.bf16.msra.mxu0 %v1694
      %1714 = vmatprep.subr.bf16.mxu0 0
      %1715 = vmatpush1.bf16.msra.mxu0 %v1693
      %1716 = vmatprep.subr.bf16.mxu0 0
      %1717 = vmatpush1.bf16.msra.mxu0 %v1692
      %1718 = vmatprep.subr.bf16.mxu0 0
      %1719 = vmatpush1.bf16.msra.mxu0 %v1691
      %1720 = vmatprep.subr.bf16.mxu0 0
      %1721 = vmatpush1.bf16.msra.mxu0 %v1690
      %1722 = vmatprep.subr.bf16.mxu0 0
      %1723 = vmatpush2.bf16.msra.mxu0 0
      %1724 = vmatprep.subr.bf16.mxu0 0
      %1725 = vmatpush2.bf16.msra.mxu0 0
      %1726 = vmatprep.subr.bf16.mxu0 0
      %1727 = vmatpush2.bf16.msra.mxu0 0
      %1728 = vmatprep.subr.bf16.mxu0 0
      %1729 = vmatpush2.bf16.msra.mxu0 0
      %1730 = vmatprep.subr.bf16.mxu0 0
      %1731 = vmatpush2.bf16.msra.mxu0 0
      %1732 = vmatprep.subr.bf16.mxu0 0
      %1733 = vmatpush2.bf16.msra.mxu0 0
      %1734 = vmatprep.subr.bf16.mxu0 0
      %1735 = vmatpush2.bf16.msra.mxu0 0
      %1736 = vmatprep.subr.bf16.mxu0 0
      %1737 = vmatpush2.bf16.msra.mxu0 0
      %1738 = vmatprep.mubr.bf16.mxu0 0
      %1739 = vmatmul.mubr.bf16.gmra.mxu0 %v1625
      %v1740 = vpop.f32.mrf.mxu0
      %v1741 = vadd.f32 0.0, %v1740
      %v1742 = vpop.f32.mrf.mxu0
      %v1743 = vpop.f32.mrf.mxu0
      %v1744 = vadd.f32 0.0, %v1743
      %v1745 = vpop.f32.mrf.mxu0
      %1746 = vmatprep.mubr.bf16.mxu0 0
      %1747 = vmatmul.mubr.bf16.gmra.mxu0 %v1626
      %v1748 = vpop.f32.mrf.mxu0
      %v1749 = vadd.f32 0.0, %v1748
      %v1750 = vpop.f32.mrf.mxu0
      %v1751 = vpop.f32.mrf.mxu0
      %v1752 = vadd.f32 0.0, %v1751
      %v1753 = vpop.f32.mrf.mxu0
      %1754 = vmatprep.mubr.bf16.mxu0 0
      %1755 = vmatmul.mubr.bf16.gmra.mxu0 %v1627
      %v1756 = vpop.f32.mrf.mxu0
      %v1757 = vadd.f32 0.0, %v1756
      %v1758 = vpop.f32.mrf.mxu0
      %v1759 = vpop.f32.mrf.mxu0
      %v1760 = vadd.f32 0.0, %v1759
      %v1761 = vpop.f32.mrf.mxu0
      %1762 = vmatprep.mubr.bf16.mxu0 0
      %1763 = vmatmul.mubr.bf16.gmra.mxu0 %v1628
      %v1764 = vpop.f32.mrf.mxu0
      %v1765 = vadd.f32 0.0, %v1764
      %v1766 = vpop.f32.mrf.mxu0
      %v1767 = vpop.f32.mrf.mxu0
      %v1768 = vadd.f32 0.0, %v1767
      %v1769 = vpop.f32.mrf.mxu0
      %1770 = vmatprep.mubr.bf16.mxu0 0
      %1771 = vmatmul.mubr.bf16.gmra.mxu0 %v1629
      %v1772 = vpop.f32.mrf.mxu0
      %v1773 = vadd.f32 0.0, %v1772
      %v1774 = vpop.f32.mrf.mxu0
      %v1775 = vpop.f32.mrf.mxu0
      %v1776 = vadd.f32 0.0, %v1775
      %v1777 = vpop.f32.mrf.mxu0
      %1778 = vmatprep.mubr.bf16.mxu0 0
      %1779 = vmatmul.mubr.bf16.gmra.mxu0 %v1630
      %v1780 = vpop.f32.mrf.mxu0
      %v1781 = vadd.f32 0.0, %v1780
      %v1782 = vpop.f32.mrf.mxu0
      %v1783 = vpop.f32.mrf.mxu0
      %v1784 = vadd.f32 0.0, %v1783
      %v1785 = vpop.f32.mrf.mxu0
      %1786 = vmatprep.mubr.bf16.mxu0 0
      %1787 = vmatmul.mubr.bf16.gmra.mxu0 %v1631
      %v1788 = vpop.f32.mrf.mxu0
      %v1789 = vadd.f32 0.0, %v1788
      %v1790 = vpop.f32.mrf.mxu0
      %v1791 = vpop.f32.mrf.mxu0
      %v1792 = vadd.f32 0.0, %v1791
      %v1793 = vpop.f32.mrf.mxu0
      %1794 = vmatprep.mubr.bf16.mxu0 0
      %1795 = vmatmul.mubr.bf16.gmra.mxu0 %v1632
      %v1796 = vpop.f32.mrf.mxu0
      %v1797 = vadd.f32 0.0, %v1796
      %v1798 = vpop.f32.mrf.mxu0
      %v1799 = vpop.f32.mrf.mxu0
      %v1800 = vadd.f32 0.0, %v1799
      %v1801 = vpop.f32.mrf.mxu0
      %1802 = vmatprep.mubr.bf16.mxu0 0
      %1803 = vmatmul.mubr.bf16.gmra.mxu0 %v1633
      %v1804 = vpop.f32.mrf.mxu0
      %v1805 = vadd.f32 0.0, %v1804
      %v1806 = vpop.f32.mrf.mxu0
      %v1807 = vpop.f32.mrf.mxu0
      %v1808 = vadd.f32 0.0, %v1807
      %v1809 = vpop.f32.mrf.mxu0
      %1810 = vmatprep.mubr.bf16.mxu0 0
      %1811 = vmatmul.mubr.bf16.gmra.mxu0 %v1634
      %v1812 = vpop.f32.mrf.mxu0
      %v1813 = vadd.f32 0.0, %v1812
      %v1814 = vpop.f32.mrf.mxu0
      %v1815 = vpop.f32.mrf.mxu0
      %v1816 = vadd.f32 0.0, %v1815
      %v1817 = vpop.f32.mrf.mxu0
      %1818 = vmatprep.mubr.bf16.mxu0 0
      %1819 = vmatmul.mubr.bf16.gmra.mxu0 %v1635
      %v1820 = vpop.f32.mrf.mxu0
      %v1821 = vadd.f32 0.0, %v1820
      %v1822 = vpop.f32.mrf.mxu0
      %v1823 = vpop.f32.mrf.mxu0
      %v1824 = vadd.f32 0.0, %v1823
      %v1825 = vpop.f32.mrf.mxu0
      %1826 = vmatprep.mubr.bf16.mxu0 0
      %1827 = vmatmul.mubr.bf16.gmra.mxu0 %v1636
      %v1828 = vpop.f32.mrf.mxu0
      %v1829 = vadd.f32 0.0, %v1828
      %v1830 = vpop.f32.mrf.mxu0
      %v1831 = vpop.f32.mrf.mxu0
      %v1832 = vadd.f32 0.0, %v1831
      %v1833 = vpop.f32.mrf.mxu0
      %1834 = vmatprep.mubr.bf16.mxu0 0
      %1835 = vmatmul.mubr.bf16.gmra.mxu0 %v1637
      %v1836 = vpop.f32.mrf.mxu0
      %v1837 = vadd.f32 0.0, %v1836
      %v1838 = vpop.f32.mrf.mxu0
      %v1839 = vpop.f32.mrf.mxu0
      %v1840 = vadd.f32 0.0, %v1839
      %v1841 = vpop.f32.mrf.mxu0
      %1842 = vmatprep.mubr.bf16.mxu0 0
      %1843 = vmatmul.mubr.bf16.gmra.mxu0 %v1638
      %v1844 = vpop.f32.mrf.mxu0
      %v1845 = vadd.f32 0.0, %v1844
      %v1846 = vpop.f32.mrf.mxu0
      %v1847 = vpop.f32.mrf.mxu0
      %v1848 = vadd.f32 0.0, %v1847
      %v1849 = vpop.f32.mrf.mxu0
      %1850 = vmatprep.mubr.bf16.mxu0 0
      %1851 = vmatmul.mubr.bf16.gmra.mxu0 %v1639
      %v1852 = vpop.f32.mrf.mxu0
      %v1853 = vadd.f32 0.0, %v1852
      %v1854 = vpop.f32.mrf.mxu0
      %v1855 = vpop.f32.mrf.mxu0
      %v1856 = vadd.f32 0.0, %v1855
      %v1857 = vpop.f32.mrf.mxu0
      %1858 = vmatprep.mubr.bf16.mxu0 0
      %1859 = vmatmul.mubr.bf16.gmra.mxu0 %v1640
      %v1860 = vpop.f32.mrf.mxu0
      %v1861 = vadd.f32 0.0, %v1860
      %v1862 = vpop.f32.mrf.mxu0
      %v1863 = vpop.f32.mrf.mxu0
      %v1864 = vadd.f32 0.0, %v1863
      %v1865 = vpop.f32.mrf.mxu0
      %1866 = vdwg.mxu0
      %v1867 = vadd.f32 %v1561, %v1741
      %v1868 = vadd.f32 %v1562, %v1744
      %v1869 = vadd.f32 %v1563, %v1749
      %v1870 = vadd.f32 %v1564, %v1752
      %v1871 = vadd.f32 %v1565, %v1757
      %v1872 = vadd.f32 %v1566, %v1760
      %v1873 = vadd.f32 %v1567, %v1765
      %v1874 = vadd.f32 %v1568, %v1768
      %v1875 = vadd.f32 %v1569, %v1773
      %v1876 = vadd.f32 %v1570, %v1776
      %v1877 = vadd.f32 %v1571, %v1781
      %v1878 = vadd.f32 %v1572, %v1784
      %v1879 = vadd.f32 %v1573, %v1789
      %v1880 = vadd.f32 %v1574, %v1792
      %v1881 = vadd.f32 %v1575, %v1797
      %v1882 = vadd.f32 %v1576, %v1800
      %v1883 = vadd.f32 %v1577, %v1805
      %v1884 = vadd.f32 %v1578, %v1808
      %v1885 = vadd.f32 %v1579, %v1813
      %v1886 = vadd.f32 %v1580, %v1816
      %v1887 = vadd.f32 %v1581, %v1821
      %v1888 = vadd.f32 %v1582, %v1824
      %v1889 = vadd.f32 %v1583, %v1829
      %v1890 = vadd.f32 %v1584, %v1832
      %v1891 = vadd.f32 %v1585, %v1837
      %v1892 = vadd.f32 %v1586, %v1840
      %v1893 = vadd.f32 %v1587, %v1845
      %v1894 = vadd.f32 %v1588, %v1848
      %v1895 = vadd.f32 %v1589, %v1853
      %v1896 = vadd.f32 %v1590, %v1856
      %v1897 = vadd.f32 %v1591, %v1861
      %v1898 = vadd.f32 %v1592, %v1864
      %v1899 = vld [vmem:[%s401 + $0x2] sm:$0xff]
      %v1900 = vld [vmem:[%s401 + $0xa] sm:$0xff]
      %v1901 = vld [vmem:[%s401 + $0x1a] sm:$0xff]
      %v1902 = vld [vmem:[%s401 + $0x22] sm:$0xff]
      %v1903 = vld [vmem:[%s401 + $0x32] sm:$0xff]
      %v1904 = vld [vmem:[%s401 + $0x3a] sm:$0xff]
      %v1905 = vld [vmem:[%s401 + $0x4a] sm:$0xff]
      %v1906 = vld [vmem:[%s401 + $0x52] sm:$0xff]
      %v1907 = vld [vmem:[%s401 + $0x62] sm:$0xff]
      %v1908 = vld [vmem:[%s401 + $0x6a] sm:$0xff]
      %v1909 = vld [vmem:[%s401 + $0x7a] sm:$0xff]
      %v1910 = vld [vmem:[%s401 + $0x82] sm:$0xff]
      %v1911 = vld [vmem:[%s401 + $0x92] sm:$0xff]
      %v1912 = vld [vmem:[%s401 + $0x9a] sm:$0xff]
      %v1913 = vld [vmem:[%s401 + $0xaa] sm:$0xff]
      %v1914 = vld [vmem:[%s401 + $0xb2] sm:$0xff]
      %v1915 = vld [vmem:[%s401 + $0xc2] sm:$0xff]
      %v1916 = vld [vmem:[%s401 + $0xca] sm:$0xff]
      %v1917 = vld [vmem:[%s401 + $0xda] sm:$0xff]
      %v1918 = vld [vmem:[%s401 + $0xe2] sm:$0xff]
      %v1919 = vld [vmem:[%s401 + $0xf2] sm:$0xff]
      %v1920 = vld [vmem:[%s401 + $0xfa] sm:$0xff]
      %v1921 = vld [vmem:[%s401 + $0x10a] sm:$0xff]
      %v1922 = vld [vmem:[%s401 + $0x112] sm:$0xff]
      %v1923 = vld [vmem:[%s401 + $0x122] sm:$0xff]
      %v1924 = vld [vmem:[%s401 + $0x12a] sm:$0xff]
      %v1925 = vld [vmem:[%s401 + $0x13a] sm:$0xff]
      %v1926 = vld [vmem:[%s401 + $0x142] sm:$0xff]
      %v1927 = vld [vmem:[%s401 + $0x152] sm:$0xff]
      %v1928 = vld [vmem:[%s401 + $0x15a] sm:$0xff]
      %v1929 = vld [vmem:[%s401 + $0x16a] sm:$0xff]
      %v1930 = vld [vmem:[%s401 + $0x172] sm:$0xff]
      %v1931 = vpack.c.bf16 %v1900, %v1899
      %v1932 = vpack.c.bf16 %v1902, %v1901
      %v1933 = vpack.c.bf16 %v1904, %v1903
      %v1934 = vpack.c.bf16 %v1906, %v1905
      %v1935 = vpack.c.bf16 %v1908, %v1907
      %v1936 = vpack.c.bf16 %v1910, %v1909
      %v1937 = vpack.c.bf16 %v1912, %v1911
      %v1938 = vpack.c.bf16 %v1914, %v1913
      %v1939 = vpack.c.bf16 %v1916, %v1915
      %v1940 = vpack.c.bf16 %v1918, %v1917
      %v1941 = vpack.c.bf16 %v1920, %v1919
      %v1942 = vpack.c.bf16 %v1922, %v1921
      %v1943 = vpack.c.bf16 %v1924, %v1923
      %v1944 = vpack.c.bf16 %v1926, %v1925
      %v1945 = vpack.c.bf16 %v1928, %v1927
      %v1946 = vpack.c.bf16 %v1930, %v1929
      %s1947 = scalar_lea.vmem %s2, 320
      %v1948 = vld [vmem:[%s1947] sm:$0xf]
      %v1949 = vld [vmem:[%s1947 + $0x4] sm:$0xf]
      %v1950 = vld [vmem:[%s1947 + $0x8] sm:$0xf]
      %v1951 = vld [vmem:[%s1947 + $0xc] sm:$0xf]
      %v1952 = vld [vmem:[%s1947 + $0x10] sm:$0xf]
      %v1953 = vld [vmem:[%s1947 + $0x14] sm:$0xf]
      %v1954 = vld [vmem:[%s1947 + $0x18] sm:$0xf]
      %v1955 = vld [vmem:[%s1947 + $0x1c] sm:$0xf]
      %v1956 = vld [vmem:[%s1947 + $0x20] sm:$0xf]
      %v1957 = vld [vmem:[%s1947 + $0x24] sm:$0xf]
      %v1958 = vld [vmem:[%s1947 + $0x28] sm:$0xf]
      %v1959 = vld [vmem:[%s1947 + $0x2c] sm:$0xf]
      %v1960 = vld [vmem:[%s1947 + $0x30] sm:$0xf]
      %v1961 = vld [vmem:[%s1947 + $0x34] sm:$0xf]
      %v1962 = vld [vmem:[%s1947 + $0x38] sm:$0xf]
      %v1963 = vld [vmem:[%s1947 + $0x3c] sm:$0xf]
      %v1980 = vunpack.c.l.b16 %v1948
      %v1981 = vunpack.c.l.b16 %v1949
      %v1982 = vunpack.c.l.b16 %v1950
      %v1983 = vunpack.c.l.b16 %v1951
      %v1984 = vunpack.c.l.b16 %v1952
      %v1985 = vunpack.c.l.b16 %v1953
      %v1986 = vunpack.c.l.b16 %v1954
      %v1987 = vunpack.c.l.b16 %v1955
      %v1988 = vunpack.c.l.b16 %v1956
      %v1989 = vunpack.c.l.b16 %v1957
      %v1990 = vunpack.c.l.b16 %v1958
      %v1991 = vunpack.c.l.b16 %v1959
      %v1992 = vunpack.c.l.b16 %v1960
      %v1993 = vunpack.c.l.b16 %v1961
      %v1994 = vunpack.c.l.b16 %v1962
      %v1995 = vunpack.c.l.b16 %v1963
      %v1996 = vpack.c.b16 %v1981, %v1980
      %v1997 = vpack.c.b16 %v1983, %v1982
      %v1998 = vpack.c.b16 %v1985, %v1984
      %v1999 = vpack.c.b16 %v1987, %v1986
      %v2000 = vpack.c.b16 %v1989, %v1988
      %v2001 = vpack.c.b16 %v1991, %v1990
      %v2002 = vpack.c.b16 %v1993, %v1992
      %v2003 = vpack.c.b16 %v1995, %v1994
      %2012 = vmatprep.subr.bf16.mxu0 0
      %2013 = vmatpush1.bf16.msra.mxu0 %v2003
      %2014 = vmatprep.subr.bf16.mxu0 0
      %2015 = vmatpush1.bf16.msra.mxu0 %v2002
      %2016 = vmatprep.subr.bf16.mxu0 0
      %2017 = vmatpush1.bf16.msra.mxu0 %v2001
      %2018 = vmatprep.subr.bf16.mxu0 0
      %2019 = vmatpush1.bf16.msra.mxu0 %v2000
      %2020 = vmatprep.subr.bf16.mxu0 0
      %2021 = vmatpush1.bf16.msra.mxu0 %v1999
      %2022 = vmatprep.subr.bf16.mxu0 0
      %2023 = vmatpush1.bf16.msra.mxu0 %v1998
      %2024 = vmatprep.subr.bf16.mxu0 0
      %2025 = vmatpush1.bf16.msra.mxu0 %v1997
      %2026 = vmatprep.subr.bf16.mxu0 0
      %2027 = vmatpush1.bf16.msra.mxu0 %v1996
      %2028 = vmatprep.subr.bf16.mxu0 0
      %2029 = vmatpush2.bf16.msra.mxu0 0
      %2030 = vmatprep.subr.bf16.mxu0 0
      %2031 = vmatpush2.bf16.msra.mxu0 0
      %2032 = vmatprep.subr.bf16.mxu0 0
      %2033 = vmatpush2.bf16.msra.mxu0 0
      %2034 = vmatprep.subr.bf16.mxu0 0
      %2035 = vmatpush2.bf16.msra.mxu0 0
      %2036 = vmatprep.subr.bf16.mxu0 0
      %2037 = vmatpush2.bf16.msra.mxu0 0
      %2038 = vmatprep.subr.bf16.mxu0 0
      %2039 = vmatpush2.bf16.msra.mxu0 0
      %2040 = vmatprep.subr.bf16.mxu0 0
      %2041 = vmatpush2.bf16.msra.mxu0 0
      %2042 = vmatprep.subr.bf16.mxu0 0
      %2043 = vmatpush2.bf16.msra.mxu0 0
      %2044 = vmatprep.mubr.bf16.mxu0 0
      %2045 = vmatmul.mubr.bf16.gmra.mxu0 %v1931
      %v2046 = vpop.f32.mrf.mxu0
      %v2047 = vadd.f32 0.0, %v2046
      %v2048 = vpop.f32.mrf.mxu0
      %v2049 = vpop.f32.mrf.mxu0
      %v2050 = vadd.f32 0.0, %v2049
      %v2051 = vpop.f32.mrf.mxu0
      %2052 = vmatprep.mubr.bf16.mxu0 0
      %2053 = vmatmul.mubr.bf16.gmra.mxu0 %v1932
      %v2054 = vpop.f32.mrf.mxu0
      %v2055 = vadd.f32 0.0, %v2054
      %v2056 = vpop.f32.mrf.mxu0
      %v2057 = vpop.f32.mrf.mxu0
      %v2058 = vadd.f32 0.0, %v2057
      %v2059 = vpop.f32.mrf.mxu0
      %2060 = vmatprep.mubr.bf16.mxu0 0
      %2061 = vmatmul.mubr.bf16.gmra.mxu0 %v1933
      %v2062 = vpop.f32.mrf.mxu0
      %v2063 = vadd.f32 0.0, %v2062
      %v2064 = vpop.f32.mrf.mxu0
      %v2065 = vpop.f32.mrf.mxu0
      %v2066 = vadd.f32 0.0, %v2065
      %v2067 = vpop.f32.mrf.mxu0
      %2068 = vmatprep.mubr.bf16.mxu0 0
      %2069 = vmatmul.mubr.bf16.gmra.mxu0 %v1934
      %v2070 = vpop.f32.mrf.mxu0
      %v2071 = vadd.f32 0.0, %v2070
      %v2072 = vpop.f32.mrf.mxu0
      %v2073 = vpop.f32.mrf.mxu0
      %v2074 = vadd.f32 0.0, %v2073
      %v2075 = vpop.f32.mrf.mxu0
      %2076 = vmatprep.mubr.bf16.mxu0 0
      %2077 = vmatmul.mubr.bf16.gmra.mxu0 %v1935
      %v2078 = vpop.f32.mrf.mxu0
      %v2079 = vadd.f32 0.0, %v2078
      %v2080 = vpop.f32.mrf.mxu0
      %v2081 = vpop.f32.mrf.mxu0
      %v2082 = vadd.f32 0.0, %v2081
      %v2083 = vpop.f32.mrf.mxu0
      %2084 = vmatprep.mubr.bf16.mxu0 0
      %2085 = vmatmul.mubr.bf16.gmra.mxu0 %v1936
      %v2086 = vpop.f32.mrf.mxu0
      %v2087 = vadd.f32 0.0, %v2086
      %v2088 = vpop.f32.mrf.mxu0
      %v2089 = vpop.f32.mrf.mxu0
      %v2090 = vadd.f32 0.0, %v2089
      %v2091 = vpop.f32.mrf.mxu0
      %2092 = vmatprep.mubr.bf16.mxu0 0
      %2093 = vmatmul.mubr.bf16.gmra.mxu0 %v1937
      %v2094 = vpop.f32.mrf.mxu0
      %v2095 = vadd.f32 0.0, %v2094
      %v2096 = vpop.f32.mrf.mxu0
      %v2097 = vpop.f32.mrf.mxu0
      %v2098 = vadd.f32 0.0, %v2097
      %v2099 = vpop.f32.mrf.mxu0
      %2100 = vmatprep.mubr.bf16.mxu0 0
      %2101 = vmatmul.mubr.bf16.gmra.mxu0 %v1938
      %v2102 = vpop.f32.mrf.mxu0
      %v2103 = vadd.f32 0.0, %v2102
      %v2104 = vpop.f32.mrf.mxu0
      %v2105 = vpop.f32.mrf.mxu0
      %v2106 = vadd.f32 0.0, %v2105
      %v2107 = vpop.f32.mrf.mxu0
      %2108 = vmatprep.mubr.bf16.mxu0 0
      %2109 = vmatmul.mubr.bf16.gmra.mxu0 %v1939
      %v2110 = vpop.f32.mrf.mxu0
      %v2111 = vadd.f32 0.0, %v2110
      %v2112 = vpop.f32.mrf.mxu0
      %v2113 = vpop.f32.mrf.mxu0
      %v2114 = vadd.f32 0.0, %v2113
      %v2115 = vpop.f32.mrf.mxu0
      %2116 = vmatprep.mubr.bf16.mxu0 0
      %2117 = vmatmul.mubr.bf16.gmra.mxu0 %v1940
      %v2118 = vpop.f32.mrf.mxu0
      %v2119 = vadd.f32 0.0, %v2118
      %v2120 = vpop.f32.mrf.mxu0
      %v2121 = vpop.f32.mrf.mxu0
      %v2122 = vadd.f32 0.0, %v2121
      %v2123 = vpop.f32.mrf.mxu0
      %2124 = vmatprep.mubr.bf16.mxu0 0
      %2125 = vmatmul.mubr.bf16.gmra.mxu0 %v1941
      %v2126 = vpop.f32.mrf.mxu0
      %v2127 = vadd.f32 0.0, %v2126
      %v2128 = vpop.f32.mrf.mxu0
      %v2129 = vpop.f32.mrf.mxu0
      %v2130 = vadd.f32 0.0, %v2129
      %v2131 = vpop.f32.mrf.mxu0
      %2132 = vmatprep.mubr.bf16.mxu0 0
      %2133 = vmatmul.mubr.bf16.gmra.mxu0 %v1942
      %v2134 = vpop.f32.mrf.mxu0
      %v2135 = vadd.f32 0.0, %v2134
      %v2136 = vpop.f32.mrf.mxu0
      %v2137 = vpop.f32.mrf.mxu0
      %v2138 = vadd.f32 0.0, %v2137
      %v2139 = vpop.f32.mrf.mxu0
      %2140 = vmatprep.mubr.bf16.mxu0 0
      %2141 = vmatmul.mubr.bf16.gmra.mxu0 %v1943
      %v2142 = vpop.f32.mrf.mxu0
      %v2143 = vadd.f32 0.0, %v2142
      %v2144 = vpop.f32.mrf.mxu0
      %v2145 = vpop.f32.mrf.mxu0
      %v2146 = vadd.f32 0.0, %v2145
      %v2147 = vpop.f32.mrf.mxu0
      %2148 = vmatprep.mubr.bf16.mxu0 0
      %2149 = vmatmul.mubr.bf16.gmra.mxu0 %v1944
      %v2150 = vpop.f32.mrf.mxu0
      %v2151 = vadd.f32 0.0, %v2150
      %v2152 = vpop.f32.mrf.mxu0
      %v2153 = vpop.f32.mrf.mxu0
      %v2154 = vadd.f32 0.0, %v2153
      %v2155 = vpop.f32.mrf.mxu0
      %2156 = vmatprep.mubr.bf16.mxu0 0
      %2157 = vmatmul.mubr.bf16.gmra.mxu0 %v1945
      %v2158 = vpop.f32.mrf.mxu0
      %v2159 = vadd.f32 0.0, %v2158
      %v2160 = vpop.f32.mrf.mxu0
      %v2161 = vpop.f32.mrf.mxu0
      %v2162 = vadd.f32 0.0, %v2161
      %v2163 = vpop.f32.mrf.mxu0
      %2164 = vmatprep.mubr.bf16.mxu0 0
      %2165 = vmatmul.mubr.bf16.gmra.mxu0 %v1946
      %v2166 = vpop.f32.mrf.mxu0
      %v2167 = vadd.f32 0.0, %v2166
      %v2168 = vpop.f32.mrf.mxu0
      %v2169 = vpop.f32.mrf.mxu0
      %v2170 = vadd.f32 0.0, %v2169
      %v2171 = vpop.f32.mrf.mxu0
      %2172 = vdwg.mxu0
      %v2173 = vadd.f32 %v1867, %v2047
      %v2174 = vadd.f32 %v1868, %v2050
      %v2175 = vadd.f32 %v1869, %v2055
      %v2176 = vadd.f32 %v1870, %v2058
      %v2177 = vadd.f32 %v1871, %v2063
      %v2178 = vadd.f32 %v1872, %v2066
      %v2179 = vadd.f32 %v1873, %v2071
      %v2180 = vadd.f32 %v1874, %v2074
      %v2181 = vadd.f32 %v1875, %v2079
      %v2182 = vadd.f32 %v1876, %v2082
      %v2183 = vadd.f32 %v1877, %v2087
      %v2184 = vadd.f32 %v1878, %v2090
      %v2185 = vadd.f32 %v1879, %v2095
      %v2186 = vadd.f32 %v1880, %v2098
      %v2187 = vadd.f32 %v1881, %v2103
      %v2188 = vadd.f32 %v1882, %v2106
      %v2189 = vadd.f32 %v1883, %v2111
      %v2190 = vadd.f32 %v1884, %v2114
      %v2191 = vadd.f32 %v1885, %v2119
      %v2192 = vadd.f32 %v1886, %v2122
      %v2193 = vadd.f32 %v1887, %v2127
      %v2194 = vadd.f32 %v1888, %v2130
      %v2195 = vadd.f32 %v1889, %v2135
      %v2196 = vadd.f32 %v1890, %v2138
      %v2197 = vadd.f32 %v1891, %v2143
      %v2198 = vadd.f32 %v1892, %v2146
      %v2199 = vadd.f32 %v1893, %v2151
      %v2200 = vadd.f32 %v1894, %v2154
      %v2201 = vadd.f32 %v1895, %v2159
      %v2202 = vadd.f32 %v1896, %v2162
      %v2203 = vadd.f32 %v1897, %v2167
      %v2204 = vadd.f32 %v1898, %v2170
      %s2205 = scalar_lea.vmem [#allocation2], 48
      %v2206 = vld [vmem:[%s2205] sm:$0xff]
      %v2207 = vld [vmem:[%s2205 + $0x8] sm:$0xff]
      %v2208 = vld [vmem:[%s2205 + $0x18] sm:$0xff]
      %v2209 = vld [vmem:[%s2205 + $0x20] sm:$0xff]
      %v2210 = vld [vmem:[%s2205 + $0x30] sm:$0xff]
      %v2211 = vld [vmem:[%s2205 + $0x38] sm:$0xff]
      %v2212 = vld [vmem:[%s2205 + $0x48] sm:$0xff]
      %v2213 = vld [vmem:[%s2205 + $0x50] sm:$0xff]
      %v2214 = vld [vmem:[%s2205 + $0x60] sm:$0xff]
      %v2215 = vld [vmem:[%s2205 + $0x68] sm:$0xff]
      %v2216 = vld [vmem:[%s2205 + $0x78] sm:$0xff]
      %v2217 = vld [vmem:[%s2205 + $0x80] sm:$0xff]
      %v2218 = vld [vmem:[%s2205 + $0x90] sm:$0xff]
      %v2219 = vld [vmem:[%s2205 + $0x98] sm:$0xff]
      %v2220 = vld [vmem:[%s2205 + $0xa8] sm:$0xff]
      %v2221 = vld [vmem:[%s2205 + $0xb0] sm:$0xff]
      %v2222 = vld [vmem:[%s2205 + $0xc0] sm:$0xff]
      %v2223 = vld [vmem:[%s2205 + $0xc8] sm:$0xff]
      %v2224 = vld [vmem:[%s2205 + $0xd8] sm:$0xff]
      %v2225 = vld [vmem:[%s2205 + $0xe0] sm:$0xff]
      %v2226 = vld [vmem:[%s2205 + $0xf0] sm:$0xff]
      %v2227 = vld [vmem:[%s2205 + $0xf8] sm:$0xff]
      %v2228 = vld [vmem:[%s2205 + $0x108] sm:$0xff]
      %v2229 = vld [vmem:[%s2205 + $0x110] sm:$0xff]
      %v2230 = vld [vmem:[%s2205 + $0x120] sm:$0xff]
      %v2231 = vld [vmem:[%s2205 + $0x128] sm:$0xff]
      %v2232 = vld [vmem:[%s2205 + $0x138] sm:$0xff]
      %v2233 = vld [vmem:[%s2205 + $0x140] sm:$0xff]
      %v2234 = vld [vmem:[%s2205 + $0x150] sm:$0xff]
      %v2235 = vld [vmem:[%s2205 + $0x158] sm:$0xff]
      %v2236 = vld [vmem:[%s2205 + $0x168] sm:$0xff]
      %v2237 = vld [vmem:[%s2205 + $0x170] sm:$0xff]
      %v2238 = vpack.c.bf16 %v2207, %v2206
      %v2239 = vpack.c.bf16 %v2209, %v2208
      %v2240 = vpack.c.bf16 %v2211, %v2210
      %v2241 = vpack.c.bf16 %v2213, %v2212
      %v2242 = vpack.c.bf16 %v2215, %v2214
      %v2243 = vpack.c.bf16 %v2217, %v2216
      %v2244 = vpack.c.bf16 %v2219, %v2218
      %v2245 = vpack.c.bf16 %v2221, %v2220
      %v2246 = vpack.c.bf16 %v2223, %v2222
      %v2247 = vpack.c.bf16 %v2225, %v2224
      %v2248 = vpack.c.bf16 %v2227, %v2226
      %v2249 = vpack.c.bf16 %v2229, %v2228
      %v2250 = vpack.c.bf16 %v2231, %v2230
      %v2251 = vpack.c.bf16 %v2233, %v2232
      %v2252 = vpack.c.bf16 %v2235, %v2234
      %v2253 = vpack.c.bf16 %v2237, %v2236
      %s2254 = scalar_lea.vmem %s2, 384
      %v2255 = vld [vmem:[%s2254] sm:$0xf]
      %v2256 = vld [vmem:[%s2254 + $0x4] sm:$0xf]
      %v2257 = vld [vmem:[%s2254 + $0x8] sm:$0xf]
      %v2258 = vld [vmem:[%s2254 + $0xc] sm:$0xf]
      %v2259 = vld [vmem:[%s2254 + $0x10] sm:$0xf]
      %v2260 = vld [vmem:[%s2254 + $0x14] sm:$0xf]
      %v2261 = vld [vmem:[%s2254 + $0x18] sm:$0xf]
      %v2262 = vld [vmem:[%s2254 + $0x1c] sm:$0xf]
      %v2263 = vld [vmem:[%s2254 + $0x20] sm:$0xf]
      %v2264 = vld [vmem:[%s2254 + $0x24] sm:$0xf]
      %v2265 = vld [vmem:[%s2254 + $0x28] sm:$0xf]
      %v2266 = vld [vmem:[%s2254 + $0x2c] sm:$0xf]
      %v2267 = vld [vmem:[%s2254 + $0x30] sm:$0xf]
      %v2268 = vld [vmem:[%s2254 + $0x34] sm:$0xf]
      %v2269 = vld [vmem:[%s2254 + $0x38] sm:$0xf]
      %v2270 = vld [vmem:[%s2254 + $0x3c] sm:$0xf]
      %v2287 = vunpack.c.l.b16 %v2255
      %v2288 = vunpack.c.l.b16 %v2256
      %v2289 = vunpack.c.l.b16 %v2257
      %v2290 = vunpack.c.l.b16 %v2258
      %v2291 = vunpack.c.l.b16 %v2259
      %v2292 = vunpack.c.l.b16 %v2260
      %v2293 = vunpack.c.l.b16 %v2261
      %v2294 = vunpack.c.l.b16 %v2262
      %v2295 = vunpack.c.l.b16 %v2263
      %v2296 = vunpack.c.l.b16 %v2264
      %v2297 = vunpack.c.l.b16 %v2265
      %v2298 = vunpack.c.l.b16 %v2266
      %v2299 = vunpack.c.l.b16 %v2267
      %v2300 = vunpack.c.l.b16 %v2268
      %v2301 = vunpack.c.l.b16 %v2269
      %v2302 = vunpack.c.l.b16 %v2270
      %v2303 = vpack.c.b16 %v2288, %v2287
      %v2304 = vpack.c.b16 %v2290, %v2289
      %v2305 = vpack.c.b16 %v2292, %v2291
      %v2306 = vpack.c.b16 %v2294, %v2293
      %v2307 = vpack.c.b16 %v2296, %v2295
      %v2308 = vpack.c.b16 %v2298, %v2297
      %v2309 = vpack.c.b16 %v2300, %v2299
      %v2310 = vpack.c.b16 %v2302, %v2301
      %2319 = vmatprep.subr.bf16.mxu0 0
      %2320 = vmatpush1.bf16.msra.mxu0 %v2310
      %2321 = vmatprep.subr.bf16.mxu0 0
      %2322 = vmatpush1.bf16.msra.mxu0 %v2309
      %2323 = vmatprep.subr.bf16.mxu0 0
      %2324 = vmatpush1.bf16.msra.mxu0 %v2308
      %2325 = vmatprep.subr.bf16.mxu0 0
      %2326 = vmatpush1.bf16.msra.mxu0 %v2307
      %2327 = vmatprep.subr.bf16.mxu0 0
      %2328 = vmatpush1.bf16.msra.mxu0 %v2306
      %2329 = vmatprep.subr.bf16.mxu0 0
      %2330 = vmatpush1.bf16.msra.mxu0 %v2305
      %2331 = vmatprep.subr.bf16.mxu0 0
      %2332 = vmatpush1.bf16.msra.mxu0 %v2304
      %2333 = vmatprep.subr.bf16.mxu0 0
      %2334 = vmatpush1.bf16.msra.mxu0 %v2303
      %2335 = vmatprep.subr.bf16.mxu0 0
      %2336 = vmatpush2.bf16.msra.mxu0 0
      %2337 = vmatprep.subr.bf16.mxu0 0
      %2338 = vmatpush2.bf16.msra.mxu0 0
      %2339 = vmatprep.subr.bf16.mxu0 0
      %2340 = vmatpush2.bf16.msra.mxu0 0
      %2341 = vmatprep.subr.bf16.mxu0 0
      %2342 = vmatpush2.bf16.msra.mxu0 0
      %2343 = vmatprep.subr.bf16.mxu0 0
      %2344 = vmatpush2.bf16.msra.mxu0 0
      %2345 = vmatprep.subr.bf16.mxu0 0
      %2346 = vmatpush2.bf16.msra.mxu0 0
      %2347 = vmatprep.subr.bf16.mxu0 0
      %2348 = vmatpush2.bf16.msra.mxu0 0
      %2349 = vmatprep.subr.bf16.mxu0 0
      %2350 = vmatpush2.bf16.msra.mxu0 0
      %2351 = vmatprep.mubr.bf16.mxu0 0
      %2352 = vmatmul.mubr.bf16.gmra.mxu0 %v2238
      %v2353 = vpop.f32.mrf.mxu0
      %v2354 = vadd.f32 0.0, %v2353
      %v2355 = vpop.f32.mrf.mxu0
      %v2356 = vpop.f32.mrf.mxu0
      %v2357 = vadd.f32 0.0, %v2356
      %v2358 = vpop.f32.mrf.mxu0
      %2359 = vmatprep.mubr.bf16.mxu0 0
      %2360 = vmatmul.mubr.bf16.gmra.mxu0 %v2239
      %v2361 = vpop.f32.mrf.mxu0
      %v2362 = vadd.f32 0.0, %v2361
      %v2363 = vpop.f32.mrf.mxu0
      %v2364 = vpop.f32.mrf.mxu0
      %v2365 = vadd.f32 0.0, %v2364
      %v2366 = vpop.f32.mrf.mxu0
      %2367 = vmatprep.mubr.bf16.mxu0 0
      %2368 = vmatmul.mubr.bf16.gmra.mxu0 %v2240
      %v2369 = vpop.f32.mrf.mxu0
      %v2370 = vadd.f32 0.0, %v2369
      %v2371 = vpop.f32.mrf.mxu0
      %v2372 = vpop.f32.mrf.mxu0
      %v2373 = vadd.f32 0.0, %v2372
      %v2374 = vpop.f32.mrf.mxu0
      %2375 = vmatprep.mubr.bf16.mxu0 0
      %2376 = vmatmul.mubr.bf16.gmra.mxu0 %v2241
      %v2377 = vpop.f32.mrf.mxu0
      %v2378 = vadd.f32 0.0, %v2377
      %v2379 = vpop.f32.mrf.mxu0
      %v2380 = vpop.f32.mrf.mxu0
      %v2381 = vadd.f32 0.0, %v2380
      %v2382 = vpop.f32.mrf.mxu0
      %2383 = vmatprep.mubr.bf16.mxu0 0
      %2384 = vmatmul.mubr.bf16.gmra.mxu0 %v2242
      %v2385 = vpop.f32.mrf.mxu0
      %v2386 = vadd.f32 0.0, %v2385
      %v2387 = vpop.f32.mrf.mxu0
      %v2388 = vpop.f32.mrf.mxu0
      %v2389 = vadd.f32 0.0, %v2388
      %v2390 = vpop.f32.mrf.mxu0
      %2391 = vmatprep.mubr.bf16.mxu0 0
      %2392 = vmatmul.mubr.bf16.gmra.mxu0 %v2243
      %v2393 = vpop.f32.mrf.mxu0
      %v2394 = vadd.f32 0.0, %v2393
      %v2395 = vpop.f32.mrf.mxu0
      %v2396 = vpop.f32.mrf.mxu0
      %v2397 = vadd.f32 0.0, %v2396
      %v2398 = vpop.f32.mrf.mxu0
      %2399 = vmatprep.mubr.bf16.mxu0 0
      %2400 = vmatmul.mubr.bf16.gmra.mxu0 %v2244
      %v2401 = vpop.f32.mrf.mxu0
      %v2402 = vadd.f32 0.0, %v2401
      %v2403 = vpop.f32.mrf.mxu0
      %v2404 = vpop.f32.mrf.mxu0
      %v2405 = vadd.f32 0.0, %v2404
      %v2406 = vpop.f32.mrf.mxu0
      %2407 = vmatprep.mubr.bf16.mxu0 0
      %2408 = vmatmul.mubr.bf16.gmra.mxu0 %v2245
      %v2409 = vpop.f32.mrf.mxu0
      %v2410 = vadd.f32 0.0, %v2409
      %v2411 = vpop.f32.mrf.mxu0
      %v2412 = vpop.f32.mrf.mxu0
      %v2413 = vadd.f32 0.0, %v2412
      %v2414 = vpop.f32.mrf.mxu0
      %2415 = vmatprep.mubr.bf16.mxu0 0
      %2416 = vmatmul.mubr.bf16.gmra.mxu0 %v2246
      %v2417 = vpop.f32.mrf.mxu0
      %v2418 = vadd.f32 0.0, %v2417
      %v2419 = vpop.f32.mrf.mxu0
      %v2420 = vpop.f32.mrf.mxu0
      %v2421 = vadd.f32 0.0, %v2420
      %v2422 = vpop.f32.mrf.mxu0
      %2423 = vmatprep.mubr.bf16.mxu0 0
      %2424 = vmatmul.mubr.bf16.gmra.mxu0 %v2247
      %v2425 = vpop.f32.mrf.mxu0
      %v2426 = vadd.f32 0.0, %v2425
      %v2427 = vpop.f32.mrf.mxu0
      %v2428 = vpop.f32.mrf.mxu0
      %v2429 = vadd.f32 0.0, %v2428
      %v2430 = vpop.f32.mrf.mxu0
      %2431 = vmatprep.mubr.bf16.mxu0 0
      %2432 = vmatmul.mubr.bf16.gmra.mxu0 %v2248
      %v2433 = vpop.f32.mrf.mxu0
      %v2434 = vadd.f32 0.0, %v2433
      %v2435 = vpop.f32.mrf.mxu0
      %v2436 = vpop.f32.mrf.mxu0
      %v2437 = vadd.f32 0.0, %v2436
      %v2438 = vpop.f32.mrf.mxu0
      %2439 = vmatprep.mubr.bf16.mxu0 0
      %2440 = vmatmul.mubr.bf16.gmra.mxu0 %v2249
      %v2441 = vpop.f32.mrf.mxu0
      %v2442 = vadd.f32 0.0, %v2441
      %v2443 = vpop.f32.mrf.mxu0
      %v2444 = vpop.f32.mrf.mxu0
      %v2445 = vadd.f32 0.0, %v2444
      %v2446 = vpop.f32.mrf.mxu0
      %2447 = vmatprep.mubr.bf16.mxu0 0
      %2448 = vmatmul.mubr.bf16.gmra.mxu0 %v2250
      %v2449 = vpop.f32.mrf.mxu0
      %v2450 = vadd.f32 0.0, %v2449
      %v2451 = vpop.f32.mrf.mxu0
      %v2452 = vpop.f32.mrf.mxu0
      %v2453 = vadd.f32 0.0, %v2452
      %v2454 = vpop.f32.mrf.mxu0
      %2455 = vmatprep.mubr.bf16.mxu0 0
      %2456 = vmatmul.mubr.bf16.gmra.mxu0 %v2251
      %v2457 = vpop.f32.mrf.mxu0
      %v2458 = vadd.f32 0.0, %v2457
      %v2459 = vpop.f32.mrf.mxu0
      %v2460 = vpop.f32.mrf.mxu0
      %v2461 = vadd.f32 0.0, %v2460
      %v2462 = vpop.f32.mrf.mxu0
      %2463 = vmatprep.mubr.bf16.mxu0 0
      %2464 = vmatmul.mubr.bf16.gmra.mxu0 %v2252
      %v2465 = vpop.f32.mrf.mxu0
      %v2466 = vadd.f32 0.0, %v2465
      %v2467 = vpop.f32.mrf.mxu0
      %v2468 = vpop.f32.mrf.mxu0
      %v2469 = vadd.f32 0.0, %v2468
      %v2470 = vpop.f32.mrf.mxu0
      %2471 = vmatprep.mubr.bf16.mxu0 0
      %2472 = vmatmul.mubr.bf16.gmra.mxu0 %v2253
      %v2473 = vpop.f32.mrf.mxu0
      %v2474 = vadd.f32 0.0, %v2473
      %v2475 = vpop.f32.mrf.mxu0
      %v2476 = vpop.f32.mrf.mxu0
      %v2477 = vadd.f32 0.0, %v2476
      %v2478 = vpop.f32.mrf.mxu0
      %2479 = vdwg.mxu0
      %v2480 = vadd.f32 %v2173, %v2354
      %v2481 = vadd.f32 %v2174, %v2357
      %v2482 = vadd.f32 %v2175, %v2362
      %v2483 = vadd.f32 %v2176, %v2365
      %v2484 = vadd.f32 %v2177, %v2370
      %v2485 = vadd.f32 %v2178, %v2373
      %v2486 = vadd.f32 %v2179, %v2378
      %v2487 = vadd.f32 %v2180, %v2381
      %v2488 = vadd.f32 %v2181, %v2386
      %v2489 = vadd.f32 %v2182, %v2389
      %v2490 = vadd.f32 %v2183, %v2394
      %v2491 = vadd.f32 %v2184, %v2397
      %v2492 = vadd.f32 %v2185, %v2402
      %v2493 = vadd.f32 %v2186, %v2405
      %v2494 = vadd.f32 %v2187, %v2410
      %v2495 = vadd.f32 %v2188, %v2413
      %v2496 = vadd.f32 %v2189, %v2418
      %v2497 = vadd.f32 %v2190, %v2421
      %v2498 = vadd.f32 %v2191, %v2426
      %v2499 = vadd.f32 %v2192, %v2429
      %v2500 = vadd.f32 %v2193, %v2434
      %v2501 = vadd.f32 %v2194, %v2437
      %v2502 = vadd.f32 %v2195, %v2442
      %v2503 = vadd.f32 %v2196, %v2445
      %v2504 = vadd.f32 %v2197, %v2450
      %v2505 = vadd.f32 %v2198, %v2453
      %v2506 = vadd.f32 %v2199, %v2458
      %v2507 = vadd.f32 %v2200, %v2461
      %v2508 = vadd.f32 %v2201, %v2466
      %v2509 = vadd.f32 %v2202, %v2469
      %v2510 = vadd.f32 %v2203, %v2474
      %v2511 = vadd.f32 %v2204, %v2477
      %v2512 = vld [vmem:[%s2205 + $0x1] sm:$0xff]
      %v2513 = vld [vmem:[%s2205 + $0x9] sm:$0xff]
      %v2514 = vld [vmem:[%s2205 + $0x19] sm:$0xff]
      %v2515 = vld [vmem:[%s2205 + $0x21] sm:$0xff]
      %v2516 = vld [vmem:[%s2205 + $0x31] sm:$0xff]
      %v2517 = vld [vmem:[%s2205 + $0x39] sm:$0xff]
      %v2518 = vld [vmem:[%s2205 + $0x49] sm:$0xff]
      %v2519 = vld [vmem:[%s2205 + $0x51] sm:$0xff]
      %v2520 = vld [vmem:[%s2205 + $0x61] sm:$0xff]
      %v2521 = vld [vmem:[%s2205 + $0x69] sm:$0xff]
      %v2522 = vld [vmem:[%s2205 + $0x79] sm:$0xff]
      %v2523 = vld [vmem:[%s2205 + $0x81] sm:$0xff]
      %v2524 = vld [vmem:[%s2205 + $0x91] sm:$0xff]
      %v2525 = vld [vmem:[%s2205 + $0x99] sm:$0xff]
      %v2526 = vld [vmem:[%s2205 + $0xa9] sm:$0xff]
      %v2527 = vld [vmem:[%s2205 + $0xb1] sm:$0xff]
      %v2528 = vld [vmem:[%s2205 + $0xc1] sm:$0xff]
      %v2529 = vld [vmem:[%s2205 + $0xc9] sm:$0xff]
      %v2530 = vld [vmem:[%s2205 + $0xd9] sm:$0xff]
      %v2531 = vld [vmem:[%s2205 + $0xe1] sm:$0xff]
      %v2532 = vld [vmem:[%s2205 + $0xf1] sm:$0xff]
      %v2533 = vld [vmem:[%s2205 + $0xf9] sm:$0xff]
      %v2534 = vld [vmem:[%s2205 + $0x109] sm:$0xff]
      %v2535 = vld [vmem:[%s2205 + $0x111] sm:$0xff]
      %v2536 = vld [vmem:[%s2205 + $0x121] sm:$0xff]
      %v2537 = vld [vmem:[%s2205 + $0x129] sm:$0xff]
      %v2538 = vld [vmem:[%s2205 + $0x139] sm:$0xff]
      %v2539 = vld [vmem:[%s2205 + $0x141] sm:$0xff]
      %v2540 = vld [vmem:[%s2205 + $0x151] sm:$0xff]
      %v2541 = vld [vmem:[%s2205 + $0x159] sm:$0xff]
      %v2542 = vld [vmem:[%s2205 + $0x169] sm:$0xff]
      %v2543 = vld [vmem:[%s2205 + $0x171] sm:$0xff]
      %v2544 = vpack.c.bf16 %v2513, %v2512
      %v2545 = vpack.c.bf16 %v2515, %v2514
      %v2546 = vpack.c.bf16 %v2517, %v2516
      %v2547 = vpack.c.bf16 %v2519, %v2518
      %v2548 = vpack.c.bf16 %v2521, %v2520
      %v2549 = vpack.c.bf16 %v2523, %v2522
      %v2550 = vpack.c.bf16 %v2525, %v2524
      %v2551 = vpack.c.bf16 %v2527, %v2526
      %v2552 = vpack.c.bf16 %v2529, %v2528
      %v2553 = vpack.c.bf16 %v2531, %v2530
      %v2554 = vpack.c.bf16 %v2533, %v2532
      %v2555 = vpack.c.bf16 %v2535, %v2534
      %v2556 = vpack.c.bf16 %v2537, %v2536
      %v2557 = vpack.c.bf16 %v2539, %v2538
      %v2558 = vpack.c.bf16 %v2541, %v2540
      %v2559 = vpack.c.bf16 %v2543, %v2542
      %s2560 = scalar_lea.vmem %s2, 448
      %v2561 = vld [vmem:[%s2560] sm:$0xf]
      %v2562 = vld [vmem:[%s2560 + $0x4] sm:$0xf]
      %v2563 = vld [vmem:[%s2560 + $0x8] sm:$0xf]
      %v2564 = vld [vmem:[%s2560 + $0xc] sm:$0xf]
      %v2565 = vld [vmem:[%s2560 + $0x10] sm:$0xf]
      %v2566 = vld [vmem:[%s2560 + $0x14] sm:$0xf]
      %v2567 = vld [vmem:[%s2560 + $0x18] sm:$0xf]
      %v2568 = vld [vmem:[%s2560 + $0x1c] sm:$0xf]
      %v2569 = vld [vmem:[%s2560 + $0x20] sm:$0xf]
      %v2570 = vld [vmem:[%s2560 + $0x24] sm:$0xf]
      %v2571 = vld [vmem:[%s2560 + $0x28] sm:$0xf]
      %v2572 = vld [vmem:[%s2560 + $0x2c] sm:$0xf]
      %v2573 = vld [vmem:[%s2560 + $0x30] sm:$0xf]
      %v2574 = vld [vmem:[%s2560 + $0x34] sm:$0xf]
      %v2575 = vld [vmem:[%s2560 + $0x38] sm:$0xf]
      %v2576 = vld [vmem:[%s2560 + $0x3c] sm:$0xf]
      %v2593 = vunpack.c.l.b16 %v2561
      %v2594 = vunpack.c.l.b16 %v2562
      %v2595 = vunpack.c.l.b16 %v2563
      %v2596 = vunpack.c.l.b16 %v2564
      %v2597 = vunpack.c.l.b16 %v2565
      %v2598 = vunpack.c.l.b16 %v2566
      %v2599 = vunpack.c.l.b16 %v2567
      %v2600 = vunpack.c.l.b16 %v2568
      %v2601 = vunpack.c.l.b16 %v2569
      %v2602 = vunpack.c.l.b16 %v2570
      %v2603 = vunpack.c.l.b16 %v2571
      %v2604 = vunpack.c.l.b16 %v2572
      %v2605 = vunpack.c.l.b16 %v2573
      %v2606 = vunpack.c.l.b16 %v2574
      %v2607 = vunpack.c.l.b16 %v2575
      %v2608 = vunpack.c.l.b16 %v2576
      %v2609 = vpack.c.b16 %v2594, %v2593
      %v2610 = vpack.c.b16 %v2596, %v2595
      %v2611 = vpack.c.b16 %v2598, %v2597
      %v2612 = vpack.c.b16 %v2600, %v2599
      %v2613 = vpack.c.b16 %v2602, %v2601
      %v2614 = vpack.c.b16 %v2604, %v2603
      %v2615 = vpack.c.b16 %v2606, %v2605
      %v2616 = vpack.c.b16 %v2608, %v2607
      %2625 = vmatprep.subr.bf16.mxu0 0
      %2626 = vmatpush1.bf16.msra.mxu0 %v2616
      %2627 = vmatprep.subr.bf16.mxu0 0
      %2628 = vmatpush1.bf16.msra.mxu0 %v2615
      %2629 = vmatprep.subr.bf16.mxu0 0
      %2630 = vmatpush1.bf16.msra.mxu0 %v2614
      %2631 = vmatprep.subr.bf16.mxu0 0
      %2632 = vmatpush1.bf16.msra.mxu0 %v2613
      %2633 = vmatprep.subr.bf16.mxu0 0
      %2634 = vmatpush1.bf16.msra.mxu0 %v2612
      %2635 = vmatprep.subr.bf16.mxu0 0
      %2636 = vmatpush1.bf16.msra.mxu0 %v2611
      %2637 = vmatprep.subr.bf16.mxu0 0
      %2638 = vmatpush1.bf16.msra.mxu0 %v2610
      %2639 = vmatprep.subr.bf16.mxu0 0
      %2640 = vmatpush1.bf16.msra.mxu0 %v2609
      %2641 = vmatprep.subr.bf16.mxu0 0
      %2642 = vmatpush2.bf16.msra.mxu0 0
      %2643 = vmatprep.subr.bf16.mxu0 0
      %2644 = vmatpush2.bf16.msra.mxu0 0
      %2645 = vmatprep.subr.bf16.mxu0 0
      %2646 = vmatpush2.bf16.msra.mxu0 0
      %2647 = vmatprep.subr.bf16.mxu0 0
      %2648 = vmatpush2.bf16.msra.mxu0 0
      %2649 = vmatprep.subr.bf16.mxu0 0
      %2650 = vmatpush2.bf16.msra.mxu0 0
      %2651 = vmatprep.subr.bf16.mxu0 0
      %2652 = vmatpush2.bf16.msra.mxu0 0
      %2653 = vmatprep.subr.bf16.mxu0 0
      %2654 = vmatpush2.bf16.msra.mxu0 0
      %2655 = vmatprep.subr.bf16.mxu0 0
      %2656 = vmatpush2.bf16.msra.mxu0 0
      %2657 = vmatprep.mubr.bf16.mxu0 0
      %2658 = vmatmul.mubr.bf16.gmra.mxu0 %v2544
      %v2659 = vpop.f32.mrf.mxu0
      %v2660 = vadd.f32 0.0, %v2659
      %v2661 = vpop.f32.mrf.mxu0
      %v2662 = vpop.f32.mrf.mxu0
      %v2663 = vadd.f32 0.0, %v2662
      %v2664 = vpop.f32.mrf.mxu0
      %2665 = vmatprep.mubr.bf16.mxu0 0
      %2666 = vmatmul.mubr.bf16.gmra.mxu0 %v2545
      %v2667 = vpop.f32.mrf.mxu0
      %v2668 = vadd.f32 0.0, %v2667
      %v2669 = vpop.f32.mrf.mxu0
      %v2670 = vpop.f32.mrf.mxu0
      %v2671 = vadd.f32 0.0, %v2670
      %v2672 = vpop.f32.mrf.mxu0
      %2673 = vmatprep.mubr.bf16.mxu0 0
      %2674 = vmatmul.mubr.bf16.gmra.mxu0 %v2546
      %v2675 = vpop.f32.mrf.mxu0
      %v2676 = vadd.f32 0.0, %v2675
      %v2677 = vpop.f32.mrf.mxu0
      %v2678 = vpop.f32.mrf.mxu0
      %v2679 = vadd.f32 0.0, %v2678
      %v2680 = vpop.f32.mrf.mxu0
      %2681 = vmatprep.mubr.bf16.mxu0 0
      %2682 = vmatmul.mubr.bf16.gmra.mxu0 %v2547
      %v2683 = vpop.f32.mrf.mxu0
      %v2684 = vadd.f32 0.0, %v2683
      %v2685 = vpop.f32.mrf.mxu0
      %v2686 = vpop.f32.mrf.mxu0
      %v2687 = vadd.f32 0.0, %v2686
      %v2688 = vpop.f32.mrf.mxu0
      %2689 = vmatprep.mubr.bf16.mxu0 0
      %2690 = vmatmul.mubr.bf16.gmra.mxu0 %v2548
      %v2691 = vpop.f32.mrf.mxu0
      %v2692 = vadd.f32 0.0, %v2691
      %v2693 = vpop.f32.mrf.mxu0
      %v2694 = vpop.f32.mrf.mxu0
      %v2695 = vadd.f32 0.0, %v2694
      %v2696 = vpop.f32.mrf.mxu0
      %2697 = vmatprep.mubr.bf16.mxu0 0
      %2698 = vmatmul.mubr.bf16.gmra.mxu0 %v2549
      %v2699 = vpop.f32.mrf.mxu0
      %v2700 = vadd.f32 0.0, %v2699
      %v2701 = vpop.f32.mrf.mxu0
      %v2702 = vpop.f32.mrf.mxu0
      %v2703 = vadd.f32 0.0, %v2702
      %v2704 = vpop.f32.mrf.mxu0
      %2705 = vmatprep.mubr.bf16.mxu0 0
      %2706 = vmatmul.mubr.bf16.gmra.mxu0 %v2550
      %v2707 = vpop.f32.mrf.mxu0
      %v2708 = vadd.f32 0.0, %v2707
      %v2709 = vpop.f32.mrf.mxu0
      %v2710 = vpop.f32.mrf.mxu0
      %v2711 = vadd.f32 0.0, %v2710
      %v2712 = vpop.f32.mrf.mxu0
      %2713 = vmatprep.mubr.bf16.mxu0 0
      %2714 = vmatmul.mubr.bf16.gmra.mxu0 %v2551
      %v2715 = vpop.f32.mrf.mxu0
      %v2716 = vadd.f32 0.0, %v2715
      %v2717 = vpop.f32.mrf.mxu0
      %v2718 = vpop.f32.mrf.mxu0
      %v2719 = vadd.f32 0.0, %v2718
      %v2720 = vpop.f32.mrf.mxu0
      %2721 = vmatprep.mubr.bf16.mxu0 0
      %2722 = vmatmul.mubr.bf16.gmra.mxu0 %v2552
      %v2723 = vpop.f32.mrf.mxu0
      %v2724 = vadd.f32 0.0, %v2723
      %v2725 = vpop.f32.mrf.mxu0
      %v2726 = vpop.f32.mrf.mxu0
      %v2727 = vadd.f32 0.0, %v2726
      %v2728 = vpop.f32.mrf.mxu0
      %2729 = vmatprep.mubr.bf16.mxu0 0
      %2730 = vmatmul.mubr.bf16.gmra.mxu0 %v2553
      %v2731 = vpop.f32.mrf.mxu0
      %v2732 = vadd.f32 0.0, %v2731
      %v2733 = vpop.f32.mrf.mxu0
      %v2734 = vpop.f32.mrf.mxu0
      %v2735 = vadd.f32 0.0, %v2734
      %v2736 = vpop.f32.mrf.mxu0
      %2737 = vmatprep.mubr.bf16.mxu0 0
      %2738 = vmatmul.mubr.bf16.gmra.mxu0 %v2554
      %v2739 = vpop.f32.mrf.mxu0
      %v2740 = vadd.f32 0.0, %v2739
      %v2741 = vpop.f32.mrf.mxu0
      %v2742 = vpop.f32.mrf.mxu0
      %v2743 = vadd.f32 0.0, %v2742
      %v2744 = vpop.f32.mrf.mxu0
      %2745 = vmatprep.mubr.bf16.mxu0 0
      %2746 = vmatmul.mubr.bf16.gmra.mxu0 %v2555
      %v2747 = vpop.f32.mrf.mxu0
      %v2748 = vadd.f32 0.0, %v2747
      %v2749 = vpop.f32.mrf.mxu0
      %v2750 = vpop.f32.mrf.mxu0
      %v2751 = vadd.f32 0.0, %v2750
      %v2752 = vpop.f32.mrf.mxu0
      %2753 = vmatprep.mubr.bf16.mxu0 0
      %2754 = vmatmul.mubr.bf16.gmra.mxu0 %v2556
      %v2755 = vpop.f32.mrf.mxu0
      %v2756 = vadd.f32 0.0, %v2755
      %v2757 = vpop.f32.mrf.mxu0
      %v2758 = vpop.f32.mrf.mxu0
      %v2759 = vadd.f32 0.0, %v2758
      %v2760 = vpop.f32.mrf.mxu0
      %2761 = vmatprep.mubr.bf16.mxu0 0
      %2762 = vmatmul.mubr.bf16.gmra.mxu0 %v2557
      %v2763 = vpop.f32.mrf.mxu0
      %v2764 = vadd.f32 0.0, %v2763
      %v2765 = vpop.f32.mrf.mxu0
      %v2766 = vpop.f32.mrf.mxu0
      %v2767 = vadd.f32 0.0, %v2766
      %v2768 = vpop.f32.mrf.mxu0
      %2769 = vmatprep.mubr.bf16.mxu0 0
      %2770 = vmatmul.mubr.bf16.gmra.mxu0 %v2558
      %v2771 = vpop.f32.mrf.mxu0
      %v2772 = vadd.f32 0.0, %v2771
      %v2773 = vpop.f32.mrf.mxu0
      %v2774 = vpop.f32.mrf.mxu0
      %v2775 = vadd.f32 0.0, %v2774
      %v2776 = vpop.f32.mrf.mxu0
      %2777 = vmatprep.mubr.bf16.mxu0 0
      %2778 = vmatmul.mubr.bf16.gmra.mxu0 %v2559
      %v2779 = vpop.f32.mrf.mxu0
      %v2780 = vadd.f32 0.0, %v2779
      %v2781 = vpop.f32.mrf.mxu0
      %v2782 = vpop.f32.mrf.mxu0
      %v2783 = vadd.f32 0.0, %v2782
      %v2784 = vpop.f32.mrf.mxu0
      %2785 = vdwg.mxu0
      %v2786 = vadd.f32 %v2480, %v2660
      %v2787 = vadd.f32 %v2481, %v2663
      %v2788 = vadd.f32 %v2482, %v2668
      %v2789 = vadd.f32 %v2483, %v2671
      %v2790 = vadd.f32 %v2484, %v2676
      %v2791 = vadd.f32 %v2485, %v2679
      %v2792 = vadd.f32 %v2486, %v2684
      %v2793 = vadd.f32 %v2487, %v2687
      %v2794 = vadd.f32 %v2488, %v2692
      %v2795 = vadd.f32 %v2489, %v2695
      %v2796 = vadd.f32 %v2490, %v2700
      %v2797 = vadd.f32 %v2491, %v2703
      %v2798 = vadd.f32 %v2492, %v2708
      %v2799 = vadd.f32 %v2493, %v2711
      %v2800 = vadd.f32 %v2494, %v2716
      %v2801 = vadd.f32 %v2495, %v2719
      %v2802 = vadd.f32 %v2496, %v2724
      %v2803 = vadd.f32 %v2497, %v2727
      %v2804 = vadd.f32 %v2498, %v2732
      %v2805 = vadd.f32 %v2499, %v2735
      %v2806 = vadd.f32 %v2500, %v2740
      %v2807 = vadd.f32 %v2501, %v2743
      %v2808 = vadd.f32 %v2502, %v2748
      %v2809 = vadd.f32 %v2503, %v2751
      %v2810 = vadd.f32 %v2504, %v2756
      %v2811 = vadd.f32 %v2505, %v2759
      %v2812 = vadd.f32 %v2506, %v2764
      %v2813 = vadd.f32 %v2507, %v2767
      %v2814 = vadd.f32 %v2508, %v2772
      %v2815 = vadd.f32 %v2509, %v2775
      %v2816 = vadd.f32 %v2510, %v2780
      %v2817 = vadd.f32 %v2511, %v2783
      %v2818 = vld [vmem:[%s2205 + $0x2] sm:$0xff]
      %v2819 = vld [vmem:[%s2205 + $0xa] sm:$0xff]
      %v2820 = vld [vmem:[%s2205 + $0x1a] sm:$0xff]
      %v2821 = vld [vmem:[%s2205 + $0x22] sm:$0xff]
      %v2822 = vld [vmem:[%s2205 + $0x32] sm:$0xff]
      %v2823 = vld [vmem:[%s2205 + $0x3a] sm:$0xff]
      %v2824 = vld [vmem:[%s2205 + $0x4a] sm:$0xff]
      %v2825 = vld [vmem:[%s2205 + $0x52] sm:$0xff]
      %v2826 = vld [vmem:[%s2205 + $0x62] sm:$0xff]
      %v2827 = vld [vmem:[%s2205 + $0x6a] sm:$0xff]
      %v2828 = vld [vmem:[%s2205 + $0x7a] sm:$0xff]
      %v2829 = vld [vmem:[%s2205 + $0x82] sm:$0xff]
      %v2830 = vld [vmem:[%s2205 + $0x92] sm:$0xff]
      %v2831 = vld [vmem:[%s2205 + $0x9a] sm:$0xff]
      %v2832 = vld [vmem:[%s2205 + $0xaa] sm:$0xff]
      %v2833 = vld [vmem:[%s2205 + $0xb2] sm:$0xff]
      %v2834 = vld [vmem:[%s2205 + $0xc2] sm:$0xff]
      %v2835 = vld [vmem:[%s2205 + $0xca] sm:$0xff]
      %v2836 = vld [vmem:[%s2205 + $0xda] sm:$0xff]
      %v2837 = vld [vmem:[%s2205 + $0xe2] sm:$0xff]
      %v2838 = vld [vmem:[%s2205 + $0xf2] sm:$0xff]
      %v2839 = vld [vmem:[%s2205 + $0xfa] sm:$0xff]
      %v2840 = vld [vmem:[%s2205 + $0x10a] sm:$0xff]
      %v2841 = vld [vmem:[%s2205 + $0x112] sm:$0xff]
      %v2842 = vld [vmem:[%s2205 + $0x122] sm:$0xff]
      %v2843 = vld [vmem:[%s2205 + $0x12a] sm:$0xff]
      %v2844 = vld [vmem:[%s2205 + $0x13a] sm:$0xff]
      %v2845 = vld [vmem:[%s2205 + $0x142] sm:$0xff]
      %v2846 = vld [vmem:[%s2205 + $0x152] sm:$0xff]
      %v2847 = vld [vmem:[%s2205 + $0x15a] sm:$0xff]
      %v2848 = vld [vmem:[%s2205 + $0x16a] sm:$0xff]
      %v2849 = vld [vmem:[%s2205 + $0x172] sm:$0xff]
      %v2850 = vpack.c.bf16 %v2819, %v2818
      %v2851 = vpack.c.bf16 %v2821, %v2820
      %v2852 = vpack.c.bf16 %v2823, %v2822
      %v2853 = vpack.c.bf16 %v2825, %v2824
      %v2854 = vpack.c.bf16 %v2827, %v2826
      %v2855 = vpack.c.bf16 %v2829, %v2828
      %v2856 = vpack.c.bf16 %v2831, %v2830
      %v2857 = vpack.c.bf16 %v2833, %v2832
      %v2858 = vpack.c.bf16 %v2835, %v2834
      %v2859 = vpack.c.bf16 %v2837, %v2836
      %v2860 = vpack.c.bf16 %v2839, %v2838
      %v2861 = vpack.c.bf16 %v2841, %v2840
      %v2862 = vpack.c.bf16 %v2843, %v2842
      %v2863 = vpack.c.bf16 %v2845, %v2844
      %v2864 = vpack.c.bf16 %v2847, %v2846
      %v2865 = vpack.c.bf16 %v2849, %v2848
      %s2866 = scalar_lea.vmem %s2, 512
      %v2867 = vld [vmem:[%s2866] sm:$0xf]
      %v2868 = vld [vmem:[%s2866 + $0x4] sm:$0xf]
      %v2869 = vld [vmem:[%s2866 + $0x8] sm:$0xf]
      %v2870 = vld [vmem:[%s2866 + $0xc] sm:$0xf]
      %v2871 = vld [vmem:[%s2866 + $0x10] sm:$0xf]
      %v2872 = vld [vmem:[%s2866 + $0x14] sm:$0xf]
      %v2873 = vld [vmem:[%s2866 + $0x18] sm:$0xf]
      %v2874 = vld [vmem:[%s2866 + $0x1c] sm:$0xf]
      %v2875 = vld [vmem:[%s2866 + $0x20] sm:$0xf]
      %v2876 = vld [vmem:[%s2866 + $0x24] sm:$0xf]
      %v2877 = vld [vmem:[%s2866 + $0x28] sm:$0xf]
      %v2878 = vld [vmem:[%s2866 + $0x2c] sm:$0xf]
      %v2879 = vld [vmem:[%s2866 + $0x30] sm:$0xf]
      %v2880 = vld [vmem:[%s2866 + $0x34] sm:$0xf]
      %v2881 = vld [vmem:[%s2866 + $0x38] sm:$0xf]
      %v2882 = vld [vmem:[%s2866 + $0x3c] sm:$0xf]
      %v2899 = vunpack.c.l.b16 %v2867
      %v2900 = vunpack.c.l.b16 %v2868
      %v2901 = vunpack.c.l.b16 %v2869
      %v2902 = vunpack.c.l.b16 %v2870
      %v2903 = vunpack.c.l.b16 %v2871
      %v2904 = vunpack.c.l.b16 %v2872
      %v2905 = vunpack.c.l.b16 %v2873
      %v2906 = vunpack.c.l.b16 %v2874
      %v2907 = vunpack.c.l.b16 %v2875
      %v2908 = vunpack.c.l.b16 %v2876
      %v2909 = vunpack.c.l.b16 %v2877
      %v2910 = vunpack.c.l.b16 %v2878
      %v2911 = vunpack.c.l.b16 %v2879
      %v2912 = vunpack.c.l.b16 %v2880
      %v2913 = vunpack.c.l.b16 %v2881
      %v2914 = vunpack.c.l.b16 %v2882
      %v2915 = vpack.c.b16 %v2900, %v2899
      %v2916 = vpack.c.b16 %v2902, %v2901
      %v2917 = vpack.c.b16 %v2904, %v2903
      %v2918 = vpack.c.b16 %v2906, %v2905
      %v2919 = vpack.c.b16 %v2908, %v2907
      %v2920 = vpack.c.b16 %v2910, %v2909
      %v2921 = vpack.c.b16 %v2912, %v2911
      %v2922 = vpack.c.b16 %v2914, %v2913
      %2931 = vmatprep.subr.bf16.mxu0 0
      %2932 = vmatpush1.bf16.msra.mxu0 %v2922
      %2933 = vmatprep.subr.bf16.mxu0 0
      %2934 = vmatpush1.bf16.msra.mxu0 %v2921
      %2935 = vmatprep.subr.bf16.mxu0 0
      %2936 = vmatpush1.bf16.msra.mxu0 %v2920
      %2937 = vmatprep.subr.bf16.mxu0 0
      %2938 = vmatpush1.bf16.msra.mxu0 %v2919
      %2939 = vmatprep.subr.bf16.mxu0 0
      %2940 = vmatpush1.bf16.msra.mxu0 %v2918
      %2941 = vmatprep.subr.bf16.mxu0 0
      %2942 = vmatpush1.bf16.msra.mxu0 %v2917
      %2943 = vmatprep.subr.bf16.mxu0 0
      %2944 = vmatpush1.bf16.msra.mxu0 %v2916
      %2945 = vmatprep.subr.bf16.mxu0 0
      %2946 = vmatpush1.bf16.msra.mxu0 %v2915
      %2947 = vmatprep.subr.bf16.mxu0 0
      %2948 = vmatpush2.bf16.msra.mxu0 0
      %2949 = vmatprep.subr.bf16.mxu0 0
      %2950 = vmatpush2.bf16.msra.mxu0 0
      %2951 = vmatprep.subr.bf16.mxu0 0
      %2952 = vmatpush2.bf16.msra.mxu0 0
      %2953 = vmatprep.subr.bf16.mxu0 0
      %2954 = vmatpush2.bf16.msra.mxu0 0
      %2955 = vmatprep.subr.bf16.mxu0 0
      %2956 = vmatpush2.bf16.msra.mxu0 0
      %2957 = vmatprep.subr.bf16.mxu0 0
      %2958 = vmatpush2.bf16.msra.mxu0 0
      %2959 = vmatprep.subr.bf16.mxu0 0
      %2960 = vmatpush2.bf16.msra.mxu0 0
      %2961 = vmatprep.subr.bf16.mxu0 0
      %2962 = vmatpush2.bf16.msra.mxu0 0
      %2963 = vmatprep.mubr.bf16.mxu0 0
      %2964 = vmatmul.mubr.bf16.gmra.mxu0 %v2850
      %v2965 = vpop.f32.mrf.mxu0
      %v2966 = vadd.f32 0.0, %v2965
      %v2967 = vpop.f32.mrf.mxu0
      %v2968 = vpop.f32.mrf.mxu0
      %v2969 = vadd.f32 0.0, %v2968
      %v2970 = vpop.f32.mrf.mxu0
      %2971 = vmatprep.mubr.bf16.mxu0 0
      %2972 = vmatmul.mubr.bf16.gmra.mxu0 %v2851
      %v2973 = vpop.f32.mrf.mxu0
      %v2974 = vadd.f32 0.0, %v2973
      %v2975 = vpop.f32.mrf.mxu0
      %v2976 = vpop.f32.mrf.mxu0
      %v2977 = vadd.f32 0.0, %v2976
      %v2978 = vpop.f32.mrf.mxu0
      %2979 = vmatprep.mubr.bf16.mxu0 0
      %2980 = vmatmul.mubr.bf16.gmra.mxu0 %v2852
      %v2981 = vpop.f32.mrf.mxu0
      %v2982 = vadd.f32 0.0, %v2981
      %v2983 = vpop.f32.mrf.mxu0
      %v2984 = vpop.f32.mrf.mxu0
      %v2985 = vadd.f32 0.0, %v2984
      %v2986 = vpop.f32.mrf.mxu0
      %2987 = vmatprep.mubr.bf16.mxu0 0
      %2988 = vmatmul.mubr.bf16.gmra.mxu0 %v2853
      %v2989 = vpop.f32.mrf.mxu0
      %v2990 = vadd.f32 0.0, %v2989
      %v2991 = vpop.f32.mrf.mxu0
      %v2992 = vpop.f32.mrf.mxu0
      %v2993 = vadd.f32 0.0, %v2992
      %v2994 = vpop.f32.mrf.mxu0
      %2995 = vmatprep.mubr.bf16.mxu0 0
      %2996 = vmatmul.mubr.bf16.gmra.mxu0 %v2854
      %v2997 = vpop.f32.mrf.mxu0
      %v2998 = vadd.f32 0.0, %v2997
      %v2999 = vpop.f32.mrf.mxu0
      %v3000 = vpop.f32.mrf.mxu0
      %v3001 = vadd.f32 0.0, %v3000
      %v3002 = vpop.f32.mrf.mxu0
      %3003 = vmatprep.mubr.bf16.mxu0 0
      %3004 = vmatmul.mubr.bf16.gmra.mxu0 %v2855
      %v3005 = vpop.f32.mrf.mxu0
      %v3006 = vadd.f32 0.0, %v3005
      %v3007 = vpop.f32.mrf.mxu0
      %v3008 = vpop.f32.mrf.mxu0
      %v3009 = vadd.f32 0.0, %v3008
      %v3010 = vpop.f32.mrf.mxu0
      %3011 = vmatprep.mubr.bf16.mxu0 0
      %3012 = vmatmul.mubr.bf16.gmra.mxu0 %v2856
      %v3013 = vpop.f32.mrf.mxu0
      %v3014 = vadd.f32 0.0, %v3013
      %v3015 = vpop.f32.mrf.mxu0
      %v3016 = vpop.f32.mrf.mxu0
      %v3017 = vadd.f32 0.0, %v3016
      %v3018 = vpop.f32.mrf.mxu0
      %3019 = vmatprep.mubr.bf16.mxu0 0
      %3020 = vmatmul.mubr.bf16.gmra.mxu0 %v2857
      %v3021 = vpop.f32.mrf.mxu0
      %v3022 = vadd.f32 0.0, %v3021
      %v3023 = vpop.f32.mrf.mxu0
      %v3024 = vpop.f32.mrf.mxu0
      %v3025 = vadd.f32 0.0, %v3024
      %v3026 = vpop.f32.mrf.mxu0
      %3027 = vmatprep.mubr.bf16.mxu0 0
      %3028 = vmatmul.mubr.bf16.gmra.mxu0 %v2858
      %v3029 = vpop.f32.mrf.mxu0
      %v3030 = vadd.f32 0.0, %v3029
      %v3031 = vpop.f32.mrf.mxu0
      %v3032 = vpop.f32.mrf.mxu0
      %v3033 = vadd.f32 0.0, %v3032
      %v3034 = vpop.f32.mrf.mxu0
      %3035 = vmatprep.mubr.bf16.mxu0 0
      %3036 = vmatmul.mubr.bf16.gmra.mxu0 %v2859
      %v3037 = vpop.f32.mrf.mxu0
      %v3038 = vadd.f32 0.0, %v3037
      %v3039 = vpop.f32.mrf.mxu0
      %v3040 = vpop.f32.mrf.mxu0
      %v3041 = vadd.f32 0.0, %v3040
      %v3042 = vpop.f32.mrf.mxu0
      %3043 = vmatprep.mubr.bf16.mxu0 0
      %3044 = vmatmul.mubr.bf16.gmra.mxu0 %v2860
      %v3045 = vpop.f32.mrf.mxu0
      %v3046 = vadd.f32 0.0, %v3045
      %v3047 = vpop.f32.mrf.mxu0
      %v3048 = vpop.f32.mrf.mxu0
      %v3049 = vadd.f32 0.0, %v3048
      %v3050 = vpop.f32.mrf.mxu0
      %3051 = vmatprep.mubr.bf16.mxu0 0
      %3052 = vmatmul.mubr.bf16.gmra.mxu0 %v2861
      %v3053 = vpop.f32.mrf.mxu0
      %v3054 = vadd.f32 0.0, %v3053
      %v3055 = vpop.f32.mrf.mxu0
      %v3056 = vpop.f32.mrf.mxu0
      %v3057 = vadd.f32 0.0, %v3056
      %v3058 = vpop.f32.mrf.mxu0
      %3059 = vmatprep.mubr.bf16.mxu0 0
      %3060 = vmatmul.mubr.bf16.gmra.mxu0 %v2862
      %v3061 = vpop.f32.mrf.mxu0
      %v3062 = vadd.f32 0.0, %v3061
      %v3063 = vpop.f32.mrf.mxu0
      %v3064 = vpop.f32.mrf.mxu0
      %v3065 = vadd.f32 0.0, %v3064
      %v3066 = vpop.f32.mrf.mxu0
      %3067 = vmatprep.mubr.bf16.mxu0 0
      %3068 = vmatmul.mubr.bf16.gmra.mxu0 %v2863
      %v3069 = vpop.f32.mrf.mxu0
      %v3070 = vadd.f32 0.0, %v3069
      %v3071 = vpop.f32.mrf.mxu0
      %v3072 = vpop.f32.mrf.mxu0
      %v3073 = vadd.f32 0.0, %v3072
      %v3074 = vpop.f32.mrf.mxu0
      %3075 = vmatprep.mubr.bf16.mxu0 0
      %3076 = vmatmul.mubr.bf16.gmra.mxu0 %v2864
      %v3077 = vpop.f32.mrf.mxu0
      %v3078 = vadd.f32 0.0, %v3077
      %v3079 = vpop.f32.mrf.mxu0
      %v3080 = vpop.f32.mrf.mxu0
      %v3081 = vadd.f32 0.0, %v3080
      %v3082 = vpop.f32.mrf.mxu0
      %3083 = vmatprep.mubr.bf16.mxu0 0
      %3084 = vmatmul.mubr.bf16.gmra.mxu0 %v2865
      %v3085 = vpop.f32.mrf.mxu0
      %v3086 = vadd.f32 0.0, %v3085
      %v3087 = vpop.f32.mrf.mxu0
      %v3088 = vpop.f32.mrf.mxu0
      %v3089 = vadd.f32 0.0, %v3088
      %v3090 = vpop.f32.mrf.mxu0
      %3091 = vdwg.mxu0
      %v3092 = vadd.f32 %v2786, %v2966
      %v3093 = vadd.f32 %v2787, %v2969
      %v3094 = vadd.f32 %v2788, %v2974
      %v3095 = vadd.f32 %v2789, %v2977
      %v3096 = vadd.f32 %v2790, %v2982
      %v3097 = vadd.f32 %v2791, %v2985
      %v3098 = vadd.f32 %v2792, %v2990
      %v3099 = vadd.f32 %v2793, %v2993
      %v3100 = vadd.f32 %v2794, %v2998
      %v3101 = vadd.f32 %v2795, %v3001
      %v3102 = vadd.f32 %v2796, %v3006
      %v3103 = vadd.f32 %v2797, %v3009
      %v3104 = vadd.f32 %v2798, %v3014
      %v3105 = vadd.f32 %v2799, %v3017
      %v3106 = vadd.f32 %v2800, %v3022
      %v3107 = vadd.f32 %v2801, %v3025
      %v3108 = vadd.f32 %v2802, %v3030
      %v3109 = vadd.f32 %v2803, %v3033
      %v3110 = vadd.f32 %v2804, %v3038
      %v3111 = vadd.f32 %v2805, %v3041
      %v3112 = vadd.f32 %v2806, %v3046
      %v3113 = vadd.f32 %v2807, %v3049
      %v3114 = vadd.f32 %v2808, %v3054
      %v3115 = vadd.f32 %v2809, %v3057
      %v3116 = vadd.f32 %v2810, %v3062
      %v3117 = vadd.f32 %v2811, %v3065
      %v3118 = vadd.f32 %v2812, %v3070
      %v3119 = vadd.f32 %v2813, %v3073
      %v3120 = vadd.f32 %v2814, %v3078
      %v3121 = vadd.f32 %v2815, %v3081
      %v3122 = vadd.f32 %v2816, %v3086
      %v3123 = vadd.f32 %v2817, %v3089
      %3124 = vst [vmem:[%s204] sm:$0xff] %v3092
      %3125 = vst [vmem:[%s204 + $0x8] sm:$0xff] %v3093
      %3126 = vst [vmem:[%s204 + $0x10] sm:$0xff] %v3094
      %3127 = vst [vmem:[%s204 + $0x18] sm:$0xff] %v3095
      %3128 = vst [vmem:[%s204 + $0x20] sm:$0xff] %v3096
      %3129 = vst [vmem:[%s204 + $0x28] sm:$0xff] %v3097
      %3130 = vst [vmem:[%s204 + $0x30] sm:$0xff] %v3098
      %3131 = vst [vmem:[%s204 + $0x38] sm:$0xff] %v3099
      %3132 = vst [vmem:[%s204 + $0x40] sm:$0xff] %v3100
      %3133 = vst [vmem:[%s204 + $0x48] sm:$0xff] %v3101
      %3134 = vst [vmem:[%s204 + $0x50] sm:$0xff] %v3102
      %3135 = vst [vmem:[%s204 + $0x58] sm:$0xff] %v3103
      %3136 = vst [vmem:[%s204 + $0x60] sm:$0xff] %v3104
      %3137 = vst [vmem:[%s204 + $0x68] sm:$0xff] %v3105
      %3138 = vst [vmem:[%s204 + $0x70] sm:$0xff] %v3106
      %3139 = vst [vmem:[%s204 + $0x78] sm:$0xff] %v3107
      %3140 = vst [vmem:[%s204 + $0x80] sm:$0xff] %v3108
      %3141 = vst [vmem:[%s204 + $0x88] sm:$0xff] %v3109
      %3142 = vst [vmem:[%s204 + $0x90] sm:$0xff] %v3110
      %3143 = vst [vmem:[%s204 + $0x98] sm:$0xff] %v3111
      %3144 = vst [vmem:[%s204 + $0xa0] sm:$0xff] %v3112
      %3145 = vst [vmem:[%s204 + $0xa8] sm:$0xff] %v3113
      %3146 = vst [vmem:[%s204 + $0xb0] sm:$0xff] %v3114
      %3147 = vst [vmem:[%s204 + $0xb8] sm:$0xff] %v3115
      %3148 = vst [vmem:[%s204 + $0xc0] sm:$0xff] %v3116
      %3149 = vst [vmem:[%s204 + $0xc8] sm:$0xff] %v3117
      %3150 = vst [vmem:[%s204 + $0xd0] sm:$0xff] %v3118
      %3151 = vst [vmem:[%s204 + $0xd8] sm:$0xff] %v3119
      %3152 = vst [vmem:[%s204 + $0xe0] sm:$0xff] %v3120
      %3153 = vst [vmem:[%s204 + $0xe8] sm:$0xff] %v3121
      %3154 = vst [vmem:[%s204 + $0xf0] sm:$0xff] %v3122
      %3155 = vst [vmem:[%s204 + $0xf8] sm:$0xff] %v3123
      %v3156 = vadd.f32 %v3092, %v3093
      %v3157 = vadd.f32 %v3156, %v3094
      %v3158 = vadd.f32 %v3157, %v3095
      %v3159 = vadd.f32 %v3158, %v3096
      %v3160 = vadd.f32 %v3159, %v3097
      %v3161 = vadd.f32 %v3160, %v3098
      %v3162 = vadd.f32 %v3161, %v3099
      %v3163 = vadd.f32 %v3162, %v3100
      %v3164 = vadd.f32 %v3163, %v3101
      %v3165 = vadd.f32 %v3164, %v3102
      %v3166 = vadd.f32 %v3165, %v3103
      %v3167 = vadd.f32 %v3166, %v3104
      %v3168 = vadd.f32 %v3167, %v3105
      %v3169 = vadd.f32 %v3168, %v3106
      %v3170 = vadd.f32 %v3169, %v3107
      %v3171 = vadd.f32 %v3170, %v3108
      %v3172 = vadd.f32 %v3171, %v3109
      %v3173 = vadd.f32 %v3172, %v3110
      %v3174 = vadd.f32 %v3173, %v3111
      %v3175 = vadd.f32 %v3174, %v3112
      %v3176 = vadd.f32 %v3175, %v3113
      %v3177 = vadd.f32 %v3176, %v3114
      %v3178 = vadd.f32 %v3177, %v3115
      %v3179 = vadd.f32 %v3178, %v3116
      %v3180 = vadd.f32 %v3179, %v3117
      %v3181 = vadd.f32 %v3180, %v3118
      %v3182 = vadd.f32 %v3181, %v3119
      %v3183 = vadd.f32 %v3182, %v3120
      %v3184 = vadd.f32 %v3183, %v3121
      %v3185 = vadd.f32 %v3184, %v3122
      %v3186 = vadd.f32 %v3185, %v3123
      %v3187 = vrot.slane %v3186, 4
      %v3188 = vadd.f32 %v3186, %v3187
      %v3189 = vrot.slane %v3188, 2
      %v3190 = vadd.f32 %v3188, %v3189
      %v3191 = vrot.slane %v3190, 1
      %v3192 = vadd.f32 %v3190, %v3191
      %v3193 = vmul.f32 %v3092, %v3092
      %v3194 = vmul.f32 %v3093, %v3093
      %v3195 = vmul.f32 %v3094, %v3094
      %v3196 = vmul.f32 %v3095, %v3095
      %v3197 = vmul.f32 %v3096, %v3096
      %v3198 = vmul.f32 %v3097, %v3097
      %v3199 = vmul.f32 %v3098, %v3098
      %v3200 = vmul.f32 %v3099, %v3099
      %v3201 = vmul.f32 %v3100, %v3100
      %v3202 = vmul.f32 %v3101, %v3101
      %v3203 = vmul.f32 %v3102, %v3102
      %v3204 = vmul.f32 %v3103, %v3103
      %v3205 = vmul.f32 %v3104, %v3104
      %v3206 = vmul.f32 %v3105, %v3105
      %v3207 = vmul.f32 %v3106, %v3106
      %v3208 = vmul.f32 %v3107, %v3107
      %v3209 = vmul.f32 %v3108, %v3108
      %v3210 = vmul.f32 %v3109, %v3109
      %v3211 = vmul.f32 %v3110, %v3110
      %v3212 = vmul.f32 %v3111, %v3111
      %v3213 = vmul.f32 %v3112, %v3112
      %v3214 = vmul.f32 %v3113, %v3113
      %v3215 = vmul.f32 %v3114, %v3114
      %v3216 = vmul.f32 %v3115, %v3115
      %v3217 = vmul.f32 %v3116, %v3116
      %v3218 = vmul.f32 %v3117, %v3117
      %v3219 = vmul.f32 %v3118, %v3118
      %v3220 = vmul.f32 %v3119, %v3119
      %v3221 = vmul.f32 %v3120, %v3120
      %v3222 = vmul.f32 %v3121, %v3121
      %v3223 = vmul.f32 %v3122, %v3122
      %v3224 = vmul.f32 %v3123, %v3123
      %v3225 = vadd.f32 %v3193, %v3194
      %v3226 = vadd.f32 %v3225, %v3195
      %v3227 = vadd.f32 %v3226, %v3196
      %v3228 = vadd.f32 %v3227, %v3197
      %v3229 = vadd.f32 %v3228, %v3198
      %v3230 = vadd.f32 %v3229, %v3199
      %v3231 = vadd.f32 %v3230, %v3200
      %v3232 = vadd.f32 %v3231, %v3201
      %v3233 = vadd.f32 %v3232, %v3202
      %v3234 = vadd.f32 %v3233, %v3203
      %v3235 = vadd.f32 %v3234, %v3204
      %v3236 = vadd.f32 %v3235, %v3205
      %v3237 = vadd.f32 %v3236, %v3206
      %v3238 = vadd.f32 %v3237, %v3207
      %v3239 = vadd.f32 %v3238, %v3208
      %v3240 = vadd.f32 %v3239, %v3209
      %v3241 = vadd.f32 %v3240, %v3210
      %v3242 = vadd.f32 %v3241, %v3211
      %v3243 = vadd.f32 %v3242, %v3212
      %v3244 = vadd.f32 %v3243, %v3213
      %v3245 = vadd.f32 %v3244, %v3214
      %v3246 = vadd.f32 %v3245, %v3215
      %v3247 = vadd.f32 %v3246, %v3216
      %v3248 = vadd.f32 %v3247, %v3217
      %v3249 = vadd.f32 %v3248, %v3218
      %v3250 = vadd.f32 %v3249, %v3219
      %v3251 = vadd.f32 %v3250, %v3220
      %v3252 = vadd.f32 %v3251, %v3221
      %v3253 = vadd.f32 %v3252, %v3222
      %v3254 = vadd.f32 %v3253, %v3223
      %v3255 = vadd.f32 %v3254, %v3224
      %v3256 = vrot.slane %v3255, 4
      %v3257 = vadd.f32 %v3255, %v3256
      %v3258 = vrot.slane %v3257, 2
      %v3259 = vadd.f32 %v3257, %v3258
      %v3260 = vrot.slane %v3259, 1
      %v3261 = vadd.f32 %v3259, %v3260
      %vm3262 = vcmask 1040384
      %v3263 = vsel %vm3262, %v3192, %v3261
      %3264 = vst [vmem:[%s208] sm:$0x3] %v3263
      %p3265 = scmp.lt.s32.totalorder %s16, 1
      %s3266 = scalar_select %p3265, %s16, 1
      %s3267 = smul.addr %s3266, 32
      %s3268 = smul.addr %s3267, 8
      %s3269 = scalar_lea.vmem %s3, %s3268
      %p3270 = scmp.lt.s32.totalorder %s16, 1
      %s3271 = scalar_select %p3270, %s16, 1
      %s3272 = smul.addr %s3271, 2
      %s3273 = scalar_lea.vmem %s4, %s3272
      // Predicated region
      $region33: #{resnet_forward.4} parent=31 // pred_check
        %p3274 = pneg %p102
      $region34: #{resnet_forward.4} parent=31 // pred_check_branch
        %3276 = sbr.rel (%p3274) target = $region36
      $region35: #{resnet_forward.4} parent=31 // pred_region
        _
      $region36: #{resnet_forward.4} parent=31 // pred_fallthru
        _
      // Predicated region
      $region37: #{resnet_forward.4} parent=31 // pred_check
        %p3277 = pneg %p128
      $region38: #{resnet_forward.4} parent=31 // pred_check_branch
        %3279 = sbr.rel (%p3277) target = $region40
      $region39: #{resnet_forward.4} parent=31 // pred_region
        _
      $region40: #{resnet_forward.4} parent=31 // pred_fallthru
        _
    $region32: #{resnet_forward.4} parent=5 // pred_fallthru
      _
    %p3280 = scmp.le.s32.totalorder 2, %s11
    // Predicated region
    $region41: #{resnet_forward.4} parent=5 // pred_check
      %p3281 = pneg %p3280
    $region42: #{resnet_forward.4} parent=5 // pred_check_branch
      %3283 = sbr.rel (%p3281) target = $region44
    $region43: #{resnet_forward.4} parent=5 // pred_region
      %s3284 = ssub.s32 %s11, 2
      // Predicated region
      $region45: #{resnet_forward.4} parent=43 // pred_check
        %p3285 = pneg %p108
      $region46: #{resnet_forward.4} parent=43 // pred_check_branch
        %3287 = sbr.rel (%p3285) target = $region48
      $region47: #{resnet_forward.4} parent=43 // pred_region
        %p3288 = scmp.lt.s32.totalorder %s17, 1
        %s3289 = scalar_select %p3288, %s17, 1
        %s3290 = smul.addr %s3289, 32
        %s3291 = smul.addr %s3290, 8
        %s3292 = scalar_lea.vmem %s3, %s3291
      $region48: #{resnet_forward.4} parent=43 // pred_fallthru
        _
      // Predicated region
      $region49: #{resnet_forward.4} parent=43 // pred_check
        %p3293 = pneg %p134
      $region50: #{resnet_forward.4} parent=43 // pred_check_branch
        %3295 = sbr.rel (%p3293) target = $region52
      $region51: #{resnet_forward.4} parent=43 // pred_region
        %p3296 = scmp.lt.s32.totalorder %s17, 1
        %s3297 = scalar_select %p3296, %s17, 1
        %s3298 = smul.addr %s3297, 2
        %s3299 = scalar_lea.vmem %s4, %s3298
      $region52: #{resnet_forward.4} parent=43 // pred_fallthru
        _
    $region44: #{resnet_forward.4} parent=5 // pred_fallthru
      _
  $region6: #{resnet_forward.4} parent=0 // loop_footer
    %s15 = sadd.s32 1, %s11
  $region7: #{resnet_forward.4} parent=0 // loop_footer_branch
    %10 = sbr.rel target = $region3
  $region8: #{resnet_forward.4} parent=0 // loop_exit
    _

// kernel: resnet_forward.3
$region0: #{resnet_forward.3}
  #allocation0 [shape = 'u32[]', space=smem, size = 0x4, offset = 0x4, fixed_abs, tag = 'smem constant byte address 0x4 - core index']
  #allocation1 [shape = 'u32[144,128]{1,0:T(1,128)}', space=vmem, size = 0x12000, scoped, tag = 'internal scratch']
  %s0 = inlined_call_operand.vmem [shape: bf16[2,18,18,128], index: 0, kind: input, shape index: {}]
  %s1 = inlined_call_operand.vmem [shape: bf16[9,128,128], index: 1, kind: input, shape index: {}]
  %s2 = inlined_call_operand.vmem [shape: bf16[128,128], index: 2, kind: input, shape index: {}]
  %s3 = inlined_call_operand.vmem [shape: f32[2,16,16,128], index: 3, kind: output, shape index: {0}]
  %s4 = inlined_call_operand.vmem [shape: f32[2,16,16,128], index: 4, kind: output, shape index: {1}]
  %s5 = inlined_call_operand.vmem [shape: f32[2,2,128], index: 5, kind: output, shape index: {2}]
  %s6 = inlined_call_operand.vmem [shape: f32[2,2,128], index: 6, kind: output, shape index: {3}]
  %7 = xla_tuple %s3, %s4, %s5, %s6
  %s8 = sld [smem:[#allocation0]]
  $region69: #{resnet_forward.3} parent=0
    _
  %s10 = ssub.s32 1, %s8
  %s11 = scalar_select 0, %s10, %s8
  loop: start=0, step=1, limit=4
  $region2: #{resnet_forward.3} parent=0 // loop_pre_header
    _
  $region3: #{resnet_forward.3} parent=0 // loop_header
    %s13 = sphi 0, %s17
    %p14 = scmp.ge.s32.totalorder %s13, 4
    %s23 = sphi 0, %s25
    %s26 = sphi 0, %s23
    %s27 = sphi 0, %s26
    %s43 = sphi 0, %s27
    %s47 = sphi 0, %s47
    %s49 = sphi 0, %s47
    %s50 = sphi 0, %s49
    %s64 = sphi 0, %s50
    %s68 = sphi 0, %s68
    %s70 = sphi 0, %s68
    %s71 = sphi 0, %s70
    %s85 = sphi 0, %s71
    %s91 = sphi 0, %s93
    %s94 = sphi 0, %s91
    %s95 = sphi 0, %s94
    %s111 = sphi 0, %s95
    %s117 = sphi 0, %s119
    %s120 = sphi 0, %s117
    %s121 = sphi 0, %s120
    %s137 = sphi 0, %s121
    %s143 = sphi 0, %s145
    %s146 = sphi 0, %s143
    %s147 = sphi 0, %s146
    %s163 = sphi 0, %s147
    %s169 = sphi 0, %s171
    %s172 = sphi 0, %s169
    %s173 = sphi 0, %s172
    %s189 = sphi 0, %s173
  $region4: #{resnet_forward.3} parent=0 // loop_header_branch
    %16 = sbr.rel (%p14) target = $region8
  $region5: #{resnet_forward.3} parent=0 // loop_body
    %s18 = ssub.s32 %s13, 1
    %s19 = ssub.s32 %s13, 2
    %s20 = sadd.s32 %s13, 1
    %s21 = ssub.s32 %s13, %s20
    %p22 = scmp.eq.s32.totalorder %s21, 0
    %s24 = sadd.s32 %s23, 1
    %s25 = scalar_select %p22, %s23, %s24
    %p28 = pneg %p22
    %p29 = scmp.eq.s32.totalorder %s13, 1
    %p30 = por %p28, %p29
    %p31 = scmp.ne.s32.totalorder %s23, %s26
    %p32 = scmp.eq.s32.totalorder %s13, 0
    %p33 = por %p31, %p32
    %p34 = scmp.ne.s32.totalorder %s23, %s26
    %p35 = scmp.eq.s32.totalorder %s18, 1
    %p36 = por %p34, %p35
    %p37 = scmp.ne.s32.totalorder %s26, %s27
    %p38 = scmp.eq.s32.totalorder %s18, 0
    %p39 = por %p37, %p38
    %p40 = scmp.ne.s32.totalorder %s26, %s27
    %p41 = scmp.eq.s32.totalorder %s19, 1
    %p42 = por %p40, %p41
    %p44 = scmp.ne.s32.totalorder %s27, %s43
    %p45 = scmp.eq.s32.totalorder %s19, 0
    %p46 = por %p44, %p45
    %s48 = sadd.s32 %s47, 1
    %p51 = scmp.eq.s32.totalorder %s13, 1
    %p52 = scmp.ne.s32.totalorder %s47, %s49
    %p53 = scmp.eq.s32.totalorder %s13, 0
    %p54 = por %p52, %p53
    %p55 = scmp.ne.s32.totalorder %s47, %s49
    %p56 = scmp.eq.s32.totalorder %s18, 1
    %p57 = por %p55, %p56
    %p58 = scmp.ne.s32.totalorder %s49, %s50
    %p59 = scmp.eq.s32.totalorder %s18, 0
    %p60 = por %p58, %p59
    %p61 = scmp.ne.s32.totalorder %s49, %s50
    %p62 = scmp.eq.s32.totalorder %s19, 1
    %p63 = por %p61, %p62
    %p65 = scmp.ne.s32.totalorder %s50, %s64
    %p66 = scmp.eq.s32.totalorder %s19, 0
    %p67 = por %p65, %p66
    %s69 = sadd.s32 %s68, 1
    %p72 = scmp.eq.s32.totalorder %s13, 1
    %p73 = scmp.ne.s32.totalorder %s68, %s70
    %p74 = scmp.eq.s32.totalorder %s13, 0
    %p75 = por %p73, %p74
    %p76 = scmp.ne.s32.totalorder %s68, %s70
    %p77 = scmp.eq.s32.totalorder %s18, 1
    %p78 = por %p76, %p77
    %p79 = scmp.ne.s32.totalorder %s70, %s71
    %p80 = scmp.eq.s32.totalorder %s18, 0
    %p81 = por %p79, %p80
    %p82 = scmp.ne.s32.totalorder %s70, %s71
    %p83 = scmp.eq.s32.totalorder %s19, 1
    %p84 = por %p82, %p83
    %p86 = scmp.ne.s32.totalorder %s71, %s85
    %p87 = scmp.eq.s32.totalorder %s19, 0
    %p88 = por %p86, %p87
    %s89 = ssub.s32 %s13, %s20
    %p90 = scmp.eq.s32.totalorder %s89, 0
    %s92 = sadd.s32 %s91, 1
    %s93 = scalar_select %p90, %s91, %s92
    %p96 = pneg %p90
    %p97 = scmp.eq.s32.totalorder %s13, 1
    %p98 = por %p96, %p97
    %p99 = scmp.ne.s32.totalorder %s91, %s94
    %p100 = scmp.eq.s32.totalorder %s13, 0
    %p101 = por %p99, %p100
    %p102 = scmp.ne.s32.totalorder %s91, %s94
    %p103 = scmp.eq.s32.totalorder %s18, 1
    %p104 = por %p102, %p103
    %p105 = scmp.ne.s32.totalorder %s94, %s95
    %p106 = scmp.eq.s32.totalorder %s18, 0
    %p107 = por %p105, %p106
    %p108 = scmp.ne.s32.totalorder %s94, %s95
    %p109 = scmp.eq.s32.totalorder %s19, 1
    %p110 = por %p108, %p109
    %p112 = scmp.ne.s32.totalorder %s95, %s111
    %p113 = scmp.eq.s32.totalorder %s19, 0
    %p114 = por %p112, %p113
    %s115 = ssub.s32 %s13, %s20
    %p116 = scmp.eq.s32.totalorder %s115, 0
    %s118 = sadd.s32 %s117, 1
    %s119 = scalar_select %p116, %s117, %s118
    %p122 = pneg %p116
    %p123 = scmp.eq.s32.totalorder %s13, 1
    %p124 = por %p122, %p123
    %p125 = scmp.ne.s32.totalorder %s117, %s120
    %p126 = scmp.eq.s32.totalorder %s13, 0
    %p127 = por %p125, %p126
    %p128 = scmp.ne.s32.totalorder %s117, %s120
    %p129 = scmp.eq.s32.totalorder %s18, 1
    %p130 = por %p128, %p129
    %p131 = scmp.ne.s32.totalorder %s120, %s121
    %p132 = scmp.eq.s32.totalorder %s18, 0
    %p133 = por %p131, %p132
    %p134 = scmp.ne.s32.totalorder %s120, %s121
    %p135 = scmp.eq.s32.totalorder %s19, 1
    %p136 = por %p134, %p135
    %p138 = scmp.ne.s32.totalorder %s121, %s137
    %p139 = scmp.eq.s32.totalorder %s19, 0
    %p140 = por %p138, %p139
    %s141 = ssub.s32 %s13, %s20
    %p142 = scmp.eq.s32.totalorder %s141, 0
    %s144 = sadd.s32 %s143, 1
    %s145 = scalar_select %p142, %s143, %s144
    %p148 = pneg %p142
    %p149 = scmp.eq.s32.totalorder %s13, 1
    %p150 = por %p148, %p149
    %p151 = scmp.ne.s32.totalorder %s143, %s146
    %p152 = scmp.eq.s32.totalorder %s13, 0
    %p153 = por %p151, %p152
    %p154 = scmp.ne.s32.totalorder %s143, %s146
    %p155 = scmp.eq.s32.totalorder %s18, 1
    %p156 = por %p154, %p155
    %p157 = scmp.ne.s32.totalorder %s146, %s147
    %p158 = scmp.eq.s32.totalorder %s18, 0
    %p159 = por %p157, %p158
    %p160 = scmp.ne.s32.totalorder %s146, %s147
    %p161 = scmp.eq.s32.totalorder %s19, 1
    %p162 = por %p160, %p161
    %p164 = scmp.ne.s32.totalorder %s147, %s163
    %p165 = scmp.eq.s32.totalorder %s19, 0
    %p166 = por %p164, %p165
    %s167 = ssub.s32 %s13, %s20
    %p168 = scmp.eq.s32.totalorder %s167, 0
    %s170 = sadd.s32 %s169, 1
    %s171 = scalar_select %p168, %s169, %s170
    %p174 = pneg %p168
    %p175 = scmp.eq.s32.totalorder %s13, 1
    %p176 = por %p174, %p175
    %p177 = scmp.ne.s32.totalorder %s169, %s172
    %p178 = scmp.eq.s32.totalorder %s13, 0
    %p179 = por %p177, %p178
    %p180 = scmp.ne.s32.totalorder %s169, %s172
    %p181 = scmp.eq.s32.totalorder %s18, 1
    %p182 = por %p180, %p181
    %p183 = scmp.ne.s32.totalorder %s172, %s173
    %p184 = scmp.eq.s32.totalorder %s18, 0
    %p185 = por %p183, %p184
    %p186 = scmp.ne.s32.totalorder %s172, %s173
    %p187 = scmp.eq.s32.totalorder %s19, 1
    %p188 = por %p186, %p187
    %p190 = scmp.ne.s32.totalorder %s173, %s189
    %p191 = scmp.eq.s32.totalorder %s19, 0
    %p192 = por %p190, %p191
    %p193 = scmp.le.s32.totalorder 1, %s13
    %p194 = scmp.lt.s32.totalorder %s13, 3
    %p195 = pnand %p193, %p194
    %p196 = pneg %p195
    // Predicated region
    $region9: #{resnet_forward.3} parent=5 // pred_check
      _
    $region10: #{resnet_forward.3} parent=5 // pred_check_branch
      %198 = sbr.rel (%p195) target = $region12
    $region11: #{resnet_forward.3} parent=5 // pred_region
      %s199 = ssub.s32 %s13, 1
      // Predicated region
      $region13: #{resnet_forward.3} parent=11 // pred_check
        %p200 = pneg %p60
      $region14: #{resnet_forward.3} parent=11 // pred_check_branch
        %202 = sbr.rel (%p200) target = $region16
      $region15: #{resnet_forward.3} parent=11 // pred_region
        _
      $region16: #{resnet_forward.3} parent=11 // pred_fallthru
        _
      // Predicated region
      $region17: #{resnet_forward.3} parent=11 // pred_check
        %p203 = pneg %p81
      $region18: #{resnet_forward.3} parent=11 // pred_check_branch
        %205 = sbr.rel (%p203) target = $region20
      $region19: #{resnet_forward.3} parent=11 // pred_region
        _
      $region20: #{resnet_forward.3} parent=11 // pred_fallthru
        _
    $region12: #{resnet_forward.3} parent=5 // pred_fallthru
      _
    %p206 = scmp.lt.s32.totalorder %s13, 2
    // Predicated region
    $region21: #{resnet_forward.3} parent=5 // pred_check
      %p207 = pneg %p206
    $region22: #{resnet_forward.3} parent=5 // pred_check_branch
      %209 = sbr.rel (%p207) target = $region24
    $region23: #{resnet_forward.3} parent=5 // pred_region
      // Predicated region
      $region25: #{resnet_forward.3} parent=23 // pred_check
        %p210 = pneg %p33
      $region26: #{resnet_forward.3} parent=23 // pred_check_branch
        %212 = sbr.rel (%p210) target = $region28
      $region27: #{resnet_forward.3} parent=23 // pred_region
        %p213 = scmp.lt.s32.totalorder %s13, 1
        %s214 = scalar_select %p213, %s13, 1
        %s215 = smul.addr %s214, 54
        %s216 = smul.addr %s215, 4
        %s217 = scalar_lea.vmem %s0, %s216
      $region28: #{resnet_forward.3} parent=23 // pred_fallthru
        _
    $region24: #{resnet_forward.3} parent=5 // pred_fallthru
      _
    %p218 = scmp.le.s32.totalorder 1, %s13
    %p219 = scmp.lt.s32.totalorder %s13, 3
    %p220 = pnand %p218, %p219
    %p221 = pneg %p220
    // Predicated region
    $region29: #{resnet_forward.3} parent=5 // pred_check
      _
    $region30: #{resnet_forward.3} parent=5 // pred_check_branch
      %223 = sbr.rel (%p220) target = $region32
    $region31: #{resnet_forward.3} parent=5 // pred_region
      %s224 = ssub.s32 %s13, 1
      %p225 = scmp.lt.s32.totalorder %s18, 1
      %s226 = scalar_select %p225, %s18, 1
      %s227 = smul.addr %s226, 54
      %s228 = smul.addr %s227, 4
      %s229 = scalar_lea.vmem %s0, %s228
      %p230 = pneg %p39
      %p231 = pneg %p36
      %p232 = pneg %p60
      %p233 = pneg %p57
      %p234 = pneg %p81
      %p235 = pneg %p78
      %p236 = pneg %p107
      %p237 = pneg %p104
      %p238 = scmp.lt.s32.totalorder %s18, 1
      %s239 = scalar_select %p238, %s18, 1
      %s240 = smul.addr %s239, 32
      %s241 = smul.addr %s240, 8
      %s242 = scalar_lea.vmem %s3, %s241
      %p243 = pneg %p133
      %p244 = pneg %p130
      %p245 = scmp.lt.s32.totalorder %s18, 1
      %s246 = scalar_select %p245, %s18, 1
      %s247 = smul.addr %s246, 32
      %s248 = smul.addr %s247, 8
      %s249 = scalar_lea.vmem %s4, %s248
      %p250 = pneg %p159
      %p251 = pneg %p156
      %p252 = scmp.lt.s32.totalorder %s18, 1
      %s253 = scalar_select %p252, %s18, 1
      %s254 = smul.addr %s253, 2
      %s255 = scalar_lea.vmem %s5, %s254
      %p256 = pneg %p185
      %p257 = pneg %p182
      %p258 = scmp.lt.s32.totalorder %s18, 1
      %s259 = scalar_select %p258, %s18, 1
      %s260 = smul.addr %s259, 2
      %s261 = scalar_lea.vmem %s6, %s260
      %p262 = scmp.lt.s32.totalorder %s18, 1
      %s263 = scalar_select %p262, %s18, 1
      %s264 = smul.addr %s263, 54
      %s265 = smul.addr %s264, 4
      %s266 = scalar_lea.vmem %s0, %s265
      %p267 = scmp.lt.s32.totalorder %s18, 1
      %s268 = scalar_select %p267, %s18, 1
      %s269 = smul.addr %s268, 32
      %s270 = smul.addr %s269, 8
      %s271 = scalar_lea.vmem %s3, %s270
      %p272 = scmp.lt.s32.totalorder %s18, 1
      %s273 = scalar_select %p272, %s18, 1
      %s274 = smul.addr %s273, 32
      %s275 = smul.addr %s274, 8
      %s276 = scalar_lea.vmem %s4, %s275
      %p277 = scmp.lt.s32.totalorder %s18, 1
      %s278 = scalar_select %p277, %s18, 1
      %s279 = smul.addr %s278, 2
      %s280 = scalar_lea.vmem %s5, %s279
      %p281 = scmp.lt.s32.totalorder %s18, 1
      %s282 = scalar_select %p281, %s18, 1
      %s283 = smul.addr %s282, 2
      %s284 = scalar_lea.vmem %s6, %s283
      %v286 = vld [vmem:[%s266] sm:$0xf]
      %v287 = vld [vmem:[%s266 + $0x4] sm:$0xf]
      %v288 = vld [vmem:[%s266 + $0xc] sm:$0xf]
      %v289 = vld [vmem:[%s266 + $0x10] sm:$0xf]
      %v290 = vld [vmem:[%s266 + $0x18] sm:$0xf]
      %v291 = vld [vmem:[%s266 + $0x1c] sm:$0xf]
      %v292 = vld [vmem:[%s266 + $0x24] sm:$0xf]
      %v293 = vld [vmem:[%s266 + $0x28] sm:$0xf]
      %v294 = vld [vmem:[%s266 + $0x30] sm:$0xf]
      %v295 = vld [vmem:[%s266 + $0x34] sm:$0xf]
      %v296 = vld [vmem:[%s266 + $0x3c] sm:$0xf]
      %v297 = vld [vmem:[%s266 + $0x40] sm:$0xf]
      %v298 = vld [vmem:[%s266 + $0x48] sm:$0xf]
      %v299 = vld [vmem:[%s266 + $0x4c] sm:$0xf]
      %v300 = vld [vmem:[%s266 + $0x54] sm:$0xf]
      %v301 = vld [vmem:[%s266 + $0x58] sm:$0xf]
      %v302 = vld [vmem:[%s266 + $0x60] sm:$0xf]
      %v303 = vld [vmem:[%s266 + $0x64] sm:$0xf]
      %v304 = vld [vmem:[%s266 + $0x6c] sm:$0xf]
      %v305 = vld [vmem:[%s266 + $0x70] sm:$0xf]
      %v306 = vld [vmem:[%s266 + $0x78] sm:$0xf]
      %v307 = vld [vmem:[%s266 + $0x7c] sm:$0xf]
      %v308 = vld [vmem:[%s266 + $0x84] sm:$0xf]
      %v309 = vld [vmem:[%s266 + $0x88] sm:$0xf]
      %v310 = vld [vmem:[%s266 + $0x90] sm:$0xf]
      %v311 = vld [vmem:[%s266 + $0x94] sm:$0xf]
      %v312 = vld [vmem:[%s266 + $0x9c] sm:$0xf]
      %v313 = vld [vmem:[%s266 + $0xa0] sm:$0xf]
      %v314 = vld [vmem:[%s266 + $0xa8] sm:$0xf]
      %v315 = vld [vmem:[%s266 + $0xac] sm:$0xf]
      %v316 = vld [vmem:[%s266 + $0xb4] sm:$0xf]
      %v317 = vld [vmem:[%s266 + $0xb8] sm:$0xf]
      %v318 = vld [vmem:[%s1] sm:$0xf]
      %v319 = vld [vmem:[%s1 + $0x4] sm:$0xf]
      %v320 = vld [vmem:[%s1 + $0x8] sm:$0xf]
      %v321 = vld [vmem:[%s1 + $0xc] sm:$0xf]
      %v322 = vld [vmem:[%s1 + $0x10] sm:$0xf]
      %v323 = vld [vmem:[%s1 + $0x14] sm:$0xf]
      %v324 = vld [vmem:[%s1 + $0x18] sm:$0xf]
      %v325 = vld [vmem:[%s1 + $0x1c] sm:$0xf]
      %v326 = vld [vmem:[%s1 + $0x20] sm:$0xf]
      %v327 = vld [vmem:[%s1 + $0x24] sm:$0xf]
      %v328 = vld [vmem:[%s1 + $0x28] sm:$0xf]
      %v329 = vld [vmem:[%s1 + $0x2c] sm:$0xf]
      %v330 = vld [vmem:[%s1 + $0x30] sm:$0xf]
      %v331 = vld [vmem:[%s1 + $0x34] sm:$0xf]
      %v332 = vld [vmem:[%s1 + $0x38] sm:$0xf]
      %v333 = vld [vmem:[%s1 + $0x3c] sm:$0xf]
      %v334 = vld [vmem:[%s266 + $0x8] sm:$0x1]
      %v335 = vld [vmem:[%s266 + $0x14] sm:$0x1]
      %v336 = vld [vmem:[%s266 + $0x20] sm:$0x1]
      %v337 = vld [vmem:[%s266 + $0x2c] sm:$0x1]
      %v338 = vld [vmem:[%s266 + $0x38] sm:$0x1]
      %v339 = vld [vmem:[%s266 + $0x44] sm:$0x1]
      %v340 = vld [vmem:[%s266 + $0x50] sm:$0x1]
      %v341 = vld [vmem:[%s266 + $0x5c] sm:$0x1]
      %v342 = vld [vmem:[%s266 + $0x68] sm:$0x1]
      %v343 = vld [vmem:[%s266 + $0x74] sm:$0x1]
      %v344 = vld [vmem:[%s266 + $0x80] sm:$0x1]
      %v345 = vld [vmem:[%s266 + $0x8c] sm:$0x1]
      %v346 = vld [vmem:[%s266 + $0x98] sm:$0x1]
      %v347 = vld [vmem:[%s266 + $0xa4] sm:$0x1]
      %v348 = vld [vmem:[%s266 + $0xb0] sm:$0x1]
      %v349 = vld [vmem:[%s266 + $0xbc] sm:$0x1]
      %vm350 = vsmask.f32 3328
      %vm351 = vsmask.f32 7440
      %vm352 = vmor %vm350, %vm351
      %v354 = vshrl.u32 %v286, 16
      %v356 = vrot.slane %v354, 4
      %v357 = vshll.u32 %v286, 16
      %v359 = vrot.slane %v357, 5
      %v360 = vor.u32 %v356, %v359
      %v361 = vrot.slane %v360, 4
      %v363 = vshll.u32 %v287, 16
      %v365 = vrot.slane %v363, 5
      %v366 = vsel %vm352, %v361, %v365
      %v367 = vshrl.u32 %v287, 16
      %v369 = vrot.slane %v367, 4
      %v370 = vor.u32 %v369, %v365
      %v371 = vrot.slane %v370, 4
      %v373 = vshll.u32 %v334, 16
      %v375 = vrot.slane %v373, 5
      %v376 = vsel %vm352, %v371, %v375
      %v378 = vshrl.u32 %v288, 16
      %v380 = vrot.slane %v378, 4
      %v381 = vshll.u32 %v288, 16
      %v383 = vrot.slane %v381, 5
      %v384 = vor.u32 %v380, %v383
      %v385 = vrot.slane %v384, 4
      %v387 = vshll.u32 %v289, 16
      %v389 = vrot.slane %v387, 5
      %v390 = vsel %vm352, %v385, %v389
      %v391 = vshrl.u32 %v289, 16
      %v393 = vrot.slane %v391, 4
      %v394 = vor.u32 %v393, %v389
      %v395 = vrot.slane %v394, 4
      %v397 = vshll.u32 %v335, 16
      %v399 = vrot.slane %v397, 5
      %v400 = vsel %vm352, %v395, %v399
      %v402 = vshrl.u32 %v290, 16
      %v404 = vrot.slane %v402, 4
      %v405 = vshll.u32 %v290, 16
      %v407 = vrot.slane %v405, 5
      %v408 = vor.u32 %v404, %v407
      %v409 = vrot.slane %v408, 4
      %v411 = vshll.u32 %v291, 16
      %v413 = vrot.slane %v411, 5
      %v414 = vsel %vm352, %v409, %v413
      %v415 = vshrl.u32 %v291, 16
      %v417 = vrot.slane %v415, 4
      %v418 = vor.u32 %v417, %v413
      %v419 = vrot.slane %v418, 4
      %v421 = vshll.u32 %v336, 16
      %v423 = vrot.slane %v421, 5
      %v424 = vsel %vm352, %v419, %v423
      %v426 = vshrl.u32 %v292, 16
      %v428 = vrot.slane %v426, 4
      %v429 = vshll.u32 %v292, 16
      %v431 = vrot.slane %v429, 5
      %v432 = vor.u32 %v428, %v431
      %v433 = vrot.slane %v432, 4
      %v435 = vshll.u32 %v293, 16
      %v437 = vrot.slane %v435, 5
      %v438 = vsel %vm352, %v433, %v437
      %v439 = vshrl.u32 %v293, 16
      %v441 = vrot.slane %v439, 4
      %v442 = vor.u32 %v441, %v437
      %v443 = vrot.slane %v442, 4
      %v445 = vshll.u32 %v337, 16
      %v447 = vrot.slane %v445, 5
      %v448 = vsel %vm352, %v443, %v447
      %v450 = vshrl.u32 %v294, 16
      %v452 = vrot.slane %v450, 4
      %v453 = vshll.u32 %v294, 16
      %v455 = vrot.slane %v453, 5
      %v456 = vor.u32 %v452, %v455
      %v457 = vrot.slane %v456, 4
      %v459 = vshll.u32 %v295, 16
      %v461 = vrot.slane %v459, 5
      %v462 = vsel %vm352, %v457, %v461
      %v463 = vshrl.u32 %v295, 16
      %v465 = vrot.slane %v463, 4
      %v466 = vor.u32 %v465, %v461
      %v467 = vrot.slane %v466, 4
      %v469 = vshll.u32 %v338, 16
      %v471 = vrot.slane %v469, 5
      %v472 = vsel %vm352, %v467, %v471
      %v474 = vshrl.u32 %v296, 16
      %v476 = vrot.slane %v474, 4
      %v477 = vshll.u32 %v296, 16
      %v479 = vrot.slane %v477, 5
      %v480 = vor.u32 %v476, %v479
      %v481 = vrot.slane %v480, 4
      %v483 = vshll.u32 %v297, 16
      %v485 = vrot.slane %v483, 5
      %v486 = vsel %vm352, %v481, %v485
      %v487 = vshrl.u32 %v297, 16
      %v489 = vrot.slane %v487, 4
      %v490 = vor.u32 %v489, %v485
      %v491 = vrot.slane %v490, 4
      %v493 = vshll.u32 %v339, 16
      %v495 = vrot.slane %v493, 5
      %v496 = vsel %vm352, %v491, %v495
      %v498 = vshrl.u32 %v298, 16
      %v500 = vrot.slane %v498, 4
      %v501 = vshll.u32 %v298, 16
      %v503 = vrot.slane %v501, 5
      %v504 = vor.u32 %v500, %v503
      %v505 = vrot.slane %v504, 4
      %v507 = vshll.u32 %v299, 16
      %v509 = vrot.slane %v507, 5
      %v510 = vsel %vm352, %v505, %v509
      %v511 = vshrl.u32 %v299, 16
      %v513 = vrot.slane %v511, 4
      %v514 = vor.u32 %v513, %v509
      %v515 = vrot.slane %v514, 4
      %v517 = vshll.u32 %v340, 16
      %v519 = vrot.slane %v517, 5
      %v520 = vsel %vm352, %v515, %v519
      %v522 = vshrl.u32 %v300, 16
      %v524 = vrot.slane %v522, 4
      %v525 = vshll.u32 %v300, 16
      %v527 = vrot.slane %v525, 5
      %v528 = vor.u32 %v524, %v527
      %v529 = vrot.slane %v528, 4
      %v531 = vshll.u32 %v301, 16
      %v533 = vrot.slane %v531, 5
      %v534 = vsel %vm352, %v529, %v533
      %v535 = vshrl.u32 %v301, 16
      %v537 = vrot.slane %v535, 4
      %v538 = vor.u32 %v537, %v533
      %v539 = vrot.slane %v538, 4
      %v541 = vshll.u32 %v341, 16
      %v543 = vrot.slane %v541, 5
      %v544 = vsel %vm352, %v539, %v543
      %v546 = vshrl.u32 %v302, 16
      %v548 = vrot.slane %v546, 4
      %v549 = vshll.u32 %v302, 16
      %v551 = vrot.slane %v549, 5
      %v552 = vor.u32 %v548, %v551
      %v553 = vrot.slane %v552, 4
      %v555 = vshll.u32 %v303, 16
      %v557 = vrot.slane %v555, 5
      %v558 = vsel %vm352, %v553, %v557
      %v559 = vshrl.u32 %v303, 16
      %v561 = vrot.slane %v559, 4
      %v562 = vor.u32 %v561, %v557
      %v563 = vrot.slane %v562, 4
      %v565 = vshll.u32 %v342, 16
      %v567 = vrot.slane %v565, 5
      %v568 = vsel %vm352, %v563, %v567
      %v570 = vshrl.u32 %v304, 16
      %v572 = vrot.slane %v570, 4
      %v573 = vshll.u32 %v304, 16
      %v575 = vrot.slane %v573, 5
      %v576 = vor.u32 %v572, %v575
      %v577 = vrot.slane %v576, 4
      %v579 = vshll.u32 %v305, 16
      %v581 = vrot.slane %v579, 5
      %v582 = vsel %vm352, %v577, %v581
      %v583 = vshrl.u32 %v305, 16
      %v585 = vrot.slane %v583, 4
      %v586 = vor.u32 %v585, %v581
      %v587 = vrot.slane %v586, 4
      %v589 = vshll.u32 %v343, 16
      %v591 = vrot.slane %v589, 5
      %v592 = vsel %vm352, %v587, %v591
      %v594 = vshrl.u32 %v306, 16
      %v596 = vrot.slane %v594, 4
      %v597 = vshll.u32 %v306, 16
      %v599 = vrot.slane %v597, 5
      %v600 = vor.u32 %v596, %v599
      %v601 = vrot.slane %v600, 4
      %v603 = vshll.u32 %v307, 16
      %v605 = vrot.slane %v603, 5
      %v606 = vsel %vm352, %v601, %v605
      %v607 = vshrl.u32 %v307, 16
      %v609 = vrot.slane %v607, 4
      %v610 = vor.u32 %v609, %v605
      %v611 = vrot.slane %v610, 4
      %v613 = vshll.u32 %v344, 16
      %v615 = vrot.slane %v613, 5
      %v616 = vsel %vm352, %v611, %v615
      %v618 = vshrl.u32 %v308, 16
      %v620 = vrot.slane %v618, 4
      %v621 = vshll.u32 %v308, 16
      %v623 = vrot.slane %v621, 5
      %v624 = vor.u32 %v620, %v623
      %v625 = vrot.slane %v624, 4
      %v627 = vshll.u32 %v309, 16
      %v629 = vrot.slane %v627, 5
      %v630 = vsel %vm352, %v625, %v629
      %v631 = vshrl.u32 %v309, 16
      %v633 = vrot.slane %v631, 4
      %v634 = vor.u32 %v633, %v629
      %v635 = vrot.slane %v634, 4
      %v637 = vshll.u32 %v345, 16
      %v639 = vrot.slane %v637, 5
      %v640 = vsel %vm352, %v635, %v639
      %v642 = vshrl.u32 %v310, 16
      %v644 = vrot.slane %v642, 4
      %v645 = vshll.u32 %v310, 16
      %v647 = vrot.slane %v645, 5
      %v648 = vor.u32 %v644, %v647
      %v649 = vrot.slane %v648, 4
      %v651 = vshll.u32 %v311, 16
      %v653 = vrot.slane %v651, 5
      %v654 = vsel %vm352, %v649, %v653
      %v655 = vshrl.u32 %v311, 16
      %v657 = vrot.slane %v655, 4
      %v658 = vor.u32 %v657, %v653
      %v659 = vrot.slane %v658, 4
      %v661 = vshll.u32 %v346, 16
      %v663 = vrot.slane %v661, 5
      %v664 = vsel %vm352, %v659, %v663
      %v666 = vshrl.u32 %v312, 16
      %v668 = vrot.slane %v666, 4
      %v669 = vshll.u32 %v312, 16
      %v671 = vrot.slane %v669, 5
      %v672 = vor.u32 %v668, %v671
      %v673 = vrot.slane %v672, 4
      %v675 = vshll.u32 %v313, 16
      %v677 = vrot.slane %v675, 5
      %v678 = vsel %vm352, %v673, %v677
      %v679 = vshrl.u32 %v313, 16
      %v681 = vrot.slane %v679, 4
      %v682 = vor.u32 %v681, %v677
      %v683 = vrot.slane %v682, 4
      %v685 = vshll.u32 %v347, 16
      %v687 = vrot.slane %v685, 5
      %v688 = vsel %vm352, %v683, %v687
      %v690 = vshrl.u32 %v314, 16
      %v692 = vrot.slane %v690, 4
      %v693 = vshll.u32 %v314, 16
      %v695 = vrot.slane %v693, 5
      %v696 = vor.u32 %v692, %v695
      %v697 = vrot.slane %v696, 4
      %v699 = vshll.u32 %v315, 16
      %v701 = vrot.slane %v699, 5
      %v702 = vsel %vm352, %v697, %v701
      %v703 = vshrl.u32 %v315, 16
      %v705 = vrot.slane %v703, 4
      %v706 = vor.u32 %v705, %v701
      %v707 = vrot.slane %v706, 4
      %v709 = vshll.u32 %v348, 16
      %v711 = vrot.slane %v709, 5
      %v712 = vsel %vm352, %v707, %v711
      %v714 = vshrl.u32 %v316, 16
      %v716 = vrot.slane %v714, 4
      %v717 = vshll.u32 %v316, 16
      %v719 = vrot.slane %v717, 5
      %v720 = vor.u32 %v716, %v719
      %v721 = vrot.slane %v720, 4
      %v723 = vshll.u32 %v317, 16
      %v725 = vrot.slane %v723, 5
      %v726 = vsel %vm352, %v721, %v725
      %v727 = vshrl.u32 %v317, 16
      %v729 = vrot.slane %v727, 4
      %v730 = vor.u32 %v729, %v725
      %v731 = vrot.slane %v730, 4
      %v733 = vshll.u32 %v349, 16
      %v735 = vrot.slane %v733, 5
      %v736 = vsel %vm352, %v731, %v735
      %s737 = scalar_lea.vmem %s1, 64
      %v738 = vld [vmem:[%s737] sm:$0xf]
      %v739 = vld [vmem:[%s737 + $0x4] sm:$0xf]
      %v740 = vld [vmem:[%s737 + $0x8] sm:$0xf]
      %v741 = vld [vmem:[%s737 + $0xc] sm:$0xf]
      %v742 = vld [vmem:[%s737 + $0x10] sm:$0xf]
      %v743 = vld [vmem:[%s737 + $0x14] sm:$0xf]
      %v744 = vld [vmem:[%s737 + $0x18] sm:$0xf]
      %v745 = vld [vmem:[%s737 + $0x1c] sm:$0xf]
      %v746 = vld [vmem:[%s737 + $0x20] sm:$0xf]
      %v747 = vld [vmem:[%s737 + $0x24] sm:$0xf]
      %v748 = vld [vmem:[%s737 + $0x28] sm:$0xf]
      %v749 = vld [vmem:[%s737 + $0x2c] sm:$0xf]
      %v750 = vld [vmem:[%s737 + $0x30] sm:$0xf]
      %v751 = vld [vmem:[%s737 + $0x34] sm:$0xf]
      %v752 = vld [vmem:[%s737 + $0x38] sm:$0xf]
      %v753 = vld [vmem:[%s737 + $0x3c] sm:$0xf]
      %v754 = vunpack.c.l.b16 %v366
      %v755 = vunpack.c.l.b16 %v376
      %v756 = vunpack.c.l.b16 %v390
      %v757 = vunpack.c.l.b16 %v400
      %v758 = vunpack.c.l.b16 %v414
      %v759 = vunpack.c.l.b16 %v424
      %v760 = vunpack.c.l.b16 %v438
      %v761 = vunpack.c.l.b16 %v448
      %v762 = vunpack.c.l.b16 %v462
      %v763 = vunpack.c.l.b16 %v472
      %v764 = vunpack.c.l.b16 %v486
      %v765 = vunpack.c.l.b16 %v496
      %v766 = vunpack.c.l.b16 %v510
      %v767 = vunpack.c.l.b16 %v520
      %v768 = vunpack.c.l.b16 %v534
      %v769 = vunpack.c.l.b16 %v544
      %v770 = vunpack.c.l.b16 %v558
      %v771 = vunpack.c.l.b16 %v568
      %v772 = vunpack.c.l.b16 %v582
      %v773 = vunpack.c.l.b16 %v592
      %v774 = vunpack.c.l.b16 %v606
      %v775 = vunpack.c.l.b16 %v616
      %v776 = vunpack.c.l.b16 %v630
      %v777 = vunpack.c.l.b16 %v640
      %v778 = vunpack.c.l.b16 %v654
      %v779 = vunpack.c.l.b16 %v664
      %v780 = vunpack.c.l.b16 %v678
      %v781 = vunpack.c.l.b16 %v688
      %v782 = vunpack.c.l.b16 %v702
      %v783 = vunpack.c.l.b16 %v712
      %v784 = vunpack.c.l.b16 %v726
      %v785 = vunpack.c.l.b16 %v736
      %v786 = vpack.c.b16 %v755, %v754
      %v787 = vpack.c.b16 %v757, %v756
      %v788 = vpack.c.b16 %v759, %v758
      %v789 = vpack.c.b16 %v761, %v760
      %v790 = vpack.c.b16 %v763, %v762
      %v791 = vpack.c.b16 %v765, %v764
      %v792 = vpack.c.b16 %v767, %v766
      %v793 = vpack.c.b16 %v769, %v768
      %v794 = vpack.c.b16 %v771, %v770
      %v795 = vpack.c.b16 %v773, %v772
      %v796 = vpack.c.b16 %v775, %v774
      %v797 = vpack.c.b16 %v777, %v776
      %v798 = vpack.c.b16 %v779, %v778
      %v799 = vpack.c.b16 %v781, %v780
      %v800 = vpack.c.b16 %v783, %v782
      %v801 = vpack.c.b16 %v785, %v784
      %v834 = vunpack.c.l.b16 %v738
      %v835 = vunpack.c.l.b16 %v739
      %v836 = vunpack.c.l.b16 %v740
      %v837 = vunpack.c.l.b16 %v741
      %v838 = vunpack.c.l.b16 %v742
      %v839 = vunpack.c.l.b16 %v743
      %v840 = vunpack.c.l.b16 %v744
      %v841 = vunpack.c.l.b16 %v745
      %v842 = vunpack.c.l.b16 %v746
      %v843 = vunpack.c.l.b16 %v747
      %v844 = vunpack.c.l.b16 %v748
      %v845 = vunpack.c.l.b16 %v749
      %v846 = vunpack.c.l.b16 %v750
      %v847 = vunpack.c.l.b16 %v751
      %v848 = vunpack.c.l.b16 %v752
      %v849 = vunpack.c.l.b16 %v753
      %v850 = vpack.c.b16 %v835, %v834
      %v851 = vpack.c.b16 %v837, %v836
      %v852 = vpack.c.b16 %v839, %v838
      %v853 = vpack.c.b16 %v841, %v840
      %v854 = vpack.c.b16 %v843, %v842
      %v855 = vpack.c.b16 %v845, %v844
      %v856 = vpack.c.b16 %v847, %v846
      %v857 = vpack.c.b16 %v849, %v848
      %866 = vmatprep.subr.bf16.mxu0 0
      %867 = vmatpush1.bf16.msra.mxu0 %v857
      %868 = vmatprep.subr.bf16.mxu0 0
      %869 = vmatpush1.bf16.msra.mxu0 %v856
      %870 = vmatprep.subr.bf16.mxu0 0
      %871 = vmatpush1.bf16.msra.mxu0 %v855
      %872 = vmatprep.subr.bf16.mxu0 0
      %873 = vmatpush1.bf16.msra.mxu0 %v854
      %874 = vmatprep.subr.bf16.mxu0 0
      %875 = vmatpush1.bf16.msra.mxu0 %v853
      %876 = vmatprep.subr.bf16.mxu0 0
      %877 = vmatpush1.bf16.msra.mxu0 %v852
      %878 = vmatprep.subr.bf16.mxu0 0
      %879 = vmatpush1.bf16.msra.mxu0 %v851
      %880 = vmatprep.subr.bf16.mxu0 0
      %881 = vmatpush1.bf16.msra.mxu0 %v850
      %882 = vmatprep.subr.bf16.mxu0 0
      %883 = vmatpush2.bf16.msra.mxu0 0
      %884 = vmatprep.subr.bf16.mxu0 0
      %885 = vmatpush2.bf16.msra.mxu0 0
      %886 = vmatprep.subr.bf16.mxu0 0
      %887 = vmatpush2.bf16.msra.mxu0 0
      %888 = vmatprep.subr.bf16.mxu0 0
      %889 = vmatpush2.bf16.msra.mxu0 0
      %890 = vmatprep.subr.bf16.mxu0 0
      %891 = vmatpush2.bf16.msra.mxu0 0
      %892 = vmatprep.subr.bf16.mxu0 0
      %893 = vmatpush2.bf16.msra.mxu0 0
      %894 = vmatprep.subr.bf16.mxu0 0
      %895 = vmatpush2.bf16.msra.mxu0 0
      %896 = vmatprep.subr.bf16.mxu0 0
      %897 = vmatpush2.bf16.msra.mxu0 0
      %898 = vmatprep.mubr.bf16.mxu0 0
      %899 = vmatmul.mubr.bf16.gmra.mxu0 %v786
      %v900 = vpop.f32.mrf.mxu0
      %v901 = vadd.f32 0.0, %v900
      %v902 = vpop.f32.mrf.mxu0
      %v903 = vpop.f32.mrf.mxu0
      %v904 = vadd.f32 0.0, %v903
      %v905 = vpop.f32.mrf.mxu0
      %906 = vmatprep.mubr.bf16.mxu0 0
      %907 = vmatmul.mubr.bf16.gmra.mxu0 %v787
      %v908 = vpop.f32.mrf.mxu0
      %v909 = vadd.f32 0.0, %v908
      %v910 = vpop.f32.mrf.mxu0
      %v911 = vpop.f32.mrf.mxu0
      %v912 = vadd.f32 0.0, %v911
      %v913 = vpop.f32.mrf.mxu0
      %914 = vmatprep.mubr.bf16.mxu0 0
      %915 = vmatmul.mubr.bf16.gmra.mxu0 %v788
      %v916 = vpop.f32.mrf.mxu0
      %v917 = vadd.f32 0.0, %v916
      %v918 = vpop.f32.mrf.mxu0
      %v919 = vpop.f32.mrf.mxu0
      %v920 = vadd.f32 0.0, %v919
      %v921 = vpop.f32.mrf.mxu0
      %922 = vmatprep.mubr.bf16.mxu0 0
      %923 = vmatmul.mubr.bf16.gmra.mxu0 %v789
      %v924 = vpop.f32.mrf.mxu0
      %v925 = vadd.f32 0.0, %v924
      %v926 = vpop.f32.mrf.mxu0
      %v927 = vpop.f32.mrf.mxu0
      %v928 = vadd.f32 0.0, %v927
      %v929 = vpop.f32.mrf.mxu0
      %930 = vmatprep.mubr.bf16.mxu0 0
      %931 = vmatmul.mubr.bf16.gmra.mxu0 %v790
      %v932 = vpop.f32.mrf.mxu0
      %v933 = vadd.f32 0.0, %v932
      %v934 = vpop.f32.mrf.mxu0
      %v935 = vpop.f32.mrf.mxu0
      %v936 = vadd.f32 0.0, %v935
      %v937 = vpop.f32.mrf.mxu0
      %938 = vmatprep.mubr.bf16.mxu0 0
      %939 = vmatmul.mubr.bf16.gmra.mxu0 %v791
      %v940 = vpop.f32.mrf.mxu0
      %v941 = vadd.f32 0.0, %v940
      %v942 = vpop.f32.mrf.mxu0
      %v943 = vpop.f32.mrf.mxu0
      %v944 = vadd.f32 0.0, %v943
      %v945 = vpop.f32.mrf.mxu0
      %946 = vmatprep.mubr.bf16.mxu0 0
      %947 = vmatmul.mubr.bf16.gmra.mxu0 %v792
      %v948 = vpop.f32.mrf.mxu0
      %v949 = vadd.f32 0.0, %v948
      %v950 = vpop.f32.mrf.mxu0
      %v951 = vpop.f32.mrf.mxu0
      %v952 = vadd.f32 0.0, %v951
      %v953 = vpop.f32.mrf.mxu0
      %954 = vmatprep.mubr.bf16.mxu0 0
      %955 = vmatmul.mubr.bf16.gmra.mxu0 %v793
      %v956 = vpop.f32.mrf.mxu0
      %v957 = vadd.f32 0.0, %v956
      %v958 = vpop.f32.mrf.mxu0
      %v959 = vpop.f32.mrf.mxu0
      %v960 = vadd.f32 0.0, %v959
      %v961 = vpop.f32.mrf.mxu0
      %962 = vmatprep.mubr.bf16.mxu0 0
      %963 = vmatmul.mubr.bf16.gmra.mxu0 %v794
      %v964 = vpop.f32.mrf.mxu0
      %v965 = vadd.f32 0.0, %v964
      %v966 = vpop.f32.mrf.mxu0
      %v967 = vpop.f32.mrf.mxu0
      %v968 = vadd.f32 0.0, %v967
      %v969 = vpop.f32.mrf.mxu0
      %970 = vmatprep.mubr.bf16.mxu0 0
      %971 = vmatmul.mubr.bf16.gmra.mxu0 %v795
      %v972 = vpop.f32.mrf.mxu0
      %v973 = vadd.f32 0.0, %v972
      %v974 = vpop.f32.mrf.mxu0
      %v975 = vpop.f32.mrf.mxu0
      %v976 = vadd.f32 0.0, %v975
      %v977 = vpop.f32.mrf.mxu0
      %978 = vmatprep.mubr.bf16.mxu0 0
      %979 = vmatmul.mubr.bf16.gmra.mxu0 %v796
      %v980 = vpop.f32.mrf.mxu0
      %v981 = vadd.f32 0.0, %v980
      %v982 = vpop.f32.mrf.mxu0
      %v983 = vpop.f32.mrf.mxu0
      %v984 = vadd.f32 0.0, %v983
      %v985 = vpop.f32.mrf.mxu0
      %986 = vmatprep.mubr.bf16.mxu0 0
      %987 = vmatmul.mubr.bf16.gmra.mxu0 %v797
      %v988 = vpop.f32.mrf.mxu0
      %v989 = vadd.f32 0.0, %v988
      %v990 = vpop.f32.mrf.mxu0
      %v991 = vpop.f32.mrf.mxu0
      %v992 = vadd.f32 0.0, %v991
      %v993 = vpop.f32.mrf.mxu0
      %994 = vmatprep.mubr.bf16.mxu0 0
      %995 = vmatmul.mubr.bf16.gmra.mxu0 %v798
      %v996 = vpop.f32.mrf.mxu0
      %v997 = vadd.f32 0.0, %v996
      %v998 = vpop.f32.mrf.mxu0
      %v999 = vpop.f32.mrf.mxu0
      %v1000 = vadd.f32 0.0, %v999
      %v1001 = vpop.f32.mrf.mxu0
      %1002 = vmatprep.mubr.bf16.mxu0 0
      %1003 = vmatmul.mubr.bf16.gmra.mxu0 %v799
      %v1004 = vpop.f32.mrf.mxu0
      %v1005 = vadd.f32 0.0, %v1004
      %v1006 = vpop.f32.mrf.mxu0
      %v1007 = vpop.f32.mrf.mxu0
      %v1008 = vadd.f32 0.0, %v1007
      %v1009 = vpop.f32.mrf.mxu0
      %1010 = vmatprep.mubr.bf16.mxu0 0
      %1011 = vmatmul.mubr.bf16.gmra.mxu0 %v800
      %v1012 = vpop.f32.mrf.mxu0
      %v1013 = vadd.f32 0.0, %v1012
      %v1014 = vpop.f32.mrf.mxu0
      %v1015 = vpop.f32.mrf.mxu0
      %v1016 = vadd.f32 0.0, %v1015
      %v1017 = vpop.f32.mrf.mxu0
      %1018 = vmatprep.mubr.bf16.mxu0 0
      %1019 = vmatmul.mubr.bf16.gmra.mxu0 %v801
      %v1020 = vpop.f32.mrf.mxu0
      %v1021 = vadd.f32 0.0, %v1020
      %v1022 = vpop.f32.mrf.mxu0
      %v1023 = vpop.f32.mrf.mxu0
      %v1024 = vadd.f32 0.0, %v1023
      %v1025 = vpop.f32.mrf.mxu0
      %1026 = vdwg.mxu0
      %v1059 = vunpack.c.l.b16 %v286
      %v1060 = vunpack.c.l.b16 %v287
      %v1061 = vunpack.c.l.b16 %v288
      %v1062 = vunpack.c.l.b16 %v289
      %v1063 = vunpack.c.l.b16 %v290
      %v1064 = vunpack.c.l.b16 %v291
      %v1065 = vunpack.c.l.b16 %v292
      %v1066 = vunpack.c.l.b16 %v293
      %v1067 = vunpack.c.l.b16 %v294
      %v1068 = vunpack.c.l.b16 %v295
      %v1069 = vunpack.c.l.b16 %v296
      %v1070 = vunpack.c.l.b16 %v297
      %v1071 = vunpack.c.l.b16 %v298
      %v1072 = vunpack.c.l.b16 %v299
      %v1073 = vunpack.c.l.b16 %v300
      %v1074 = vunpack.c.l.b16 %v301
      %v1075 = vunpack.c.l.b16 %v302
      %v1076 = vunpack.c.l.b16 %v303
      %v1077 = vunpack.c.l.b16 %v304
      %v1078 = vunpack.c.l.b16 %v305
      %v1079 = vunpack.c.l.b16 %v306
      %v1080 = vunpack.c.l.b16 %v307
      %v1081 = vunpack.c.l.b16 %v308
      %v1082 = vunpack.c.l.b16 %v309
      %v1083 = vunpack.c.l.b16 %v310
      %v1084 = vunpack.c.l.b16 %v311
      %v1085 = vunpack.c.l.b16 %v312
      %v1086 = vunpack.c.l.b16 %v313
      %v1087 = vunpack.c.l.b16 %v314
      %v1088 = vunpack.c.l.b16 %v315
      %v1089 = vunpack.c.l.b16 %v316
      %v1090 = vunpack.c.l.b16 %v317
      %v1091 = vpack.c.b16 %v1060, %v1059
      %v1092 = vpack.c.b16 %v1062, %v1061
      %v1093 = vpack.c.b16 %v1064, %v1063
      %v1094 = vpack.c.b16 %v1066, %v1065
      %v1095 = vpack.c.b16 %v1068, %v1067
      %v1096 = vpack.c.b16 %v1070, %v1069
      %v1097 = vpack.c.b16 %v1072, %v1071
      %v1098 = vpack.c.b16 %v1074, %v1073
      %v1099 = vpack.c.b16 %v1076, %v1075
      %v1100 = vpack.c.b16 %v1078, %v1077
      %v1101 = vpack.c.b16 %v1080, %v1079
      %v1102 = vpack.c.b16 %v1082, %v1081
      %v1103 = vpack.c.b16 %v1084, %v1083
      %v1104 = vpack.c.b16 %v1086, %v1085
      %v1105 = vpack.c.b16 %v1088, %v1087
      %v1106 = vpack.c.b16 %v1090, %v1089
      %v1139 = vunpack.c.l.b16 %v318
      %v1140 = vunpack.c.l.b16 %v319
      %v1141 = vunpack.c.l.b16 %v320
      %v1142 = vunpack.c.l.b16 %v321
      %v1143 = vunpack.c.l.b16 %v322
      %v1144 = vunpack.c.l.b16 %v323
      %v1145 = vunpack.c.l.b16 %v324
      %v1146 = vunpack.c.l.b16 %v325
      %v1147 = vunpack.c.l.b16 %v326
      %v1148 = vunpack.c.l.b16 %v327
      %v1149 = vunpack.c.l.b16 %v328
      %v1150 = vunpack.c.l.b16 %v329
      %v1151 = vunpack.c.l.b16 %v330
      %v1152 = vunpack.c.l.b16 %v331
      %v1153 = vunpack.c.l.b16 %v332
      %v1154 = vunpack.c.l.b16 %v333
      %v1155 = vpack.c.b16 %v1140, %v1139
      %v1156 = vpack.c.b16 %v1142, %v1141
      %v1157 = vpack.c.b16 %v1144, %v1143
      %v1158 = vpack.c.b16 %v1146, %v1145
      %v1159 = vpack.c.b16 %v1148, %v1147
      %v1160 = vpack.c.b16 %v1150, %v1149
      %v1161 = vpack.c.b16 %v1152, %v1151
      %v1162 = vpack.c.b16 %v1154, %v1153
      %1171 = vmatprep.subr.bf16.mxu0 0
      %1172 = vmatpush1.bf16.msra.mxu0 %v1162
      %1173 = vmatprep.subr.bf16.mxu0 0
      %1174 = vmatpush1.bf16.msra.mxu0 %v1161
      %1175 = vmatprep.subr.bf16.mxu0 0
      %1176 = vmatpush1.bf16.msra.mxu0 %v1160
      %1177 = vmatprep.subr.bf16.mxu0 0
      %1178 = vmatpush1.bf16.msra.mxu0 %v1159
      %1179 = vmatprep.subr.bf16.mxu0 0
      %1180 = vmatpush1.bf16.msra.mxu0 %v1158
      %1181 = vmatprep.subr.bf16.mxu0 0
      %1182 = vmatpush1.bf16.msra.mxu0 %v1157
      %1183 = vmatprep.subr.bf16.mxu0 0
      %1184 = vmatpush1.bf16.msra.mxu0 %v1156
      %1185 = vmatprep.subr.bf16.mxu0 0
      %1186 = vmatpush1.bf16.msra.mxu0 %v1155
      %1187 = vmatprep.subr.bf16.mxu0 0
      %1188 = vmatpush2.bf16.msra.mxu0 0
      %1189 = vmatprep.subr.bf16.mxu0 0
      %1190 = vmatpush2.bf16.msra.mxu0 0
      %1191 = vmatprep.subr.bf16.mxu0 0
      %1192 = vmatpush2.bf16.msra.mxu0 0
      %1193 = vmatprep.subr.bf16.mxu0 0
      %1194 = vmatpush2.bf16.msra.mxu0 0
      %1195 = vmatprep.subr.bf16.mxu0 0
      %1196 = vmatpush2.bf16.msra.mxu0 0
      %1197 = vmatprep.subr.bf16.mxu0 0
      %1198 = vmatpush2.bf16.msra.mxu0 0
      %1199 = vmatprep.subr.bf16.mxu0 0
      %1200 = vmatpush2.bf16.msra.mxu0 0
      %1201 = vmatprep.subr.bf16.mxu0 0
      %1202 = vmatpush2.bf16.msra.mxu0 0
      %1203 = vmatprep.mubr.bf16.mxu0 0
      %1204 = vmatmul.mubr.bf16.gmra.mxu0 %v1091
      %v1205 = vpop.f32.mrf.mxu0
      %v1206 = vadd.f32 %v901, %v1205
      %v1207 = vpop.f32.mrf.mxu0
      %v1208 = vpop.f32.mrf.mxu0
      %v1209 = vadd.f32 %v904, %v1208
      %v1210 = vpop.f32.mrf.mxu0
      %1211 = vmatprep.mubr.bf16.mxu0 0
      %1212 = vmatmul.mubr.bf16.gmra.mxu0 %v1092
      %v1213 = vpop.f32.mrf.mxu0
      %v1214 = vadd.f32 %v909, %v1213
      %v1215 = vpop.f32.mrf.mxu0
      %v1216 = vpop.f32.mrf.mxu0
      %v1217 = vadd.f32 %v912, %v1216
      %v1218 = vpop.f32.mrf.mxu0
      %1219 = vmatprep.mubr.bf16.mxu0 0
      %1220 = vmatmul.mubr.bf16.gmra.mxu0 %v1093
      %v1221 = vpop.f32.mrf.mxu0
      %v1222 = vadd.f32 %v917, %v1221
      %v1223 = vpop.f32.mrf.mxu0
      %v1224 = vpop.f32.mrf.mxu0
      %v1225 = vadd.f32 %v920, %v1224
      %v1226 = vpop.f32.mrf.mxu0
      %1227 = vmatprep.mubr.bf16.mxu0 0
      %1228 = vmatmul.mubr.bf16.gmra.mxu0 %v1094
      %v1229 = vpop.f32.mrf.mxu0
      %v1230 = vadd.f32 %v925, %v1229
      %v1231 = vpop.f32.mrf.mxu0
      %v1232 = vpop.f32.mrf.mxu0
      %v1233 = vadd.f32 %v928, %v1232
      %v1234 = vpop.f32.mrf.mxu0
      %1235 = vmatprep.mubr.bf16.mxu0 0
      %1236 = vmatmul.mubr.bf16.gmra.mxu0 %v1095
      %v1237 = vpop.f32.mrf.mxu0
      %v1238 = vadd.f32 %v933, %v1237
      %v1239 = vpop.f32.mrf.mxu0
      %v1240 = vpop.f32.mrf.mxu0
      %v1241 = vadd.f32 %v936, %v1240
      %v1242 = vpop.f32.mrf.mxu0
      %1243 = vmatprep.mubr.bf16.mxu0 0
      %1244 = vmatmul.mubr.bf16.gmra.mxu0 %v1096
      %v1245 = vpop.f32.mrf.mxu0
      %v1246 = vadd.f32 %v941, %v1245
      %v1247 = vpop.f32.mrf.mxu0
      %v1248 = vpop.f32.mrf.mxu0
      %v1249 = vadd.f32 %v944, %v1248
      %v1250 = vpop.f32.mrf.mxu0
      %1251 = vmatprep.mubr.bf16.mxu0 0
      %1252 = vmatmul.mubr.bf16.gmra.mxu0 %v1097
      %v1253 = vpop.f32.mrf.mxu0
      %v1254 = vadd.f32 %v949, %v1253
      %v1255 = vpop.f32.mrf.mxu0
      %v1256 = vpop.f32.mrf.mxu0
      %v1257 = vadd.f32 %v952, %v1256
      %v1258 = vpop.f32.mrf.mxu0
      %1259 = vmatprep.mubr.bf16.mxu0 0
      %1260 = vmatmul.mubr.bf16.gmra.mxu0 %v1098
      %v1261 = vpop.f32.mrf.mxu0
      %v1262 = vadd.f32 %v957, %v1261
      %v1263 = vpop.f32.mrf.mxu0
      %v1264 = vpop.f32.mrf.mxu0
      %v1265 = vadd.f32 %v960, %v1264
      %v1266 = vpop.f32.mrf.mxu0
      %1267 = vmatprep.mubr.bf16.mxu0 0
      %1268 = vmatmul.mubr.bf16.gmra.mxu0 %v1099
      %v1269 = vpop.f32.mrf.mxu0
      %v1270 = vadd.f32 %v965, %v1269
      %v1271 = vpop.f32.mrf.mxu0
      %v1272 = vpop.f32.mrf.mxu0
      %v1273 = vadd.f32 %v968, %v1272
      %v1274 = vpop.f32.mrf.mxu0
      %1275 = vmatprep.mubr.bf16.mxu0 0
      %1276 = vmatmul.mubr.bf16.gmra.mxu0 %v1100
      %v1277 = vpop.f32.mrf.mxu0
      %v1278 = vadd.f32 %v973, %v1277
      %v1279 = vpop.f32.mrf.mxu0
      %v1280 = vpop.f32.mrf.mxu0
      %v1281 = vadd.f32 %v976, %v1280
      %v1282 = vpop.f32.mrf.mxu0
      %1283 = vmatprep.mubr.bf16.mxu0 0
      %1284 = vmatmul.mubr.bf16.gmra.mxu0 %v1101
      %v1285 = vpop.f32.mrf.mxu0
      %v1286 = vadd.f32 %v981, %v1285
      %v1287 = vpop.f32.mrf.mxu0
      %v1288 = vpop.f32.mrf.mxu0
      %v1289 = vadd.f32 %v984, %v1288
      %v1290 = vpop.f32.mrf.mxu0
      %1291 = vmatprep.mubr.bf16.mxu0 0
      %1292 = vmatmul.mubr.bf16.gmra.mxu0 %v1102
      %v1293 = vpop.f32.mrf.mxu0
      %v1294 = vadd.f32 %v989, %v1293
      %v1295 = vpop.f32.mrf.mxu0
      %v1296 = vpop.f32.mrf.mxu0
      %v1297 = vadd.f32 %v992, %v1296
      %v1298 = vpop.f32.mrf.mxu0
      %1299 = vmatprep.mubr.bf16.mxu0 0
      %1300 = vmatmul.mubr.bf16.gmra.mxu0 %v1103
      %v1301 = vpop.f32.mrf.mxu0
      %v1302 = vadd.f32 %v997, %v1301
      %v1303 = vpop.f32.mrf.mxu0
      %v1304 = vpop.f32.mrf.mxu0
      %v1305 = vadd.f32 %v1000, %v1304
      %v1306 = vpop.f32.mrf.mxu0
      %1307 = vmatprep.mubr.bf16.mxu0 0
      %1308 = vmatmul.mubr.bf16.gmra.mxu0 %v1104
      %v1309 = vpop.f32.mrf.mxu0
      %v1310 = vadd.f32 %v1005, %v1309
      %v1311 = vpop.f32.mrf.mxu0
      %v1312 = vpop.f32.mrf.mxu0
      %v1313 = vadd.f32 %v1008, %v1312
      %v1314 = vpop.f32.mrf.mxu0
      %1315 = vmatprep.mubr.bf16.mxu0 0
      %1316 = vmatmul.mubr.bf16.gmra.mxu0 %v1105
      %v1317 = vpop.f32.mrf.mxu0
      %v1318 = vadd.f32 %v1013, %v1317
      %v1319 = vpop.f32.mrf.mxu0
      %v1320 = vpop.f32.mrf.mxu0
      %v1321 = vadd.f32 %v1016, %v1320
      %v1322 = vpop.f32.mrf.mxu0
      %1323 = vmatprep.mubr.bf16.mxu0 0
      %1324 = vmatmul.mubr.bf16.gmra.mxu0 %v1106
      %v1325 = vpop.f32.mrf.mxu0
      %v1326 = vadd.f32 %v1021, %v1325
      %v1327 = vpop.f32.mrf.mxu0
      %v1328 = vpop.f32.mrf.mxu0
      %v1329 = vadd.f32 %v1024, %v1328
      %v1330 = vpop.f32.mrf.mxu0
      %1331 = vdwg.mxu0
      %v1332 = vld [vmem:[%s266] sm:$0xe]
      %v1333 = vld [vmem:[%s266 + $0xc] sm:$0xe]
      %v1334 = vld [vmem:[%s266 + $0x18] sm:$0xe]
      %v1335 = vld [vmem:[%s266 + $0x24] sm:$0xe]
      %v1336 = vld [vmem:[%s266 + $0x30] sm:$0xe]
      %v1337 = vld [vmem:[%s266 + $0x3c] sm:$0xe]
      %v1338 = vld [vmem:[%s266 + $0x48] sm:$0xe]
      %v1339 = vld [vmem:[%s266 + $0x54] sm:$0xe]
      %v1340 = vld [vmem:[%s266 + $0x60] sm:$0xe]
      %v1341 = vld [vmem:[%s266 + $0x6c] sm:$0xe]
      %v1342 = vld [vmem:[%s266 + $0x78] sm:$0xe]
      %v1343 = vld [vmem:[%s266 + $0x84] sm:$0xe]
      %v1344 = vld [vmem:[%s266 + $0x90] sm:$0xe]
      %v1345 = vld [vmem:[%s266 + $0x9c] sm:$0xe]
      %v1346 = vld [vmem:[%s266 + $0xa8] sm:$0xe]
      %v1347 = vld [vmem:[%s266 + $0xb4] sm:$0xe]
      %vm1380 = vcmask 1042432
      %vm1381 = vcmask 1046532
      %vm1382 = vmor %vm1380, %vm1381
      %v1383 = vrot.slane %v1332, 5
      %v1384 = vrot.slane %v1383, 4
      %v1385 = vrot.slane %v287, 5
      %v1386 = vsel %vm1382, %v1384, %v1385
      %v1387 = vrot.slane %v1385, 4
      %v1388 = vrot.slane %v334, 5
      %v1389 = vsel %vm1382, %v1387, %v1388
      %v1390 = vrot.slane %v1333, 5
      %v1391 = vrot.slane %v1390, 4
      %v1392 = vrot.slane %v289, 5
      %v1393 = vsel %vm1382, %v1391, %v1392
      %v1394 = vrot.slane %v1392, 4
      %v1395 = vrot.slane %v335, 5
      %v1396 = vsel %vm1382, %v1394, %v1395
      %v1397 = vrot.slane %v1334, 5
      %v1398 = vrot.slane %v1397, 4
      %v1399 = vrot.slane %v291, 5
      %v1400 = vsel %vm1382, %v1398, %v1399
      %v1401 = vrot.slane %v1399, 4
      %v1402 = vrot.slane %v336, 5
      %v1403 = vsel %vm1382, %v1401, %v1402
      %v1404 = vrot.slane %v1335, 5
      %v1405 = vrot.slane %v1404, 4
      %v1406 = vrot.slane %v293, 5
      %v1407 = vsel %vm1382, %v1405, %v1406
      %v1408 = vrot.slane %v1406, 4
      %v1409 = vrot.slane %v337, 5
      %v1410 = vsel %vm1382, %v1408, %v1409
      %v1411 = vrot.slane %v1336, 5
      %v1412 = vrot.slane %v1411, 4
      %v1413 = vrot.slane %v295, 5
      %v1414 = vsel %vm1382, %v1412, %v1413
      %v1415 = vrot.slane %v1413, 4
      %v1416 = vrot.slane %v338, 5
      %v1417 = vsel %vm1382, %v1415, %v1416
      %v1418 = vrot.slane %v1337, 5
      %v1419 = vrot.slane %v1418, 4
      %v1420 = vrot.slane %v297, 5
      %v1421 = vsel %vm1382, %v1419, %v1420
      %v1422 = vrot.slane %v1420, 4
      %v1423 = vrot.slane %v339, 5
      %v1424 = vsel %vm1382, %v1422, %v1423
      %v1425 = vrot.slane %v1338, 5
      %v1426 = vrot.slane %v1425, 4
      %v1427 = vrot.slane %v299, 5
      %v1428 = vsel %vm1382, %v1426, %v1427
      %v1429 = vrot.slane %v1427, 4
      %v1430 = vrot.slane %v340, 5
      %v1431 = vsel %vm1382, %v1429, %v1430
      %v1432 = vrot.slane %v1339, 5
      %v1433 = vrot.slane %v1432, 4
      %v1434 = vrot.slane %v301, 5
      %v1435 = vsel %vm1382, %v1433, %v1434
      %v1436 = vrot.slane %v1434, 4
      %v1437 = vrot.slane %v341, 5
      %v1438 = vsel %vm1382, %v1436, %v1437
      %v1439 = vrot.slane %v1340, 5
      %v1440 = vrot.slane %v1439, 4
      %v1441 = vrot.slane %v303, 5
      %v1442 = vsel %vm1382, %v1440, %v1441
      %v1443 = vrot.slane %v1441, 4
      %v1444 = vrot.slane %v342, 5
      %v1445 = vsel %vm1382, %v1443, %v1444
      %v1446 = vrot.slane %v1341, 5
      %v1447 = vrot.slane %v1446, 4
      %v1448 = vrot.slane %v305, 5
      %v1449 = vsel %vm1382, %v1447, %v1448
      %v1450 = vrot.slane %v1448, 4
      %v1451 = vrot.slane %v343, 5
      %v1452 = vsel %vm1382, %v1450, %v1451
      %v1453 = vrot.slane %v1342, 5
      %v1454 = vrot.slane %v1453, 4
      %v1455 = vrot.slane %v307, 5
      %v1456 = vsel %vm1382, %v1454, %v1455
      %v1457 = vrot.slane %v1455, 4
      %v1458 = vrot.slane %v344, 5
      %v1459 = vsel %vm1382, %v1457, %v1458
      %v1460 = vrot.slane %v1343, 5
      %v1461 = vrot.slane %v1460, 4
      %v1462 = vrot.slane %v309, 5
      %v1463 = vsel %vm1382, %v1461, %v1462
      %v1464 = vrot.slane %v1462, 4
      %v1465 = vrot.slane %v345, 5
      %v1466 = vsel %vm1382, %v1464, %v1465
      %v1467 = vrot.slane %v1344, 5
      %v1468 = vrot.slane %v1467, 4
      %v1469 = vrot.slane %v311, 5
      %v1470 = vsel %vm1382, %v1468, %v1469
      %v1471 = vrot.slane %v1469, 4
      %v1472 = vrot.slane %v346, 5
      %v1473 = vsel %vm1382, %v1471, %v1472
      %v1474 = vrot.slane %v1345, 5
      %v1475 = vrot.slane %v1474, 4
      %v1476 = vrot.slane %v313, 5
      %v1477 = vsel %vm1382, %v1475, %v1476
      %v1478 = vrot.slane %v1476, 4
      %v1479 = vrot.slane %v347, 5
      %v1480 = vsel %vm1382, %v1478, %v1479
      %v1481 = vrot.slane %v1346, 5
      %v1482 = vrot.slane %v1481, 4
      %v1483 = vrot.slane %v315, 5
      %v1484 = vsel %vm1382, %v1482, %v1483
      %v1485 = vrot.slane %v1483, 4
      %v1486 = vrot.slane %v348, 5
      %v1487 = vsel %vm1382, %v1485, %v1486
      %v1488 = vrot.slane %v1347, 5
      %v1489 = vrot.slane %v1488, 4
      %v1490 = vrot.slane %v317, 5
      %v1491 = vsel %vm1382, %v1489, %v1490
      %v1492 = vrot.slane %v1490, 4
      %v1493 = vrot.slane %v349, 5
      %v1494 = vsel %vm1382, %v1492, %v1493
      %s1495 = scalar_lea.vmem %s1, 128
      %v1496 = vld [vmem:[%s1495] sm:$0xf]
      %v1497 = vld [vmem:[%s1495 + $0x4] sm:$0xf]
      %v1498 = vld [vmem:[%s1495 + $0x8] sm:$0xf]
      %v1499 = vld [vmem:[%s1495 + $0xc] sm:$0xf]
      %v1500 = vld [vmem:[%s1495 + $0x10] sm:$0xf]
      %v1501 = vld [vmem:[%s1495 + $0x14] sm:$0xf]
      %v1502 = vld [vmem:[%s1495 + $0x18] sm:$0xf]
      %v1503 = vld [vmem:[%s1495 + $0x1c] sm:$0xf]
      %v1504 = vld [vmem:[%s1495 + $0x20] sm:$0xf]
      %v1505 = vld [vmem:[%s1495 + $0x24] sm:$0xf]
      %v1506 = vld [vmem:[%s1495 + $0x28] sm:$0xf]
      %v1507 = vld [vmem:[%s1495 + $0x2c] sm:$0xf]
      %v1508 = vld [vmem:[%s1495 + $0x30] sm:$0xf]
      %v1509 = vld [vmem:[%s1495 + $0x34] sm:$0xf]
      %v1510 = vld [vmem:[%s1495 + $0x38] sm:$0xf]
      %v1511 = vld [vmem:[%s1495 + $0x3c] sm:$0xf]
      %v1512 = vunpack.c.l.b16 %v1386
      %v1513 = vunpack.c.l.b16 %v1389
      %v1514 = vunpack.c.l.b16 %v1393
      %v1515 = vunpack.c.l.b16 %v1396
      %v1516 = vunpack.c.l.b16 %v1400
      %v1517 = vunpack.c.l.b16 %v1403
      %v1518 = vunpack.c.l.b16 %v1407
      %v1519 = vunpack.c.l.b16 %v1410
      %v1520 = vunpack.c.l.b16 %v1414
      %v1521 = vunpack.c.l.b16 %v1417
      %v1522 = vunpack.c.l.b16 %v1421
      %v1523 = vunpack.c.l.b16 %v1424
      %v1524 = vunpack.c.l.b16 %v1428
      %v1525 = vunpack.c.l.b16 %v1431
      %v1526 = vunpack.c.l.b16 %v1435
      %v1527 = vunpack.c.l.b16 %v1438
      %v1528 = vunpack.c.l.b16 %v1442
      %v1529 = vunpack.c.l.b16 %v1445
      %v1530 = vunpack.c.l.b16 %v1449
      %v1531 = vunpack.c.l.b16 %v1452
      %v1532 = vunpack.c.l.b16 %v1456
      %v1533 = vunpack.c.l.b16 %v1459
      %v1534 = vunpack.c.l.b16 %v1463
      %v1535 = vunpack.c.l.b16 %v1466
      %v1536 = vunpack.c.l.b16 %v1470
      %v1537 = vunpack.c.l.b16 %v1473
      %v1538 = vunpack.c.l.b16 %v1477
      %v1539 = vunpack.c.l.b16 %v1480
      %v1540 = vunpack.c.l.b16 %v1484
      %v1541 = vunpack.c.l.b16 %v1487
      %v1542 = vunpack.c.l.b16 %v1491
      %v1543 = vunpack.c.l.b16 %v1494
      %v1544 = vpack.c.b16 %v1513, %v1512
      %v1545 = vpack.c.b16 %v1515, %v1514
      %v1546 = vpack.c.b16 %v1517, %v1516
      %v1547 = vpack.c.b16 %v1519, %v1518
      %v1548 = vpack.c.b16 %v1521, %v1520
      %v1549 = vpack.c.b16 %v1523, %v1522
      %v1550 = vpack.c.b16 %v1525, %v1524
      %v1551 = vpack.c.b16 %v1527, %v1526
      %v1552 = vpack.c.b16 %v1529, %v1528
      %v1553 = vpack.c.b16 %v1531, %v1530
      %v1554 = vpack.c.b16 %v1533, %v1532
      %v1555 = vpack.c.b16 %v1535, %v1534
      %v1556 = vpack.c.b16 %v1537, %v1536
      %v1557 = vpack.c.b16 %v1539, %v1538
      %v1558 = vpack.c.b16 %v1541, %v1540
      %v1559 = vpack.c.b16 %v1543, %v1542
      %v1592 = vunpack.c.l.b16 %v1496
      %v1593 = vunpack.c.l.b16 %v1497
      %v1594 = vunpack.c.l.b16 %v1498
      %v1595 = vunpack.c.l.b16 %v1499
      %v1596 = vunpack.c.l.b16 %v1500
      %v1597 = vunpack.c.l.b16 %v1501
      %v1598 = vunpack.c.l.b16 %v1502
      %v1599 = vunpack.c.l.b16 %v1503
      %v1600 = vunpack.c.l.b16 %v1504
      %v1601 = vunpack.c.l.b16 %v1505
      %v1602 = vunpack.c.l.b16 %v1506
      %v1603 = vunpack.c.l.b16 %v1507
      %v1604 = vunpack.c.l.b16 %v1508
      %v1605 = vunpack.c.l.b16 %v1509
      %v1606 = vunpack.c.l.b16 %v1510
      %v1607 = vunpack.c.l.b16 %v1511
      %v1608 = vpack.c.b16 %v1593, %v1592
      %v1609 = vpack.c.b16 %v1595, %v1594
      %v1610 = vpack.c.b16 %v1597, %v1596
      %v1611 = vpack.c.b16 %v1599, %v1598
      %v1612 = vpack.c.b16 %v1601, %v1600
      %v1613 = vpack.c.b16 %v1603, %v1602
      %v1614 = vpack.c.b16 %v1605, %v1604
      %v1615 = vpack.c.b16 %v1607, %v1606
      %1624 = vmatprep.subr.bf16.mxu0 0
      %1625 = vmatpush1.bf16.msra.mxu0 %v1615
      %1626 = vmatprep.subr.bf16.mxu0 0
      %1627 = vmatpush1.bf16.msra.mxu0 %v1614
      %1628 = vmatprep.subr.bf16.mxu0 0
      %1629 = vmatpush1.bf16.msra.mxu0 %v1613
      %1630 = vmatprep.subr.bf16.mxu0 0
      %1631 = vmatpush1.bf16.msra.mxu0 %v1612
      %1632 = vmatprep.subr.bf16.mxu0 0
      %1633 = vmatpush1.bf16.msra.mxu0 %v1611
      %1634 = vmatprep.subr.bf16.mxu0 0
      %1635 = vmatpush1.bf16.msra.mxu0 %v1610
      %1636 = vmatprep.subr.bf16.mxu0 0
      %1637 = vmatpush1.bf16.msra.mxu0 %v1609
      %1638 = vmatprep.subr.bf16.mxu0 0
      %1639 = vmatpush1.bf16.msra.mxu0 %v1608
      %1640 = vmatprep.subr.bf16.mxu0 0
      %1641 = vmatpush2.bf16.msra.mxu0 0
      %1642 = vmatprep.subr.bf16.mxu0 0
      %1643 = vmatpush2.bf16.msra.mxu0 0
      %1644 = vmatprep.subr.bf16.mxu0 0
      %1645 = vmatpush2.bf16.msra.mxu0 0
      %1646 = vmatprep.subr.bf16.mxu0 0
      %1647 = vmatpush2.bf16.msra.mxu0 0
      %1648 = vmatprep.subr.bf16.mxu0 0
      %1649 = vmatpush2.bf16.msra.mxu0 0
      %1650 = vmatprep.subr.bf16.mxu0 0
      %1651 = vmatpush2.bf16.msra.mxu0 0
      %1652 = vmatprep.subr.bf16.mxu0 0
      %1653 = vmatpush2.bf16.msra.mxu0 0
      %1654 = vmatprep.subr.bf16.mxu0 0
      %1655 = vmatpush2.bf16.msra.mxu0 0
      %1656 = vmatprep.mubr.bf16.mxu0 0
      %1657 = vmatmul.mubr.bf16.gmra.mxu0 %v1544
      %v1658 = vpop.f32.mrf.mxu0
      %v1659 = vadd.f32 0.0, %v1658
      %v1660 = vpop.f32.mrf.mxu0
      %v1661 = vpop.f32.mrf.mxu0
      %v1662 = vadd.f32 0.0, %v1661
      %v1663 = vpop.f32.mrf.mxu0
      %1664 = vmatprep.mubr.bf16.mxu0 0
      %1665 = vmatmul.mubr.bf16.gmra.mxu0 %v1545
      %v1666 = vpop.f32.mrf.mxu0
      %v1667 = vadd.f32 0.0, %v1666
      %v1668 = vpop.f32.mrf.mxu0
      %v1669 = vpop.f32.mrf.mxu0
      %v1670 = vadd.f32 0.0, %v1669
      %v1671 = vpop.f32.mrf.mxu0
      %1672 = vmatprep.mubr.bf16.mxu0 0
      %1673 = vmatmul.mubr.bf16.gmra.mxu0 %v1546
      %v1674 = vpop.f32.mrf.mxu0
      %v1675 = vadd.f32 0.0, %v1674
      %v1676 = vpop.f32.mrf.mxu0
      %v1677 = vpop.f32.mrf.mxu0
      %v1678 = vadd.f32 0.0, %v1677
      %v1679 = vpop.f32.mrf.mxu0
      %1680 = vmatprep.mubr.bf16.mxu0 0
      %1681 = vmatmul.mubr.bf16.gmra.mxu0 %v1547
      %v1682 = vpop.f32.mrf.mxu0
      %v1683 = vadd.f32 0.0, %v1682
      %v1684 = vpop.f32.mrf.mxu0
      %v1685 = vpop.f32.mrf.mxu0
      %v1686 = vadd.f32 0.0, %v1685
      %v1687 = vpop.f32.mrf.mxu0
      %1688 = vmatprep.mubr.bf16.mxu0 0
      %1689 = vmatmul.mubr.bf16.gmra.mxu0 %v1548
      %v1690 = vpop.f32.mrf.mxu0
      %v1691 = vadd.f32 0.0, %v1690
      %v1692 = vpop.f32.mrf.mxu0
      %v1693 = vpop.f32.mrf.mxu0
      %v1694 = vadd.f32 0.0, %v1693
      %v1695 = vpop.f32.mrf.mxu0
      %1696 = vmatprep.mubr.bf16.mxu0 0
      %1697 = vmatmul.mubr.bf16.gmra.mxu0 %v1549
      %v1698 = vpop.f32.mrf.mxu0
      %v1699 = vadd.f32 0.0, %v1698
      %v1700 = vpop.f32.mrf.mxu0
      %v1701 = vpop.f32.mrf.mxu0
      %v1702 = vadd.f32 0.0, %v1701
      %v1703 = vpop.f32.mrf.mxu0
      %1704 = vmatprep.mubr.bf16.mxu0 0
      %1705 = vmatmul.mubr.bf16.gmra.mxu0 %v1550
      %v1706 = vpop.f32.mrf.mxu0
      %v1707 = vadd.f32 0.0, %v1706
      %v1708 = vpop.f32.mrf.mxu0
      %v1709 = vpop.f32.mrf.mxu0
      %v1710 = vadd.f32 0.0, %v1709
      %v1711 = vpop.f32.mrf.mxu0
      %1712 = vmatprep.mubr.bf16.mxu0 0
      %1713 = vmatmul.mubr.bf16.gmra.mxu0 %v1551
      %v1714 = vpop.f32.mrf.mxu0
      %v1715 = vadd.f32 0.0, %v1714
      %v1716 = vpop.f32.mrf.mxu0
      %v1717 = vpop.f32.mrf.mxu0
      %v1718 = vadd.f32 0.0, %v1717
      %v1719 = vpop.f32.mrf.mxu0
      %1720 = vmatprep.mubr.bf16.mxu0 0
      %1721 = vmatmul.mubr.bf16.gmra.mxu0 %v1552
      %v1722 = vpop.f32.mrf.mxu0
      %v1723 = vadd.f32 0.0, %v1722
      %v1724 = vpop.f32.mrf.mxu0
      %v1725 = vpop.f32.mrf.mxu0
      %v1726 = vadd.f32 0.0, %v1725
      %v1727 = vpop.f32.mrf.mxu0
      %1728 = vmatprep.mubr.bf16.mxu0 0
      %1729 = vmatmul.mubr.bf16.gmra.mxu0 %v1553
      %v1730 = vpop.f32.mrf.mxu0
      %v1731 = vadd.f32 0.0, %v1730
      %v1732 = vpop.f32.mrf.mxu0
      %v1733 = vpop.f32.mrf.mxu0
      %v1734 = vadd.f32 0.0, %v1733
      %v1735 = vpop.f32.mrf.mxu0
      %1736 = vmatprep.mubr.bf16.mxu0 0
      %1737 = vmatmul.mubr.bf16.gmra.mxu0 %v1554
      %v1738 = vpop.f32.mrf.mxu0
      %v1739 = vadd.f32 0.0, %v1738
      %v1740 = vpop.f32.mrf.mxu0
      %v1741 = vpop.f32.mrf.mxu0
      %v1742 = vadd.f32 0.0, %v1741
      %v1743 = vpop.f32.mrf.mxu0
      %1744 = vmatprep.mubr.bf16.mxu0 0
      %1745 = vmatmul.mubr.bf16.gmra.mxu0 %v1555
      %v1746 = vpop.f32.mrf.mxu0
      %v1747 = vadd.f32 0.0, %v1746
      %v1748 = vpop.f32.mrf.mxu0
      %v1749 = vpop.f32.mrf.mxu0
      %v1750 = vadd.f32 0.0, %v1749
      %v1751 = vpop.f32.mrf.mxu0
      %1752 = vmatprep.mubr.bf16.mxu0 0
      %1753 = vmatmul.mubr.bf16.gmra.mxu0 %v1556
      %v1754 = vpop.f32.mrf.mxu0
      %v1755 = vadd.f32 0.0, %v1754
      %v1756 = vpop.f32.mrf.mxu0
      %v1757 = vpop.f32.mrf.mxu0
      %v1758 = vadd.f32 0.0, %v1757
      %v1759 = vpop.f32.mrf.mxu0
      %1760 = vmatprep.mubr.bf16.mxu0 0
      %1761 = vmatmul.mubr.bf16.gmra.mxu0 %v1557
      %v1762 = vpop.f32.mrf.mxu0
      %v1763 = vadd.f32 0.0, %v1762
      %v1764 = vpop.f32.mrf.mxu0
      %v1765 = vpop.f32.mrf.mxu0
      %v1766 = vadd.f32 0.0, %v1765
      %v1767 = vpop.f32.mrf.mxu0
      %1768 = vmatprep.mubr.bf16.mxu0 0
      %1769 = vmatmul.mubr.bf16.gmra.mxu0 %v1558
      %v1770 = vpop.f32.mrf.mxu0
      %v1771 = vadd.f32 0.0, %v1770
      %v1772 = vpop.f32.mrf.mxu0
      %v1773 = vpop.f32.mrf.mxu0
      %v1774 = vadd.f32 0.0, %v1773
      %v1775 = vpop.f32.mrf.mxu0
      %1776 = vmatprep.mubr.bf16.mxu0 0
      %1777 = vmatmul.mubr.bf16.gmra.mxu0 %v1559
      %v1778 = vpop.f32.mrf.mxu0
      %v1779 = vadd.f32 0.0, %v1778
      %v1780 = vpop.f32.mrf.mxu0
      %v1781 = vpop.f32.mrf.mxu0
      %v1782 = vadd.f32 0.0, %v1781
      %v1783 = vpop.f32.mrf.mxu0
      %1784 = vdwg.mxu0
      %v1785 = vadd.f32 %v1206, %v1659
      %v1786 = vadd.f32 %v1209, %v1662
      %v1787 = vadd.f32 %v1214, %v1667
      %v1788 = vadd.f32 %v1217, %v1670
      %v1789 = vadd.f32 %v1222, %v1675
      %v1790 = vadd.f32 %v1225, %v1678
      %v1791 = vadd.f32 %v1230, %v1683
      %v1792 = vadd.f32 %v1233, %v1686
      %v1793 = vadd.f32 %v1238, %v1691
      %v1794 = vadd.f32 %v1241, %v1694
      %v1795 = vadd.f32 %v1246, %v1699
      %v1796 = vadd.f32 %v1249, %v1702
      %v1797 = vadd.f32 %v1254, %v1707
      %v1798 = vadd.f32 %v1257, %v1710
      %v1799 = vadd.f32 %v1262, %v1715
      %v1800 = vadd.f32 %v1265, %v1718
      %v1801 = vadd.f32 %v1270, %v1723
      %v1802 = vadd.f32 %v1273, %v1726
      %v1803 = vadd.f32 %v1278, %v1731
      %v1804 = vadd.f32 %v1281, %v1734
      %v1805 = vadd.f32 %v1286, %v1739
      %v1806 = vadd.f32 %v1289, %v1742
      %v1807 = vadd.f32 %v1294, %v1747
      %v1808 = vadd.f32 %v1297, %v1750
      %v1809 = vadd.f32 %v1302, %v1755
      %v1810 = vadd.f32 %v1305, %v1758
      %v1811 = vadd.f32 %v1310, %v1763
      %v1812 = vadd.f32 %v1313, %v1766
      %v1813 = vadd.f32 %v1318, %v1771
      %v1814 = vadd.f32 %v1321, %v1774
      %v1815 = vadd.f32 %v1326, %v1779
      %v1816 = vadd.f32 %v1329, %v1782
      %s1817 = scalar_lea.vmem %s266, 12
      %v1818 = vld [vmem:[%s1817] sm:$0xf]
      %v1819 = vld [vmem:[%s1817 + $0x4] sm:$0xf]
      %v1820 = vld [vmem:[%s1817 + $0xc] sm:$0xf]
      %v1821 = vld [vmem:[%s1817 + $0x10] sm:$0xf]
      %v1822 = vld [vmem:[%s1817 + $0x18] sm:$0xf]
      %v1823 = vld [vmem:[%s1817 + $0x1c] sm:$0xf]
      %v1824 = vld [vmem:[%s1817 + $0x24] sm:$0xf]
      %v1825 = vld [vmem:[%s1817 + $0x28] sm:$0xf]
      %v1826 = vld [vmem:[%s1817 + $0x30] sm:$0xf]
      %v1827 = vld [vmem:[%s1817 + $0x34] sm:$0xf]
      %v1828 = vld [vmem:[%s1817 + $0x3c] sm:$0xf]
      %v1829 = vld [vmem:[%s1817 + $0x40] sm:$0xf]
      %v1830 = vld [vmem:[%s1817 + $0x48] sm:$0xf]
      %v1831 = vld [vmem:[%s1817 + $0x4c] sm:$0xf]
      %v1832 = vld [vmem:[%s1817 + $0x54] sm:$0xf]
      %v1833 = vld [vmem:[%s1817 + $0x58] sm:$0xf]
      %v1834 = vld [vmem:[%s1817 + $0x60] sm:$0xf]
      %v1835 = vld [vmem:[%s1817 + $0x64] sm:$0xf]
      %v1836 = vld [vmem:[%s1817 + $0x6c] sm:$0xf]
      %v1837 = vld [vmem:[%s1817 + $0x70] sm:$0xf]
      %v1838 = vld [vmem:[%s1817 + $0x78] sm:$0xf]
      %v1839 = vld [vmem:[%s1817 + $0x7c] sm:$0xf]
      %v1840 = vld [vmem:[%s1817 + $0x84] sm:$0xf]
      %v1841 = vld [vmem:[%s1817 + $0x88] sm:$0xf]
      %v1842 = vld [vmem:[%s1817 + $0x90] sm:$0xf]
      %v1843 = vld [vmem:[%s1817 + $0x94] sm:$0xf]
      %v1844 = vld [vmem:[%s1817 + $0x9c] sm:$0xf]
      %v1845 = vld [vmem:[%s1817 + $0xa0] sm:$0xf]
      %v1846 = vld [vmem:[%s1817 + $0xa8] sm:$0xf]
      %v1847 = vld [vmem:[%s1817 + $0xac] sm:$0xf]
      %v1848 = vld [vmem:[%s1817 + $0xb4] sm:$0xf]
      %v1849 = vld [vmem:[%s1817 + $0xb8] sm:$0xf]
      %s1850 = scalar_lea.vmem %s1, 192
      %v1851 = vld [vmem:[%s1850] sm:$0xf]
      %v1852 = vld [vmem:[%s1850 + $0x4] sm:$0xf]
      %v1853 = vld [vmem:[%s1850 + $0x8] sm:$0xf]
      %v1854 = vld [vmem:[%s1850 + $0xc] sm:$0xf]
      %v1855 = vld [vmem:[%s1850 + $0x10] sm:$0xf]
      %v1856 = vld [vmem:[%s1850 + $0x14] sm:$0xf]
      %v1857 = vld [vmem:[%s1850 + $0x18] sm:$0xf]
      %v1858 = vld [vmem:[%s1850 + $0x1c] sm:$0xf]
      %v1859 = vld [vmem:[%s1850 + $0x20] sm:$0xf]
      %v1860 = vld [vmem:[%s1850 + $0x24] sm:$0xf]
      %v1861 = vld [vmem:[%s1850 + $0x28] sm:$0xf]
      %v1862 = vld [vmem:[%s1850 + $0x2c] sm:$0xf]
      %v1863 = vld [vmem:[%s1850 + $0x30] sm:$0xf]
      %v1864 = vld [vmem:[%s1850 + $0x34] sm:$0xf]
      %v1865 = vld [vmem:[%s1850 + $0x38] sm:$0xf]
      %v1866 = vld [vmem:[%s1850 + $0x3c] sm:$0xf]
      %v1899 = vunpack.c.l.b16 %v1818
      %v1900 = vunpack.c.l.b16 %v1819
      %v1901 = vunpack.c.l.b16 %v1820
      %v1902 = vunpack.c.l.b16 %v1821
      %v1903 = vunpack.c.l.b16 %v1822
      %v1904 = vunpack.c.l.b16 %v1823
      %v1905 = vunpack.c.l.b16 %v1824
      %v1906 = vunpack.c.l.b16 %v1825
      %v1907 = vunpack.c.l.b16 %v1826
      %v1908 = vunpack.c.l.b16 %v1827
      %v1909 = vunpack.c.l.b16 %v1828
      %v1910 = vunpack.c.l.b16 %v1829
      %v1911 = vunpack.c.l.b16 %v1830
      %v1912 = vunpack.c.l.b16 %v1831
      %v1913 = vunpack.c.l.b16 %v1832
      %v1914 = vunpack.c.l.b16 %v1833
      %v1915 = vunpack.c.l.b16 %v1834
      %v1916 = vunpack.c.l.b16 %v1835
      %v1917 = vunpack.c.l.b16 %v1836
      %v1918 = vunpack.c.l.b16 %v1837
      %v1919 = vunpack.c.l.b16 %v1838
      %v1920 = vunpack.c.l.b16 %v1839
      %v1921 = vunpack.c.l.b16 %v1840
      %v1922 = vunpack.c.l.b16 %v1841
      %v1923 = vunpack.c.l.b16 %v1842
      %v1924 = vunpack.c.l.b16 %v1843
      %v1925 = vunpack.c.l.b16 %v1844
      %v1926 = vunpack.c.l.b16 %v1845
      %v1927 = vunpack.c.l.b16 %v1846
      %v1928 = vunpack.c.l.b16 %v1847
      %v1929 = vunpack.c.l.b16 %v1848
      %v1930 = vunpack.c.l.b16 %v1849
      %v1931 = vpack.c.b16 %v1900, %v1899
      %v1932 = vpack.c.b16 %v1902, %v1901
      %v1933 = vpack.c.b16 %v1904, %v1903
      %v1934 = vpack.c.b16 %v1906, %v1905
      %v1935 = vpack.c.b16 %v1908, %v1907
      %v1936 = vpack.c.b16 %v1910, %v1909
      %v1937 = vpack.c.b16 %v1912, %v1911
      %v1938 = vpack.c.b16 %v1914, %v1913
      %v1939 = vpack.c.b16 %v1916, %v1915
      %v1940 = vpack.c.b16 %v1918, %v1917
      %v1941 = vpack.c.b16 %v1920, %v1919
      %v1942 = vpack.c.b16 %v1922, %v1921
      %v1943 = vpack.c.b16 %v1924, %v1923
      %v1944 = vpack.c.b16 %v1926, %v1925
      %v1945 = vpack.c.b16 %v1928, %v1927
      %v1946 = vpack.c.b16 %v1930, %v1929
      %v1979 = vunpack.c.l.b16 %v1851
      %v1980 = vunpack.c.l.b16 %v1852
      %v1981 = vunpack.c.l.b16 %v1853
      %v1982 = vunpack.c.l.b16 %v1854
      %v1983 = vunpack.c.l.b16 %v1855
      %v1984 = vunpack.c.l.b16 %v1856
      %v1985 = vunpack.c.l.b16 %v1857
      %v1986 = vunpack.c.l.b16 %v1858
      %v1987 = vunpack.c.l.b16 %v1859
      %v1988 = vunpack.c.l.b16 %v1860
      %v1989 = vunpack.c.l.b16 %v1861
      %v1990 = vunpack.c.l.b16 %v1862
      %v1991 = vunpack.c.l.b16 %v1863
      %v1992 = vunpack.c.l.b16 %v1864
      %v1993 = vunpack.c.l.b16 %v1865
      %v1994 = vunpack.c.l.b16 %v1866
      %v1995 = vpack.c.b16 %v1980, %v1979
      %v1996 = vpack.c.b16 %v1982, %v1981
      %v1997 = vpack.c.b16 %v1984, %v1983
      %v1998 = vpack.c.b16 %v1986, %v1985
      %v1999 = vpack.c.b16 %v1988, %v1987
      %v2000 = vpack.c.b16 %v1990, %v1989
      %v2001 = vpack.c.b16 %v1992, %v1991
      %v2002 = vpack.c.b16 %v1994, %v1993
      %2011 = vmatprep.subr.bf16.mxu0 0
      %2012 = vmatpush1.bf16.msra.mxu0 %v2002
      %2013 = vmatprep.subr.bf16.mxu0 0
      %2014 = vmatpush1.bf16.msra.mxu0 %v2001
      %2015 = vmatprep.subr.bf16.mxu0 0
      %2016 = vmatpush1.bf16.msra.mxu0 %v2000
      %2017 = vmatprep.subr.bf16.mxu0 0
      %2018 = vmatpush1.bf16.msra.mxu0 %v1999
      %2019 = vmatprep.subr.bf16.mxu0 0
      %2020 = vmatpush1.bf16.msra.mxu0 %v1998
      %2021 = vmatprep.subr.bf16.mxu0 0
      %2022 = vmatpush1.bf16.msra.mxu0 %v1997
      %2023 = vmatprep.subr.bf16.mxu0 0
      %2024 = vmatpush1.bf16.msra.mxu0 %v1996
      %2025 = vmatprep.subr.bf16.mxu0 0
      %2026 = vmatpush1.bf16.msra.mxu0 %v1995
      %2027 = vmatprep.subr.bf16.mxu0 0
      %2028 = vmatpush2.bf16.msra.mxu0 0
      %2029 = vmatprep.subr.bf16.mxu0 0
      %2030 = vmatpush2.bf16.msra.mxu0 0
      %2031 = vmatprep.subr.bf16.mxu0 0
      %2032 = vmatpush2.bf16.msra.mxu0 0
      %2033 = vmatprep.subr.bf16.mxu0 0
      %2034 = vmatpush2.bf16.msra.mxu0 0
      %2035 = vmatprep.subr.bf16.mxu0 0
      %2036 = vmatpush2.bf16.msra.mxu0 0
      %2037 = vmatprep.subr.bf16.mxu0 0
      %2038 = vmatpush2.bf16.msra.mxu0 0
      %2039 = vmatprep.subr.bf16.mxu0 0
      %2040 = vmatpush2.bf16.msra.mxu0 0
      %2041 = vmatprep.subr.bf16.mxu0 0
      %2042 = vmatpush2.bf16.msra.mxu0 0
      %2043 = vmatprep.mubr.bf16.mxu0 0
      %2044 = vmatmul.mubr.bf16.gmra.mxu0 %v1931
      %v2045 = vpop.f32.mrf.mxu0
      %v2046 = vadd.f32 0.0, %v2045
      %v2047 = vpop.f32.mrf.mxu0
      %v2048 = vpop.f32.mrf.mxu0
      %v2049 = vadd.f32 0.0, %v2048
      %v2050 = vpop.f32.mrf.mxu0
      %2051 = vmatprep.mubr.bf16.mxu0 0
      %2052 = vmatmul.mubr.bf16.gmra.mxu0 %v1932
      %v2053 = vpop.f32.mrf.mxu0
      %v2054 = vadd.f32 0.0, %v2053
      %v2055 = vpop.f32.mrf.mxu0
      %v2056 = vpop.f32.mrf.mxu0
      %v2057 = vadd.f32 0.0, %v2056
      %v2058 = vpop.f32.mrf.mxu0
      %2059 = vmatprep.mubr.bf16.mxu0 0
      %2060 = vmatmul.mubr.bf16.gmra.mxu0 %v1933
      %v2061 = vpop.f32.mrf.mxu0
      %v2062 = vadd.f32 0.0, %v2061
      %v2063 = vpop.f32.mrf.mxu0
      %v2064 = vpop.f32.mrf.mxu0
      %v2065 = vadd.f32 0.0, %v2064
      %v2066 = vpop.f32.mrf.mxu0
      %2067 = vmatprep.mubr.bf16.mxu0 0
      %2068 = vmatmul.mubr.bf16.gmra.mxu0 %v1934
      %v2069 = vpop.f32.mrf.mxu0
      %v2070 = vadd.f32 0.0, %v2069
      %v2071 = vpop.f32.mrf.mxu0
      %v2072 = vpop.f32.mrf.mxu0
      %v2073 = vadd.f32 0.0, %v2072
      %v2074 = vpop.f32.mrf.mxu0
      %2075 = vmatprep.mubr.bf16.mxu0 0
      %2076 = vmatmul.mubr.bf16.gmra.mxu0 %v1935
      %v2077 = vpop.f32.mrf.mxu0
      %v2078 = vadd.f32 0.0, %v2077
      %v2079 = vpop.f32.mrf.mxu0
      %v2080 = vpop.f32.mrf.mxu0
      %v2081 = vadd.f32 0.0, %v2080
      %v2082 = vpop.f32.mrf.mxu0
      %2083 = vmatprep.mubr.bf16.mxu0 0
      %2084 = vmatmul.mubr.bf16.gmra.mxu0 %v1936
      %v2085 = vpop.f32.mrf.mxu0
      %v2086 = vadd.f32 0.0, %v2085
      %v2087 = vpop.f32.mrf.mxu0
      %v2088 = vpop.f32.mrf.mxu0
      %v2089 = vadd.f32 0.0, %v2088
      %v2090 = vpop.f32.mrf.mxu0
      %2091 = vmatprep.mubr.bf16.mxu0 0
      %2092 = vmatmul.mubr.bf16.gmra.mxu0 %v1937
      %v2093 = vpop.f32.mrf.mxu0
      %v2094 = vadd.f32 0.0, %v2093
      %v2095 = vpop.f32.mrf.mxu0
      %v2096 = vpop.f32.mrf.mxu0
      %v2097 = vadd.f32 0.0, %v2096
      %v2098 = vpop.f32.mrf.mxu0
      %2099 = vmatprep.mubr.bf16.mxu0 0
      %2100 = vmatmul.mubr.bf16.gmra.mxu0 %v1938
      %v2101 = vpop.f32.mrf.mxu0
      %v2102 = vadd.f32 0.0, %v2101
      %v2103 = vpop.f32.mrf.mxu0
      %v2104 = vpop.f32.mrf.mxu0
      %v2105 = vadd.f32 0.0, %v2104
      %v2106 = vpop.f32.mrf.mxu0
      %2107 = vmatprep.mubr.bf16.mxu0 0
      %2108 = vmatmul.mubr.bf16.gmra.mxu0 %v1939
      %v2109 = vpop.f32.mrf.mxu0
      %v2110 = vadd.f32 0.0, %v2109
      %v2111 = vpop.f32.mrf.mxu0
      %v2112 = vpop.f32.mrf.mxu0
      %v2113 = vadd.f32 0.0, %v2112
      %v2114 = vpop.f32.mrf.mxu0
      %2115 = vmatprep.mubr.bf16.mxu0 0
      %2116 = vmatmul.mubr.bf16.gmra.mxu0 %v1940
      %v2117 = vpop.f32.mrf.mxu0
      %v2118 = vadd.f32 0.0, %v2117
      %v2119 = vpop.f32.mrf.mxu0
      %v2120 = vpop.f32.mrf.mxu0
      %v2121 = vadd.f32 0.0, %v2120
      %v2122 = vpop.f32.mrf.mxu0
      %2123 = vmatprep.mubr.bf16.mxu0 0
      %2124 = vmatmul.mubr.bf16.gmra.mxu0 %v1941
      %v2125 = vpop.f32.mrf.mxu0
      %v2126 = vadd.f32 0.0, %v2125
      %v2127 = vpop.f32.mrf.mxu0
      %v2128 = vpop.f32.mrf.mxu0
      %v2129 = vadd.f32 0.0, %v2128
      %v2130 = vpop.f32.mrf.mxu0
      %2131 = vmatprep.mubr.bf16.mxu0 0
      %2132 = vmatmul.mubr.bf16.gmra.mxu0 %v1942
      %v2133 = vpop.f32.mrf.mxu0
      %v2134 = vadd.f32 0.0, %v2133
      %v2135 = vpop.f32.mrf.mxu0
      %v2136 = vpop.f32.mrf.mxu0
      %v2137 = vadd.f32 0.0, %v2136
      %v2138 = vpop.f32.mrf.mxu0
      %2139 = vmatprep.mubr.bf16.mxu0 0
      %2140 = vmatmul.mubr.bf16.gmra.mxu0 %v1943
      %v2141 = vpop.f32.mrf.mxu0
      %v2142 = vadd.f32 0.0, %v2141
      %v2143 = vpop.f32.mrf.mxu0
      %v2144 = vpop.f32.mrf.mxu0
      %v2145 = vadd.f32 0.0, %v2144
      %v2146 = vpop.f32.mrf.mxu0
      %2147 = vmatprep.mubr.bf16.mxu0 0
      %2148 = vmatmul.mubr.bf16.gmra.mxu0 %v1944
      %v2149 = vpop.f32.mrf.mxu0
      %v2150 = vadd.f32 0.0, %v2149
      %v2151 = vpop.f32.mrf.mxu0
      %v2152 = vpop.f32.mrf.mxu0
      %v2153 = vadd.f32 0.0, %v2152
      %v2154 = vpop.f32.mrf.mxu0
      %2155 = vmatprep.mubr.bf16.mxu0 0
      %2156 = vmatmul.mubr.bf16.gmra.mxu0 %v1945
      %v2157 = vpop.f32.mrf.mxu0
      %v2158 = vadd.f32 0.0, %v2157
      %v2159 = vpop.f32.mrf.mxu0
      %v2160 = vpop.f32.mrf.mxu0
      %v2161 = vadd.f32 0.0, %v2160
      %v2162 = vpop.f32.mrf.mxu0
      %2163 = vmatprep.mubr.bf16.mxu0 0
      %2164 = vmatmul.mubr.bf16.gmra.mxu0 %v1946
      %v2165 = vpop.f32.mrf.mxu0
      %v2166 = vadd.f32 0.0, %v2165
      %v2167 = vpop.f32.mrf.mxu0
      %v2168 = vpop.f32.mrf.mxu0
      %v2169 = vadd.f32 0.0, %v2168
      %v2170 = vpop.f32.mrf.mxu0
      %2171 = vdwg.mxu0
      %v2172 = vadd.f32 %v1785, %v2046
      %v2173 = vadd.f32 %v1786, %v2049
      %v2174 = vadd.f32 %v1787, %v2054
      %v2175 = vadd.f32 %v1788, %v2057
      %v2176 = vadd.f32 %v1789, %v2062
      %v2177 = vadd.f32 %v1790, %v2065
      %v2178 = vadd.f32 %v1791, %v2070
      %v2179 = vadd.f32 %v1792, %v2073
      %v2180 = vadd.f32 %v1793, %v2078
      %v2181 = vadd.f32 %v1794, %v2081
      %v2182 = vadd.f32 %v1795, %v2086
      %v2183 = vadd.f32 %v1796, %v2089
      %v2184 = vadd.f32 %v1797, %v2094
      %v2185 = vadd.f32 %v1798, %v2097
      %v2186 = vadd.f32 %v1799, %v2102
      %v2187 = vadd.f32 %v1800, %v2105
      %v2188 = vadd.f32 %v1801, %v2110
      %v2189 = vadd.f32 %v1802, %v2113
      %v2190 = vadd.f32 %v1803, %v2118
      %v2191 = vadd.f32 %v1804, %v2121
      %v2192 = vadd.f32 %v1805, %v2126
      %v2193 = vadd.f32 %v1806, %v2129
      %v2194 = vadd.f32 %v1807, %v2134
      %v2195 = vadd.f32 %v1808, %v2137
      %v2196 = vadd.f32 %v1809, %v2142
      %v2197 = vadd.f32 %v1810, %v2145
      %v2198 = vadd.f32 %v1811, %v2150
      %v2199 = vadd.f32 %v1812, %v2153
      %v2200 = vadd.f32 %v1813, %v2158
      %v2201 = vadd.f32 %v1814, %v2161
      %v2202 = vadd.f32 %v1815, %v2166
      %v2203 = vadd.f32 %v1816, %v2169
      %v2204 = vld [vmem:[%s1817] sm:$0xf]
      %v2205 = vld [vmem:[%s1817 + $0x4] sm:$0xf]
      %v2206 = vld [vmem:[%s1817 + $0x8] sm:$0x1]
      %v2207 = vld [vmem:[%s1817 + $0xc] sm:$0xf]
      %v2208 = vld [vmem:[%s1817 + $0x10] sm:$0xf]
      %v2209 = vld [vmem:[%s1817 + $0x14] sm:$0x1]
      %v2210 = vld [vmem:[%s1817 + $0x18] sm:$0xf]
      %v2211 = vld [vmem:[%s1817 + $0x1c] sm:$0xf]
      %v2212 = vld [vmem:[%s1817 + $0x20] sm:$0x1]
      %v2213 = vld [vmem:[%s1817 + $0x24] sm:$0xf]
      %v2214 = vld [vmem:[%s1817 + $0x28] sm:$0xf]
      %v2215 = vld [vmem:[%s1817 + $0x2c] sm:$0x1]
      %v2216 = vld [vmem:[%s1817 + $0x30] sm:$0xf]
      %v2217 = vld [vmem:[%s1817 + $0x34] sm:$0xf]
      %v2218 = vld [vmem:[%s1817 + $0x38] sm:$0x1]
      %v2219 = vld [vmem:[%s1817 + $0x3c] sm:$0xf]
      %v2220 = vld [vmem:[%s1817 + $0x40] sm:$0xf]
      %v2221 = vld [vmem:[%s1817 + $0x44] sm:$0x1]
      %v2222 = vld [vmem:[%s1817 + $0x48] sm:$0xf]
      %v2223 = vld [vmem:[%s1817 + $0x4c] sm:$0xf]
      %v2224 = vld [vmem:[%s1817 + $0x50] sm:$0x1]
      %v2225 = vld [vmem:[%s1817 + $0x54] sm:$0xf]
      %v2226 = vld [vmem:[%s1817 + $0x58] sm:$0xf]
      %v2227 = vld [vmem:[%s1817 + $0x5c] sm:$0x1]
      %v2228 = vld [vmem:[%s1817 + $0x60] sm:$0xf]
      %v2229 = vld [vmem:[%s1817 + $0x64] sm:$0xf]
      %v2230 = vld [vmem:[%s1817 + $0x68] sm:$0x1]
      %v2231 = vld [vmem:[%s1817 + $0x6c] sm:$0xf]
      %v2232 = vld [vmem:[%s1817 + $0x70] sm:$0xf]
      %v2233 = vld [vmem:[%s1817 + $0x74] sm:$0x1]
      %v2234 = vld [vmem:[%s1817 + $0x78] sm:$0xf]
      %v2235 = vld [vmem:[%s1817 + $0x7c] sm:$0xf]
      %v2236 = vld [vmem:[%s1817 + $0x80] sm:$0x1]
      %v2237 = vld [vmem:[%s1817 + $0x84] sm:$0xf]
      %v2238 = vld [vmem:[%s1817 + $0x88] sm:$0xf]
      %v2239 = vld [vmem:[%s1817 + $0x8c] sm:$0x1]
      %v2240 = vld [vmem:[%s1817 + $0x90] sm:$0xf]
      %v2241 = vld [vmem:[%s1817 + $0x94] sm:$0xf]
      %v2242 = vld [vmem:[%s1817 + $0x98] sm:$0x1]
      %v2243 = vld [vmem:[%s1817 + $0x9c] sm:$0xf]
      %v2244 = vld [vmem:[%s1817 + $0xa0] sm:$0xf]
      %v2245 = vld [vmem:[%s1817 + $0xa4] sm:$0x1]
      %v2246 = vld [vmem:[%s1817 + $0xa8] sm:$0xf]
      %v2247 = vld [vmem:[%s1817 + $0xac] sm:$0xf]
      %v2248 = vld [vmem:[%s1817 + $0xb0] sm:$0x1]
      %v2249 = vld [vmem:[%s1817 + $0xb4] sm:$0xf]
      %v2250 = vld [vmem:[%s1817 + $0xb8] sm:$0xf]
      %v2251 = vld [vmem:[%s1817 + $0xbc] sm:$0x1]
      %v2253 = vshrl.u32 %v2204, 16
      %v2255 = vrot.slane %v2253, 4
      %v2256 = vshll.u32 %v2204, 16
      %v2258 = vrot.slane %v2256, 5
      %v2259 = vor.u32 %v2255, %v2258
      %v2260 = vrot.slane %v2259, 4
      %v2262 = vshll.u32 %v2205, 16
      %v2264 = vrot.slane %v2262, 5
      %v2265 = vsel %vm352, %v2260, %v2264
      %v2266 = vshrl.u32 %v2205, 16
      %v2268 = vrot.slane %v2266, 4
      %v2269 = vor.u32 %v2268, %v2264
      %v2270 = vrot.slane %v2269, 4
      %v2272 = vshll.u32 %v2206, 16
      %v2274 = vrot.slane %v2272, 5
      %v2275 = vsel %vm352, %v2270, %v2274
      %v2277 = vshrl.u32 %v2207, 16
      %v2279 = vrot.slane %v2277, 4
      %v2280 = vshll.u32 %v2207, 16
      %v2282 = vrot.slane %v2280, 5
      %v2283 = vor.u32 %v2279, %v2282
      %v2284 = vrot.slane %v2283, 4
      %v2286 = vshll.u32 %v2208, 16
      %v2288 = vrot.slane %v2286, 5
      %v2289 = vsel %vm352, %v2284, %v2288
      %v2290 = vshrl.u32 %v2208, 16
      %v2292 = vrot.slane %v2290, 4
      %v2293 = vor.u32 %v2292, %v2288
      %v2294 = vrot.slane %v2293, 4
      %v2296 = vshll.u32 %v2209, 16
      %v2298 = vrot.slane %v2296, 5
      %v2299 = vsel %vm352, %v2294, %v2298
      %v2301 = vshrl.u32 %v2210, 16
      %v2303 = vrot.slane %v2301, 4
      %v2304 = vshll.u32 %v2210, 16
      %v2306 = vrot.slane %v2304, 5
      %v2307 = vor.u32 %v2303, %v2306
      %v2308 = vrot.slane %v2307, 4
      %v2310 = vshll.u32 %v2211, 16
      %v2312 = vrot.slane %v2310, 5
      %v2313 = vsel %vm352, %v2308, %v2312
      %v2314 = vshrl.u32 %v2211, 16
      %v2316 = vrot.slane %v2314, 4
      %v2317 = vor.u32 %v2316, %v2312
      %v2318 = vrot.slane %v2317, 4
      %v2320 = vshll.u32 %v2212, 16
      %v2322 = vrot.slane %v2320, 5
      %v2323 = vsel %vm352, %v2318, %v2322
      %v2325 = vshrl.u32 %v2213, 16
      %v2327 = vrot.slane %v2325, 4
      %v2328 = vshll.u32 %v2213, 16
      %v2330 = vrot.slane %v2328, 5
      %v2331 = vor.u32 %v2327, %v2330
      %v2332 = vrot.slane %v2331, 4
      %v2334 = vshll.u32 %v2214, 16
      %v2336 = vrot.slane %v2334, 5
      %v2337 = vsel %vm352, %v2332, %v2336
      %v2338 = vshrl.u32 %v2214, 16
      %v2340 = vrot.slane %v2338, 4
      %v2341 = vor.u32 %v2340, %v2336
      %v2342 = vrot.slane %v2341, 4
      %v2344 = vshll.u32 %v2215, 16
      %v2346 = vrot.slane %v2344, 5
      %v2347 = vsel %vm352, %v2342, %v2346
      %v2349 = vshrl.u32 %v2216, 16
      %v2351 = vrot.slane %v2349, 4
      %v2352 = vshll.u32 %v2216, 16
      %v2354 = vrot.slane %v2352, 5
      %v2355 = vor.u32 %v2351, %v2354
      %v2356 = vrot.slane %v2355, 4
      %v2358 = vshll.u32 %v2217, 16
      %v2360 = vrot.slane %v2358, 5
      %v2361 = vsel %vm352, %v2356, %v2360
      %v2362 = vshrl.u32 %v2217, 16
      %v2364 = vrot.slane %v2362, 4
      %v2365 = vor.u32 %v2364, %v2360
      %v2366 = vrot.slane %v2365, 4
      %v2368 = vshll.u32 %v2218, 16
      %v2370 = vrot.slane %v2368, 5
      %v2371 = vsel %vm352, %v2366, %v2370
      %v2373 = vshrl.u32 %v2219, 16
      %v2375 = vrot.slane %v2373, 4
      %v2376 = vshll.u32 %v2219, 16
      %v2378 = vrot.slane %v2376, 5
      %v2379 = vor.u32 %v2375, %v2378
      %v2380 = vrot.slane %v2379, 4
      %v2382 = vshll.u32 %v2220, 16
      %v2384 = vrot.slane %v2382, 5
      %v2385 = vsel %vm352, %v2380, %v2384
      %v2386 = vshrl.u32 %v2220, 16
      %v2388 = vrot.slane %v2386, 4
      %v2389 = vor.u32 %v2388, %v2384
      %v2390 = vrot.slane %v2389, 4
      %v2392 = vshll.u32 %v2221, 16
      %v2394 = vrot.slane %v2392, 5
      %v2395 = vsel %vm352, %v2390, %v2394
      %v2397 = vshrl.u32 %v2222, 16
      %v2399 = vrot.slane %v2397, 4
      %v2400 = vshll.u32 %v2222, 16
      %v2402 = vrot.slane %v2400, 5
      %v2403 = vor.u32 %v2399, %v2402
      %v2404 = vrot.slane %v2403, 4
      %v2406 = vshll.u32 %v2223, 16
      %v2408 = vrot.slane %v2406, 5
      %v2409 = vsel %vm352, %v2404, %v2408
      %v2410 = vshrl.u32 %v2223, 16
      %v2412 = vrot.slane %v2410, 4
      %v2413 = vor.u32 %v2412, %v2408
      %v2414 = vrot.slane %v2413, 4
      %v2416 = vshll.u32 %v2224, 16
      %v2418 = vrot.slane %v2416, 5
      %v2419 = vsel %vm352, %v2414, %v2418
      %v2421 = vshrl.u32 %v2225, 16
      %v2423 = vrot.slane %v2421, 4
      %v2424 = vshll.u32 %v2225, 16
      %v2426 = vrot.slane %v2424, 5
      %v2427 = vor.u32 %v2423, %v2426
      %v2428 = vrot.slane %v2427, 4
      %v2430 = vshll.u32 %v2226, 16
      %v2432 = vrot.slane %v2430, 5
      %v2433 = vsel %vm352, %v2428, %v2432
      %v2434 = vshrl.u32 %v2226, 16
      %v2436 = vrot.slane %v2434, 4
      %v2437 = vor.u32 %v2436, %v2432
      %v2438 = vrot.slane %v2437, 4
      %v2440 = vshll.u32 %v2227, 16
      %v2442 = vrot.slane %v2440, 5
      %v2443 = vsel %vm352, %v2438, %v2442
      %v2445 = vshrl.u32 %v2228, 16
      %v2447 = vrot.slane %v2445, 4
      %v2448 = vshll.u32 %v2228, 16
      %v2450 = vrot.slane %v2448, 5
      %v2451 = vor.u32 %v2447, %v2450
      %v2452 = vrot.slane %v2451, 4
      %v2454 = vshll.u32 %v2229, 16
      %v2456 = vrot.slane %v2454, 5
      %v2457 = vsel %vm352, %v2452, %v2456
      %v2458 = vshrl.u32 %v2229, 16
      %v2460 = vrot.slane %v2458, 4
      %v2461 = vor.u32 %v2460, %v2456
      %v2462 = vrot.slane %v2461, 4
      %v2464 = vshll.u32 %v2230, 16
      %v2466 = vrot.slane %v2464, 5
      %v2467 = vsel %vm352, %v2462, %v2466
      %v2469 = vshrl.u32 %v2231, 16
      %v2471 = vrot.slane %v2469, 4
      %v2472 = vshll.u32 %v2231, 16
      %v2474 = vrot.slane %v2472, 5
      %v2475 = vor.u32 %v2471, %v2474
      %v2476 = vrot.slane %v2475, 4
      %v2478 = vshll.u32 %v2232, 16
      %v2480 = vrot.slane %v2478, 5
      %v2481 = vsel %vm352, %v2476, %v2480
      %v2482 = vshrl.u32 %v2232, 16
      %v2484 = vrot.slane %v2482, 4
      %v2485 = vor.u32 %v2484, %v2480
      %v2486 = vrot.slane %v2485, 4
      %v2488 = vshll.u32 %v2233, 16
      %v2490 = vrot.slane %v2488, 5
      %v2491 = vsel %vm352, %v2486, %v2490
      %v2493 = vshrl.u32 %v2234, 16
      %v2495 = vrot.slane %v2493, 4
      %v2496 = vshll.u32 %v2234, 16
      %v2498 = vrot.slane %v2496, 5
      %v2499 = vor.u32 %v2495, %v2498
      %v2500 = vrot.slane %v2499, 4
      %v2502 = vshll.u32 %v2235, 16
      %v2504 = vrot.slane %v2502, 5
      %v2505 = vsel %vm352, %v2500, %v2504
      %v2506 = vshrl.u32 %v2235, 16
      %v2508 = vrot.slane %v2506, 4
      %v2509 = vor.u32 %v2508, %v2504
      %v2510 = vrot.slane %v2509, 4
      %v2512 = vshll.u32 %v2236, 16
      %v2514 = vrot.slane %v2512, 5
      %v2515 = vsel %vm352, %v2510, %v2514
      %v2517 = vshrl.u32 %v2237, 16
      %v2519 = vrot.slane %v2517, 4
      %v2520 = vshll.u32 %v2237, 16
      %v2522 = vrot.slane %v2520, 5
      %v2523 = vor.u32 %v2519, %v2522
      %v2524 = vrot.slane %v2523, 4
      %v2526 = vshll.u32 %v2238, 16
      %v2528 = vrot.slane %v2526, 5
      %v2529 = vsel %vm352, %v2524, %v2528
      %v2530 = vshrl.u32 %v2238, 16
      %v2532 = vrot.slane %v2530, 4
      %v2533 = vor.u32 %v2532, %v2528
      %v2534 = vrot.slane %v2533, 4
      %v2536 = vshll.u32 %v2239, 16
      %v2538 = vrot.slane %v2536, 5
      %v2539 = vsel %vm352, %v2534, %v2538
      %v2541 = vshrl.u32 %v2240, 16
      %v2543 = vrot.slane %v2541, 4
      %v2544 = vshll.u32 %v2240, 16
      %v2546 = vrot.slane %v2544, 5
      %v2547 = vor.u32 %v2543, %v2546
      %v2548 = vrot.slane %v2547, 4
      %v2550 = vshll.u32 %v2241, 16
      %v2552 = vrot.slane %v2550, 5
      %v2553 = vsel %vm352, %v2548, %v2552
      %v2554 = vshrl.u32 %v2241, 16
      %v2556 = vrot.slane %v2554, 4
      %v2557 = vor.u32 %v2556, %v2552
      %v2558 = vrot.slane %v2557, 4
      %v2560 = vshll.u32 %v2242, 16
      %v2562 = vrot.slane %v2560, 5
      %v2563 = vsel %vm352, %v2558, %v2562
      %v2565 = vshrl.u32 %v2243, 16
      %v2567 = vrot.slane %v2565, 4
      %v2568 = vshll.u32 %v2243, 16
      %v2570 = vrot.slane %v2568, 5
      %v2571 = vor.u32 %v2567, %v2570
      %v2572 = vrot.slane %v2571, 4
      %v2574 = vshll.u32 %v2244, 16
      %v2576 = vrot.slane %v2574, 5
      %v2577 = vsel %vm352, %v2572, %v2576
      %v2578 = vshrl.u32 %v2244, 16
      %v2580 = vrot.slane %v2578, 4
      %v2581 = vor.u32 %v2580, %v2576
      %v2582 = vrot.slane %v2581, 4
      %v2584 = vshll.u32 %v2245, 16
      %v2586 = vrot.slane %v2584, 5
      %v2587 = vsel %vm352, %v2582, %v2586
      %v2589 = vshrl.u32 %v2246, 16
      %v2591 = vrot.slane %v2589, 4
      %v2592 = vshll.u32 %v2246, 16
      %v2594 = vrot.slane %v2592, 5
      %v2595 = vor.u32 %v2591, %v2594
      %v2596 = vrot.slane %v2595, 4
      %v2598 = vshll.u32 %v2247, 16
      %v2600 = vrot.slane %v2598, 5
      %v2601 = vsel %vm352, %v2596, %v2600
      %v2602 = vshrl.u32 %v2247, 16
      %v2604 = vrot.slane %v2602, 4
      %v2605 = vor.u32 %v2604, %v2600
      %v2606 = vrot.slane %v2605, 4
      %v2608 = vshll.u32 %v2248, 16
      %v2610 = vrot.slane %v2608, 5
      %v2611 = vsel %vm352, %v2606, %v2610
      %v2613 = vshrl.u32 %v2249, 16
      %v2615 = vrot.slane %v2613, 4
      %v2616 = vshll.u32 %v2249, 16
      %v2618 = vrot.slane %v2616, 5
      %v2619 = vor.u32 %v2615, %v2618
      %v2620 = vrot.slane %v2619, 4
      %v2622 = vshll.u32 %v2250, 16
      %v2624 = vrot.slane %v2622, 5
      %v2625 = vsel %vm352, %v2620, %v2624
      %v2626 = vshrl.u32 %v2250, 16
      %v2628 = vrot.slane %v2626, 4
      %v2629 = vor.u32 %v2628, %v2624
      %v2630 = vrot.slane %v2629, 4
      %v2632 = vshll.u32 %v2251, 16
      %v2634 = vrot.slane %v2632, 5
      %v2635 = vsel %vm352, %v2630, %v2634
      %s2636 = scalar_lea.vmem %s1, 256
      %v2637 = vld [vmem:[%s2636] sm:$0xf]
      %v2638 = vld [vmem:[%s2636 + $0x4] sm:$0xf]
      %v2639 = vld [vmem:[%s2636 + $0x8] sm:$0xf]
      %v2640 = vld [vmem:[%s2636 + $0xc] sm:$0xf]
      %v2641 = vld [vmem:[%s2636 + $0x10] sm:$0xf]
      %v2642 = vld [vmem:[%s2636 + $0x14] sm:$0xf]
      %v2643 = vld [vmem:[%s2636 + $0x18] sm:$0xf]
      %v2644 = vld [vmem:[%s2636 + $0x1c] sm:$0xf]
      %v2645 = vld [vmem:[%s2636 + $0x20] sm:$0xf]
      %v2646 = vld [vmem:[%s2636 + $0x24] sm:$0xf]
      %v2647 = vld [vmem:[%s2636 + $0x28] sm:$0xf]
      %v2648 = vld [vmem:[%s2636 + $0x2c] sm:$0xf]
      %v2649 = vld [vmem:[%s2636 + $0x30] sm:$0xf]
      %v2650 = vld [vmem:[%s2636 + $0x34] sm:$0xf]
      %v2651 = vld [vmem:[%s2636 + $0x38] sm:$0xf]
      %v2652 = vld [vmem:[%s2636 + $0x3c] sm:$0xf]
      %v2653 = vunpack.c.l.b16 %v2265
      %v2654 = vunpack.c.l.b16 %v2275
      %v2655 = vunpack.c.l.b16 %v2289
      %v2656 = vunpack.c.l.b16 %v2299
      %v2657 = vunpack.c.l.b16 %v2313
      %v2658 = vunpack.c.l.b16 %v2323
      %v2659 = vunpack.c.l.b16 %v2337
      %v2660 = vunpack.c.l.b16 %v2347
      %v2661 = vunpack.c.l.b16 %v2361
      %v2662 = vunpack.c.l.b16 %v2371
      %v2663 = vunpack.c.l.b16 %v2385
      %v2664 = vunpack.c.l.b16 %v2395
      %v2665 = vunpack.c.l.b16 %v2409
      %v2666 = vunpack.c.l.b16 %v2419
      %v2667 = vunpack.c.l.b16 %v2433
      %v2668 = vunpack.c.l.b16 %v2443
      %v2669 = vunpack.c.l.b16 %v2457
      %v2670 = vunpack.c.l.b16 %v2467
      %v2671 = vunpack.c.l.b16 %v2481
      %v2672 = vunpack.c.l.b16 %v2491
      %v2673 = vunpack.c.l.b16 %v2505
      %v2674 = vunpack.c.l.b16 %v2515
      %v2675 = vunpack.c.l.b16 %v2529
      %v2676 = vunpack.c.l.b16 %v2539
      %v2677 = vunpack.c.l.b16 %v2553
      %v2678 = vunpack.c.l.b16 %v2563
      %v2679 = vunpack.c.l.b16 %v2577
      %v2680 = vunpack.c.l.b16 %v2587
      %v2681 = vunpack.c.l.b16 %v2601
      %v2682 = vunpack.c.l.b16 %v2611
      %v2683 = vunpack.c.l.b16 %v2625
      %v2684 = vunpack.c.l.b16 %v2635
      %v2685 = vpack.c.b16 %v2654, %v2653
      %v2686 = vpack.c.b16 %v2656, %v2655
      %v2687 = vpack.c.b16 %v2658, %v2657
      %v2688 = vpack.c.b16 %v2660, %v2659
      %v2689 = vpack.c.b16 %v2662, %v2661
      %v2690 = vpack.c.b16 %v2664, %v2663
      %v2691 = vpack.c.b16 %v2666, %v2665
      %v2692 = vpack.c.b16 %v2668, %v2667
      %v2693 = vpack.c.b16 %v2670, %v2669
      %v2694 = vpack.c.b16 %v2672, %v2671
      %v2695 = vpack.c.b16 %v2674, %v2673
      %v2696 = vpack.c.b16 %v2676, %v2675
      %v2697 = vpack.c.b16 %v2678, %v2677
      %v2698 = vpack.c.b16 %v2680, %v2679
      %v2699 = vpack.c.b16 %v2682, %v2681
      %v2700 = vpack.c.b16 %v2684, %v2683
      %v2733 = vunpack.c.l.b16 %v2637
      %v2734 = vunpack.c.l.b16 %v2638
      %v2735 = vunpack.c.l.b16 %v2639
      %v2736 = vunpack.c.l.b16 %v2640
      %v2737 = vunpack.c.l.b16 %v2641
      %v2738 = vunpack.c.l.b16 %v2642
      %v2739 = vunpack.c.l.b16 %v2643
      %v2740 = vunpack.c.l.b16 %v2644
      %v2741 = vunpack.c.l.b16 %v2645
      %v2742 = vunpack.c.l.b16 %v2646
      %v2743 = vunpack.c.l.b16 %v2647
      %v2744 = vunpack.c.l.b16 %v2648
      %v2745 = vunpack.c.l.b16 %v2649
      %v2746 = vunpack.c.l.b16 %v2650
      %v2747 = vunpack.c.l.b16 %v2651
      %v2748 = vunpack.c.l.b16 %v2652
      %v2749 = vpack.c.b16 %v2734, %v2733
      %v2750 = vpack.c.b16 %v2736, %v2735
      %v2751 = vpack.c.b16 %v2738, %v2737
      %v2752 = vpack.c.b16 %v2740, %v2739
      %v2753 = vpack.c.b16 %v2742, %v2741
      %v2754 = vpack.c.b16 %v2744, %v2743
      %v2755 = vpack.c.b16 %v2746, %v2745
      %v2756 = vpack.c.b16 %v2748, %v2747
      %2765 = vmatprep.subr.bf16.mxu0 0
      %2766 = vmatpush1.bf16.msra.mxu0 %v2756
      %2767 = vmatprep.subr.bf16.mxu0 0
      %2768 = vmatpush1.bf16.msra.mxu0 %v2755
      %2769 = vmatprep.subr.bf16.mxu0 0
      %2770 = vmatpush1.bf16.msra.mxu0 %v2754
      %2771 = vmatprep.subr.bf16.mxu0 0
      %2772 = vmatpush1.bf16.msra.mxu0 %v2753
      %2773 = vmatprep.subr.bf16.mxu0 0
      %2774 = vmatpush1.bf16.msra.mxu0 %v2752
      %2775 = vmatprep.subr.bf16.mxu0 0
      %2776 = vmatpush1.bf16.msra.mxu0 %v2751
      %2777 = vmatprep.subr.bf16.mxu0 0
      %2778 = vmatpush1.bf16.msra.mxu0 %v2750
      %2779 = vmatprep.subr.bf16.mxu0 0
      %2780 = vmatpush1.bf16.msra.mxu0 %v2749
      %2781 = vmatprep.subr.bf16.mxu0 0
      %2782 = vmatpush2.bf16.msra.mxu0 0
      %2783 = vmatprep.subr.bf16.mxu0 0
      %2784 = vmatpush2.bf16.msra.mxu0 0
      %2785 = vmatprep.subr.bf16.mxu0 0
      %2786 = vmatpush2.bf16.msra.mxu0 0
      %2787 = vmatprep.subr.bf16.mxu0 0
      %2788 = vmatpush2.bf16.msra.mxu0 0
      %2789 = vmatprep.subr.bf16.mxu0 0
      %2790 = vmatpush2.bf16.msra.mxu0 0
      %2791 = vmatprep.subr.bf16.mxu0 0
      %2792 = vmatpush2.bf16.msra.mxu0 0
      %2793 = vmatprep.subr.bf16.mxu0 0
      %2794 = vmatpush2.bf16.msra.mxu0 0
      %2795 = vmatprep.subr.bf16.mxu0 0
      %2796 = vmatpush2.bf16.msra.mxu0 0
      %2797 = vmatprep.mubr.bf16.mxu0 0
      %2798 = vmatmul.mubr.bf16.gmra.mxu0 %v2685
      %v2799 = vpop.f32.mrf.mxu0
      %v2800 = vadd.f32 0.0, %v2799
      %v2801 = vpop.f32.mrf.mxu0
      %v2802 = vpop.f32.mrf.mxu0
      %v2803 = vadd.f32 0.0, %v2802
      %v2804 = vpop.f32.mrf.mxu0
      %2805 = vmatprep.mubr.bf16.mxu0 0
      %2806 = vmatmul.mubr.bf16.gmra.mxu0 %v2686
      %v2807 = vpop.f32.mrf.mxu0
      %v2808 = vadd.f32 0.0, %v2807
      %v2809 = vpop.f32.mrf.mxu0
      %v2810 = vpop.f32.mrf.mxu0
      %v2811 = vadd.f32 0.0, %v2810
      %v2812 = vpop.f32.mrf.mxu0
      %2813 = vmatprep.mubr.bf16.mxu0 0
      %2814 = vmatmul.mubr.bf16.gmra.mxu0 %v2687
      %v2815 = vpop.f32.mrf.mxu0
      %v2816 = vadd.f32 0.0, %v2815
      %v2817 = vpop.f32.mrf.mxu0
      %v2818 = vpop.f32.mrf.mxu0
      %v2819 = vadd.f32 0.0, %v2818
      %v2820 = vpop.f32.mrf.mxu0
      %2821 = vmatprep.mubr.bf16.mxu0 0
      %2822 = vmatmul.mubr.bf16.gmra.mxu0 %v2688
      %v2823 = vpop.f32.mrf.mxu0
      %v2824 = vadd.f32 0.0, %v2823
      %v2825 = vpop.f32.mrf.mxu0
      %v2826 = vpop.f32.mrf.mxu0
      %v2827 = vadd.f32 0.0, %v2826
      %v2828 = vpop.f32.mrf.mxu0
      %2829 = vmatprep.mubr.bf16.mxu0 0
      %2830 = vmatmul.mubr.bf16.gmra.mxu0 %v2689
      %v2831 = vpop.f32.mrf.mxu0
      %v2832 = vadd.f32 0.0, %v2831
      %v2833 = vpop.f32.mrf.mxu0
      %v2834 = vpop.f32.mrf.mxu0
      %v2835 = vadd.f32 0.0, %v2834
      %v2836 = vpop.f32.mrf.mxu0
      %2837 = vmatprep.mubr.bf16.mxu0 0
      %2838 = vmatmul.mubr.bf16.gmra.mxu0 %v2690
      %v2839 = vpop.f32.mrf.mxu0
      %v2840 = vadd.f32 0.0, %v2839
      %v2841 = vpop.f32.mrf.mxu0
      %v2842 = vpop.f32.mrf.mxu0
      %v2843 = vadd.f32 0.0, %v2842
      %v2844 = vpop.f32.mrf.mxu0
      %2845 = vmatprep.mubr.bf16.mxu0 0
      %2846 = vmatmul.mubr.bf16.gmra.mxu0 %v2691
      %v2847 = vpop.f32.mrf.mxu0
      %v2848 = vadd.f32 0.0, %v2847
      %v2849 = vpop.f32.mrf.mxu0
      %v2850 = vpop.f32.mrf.mxu0
      %v2851 = vadd.f32 0.0, %v2850
      %v2852 = vpop.f32.mrf.mxu0
      %2853 = vmatprep.mubr.bf16.mxu0 0
      %2854 = vmatmul.mubr.bf16.gmra.mxu0 %v2692
      %v2855 = vpop.f32.mrf.mxu0
      %v2856 = vadd.f32 0.0, %v2855
      %v2857 = vpop.f32.mrf.mxu0
      %v2858 = vpop.f32.mrf.mxu0
      %v2859 = vadd.f32 0.0, %v2858
      %v2860 = vpop.f32.mrf.mxu0
      %2861 = vmatprep.mubr.bf16.mxu0 0
      %2862 = vmatmul.mubr.bf16.gmra.mxu0 %v2693
      %v2863 = vpop.f32.mrf.mxu0
      %v2864 = vadd.f32 0.0, %v2863
      %v2865 = vpop.f32.mrf.mxu0
      %v2866 = vpop.f32.mrf.mxu0
      %v2867 = vadd.f32 0.0, %v2866
      %v2868 = vpop.f32.mrf.mxu0
      %2869 = vmatprep.mubr.bf16.mxu0 0
      %2870 = vmatmul.mubr.bf16.gmra.mxu0 %v2694
      %v2871 = vpop.f32.mrf.mxu0
      %v2872 = vadd.f32 0.0, %v2871
      %v2873 = vpop.f32.mrf.mxu0
      %v2874 = vpop.f32.mrf.mxu0
      %v2875 = vadd.f32 0.0, %v2874
      %v2876 = vpop.f32.mrf.mxu0
      %2877 = vmatprep.mubr.bf16.mxu0 0
      %2878 = vmatmul.mubr.bf16.gmra.mxu0 %v2695
      %v2879 = vpop.f32.mrf.mxu0
      %v2880 = vadd.f32 0.0, %v2879
      %v2881 = vpop.f32.mrf.mxu0
      %v2882 = vpop.f32.mrf.mxu0
      %v2883 = vadd.f32 0.0, %v2882
      %v2884 = vpop.f32.mrf.mxu0
      %2885 = vmatprep.mubr.bf16.mxu0 0
      %2886 = vmatmul.mubr.bf16.gmra.mxu0 %v2696
      %v2887 = vpop.f32.mrf.mxu0
      %v2888 = vadd.f32 0.0, %v2887
      %v2889 = vpop.f32.mrf.mxu0
      %v2890 = vpop.f32.mrf.mxu0
      %v2891 = vadd.f32 0.0, %v2890
      %v2892 = vpop.f32.mrf.mxu0
      %2893 = vmatprep.mubr.bf16.mxu0 0
      %2894 = vmatmul.mubr.bf16.gmra.mxu0 %v2697
      %v2895 = vpop.f32.mrf.mxu0
      %v2896 = vadd.f32 0.0, %v2895
      %v2897 = vpop.f32.mrf.mxu0
      %v2898 = vpop.f32.mrf.mxu0
      %v2899 = vadd.f32 0.0, %v2898
      %v2900 = vpop.f32.mrf.mxu0
      %2901 = vmatprep.mubr.bf16.mxu0 0
      %2902 = vmatmul.mubr.bf16.gmra.mxu0 %v2698
      %v2903 = vpop.f32.mrf.mxu0
      %v2904 = vadd.f32 0.0, %v2903
      %v2905 = vpop.f32.mrf.mxu0
      %v2906 = vpop.f32.mrf.mxu0
      %v2907 = vadd.f32 0.0, %v2906
      %v2908 = vpop.f32.mrf.mxu0
      %2909 = vmatprep.mubr.bf16.mxu0 0
      %2910 = vmatmul.mubr.bf16.gmra.mxu0 %v2699
      %v2911 = vpop.f32.mrf.mxu0
      %v2912 = vadd.f32 0.0, %v2911
      %v2913 = vpop.f32.mrf.mxu0
      %v2914 = vpop.f32.mrf.mxu0
      %v2915 = vadd.f32 0.0, %v2914
      %v2916 = vpop.f32.mrf.mxu0
      %2917 = vmatprep.mubr.bf16.mxu0 0
      %2918 = vmatmul.mubr.bf16.gmra.mxu0 %v2700
      %v2919 = vpop.f32.mrf.mxu0
      %v2920 = vadd.f32 0.0, %v2919
      %v2921 = vpop.f32.mrf.mxu0
      %v2922 = vpop.f32.mrf.mxu0
      %v2923 = vadd.f32 0.0, %v2922
      %v2924 = vpop.f32.mrf.mxu0
      %2925 = vdwg.mxu0
      %v2926 = vadd.f32 %v2172, %v2800
      %v2927 = vadd.f32 %v2173, %v2803
      %v2928 = vadd.f32 %v2174, %v2808
      %v2929 = vadd.f32 %v2175, %v2811
      %v2930 = vadd.f32 %v2176, %v2816
      %v2931 = vadd.f32 %v2177, %v2819
      %v2932 = vadd.f32 %v2178, %v2824
      %v2933 = vadd.f32 %v2179, %v2827
      %v2934 = vadd.f32 %v2180, %v2832
      %v2935 = vadd.f32 %v2181, %v2835
      %v2936 = vadd.f32 %v2182, %v2840
      %v2937 = vadd.f32 %v2183, %v2843
      %v2938 = vadd.f32 %v2184, %v2848
      %v2939 = vadd.f32 %v2185, %v2851
      %v2940 = vadd.f32 %v2186, %v2856
      %v2941 = vadd.f32 %v2187, %v2859
      %v2942 = vadd.f32 %v2188, %v2864
      %v2943 = vadd.f32 %v2189, %v2867
      %v2944 = vadd.f32 %v2190, %v2872
      %v2945 = vadd.f32 %v2191, %v2875
      %v2946 = vadd.f32 %v2192, %v2880
      %v2947 = vadd.f32 %v2193, %v2883
      %v2948 = vadd.f32 %v2194, %v2888
      %v2949 = vadd.f32 %v2195, %v2891
      %v2950 = vadd.f32 %v2196, %v2896
      %v2951 = vadd.f32 %v2197, %v2899
      %v2952 = vadd.f32 %v2198, %v2904
      %v2953 = vadd.f32 %v2199, %v2907
      %v2954 = vadd.f32 %v2200, %v2912
      %v2955 = vadd.f32 %v2201, %v2915
      %v2956 = vadd.f32 %v2202, %v2920
      %v2957 = vadd.f32 %v2203, %v2923
      %v2958 = vld [vmem:[%s1817] sm:$0xe]
      %v2959 = vld [vmem:[%s1817 + $0xc] sm:$0xe]
      %v2960 = vld [vmem:[%s1817 + $0x18] sm:$0xe]
      %v2961 = vld [vmem:[%s1817 + $0x24] sm:$0xe]
      %v2962 = vld [vmem:[%s1817 + $0x30] sm:$0xe]
      %v2963 = vld [vmem:[%s1817 + $0x3c] sm:$0xe]
      %v2964 = vld [vmem:[%s1817 + $0x48] sm:$0xe]
      %v2965 = vld [vmem:[%s1817 + $0x54] sm:$0xe]
      %v2966 = vld [vmem:[%s1817 + $0x60] sm:$0xe]
      %v2967 = vld [vmem:[%s1817 + $0x6c] sm:$0xe]
      %v2968 = vld [vmem:[%s1817 + $0x78] sm:$0xe]
      %v2969 = vld [vmem:[%s1817 + $0x84] sm:$0xe]
      %v2970 = vld [vmem:[%s1817 + $0x90] sm:$0xe]
      %v2971 = vld [vmem:[%s1817 + $0x9c] sm:$0xe]
      %v2972 = vld [vmem:[%s1817 + $0xa8] sm:$0xe]
      %v2973 = vld [vmem:[%s1817 + $0xb4] sm:$0xe]
      %v3022 = vrot.slane %v2958, 5
      %v3023 = vrot.slane %v3022, 4
      %v3024 = vrot.slane %v2205, 5
      %v3025 = vsel %vm1382, %v3023, %v3024
      %v3026 = vrot.slane %v3024, 4
      %v3027 = vrot.slane %v2206, 5
      %v3028 = vsel %vm1382, %v3026, %v3027
      %v3029 = vrot.slane %v2959, 5
      %v3030 = vrot.slane %v3029, 4
      %v3031 = vrot.slane %v2208, 5
      %v3032 = vsel %vm1382, %v3030, %v3031
      %v3033 = vrot.slane %v3031, 4
      %v3034 = vrot.slane %v2209, 5
      %v3035 = vsel %vm1382, %v3033, %v3034
      %v3036 = vrot.slane %v2960, 5
      %v3037 = vrot.slane %v3036, 4
      %v3038 = vrot.slane %v2211, 5
      %v3039 = vsel %vm1382, %v3037, %v3038
      %v3040 = vrot.slane %v3038, 4
      %v3041 = vrot.slane %v2212, 5
      %v3042 = vsel %vm1382, %v3040, %v3041
      %v3043 = vrot.slane %v2961, 5
      %v3044 = vrot.slane %v3043, 4
      %v3045 = vrot.slane %v2214, 5
      %v3046 = vsel %vm1382, %v3044, %v3045
      %v3047 = vrot.slane %v3045, 4
      %v3048 = vrot.slane %v2215, 5
      %v3049 = vsel %vm1382, %v3047, %v3048
      %v3050 = vrot.slane %v2962, 5
      %v3051 = vrot.slane %v3050, 4
      %v3052 = vrot.slane %v2217, 5
      %v3053 = vsel %vm1382, %v3051, %v3052
      %v3054 = vrot.slane %v3052, 4
      %v3055 = vrot.slane %v2218, 5
      %v3056 = vsel %vm1382, %v3054, %v3055
      %v3057 = vrot.slane %v2963, 5
      %v3058 = vrot.slane %v3057, 4
      %v3059 = vrot.slane %v2220, 5
      %v3060 = vsel %vm1382, %v3058, %v3059
      %v3061 = vrot.slane %v3059, 4
      %v3062 = vrot.slane %v2221, 5
      %v3063 = vsel %vm1382, %v3061, %v3062
      %v3064 = vrot.slane %v2964, 5
      %v3065 = vrot.slane %v3064, 4
      %v3066 = vrot.slane %v2223, 5
      %v3067 = vsel %vm1382, %v3065, %v3066
      %v3068 = vrot.slane %v3066, 4
      %v3069 = vrot.slane %v2224, 5
      %v3070 = vsel %vm1382, %v3068, %v3069
      %v3071 = vrot.slane %v2965, 5
      %v3072 = vrot.slane %v3071, 4
      %v3073 = vrot.slane %v2226, 5
      %v3074 = vsel %vm1382, %v3072, %v3073
      %v3075 = vrot.slane %v3073, 4
      %v3076 = vrot.slane %v2227, 5
      %v3077 = vsel %vm1382, %v3075, %v3076
      %v3078 = vrot.slane %v2966, 5
      %v3079 = vrot.slane %v3078, 4
      %v3080 = vrot.slane %v2229, 5
      %v3081 = vsel %vm1382, %v3079, %v3080
      %v3082 = vrot.slane %v3080, 4
      %v3083 = vrot.slane %v2230, 5
      %v3084 = vsel %vm1382, %v3082, %v3083
      %v3085 = vrot.slane %v2967, 5
      %v3086 = vrot.slane %v3085, 4
      %v3087 = vrot.slane %v2232, 5
      %v3088 = vsel %vm1382, %v3086, %v3087
      %v3089 = vrot.slane %v3087, 4
      %v3090 = vrot.slane %v2233, 5
      %v3091 = vsel %vm1382, %v3089, %v3090
      %v3092 = vrot.slane %v2968, 5
      %v3093 = vrot.slane %v3092, 4
      %v3094 = vrot.slane %v2235, 5
      %v3095 = vsel %vm1382, %v3093, %v3094
      %v3096 = vrot.slane %v3094, 4
      %v3097 = vrot.slane %v2236, 5
      %v3098 = vsel %vm1382, %v3096, %v3097
      %v3099 = vrot.slane %v2969, 5
      %v3100 = vrot.slane %v3099, 4
      %v3101 = vrot.slane %v2238, 5
      %v3102 = vsel %vm1382, %v3100, %v3101
      %v3103 = vrot.slane %v3101, 4
      %v3104 = vrot.slane %v2239, 5
      %v3105 = vsel %vm1382, %v3103, %v3104
      %v3106 = vrot.slane %v2970, 5
      %v3107 = vrot.slane %v3106, 4
      %v3108 = vrot.slane %v2241, 5
      %v3109 = vsel %vm1382, %v3107, %v3108
      %v3110 = vrot.slane %v3108, 4
      %v3111 = vrot.slane %v2242, 5
      %v3112 = vsel %vm1382, %v3110, %v3111
      %v3113 = vrot.slane %v2971, 5
      %v3114 = vrot.slane %v3113, 4
      %v3115 = vrot.slane %v2244, 5
      %v3116 = vsel %vm1382, %v3114, %v3115
      %v3117 = vrot.slane %v3115, 4
      %v3118 = vrot.slane %v2245, 5
      %v3119 = vsel %vm1382, %v3117, %v3118
      %v3120 = vrot.slane %v2972, 5
      %v3121 = vrot.slane %v3120, 4
      %v3122 = vrot.slane %v2247, 5
      %v3123 = vsel %vm1382, %v3121, %v3122
      %v3124 = vrot.slane %v3122, 4
      %v3125 = vrot.slane %v2248, 5
      %v3126 = vsel %vm1382, %v3124, %v3125
      %v3127 = vrot.slane %v2973, 5
      %v3128 = vrot.slane %v3127, 4
      %v3129 = vrot.slane %v2250, 5
      %v3130 = vsel %vm1382, %v3128, %v3129
      %v3131 = vrot.slane %v3129, 4
      %v3132 = vrot.slane %v2251, 5
      %v3133 = vsel %vm1382, %v3131, %v3132
      %s3134 = scalar_lea.vmem %s1, 320
      %v3135 = vld [vmem:[%s3134] sm:$0xf]
      %v3136 = vld [vmem:[%s3134 + $0x4] sm:$0xf]
      %v3137 = vld [vmem:[%s3134 + $0x8] sm:$0xf]
      %v3138 = vld [vmem:[%s3134 + $0xc] sm:$0xf]
      %v3139 = vld [vmem:[%s3134 + $0x10] sm:$0xf]
      %v3140 = vld [vmem:[%s3134 + $0x14] sm:$0xf]
      %v3141 = vld [vmem:[%s3134 + $0x18] sm:$0xf]
      %v3142 = vld [vmem:[%s3134 + $0x1c] sm:$0xf]
      %v3143 = vld [vmem:[%s3134 + $0x20] sm:$0xf]
      %v3144 = vld [vmem:[%s3134 + $0x24] sm:$0xf]
      %v3145 = vld [vmem:[%s3134 + $0x28] sm:$0xf]
      %v3146 = vld [vmem:[%s3134 + $0x2c] sm:$0xf]
      %v3147 = vld [vmem:[%s3134 + $0x30] sm:$0xf]
      %v3148 = vld [vmem:[%s3134 + $0x34] sm:$0xf]
      %v3149 = vld [vmem:[%s3134 + $0x38] sm:$0xf]
      %v3150 = vld [vmem:[%s3134 + $0x3c] sm:$0xf]
      %v3151 = vunpack.c.l.b16 %v3025
      %v3152 = vunpack.c.l.b16 %v3028
      %v3153 = vunpack.c.l.b16 %v3032
      %v3154 = vunpack.c.l.b16 %v3035
      %v3155 = vunpack.c.l.b16 %v3039
      %v3156 = vunpack.c.l.b16 %v3042
      %v3157 = vunpack.c.l.b16 %v3046
      %v3158 = vunpack.c.l.b16 %v3049
      %v3159 = vunpack.c.l.b16 %v3053
      %v3160 = vunpack.c.l.b16 %v3056
      %v3161 = vunpack.c.l.b16 %v3060
      %v3162 = vunpack.c.l.b16 %v3063
      %v3163 = vunpack.c.l.b16 %v3067
      %v3164 = vunpack.c.l.b16 %v3070
      %v3165 = vunpack.c.l.b16 %v3074
      %v3166 = vunpack.c.l.b16 %v3077
      %v3167 = vunpack.c.l.b16 %v3081
      %v3168 = vunpack.c.l.b16 %v3084
      %v3169 = vunpack.c.l.b16 %v3088
      %v3170 = vunpack.c.l.b16 %v3091
      %v3171 = vunpack.c.l.b16 %v3095
      %v3172 = vunpack.c.l.b16 %v3098
      %v3173 = vunpack.c.l.b16 %v3102
      %v3174 = vunpack.c.l.b16 %v3105
      %v3175 = vunpack.c.l.b16 %v3109
      %v3176 = vunpack.c.l.b16 %v3112
      %v3177 = vunpack.c.l.b16 %v3116
      %v3178 = vunpack.c.l.b16 %v3119
      %v3179 = vunpack.c.l.b16 %v3123
      %v3180 = vunpack.c.l.b16 %v3126
      %v3181 = vunpack.c.l.b16 %v3130
      %v3182 = vunpack.c.l.b16 %v3133
      %v3183 = vpack.c.b16 %v3152, %v3151
      %v3184 = vpack.c.b16 %v3154, %v3153
      %v3185 = vpack.c.b16 %v3156, %v3155
      %v3186 = vpack.c.b16 %v3158, %v3157
      %v3187 = vpack.c.b16 %v3160, %v3159
      %v3188 = vpack.c.b16 %v3162, %v3161
      %v3189 = vpack.c.b16 %v3164, %v3163
      %v3190 = vpack.c.b16 %v3166, %v3165
      %v3191 = vpack.c.b16 %v3168, %v3167
      %v3192 = vpack.c.b16 %v3170, %v3169
      %v3193 = vpack.c.b16 %v3172, %v3171
      %v3194 = vpack.c.b16 %v3174, %v3173
      %v3195 = vpack.c.b16 %v3176, %v3175
      %v3196 = vpack.c.b16 %v3178, %v3177
      %v3197 = vpack.c.b16 %v3180, %v3179
      %v3198 = vpack.c.b16 %v3182, %v3181
      %v3231 = vunpack.c.l.b16 %v3135
      %v3232 = vunpack.c.l.b16 %v3136
      %v3233 = vunpack.c.l.b16 %v3137
      %v3234 = vunpack.c.l.b16 %v3138
      %v3235 = vunpack.c.l.b16 %v3139
      %v3236 = vunpack.c.l.b16 %v3140
      %v3237 = vunpack.c.l.b16 %v3141
      %v3238 = vunpack.c.l.b16 %v3142
      %v3239 = vunpack.c.l.b16 %v3143
      %v3240 = vunpack.c.l.b16 %v3144
      %v3241 = vunpack.c.l.b16 %v3145
      %v3242 = vunpack.c.l.b16 %v3146
      %v3243 = vunpack.c.l.b16 %v3147
      %v3244 = vunpack.c.l.b16 %v3148
      %v3245 = vunpack.c.l.b16 %v3149
      %v3246 = vunpack.c.l.b16 %v3150
      %v3247 = vpack.c.b16 %v3232, %v3231
      %v3248 = vpack.c.b16 %v3234, %v3233
      %v3249 = vpack.c.b16 %v3236, %v3235
      %v3250 = vpack.c.b16 %v3238, %v3237
      %v3251 = vpack.c.b16 %v3240, %v3239
      %v3252 = vpack.c.b16 %v3242, %v3241
      %v3253 = vpack.c.b16 %v3244, %v3243
      %v3254 = vpack.c.b16 %v3246, %v3245
      %3263 = vmatprep.subr.bf16.mxu0 0
      %3264 = vmatpush1.bf16.msra.mxu0 %v3254
      %3265 = vmatprep.subr.bf16.mxu0 0
      %3266 = vmatpush1.bf16.msra.mxu0 %v3253
      %3267 = vmatprep.subr.bf16.mxu0 0
      %3268 = vmatpush1.bf16.msra.mxu0 %v3252
      %3269 = vmatprep.subr.bf16.mxu0 0
      %3270 = vmatpush1.bf16.msra.mxu0 %v3251
      %3271 = vmatprep.subr.bf16.mxu0 0
      %3272 = vmatpush1.bf16.msra.mxu0 %v3250
      %3273 = vmatprep.subr.bf16.mxu0 0
      %3274 = vmatpush1.bf16.msra.mxu0 %v3249
      %3275 = vmatprep.subr.bf16.mxu0 0
      %3276 = vmatpush1.bf16.msra.mxu0 %v3248
      %3277 = vmatprep.subr.bf16.mxu0 0
      %3278 = vmatpush1.bf16.msra.mxu0 %v3247
      %3279 = vmatprep.subr.bf16.mxu0 0
      %3280 = vmatpush2.bf16.msra.mxu0 0
      %3281 = vmatprep.subr.bf16.mxu0 0
      %3282 = vmatpush2.bf16.msra.mxu0 0
      %3283 = vmatprep.subr.bf16.mxu0 0
      %3284 = vmatpush2.bf16.msra.mxu0 0
      %3285 = vmatprep.subr.bf16.mxu0 0
      %3286 = vmatpush2.bf16.msra.mxu0 0
      %3287 = vmatprep.subr.bf16.mxu0 0
      %3288 = vmatpush2.bf16.msra.mxu0 0
      %3289 = vmatprep.subr.bf16.mxu0 0
      %3290 = vmatpush2.bf16.msra.mxu0 0
      %3291 = vmatprep.subr.bf16.mxu0 0
      %3292 = vmatpush2.bf16.msra.mxu0 0
      %3293 = vmatprep.subr.bf16.mxu0 0
      %3294 = vmatpush2.bf16.msra.mxu0 0
      %3295 = vmatprep.mubr.bf16.mxu0 0
      %3296 = vmatmul.mubr.bf16.gmra.mxu0 %v3183
      %v3297 = vpop.f32.mrf.mxu0
      %v3298 = vadd.f32 0.0, %v3297
      %v3299 = vpop.f32.mrf.mxu0
      %v3300 = vpop.f32.mrf.mxu0
      %v3301 = vadd.f32 0.0, %v3300
      %v3302 = vpop.f32.mrf.mxu0
      %3303 = vmatprep.mubr.bf16.mxu0 0
      %3304 = vmatmul.mubr.bf16.gmra.mxu0 %v3184
      %v3305 = vpop.f32.mrf.mxu0
      %v3306 = vadd.f32 0.0, %v3305
      %v3307 = vpop.f32.mrf.mxu0
      %v3308 = vpop.f32.mrf.mxu0
      %v3309 = vadd.f32 0.0, %v3308
      %v3310 = vpop.f32.mrf.mxu0
      %3311 = vmatprep.mubr.bf16.mxu0 0
      %3312 = vmatmul.mubr.bf16.gmra.mxu0 %v3185
      %v3313 = vpop.f32.mrf.mxu0
      %v3314 = vadd.f32 0.0, %v3313
      %v3315 = vpop.f32.mrf.mxu0
      %v3316 = vpop.f32.mrf.mxu0
      %v3317 = vadd.f32 0.0, %v3316
      %v3318 = vpop.f32.mrf.mxu0
      %3319 = vmatprep.mubr.bf16.mxu0 0
      %3320 = vmatmul.mubr.bf16.gmra.mxu0 %v3186
      %v3321 = vpop.f32.mrf.mxu0
      %v3322 = vadd.f32 0.0, %v3321
      %v3323 = vpop.f32.mrf.mxu0
      %v3324 = vpop.f32.mrf.mxu0
      %v3325 = vadd.f32 0.0, %v3324
      %v3326 = vpop.f32.mrf.mxu0
      %3327 = vmatprep.mubr.bf16.mxu0 0
      %3328 = vmatmul.mubr.bf16.gmra.mxu0 %v3187
      %v3329 = vpop.f32.mrf.mxu0
      %v3330 = vadd.f32 0.0, %v3329
      %v3331 = vpop.f32.mrf.mxu0
      %v3332 = vpop.f32.mrf.mxu0
      %v3333 = vadd.f32 0.0, %v3332
      %v3334 = vpop.f32.mrf.mxu0
      %3335 = vmatprep.mubr.bf16.mxu0 0
      %3336 = vmatmul.mubr.bf16.gmra.mxu0 %v3188
      %v3337 = vpop.f32.mrf.mxu0
      %v3338 = vadd.f32 0.0, %v3337
      %v3339 = vpop.f32.mrf.mxu0
      %v3340 = vpop.f32.mrf.mxu0
      %v3341 = vadd.f32 0.0, %v3340
      %v3342 = vpop.f32.mrf.mxu0
      %3343 = vmatprep.mubr.bf16.mxu0 0
      %3344 = vmatmul.mubr.bf16.gmra.mxu0 %v3189
      %v3345 = vpop.f32.mrf.mxu0
      %v3346 = vadd.f32 0.0, %v3345
      %v3347 = vpop.f32.mrf.mxu0
      %v3348 = vpop.f32.mrf.mxu0
      %v3349 = vadd.f32 0.0, %v3348
      %v3350 = vpop.f32.mrf.mxu0
      %3351 = vmatprep.mubr.bf16.mxu0 0
      %3352 = vmatmul.mubr.bf16.gmra.mxu0 %v3190
      %v3353 = vpop.f32.mrf.mxu0
      %v3354 = vadd.f32 0.0, %v3353
      %v3355 = vpop.f32.mrf.mxu0
      %v3356 = vpop.f32.mrf.mxu0
      %v3357 = vadd.f32 0.0, %v3356
      %v3358 = vpop.f32.mrf.mxu0
      %3359 = vmatprep.mubr.bf16.mxu0 0
      %3360 = vmatmul.mubr.bf16.gmra.mxu0 %v3191
      %v3361 = vpop.f32.mrf.mxu0
      %v3362 = vadd.f32 0.0, %v3361
      %v3363 = vpop.f32.mrf.mxu0
      %v3364 = vpop.f32.mrf.mxu0
      %v3365 = vadd.f32 0.0, %v3364
      %v3366 = vpop.f32.mrf.mxu0
      %3367 = vmatprep.mubr.bf16.mxu0 0
      %3368 = vmatmul.mubr.bf16.gmra.mxu0 %v3192
      %v3369 = vpop.f32.mrf.mxu0
      %v3370 = vadd.f32 0.0, %v3369
      %v3371 = vpop.f32.mrf.mxu0
      %v3372 = vpop.f32.mrf.mxu0
      %v3373 = vadd.f32 0.0, %v3372
      %v3374 = vpop.f32.mrf.mxu0
      %3375 = vmatprep.mubr.bf16.mxu0 0
      %3376 = vmatmul.mubr.bf16.gmra.mxu0 %v3193
      %v3377 = vpop.f32.mrf.mxu0
      %v3378 = vadd.f32 0.0, %v3377
      %v3379 = vpop.f32.mrf.mxu0
      %v3380 = vpop.f32.mrf.mxu0
      %v3381 = vadd.f32 0.0, %v3380
      %v3382 = vpop.f32.mrf.mxu0
      %3383 = vmatprep.mubr.bf16.mxu0 0
      %3384 = vmatmul.mubr.bf16.gmra.mxu0 %v3194
      %v3385 = vpop.f32.mrf.mxu0
      %v3386 = vadd.f32 0.0, %v3385
      %v3387 = vpop.f32.mrf.mxu0
      %v3388 = vpop.f32.mrf.mxu0
      %v3389 = vadd.f32 0.0, %v3388
      %v3390 = vpop.f32.mrf.mxu0
      %3391 = vmatprep.mubr.bf16.mxu0 0
      %3392 = vmatmul.mubr.bf16.gmra.mxu0 %v3195
      %v3393 = vpop.f32.mrf.mxu0
      %v3394 = vadd.f32 0.0, %v3393
      %v3395 = vpop.f32.mrf.mxu0
      %v3396 = vpop.f32.mrf.mxu0
      %v3397 = vadd.f32 0.0, %v3396
      %v3398 = vpop.f32.mrf.mxu0
      %3399 = vmatprep.mubr.bf16.mxu0 0
      %3400 = vmatmul.mubr.bf16.gmra.mxu0 %v3196
      %v3401 = vpop.f32.mrf.mxu0
      %v3402 = vadd.f32 0.0, %v3401
      %v3403 = vpop.f32.mrf.mxu0
      %v3404 = vpop.f32.mrf.mxu0
      %v3405 = vadd.f32 0.0, %v3404
      %v3406 = vpop.f32.mrf.mxu0
      %3407 = vmatprep.mubr.bf16.mxu0 0
      %3408 = vmatmul.mubr.bf16.gmra.mxu0 %v3197
      %v3409 = vpop.f32.mrf.mxu0
      %v3410 = vadd.f32 0.0, %v3409
      %v3411 = vpop.f32.mrf.mxu0
      %v3412 = vpop.f32.mrf.mxu0
      %v3413 = vadd.f32 0.0, %v3412
      %v3414 = vpop.f32.mrf.mxu0
      %3415 = vmatprep.mubr.bf16.mxu0 0
      %3416 = vmatmul.mubr.bf16.gmra.mxu0 %v3198
      %v3417 = vpop.f32.mrf.mxu0
      %v3418 = vadd.f32 0.0, %v3417
      %v3419 = vpop.f32.mrf.mxu0
      %v3420 = vpop.f32.mrf.mxu0
      %v3421 = vadd.f32 0.0, %v3420
      %v3422 = vpop.f32.mrf.mxu0
      %3423 = vdwg.mxu0
      %v3424 = vadd.f32 %v2926, %v3298
      %v3425 = vadd.f32 %v2927, %v3301
      %v3426 = vadd.f32 %v2928, %v3306
      %v3427 = vadd.f32 %v2929, %v3309
      %v3428 = vadd.f32 %v2930, %v3314
      %v3429 = vadd.f32 %v2931, %v3317
      %v3430 = vadd.f32 %v2932, %v3322
      %v3431 = vadd.f32 %v2933, %v3325
      %v3432 = vadd.f32 %v2934, %v3330
      %v3433 = vadd.f32 %v2935, %v3333
      %v3434 = vadd.f32 %v2936, %v3338
      %v3435 = vadd.f32 %v2937, %v3341
      %v3436 = vadd.f32 %v2938, %v3346
      %v3437 = vadd.f32 %v2939, %v3349
      %v3438 = vadd.f32 %v2940, %v3354
      %v3439 = vadd.f32 %v2941, %v3357
      %v3440 = vadd.f32 %v2942, %v3362
      %v3441 = vadd.f32 %v2943, %v3365
      %v3442 = vadd.f32 %v2944, %v3370
      %v3443 = vadd.f32 %v2945, %v3373
      %v3444 = vadd.f32 %v2946, %v3378
      %v3445 = vadd.f32 %v2947, %v3381
      %v3446 = vadd.f32 %v2948, %v3386
      %v3447 = vadd.f32 %v2949, %v3389
      %v3448 = vadd.f32 %v2950, %v3394
      %v3449 = vadd.f32 %v2951, %v3397
      %v3450 = vadd.f32 %v2952, %v3402
      %v3451 = vadd.f32 %v2953, %v3405
      %v3452 = vadd.f32 %v2954, %v3410
      %v3453 = vadd.f32 %v2955, %v3413
      %v3454 = vadd.f32 %v2956, %v3418
      %v3455 = vadd.f32 %v2957, %v3421
      %s3456 = scalar_lea.vmem %s266, 24
      %v3457 = vld [vmem:[%s3456] sm:$0xf]
      %v3458 = vld [vmem:[%s3456 + $0x4] sm:$0xf]
      %v3459 = vld [vmem:[%s3456 + $0xc] sm:$0xf]
      %v3460 = vld [vmem:[%s3456 + $0x10] sm:$0xf]
      %v3461 = vld [vmem:[%s3456 + $0x18] sm:$0xf]
      %v3462 = vld [vmem:[%s3456 + $0x1c] sm:$0xf]
      %v3463 = vld [vmem:[%s3456 + $0x24] sm:$0xf]
      %v3464 = vld [vmem:[%s3456 + $0x28] sm:$0xf]
      %v3465 = vld [vmem:[%s3456 + $0x30] sm:$0xf]
      %v3466 = vld [vmem:[%s3456 + $0x34] sm:$0xf]
      %v3467 = vld [vmem:[%s3456 + $0x3c] sm:$0xf]
      %v3468 = vld [vmem:[%s3456 + $0x40] sm:$0xf]
      %v3469 = vld [vmem:[%s3456 + $0x48] sm:$0xf]
      %v3470 = vld [vmem:[%s3456 + $0x4c] sm:$0xf]
      %v3471 = vld [vmem:[%s3456 + $0x54] sm:$0xf]
      %v3472 = vld [vmem:[%s3456 + $0x58] sm:$0xf]
      %v3473 = vld [vmem:[%s3456 + $0x60] sm:$0xf]
      %v3474 = vld [vmem:[%s3456 + $0x64] sm:$0xf]
      %v3475 = vld [vmem:[%s3456 + $0x6c] sm:$0xf]
      %v3476 = vld [vmem:[%s3456 + $0x70] sm:$0xf]
      %v3477 = vld [vmem:[%s3456 + $0x78] sm:$0xf]
      %v3478 = vld [vmem:[%s3456 + $0x7c] sm:$0xf]
      %v3479 = vld [vmem:[%s3456 + $0x84] sm:$0xf]
      %v3480 = vld [vmem:[%s3456 + $0x88] sm:$0xf]
      %v3481 = vld [vmem:[%s3456 + $0x90] sm:$0xf]
      %v3482 = vld [vmem:[%s3456 + $0x94] sm:$0xf]
      %v3483 = vld [vmem:[%s3456 + $0x9c] sm:$0xf]
      %v3484 = vld [vmem:[%s3456 + $0xa0] sm:$0xf]
      %v3485 = vld [vmem:[%s3456 + $0xa8] sm:$0xf]
      %v3486 = vld [vmem:[%s3456 + $0xac] sm:$0xf]
      %v3487 = vld [vmem:[%s3456 + $0xb4] sm:$0xf]
      %v3488 = vld [vmem:[%s3456 + $0xb8] sm:$0xf]
      %s3489 = scalar_lea.vmem %s1, 384
      %v3490 = vld [vmem:[%s3489] sm:$0xf]
      %v3491 = vld [vmem:[%s3489 + $0x4] sm:$0xf]
      %v3492 = vld [vmem:[%s3489 + $0x8] sm:$0xf]
      %v3493 = vld [vmem:[%s3489 + $0xc] sm:$0xf]
      %v3494 = vld [vmem:[%s3489 + $0x10] sm:$0xf]
      %v3495 = vld [vmem:[%s3489 + $0x14] sm:$0xf]
      %v3496 = vld [vmem:[%s3489 + $0x18] sm:$0xf]
      %v3497 = vld [vmem:[%s3489 + $0x1c] sm:$0xf]
      %v3498 = vld [vmem:[%s3489 + $0x20] sm:$0xf]
      %v3499 = vld [vmem:[%s3489 + $0x24] sm:$0xf]
      %v3500 = vld [vmem:[%s3489 + $0x28] sm:$0xf]
      %v3501 = vld [vmem:[%s3489 + $0x2c] sm:$0xf]
      %v3502 = vld [vmem:[%s3489 + $0x30] sm:$0xf]
      %v3503 = vld [vmem:[%s3489 + $0x34] sm:$0xf]
      %v3504 = vld [vmem:[%s3489 + $0x38] sm:$0xf]
      %v3505 = vld [vmem:[%s3489 + $0x3c] sm:$0xf]
      %v3538 = vunpack.c.l.b16 %v3457
      %v3539 = vunpack.c.l.b16 %v3458
      %v3540 = vunpack.c.l.b16 %v3459
      %v3541 = vunpack.c.l.b16 %v3460
      %v3542 = vunpack.c.l.b16 %v3461
      %v3543 = vunpack.c.l.b16 %v3462
      %v3544 = vunpack.c.l.b16 %v3463
      %v3545 = vunpack.c.l.b16 %v3464
      %v3546 = vunpack.c.l.b16 %v3465
      %v3547 = vunpack.c.l.b16 %v3466
      %v3548 = vunpack.c.l.b16 %v3467
      %v3549 = vunpack.c.l.b16 %v3468
      %v3550 = vunpack.c.l.b16 %v3469
      %v3551 = vunpack.c.l.b16 %v3470
      %v3552 = vunpack.c.l.b16 %v3471
      %v3553 = vunpack.c.l.b16 %v3472
      %v3554 = vunpack.c.l.b16 %v3473
      %v3555 = vunpack.c.l.b16 %v3474
      %v3556 = vunpack.c.l.b16 %v3475
      %v3557 = vunpack.c.l.b16 %v3476
      %v3558 = vunpack.c.l.b16 %v3477
      %v3559 = vunpack.c.l.b16 %v3478
      %v3560 = vunpack.c.l.b16 %v3479
      %v3561 = vunpack.c.l.b16 %v3480
      %v3562 = vunpack.c.l.b16 %v3481
      %v3563 = vunpack.c.l.b16 %v3482
      %v3564 = vunpack.c.l.b16 %v3483
      %v3565 = vunpack.c.l.b16 %v3484
      %v3566 = vunpack.c.l.b16 %v3485
      %v3567 = vunpack.c.l.b16 %v3486
      %v3568 = vunpack.c.l.b16 %v3487
      %v3569 = vunpack.c.l.b16 %v3488
      %v3570 = vpack.c.b16 %v3539, %v3538
      %v3571 = vpack.c.b16 %v3541, %v3540
      %v3572 = vpack.c.b16 %v3543, %v3542
      %v3573 = vpack.c.b16 %v3545, %v3544
      %v3574 = vpack.c.b16 %v3547, %v3546
      %v3575 = vpack.c.b16 %v3549, %v3548
      %v3576 = vpack.c.b16 %v3551, %v3550
      %v3577 = vpack.c.b16 %v3553, %v3552
      %v3578 = vpack.c.b16 %v3555, %v3554
      %v3579 = vpack.c.b16 %v3557, %v3556
      %v3580 = vpack.c.b16 %v3559, %v3558
      %v3581 = vpack.c.b16 %v3561, %v3560
      %v3582 = vpack.c.b16 %v3563, %v3562
      %v3583 = vpack.c.b16 %v3565, %v3564
      %v3584 = vpack.c.b16 %v3567, %v3566
      %v3585 = vpack.c.b16 %v3569, %v3568
      %v3618 = vunpack.c.l.b16 %v3490
      %v3619 = vunpack.c.l.b16 %v3491
      %v3620 = vunpack.c.l.b16 %v3492
      %v3621 = vunpack.c.l.b16 %v3493
      %v3622 = vunpack.c.l.b16 %v3494
      %v3623 = vunpack.c.l.b16 %v3495
      %v3624 = vunpack.c.l.b16 %v3496
      %v3625 = vunpack.c.l.b16 %v3497
      %v3626 = vunpack.c.l.b16 %v3498
      %v3627 = vunpack.c.l.b16 %v3499
      %v3628 = vunpack.c.l.b16 %v3500
      %v3629 = vunpack.c.l.b16 %v3501
      %v3630 = vunpack.c.l.b16 %v3502
      %v3631 = vunpack.c.l.b16 %v3503
      %v3632 = vunpack.c.l.b16 %v3504
      %v3633 = vunpack.c.l.b16 %v3505
      %v3634 = vpack.c.b16 %v3619, %v3618
      %v3635 = vpack.c.b16 %v3621, %v3620
      %v3636 = vpack.c.b16 %v3623, %v3622
      %v3637 = vpack.c.b16 %v3625, %v3624
      %v3638 = vpack.c.b16 %v3627, %v3626
      %v3639 = vpack.c.b16 %v3629, %v3628
      %v3640 = vpack.c.b16 %v3631, %v3630
      %v3641 = vpack.c.b16 %v3633, %v3632
      %3650 = vmatprep.subr.bf16.mxu0 0
      %3651 = vmatpush1.bf16.msra.mxu0 %v3641
      %3652 = vmatprep.subr.bf16.mxu0 0
      %3653 = vmatpush1.bf16.msra.mxu0 %v3640
      %3654 = vmatprep.subr.bf16.mxu0 0
      %3655 = vmatpush1.bf16.msra.mxu0 %v3639
      %3656 = vmatprep.subr.bf16.mxu0 0
      %3657 = vmatpush1.bf16.msra.mxu0 %v3638
      %3658 = vmatprep.subr.bf16.mxu0 0
      %3659 = vmatpush1.bf16.msra.mxu0 %v3637
      %3660 = vmatprep.subr.bf16.mxu0 0
      %3661 = vmatpush1.bf16.msra.mxu0 %v3636
      %3662 = vmatprep.subr.bf16.mxu0 0
      %3663 = vmatpush1.bf16.msra.mxu0 %v3635
      %3664 = vmatprep.subr.bf16.mxu0 0
      %3665 = vmatpush1.bf16.msra.mxu0 %v3634
      %3666 = vmatprep.subr.bf16.mxu0 0
      %3667 = vmatpush2.bf16.msra.mxu0 0
      %3668 = vmatprep.subr.bf16.mxu0 0
      %3669 = vmatpush2.bf16.msra.mxu0 0
      %3670 = vmatprep.subr.bf16.mxu0 0
      %3671 = vmatpush2.bf16.msra.mxu0 0
      %3672 = vmatprep.subr.bf16.mxu0 0
      %3673 = vmatpush2.bf16.msra.mxu0 0
      %3674 = vmatprep.subr.bf16.mxu0 0
      %3675 = vmatpush2.bf16.msra.mxu0 0
      %3676 = vmatprep.subr.bf16.mxu0 0
      %3677 = vmatpush2.bf16.msra.mxu0 0
      %3678 = vmatprep.subr.bf16.mxu0 0
      %3679 = vmatpush2.bf16.msra.mxu0 0
      %3680 = vmatprep.subr.bf16.mxu0 0
      %3681 = vmatpush2.bf16.msra.mxu0 0
      %3682 = vmatprep.mubr.bf16.mxu0 0
      %3683 = vmatmul.mubr.bf16.gmra.mxu0 %v3570
      %v3684 = vpop.f32.mrf.mxu0
      %v3685 = vadd.f32 0.0, %v3684
      %v3686 = vpop.f32.mrf.mxu0
      %v3687 = vpop.f32.mrf.mxu0
      %v3688 = vadd.f32 0.0, %v3687
      %v3689 = vpop.f32.mrf.mxu0
      %3690 = vmatprep.mubr.bf16.mxu0 0
      %3691 = vmatmul.mubr.bf16.gmra.mxu0 %v3571
      %v3692 = vpop.f32.mrf.mxu0
      %v3693 = vadd.f32 0.0, %v3692
      %v3694 = vpop.f32.mrf.mxu0
      %v3695 = vpop.f32.mrf.mxu0
      %v3696 = vadd.f32 0.0, %v3695
      %v3697 = vpop.f32.mrf.mxu0
      %3698 = vmatprep.mubr.bf16.mxu0 0
      %3699 = vmatmul.mubr.bf16.gmra.mxu0 %v3572
      %v3700 = vpop.f32.mrf.mxu0
      %v3701 = vadd.f32 0.0, %v3700
      %v3702 = vpop.f32.mrf.mxu0
      %v3703 = vpop.f32.mrf.mxu0
      %v3704 = vadd.f32 0.0, %v3703
      %v3705 = vpop.f32.mrf.mxu0
      %3706 = vmatprep.mubr.bf16.mxu0 0
      %3707 = vmatmul.mubr.bf16.gmra.mxu0 %v3573
      %v3708 = vpop.f32.mrf.mxu0
      %v3709 = vadd.f32 0.0, %v3708
      %v3710 = vpop.f32.mrf.mxu0
      %v3711 = vpop.f32.mrf.mxu0
      %v3712 = vadd.f32 0.0, %v3711
      %v3713 = vpop.f32.mrf.mxu0
      %3714 = vmatprep.mubr.bf16.mxu0 0
      %3715 = vmatmul.mubr.bf16.gmra.mxu0 %v3574
      %v3716 = vpop.f32.mrf.mxu0
      %v3717 = vadd.f32 0.0, %v3716
      %v3718 = vpop.f32.mrf.mxu0
      %v3719 = vpop.f32.mrf.mxu0
      %v3720 = vadd.f32 0.0, %v3719
      %v3721 = vpop.f32.mrf.mxu0
      %3722 = vmatprep.mubr.bf16.mxu0 0
      %3723 = vmatmul.mubr.bf16.gmra.mxu0 %v3575
      %v3724 = vpop.f32.mrf.mxu0
      %v3725 = vadd.f32 0.0, %v3724
      %v3726 = vpop.f32.mrf.mxu0
      %v3727 = vpop.f32.mrf.mxu0
      %v3728 = vadd.f32 0.0, %v3727
      %v3729 = vpop.f32.mrf.mxu0
      %3730 = vmatprep.mubr.bf16.mxu0 0
      %3731 = vmatmul.mubr.bf16.gmra.mxu0 %v3576
      %v3732 = vpop.f32.mrf.mxu0
      %v3733 = vadd.f32 0.0, %v3732
      %v3734 = vpop.f32.mrf.mxu0
      %v3735 = vpop.f32.mrf.mxu0
      %v3736 = vadd.f32 0.0, %v3735
      %v3737 = vpop.f32.mrf.mxu0
      %3738 = vmatprep.mubr.bf16.mxu0 0
      %3739 = vmatmul.mubr.bf16.gmra.mxu0 %v3577
      %v3740 = vpop.f32.mrf.mxu0
      %v3741 = vadd.f32 0.0, %v3740
      %v3742 = vpop.f32.mrf.mxu0
      %v3743 = vpop.f32.mrf.mxu0
      %v3744 = vadd.f32 0.0, %v3743
      %v3745 = vpop.f32.mrf.mxu0
      %3746 = vmatprep.mubr.bf16.mxu0 0
      %3747 = vmatmul.mubr.bf16.gmra.mxu0 %v3578
      %v3748 = vpop.f32.mrf.mxu0
      %v3749 = vadd.f32 0.0, %v3748
      %v3750 = vpop.f32.mrf.mxu0
      %v3751 = vpop.f32.mrf.mxu0
      %v3752 = vadd.f32 0.0, %v3751
      %v3753 = vpop.f32.mrf.mxu0
      %3754 = vmatprep.mubr.bf16.mxu0 0
      %3755 = vmatmul.mubr.bf16.gmra.mxu0 %v3579
      %v3756 = vpop.f32.mrf.mxu0
      %v3757 = vadd.f32 0.0, %v3756
      %v3758 = vpop.f32.mrf.mxu0
      %v3759 = vpop.f32.mrf.mxu0
      %v3760 = vadd.f32 0.0, %v3759
      %v3761 = vpop.f32.mrf.mxu0
      %3762 = vmatprep.mubr.bf16.mxu0 0
      %3763 = vmatmul.mubr.bf16.gmra.mxu0 %v3580
      %v3764 = vpop.f32.mrf.mxu0
      %v3765 = vadd.f32 0.0, %v3764
      %v3766 = vpop.f32.mrf.mxu0
      %v3767 = vpop.f32.mrf.mxu0
      %v3768 = vadd.f32 0.0, %v3767
      %v3769 = vpop.f32.mrf.mxu0
      %3770 = vmatprep.mubr.bf16.mxu0 0
      %3771 = vmatmul.mubr.bf16.gmra.mxu0 %v3581
      %v3772 = vpop.f32.mrf.mxu0
      %v3773 = vadd.f32 0.0, %v3772
      %v3774 = vpop.f32.mrf.mxu0
      %v3775 = vpop.f32.mrf.mxu0
      %v3776 = vadd.f32 0.0, %v3775
      %v3777 = vpop.f32.mrf.mxu0
      %3778 = vmatprep.mubr.bf16.mxu0 0
      %3779 = vmatmul.mubr.bf16.gmra.mxu0 %v3582
      %v3780 = vpop.f32.mrf.mxu0
      %v3781 = vadd.f32 0.0, %v3780
      %v3782 = vpop.f32.mrf.mxu0
      %v3783 = vpop.f32.mrf.mxu0
      %v3784 = vadd.f32 0.0, %v3783
      %v3785 = vpop.f32.mrf.mxu0
      %3786 = vmatprep.mubr.bf16.mxu0 0
      %3787 = vmatmul.mubr.bf16.gmra.mxu0 %v3583
      %v3788 = vpop.f32.mrf.mxu0
      %v3789 = vadd.f32 0.0, %v3788
      %v3790 = vpop.f32.mrf.mxu0
      %v3791 = vpop.f32.mrf.mxu0
      %v3792 = vadd.f32 0.0, %v3791
      %v3793 = vpop.f32.mrf.mxu0
      %3794 = vmatprep.mubr.bf16.mxu0 0
      %3795 = vmatmul.mubr.bf16.gmra.mxu0 %v3584
      %v3796 = vpop.f32.mrf.mxu0
      %v3797 = vadd.f32 0.0, %v3796
      %v3798 = vpop.f32.mrf.mxu0
      %v3799 = vpop.f32.mrf.mxu0
      %v3800 = vadd.f32 0.0, %v3799
      %v3801 = vpop.f32.mrf.mxu0
      %3802 = vmatprep.mubr.bf16.mxu0 0
      %3803 = vmatmul.mubr.bf16.gmra.mxu0 %v3585
      %v3804 = vpop.f32.mrf.mxu0
      %v3805 = vadd.f32 0.0, %v3804
      %v3806 = vpop.f32.mrf.mxu0
      %v3807 = vpop.f32.mrf.mxu0
      %v3808 = vadd.f32 0.0, %v3807
      %v3809 = vpop.f32.mrf.mxu0
      %3810 = vdwg.mxu0
      %v3811 = vadd.f32 %v3424, %v3685
      %v3812 = vadd.f32 %v3425, %v3688
      %v3813 = vadd.f32 %v3426, %v3693
      %v3814 = vadd.f32 %v3427, %v3696
      %v3815 = vadd.f32 %v3428, %v3701
      %v3816 = vadd.f32 %v3429, %v3704
      %v3817 = vadd.f32 %v3430, %v3709
      %v3818 = vadd.f32 %v3431, %v3712
      %v3819 = vadd.f32 %v3432, %v3717
      %v3820 = vadd.f32 %v3433, %v3720
      %v3821 = vadd.f32 %v3434, %v3725
      %v3822 = vadd.f32 %v3435, %v3728
      %v3823 = vadd.f32 %v3436, %v3733
      %v3824 = vadd.f32 %v3437, %v3736
      %v3825 = vadd.f32 %v3438, %v3741
      %v3826 = vadd.f32 %v3439, %v3744
      %v3827 = vadd.f32 %v3440, %v3749
      %v3828 = vadd.f32 %v3441, %v3752
      %v3829 = vadd.f32 %v3442, %v3757
      %v3830 = vadd.f32 %v3443, %v3760
      %v3831 = vadd.f32 %v3444, %v3765
      %v3832 = vadd.f32 %v3445, %v3768
      %v3833 = vadd.f32 %v3446, %v3773
      %v3834 = vadd.f32 %v3447, %v3776
      %v3835 = vadd.f32 %v3448, %v3781
      %v3836 = vadd.f32 %v3449, %v3784
      %v3837 = vadd.f32 %v3450, %v3789
      %v3838 = vadd.f32 %v3451, %v3792
      %v3839 = vadd.f32 %v3452, %v3797
      %v3840 = vadd.f32 %v3453, %v3800
      %v3841 = vadd.f32 %v3454, %v3805
      %v3842 = vadd.f32 %v3455, %v3808
      %v3843 = vld [vmem:[%s3456] sm:$0xf]
      %v3844 = vld [vmem:[%s3456 + $0x4] sm:$0xf]
      %v3845 = vld [vmem:[%s3456 + $0x8] sm:$0x1]
      %v3846 = vld [vmem:[%s3456 + $0xc] sm:$0xf]
      %v3847 = vld [vmem:[%s3456 + $0x10] sm:$0xf]
      %v3848 = vld [vmem:[%s3456 + $0x14] sm:$0x1]
      %v3849 = vld [vmem:[%s3456 + $0x18] sm:$0xf]
      %v3850 = vld [vmem:[%s3456 + $0x1c] sm:$0xf]
      %v3851 = vld [vmem:[%s3456 + $0x20] sm:$0x1]
      %v3852 = vld [vmem:[%s3456 + $0x24] sm:$0xf]
      %v3853 = vld [vmem:[%s3456 + $0x28] sm:$0xf]
      %v3854 = vld [vmem:[%s3456 + $0x2c] sm:$0x1]
      %v3855 = vld [vmem:[%s3456 + $0x30] sm:$0xf]
      %v3856 = vld [vmem:[%s3456 + $0x34] sm:$0xf]
      %v3857 = vld [vmem:[%s3456 + $0x38] sm:$0x1]
      %v3858 = vld [vmem:[%s3456 + $0x3c] sm:$0xf]
      %v3859 = vld [vmem:[%s3456 + $0x40] sm:$0xf]
      %v3860 = vld [vmem:[%s3456 + $0x44] sm:$0x1]
      %v3861 = vld [vmem:[%s3456 + $0x48] sm:$0xf]
      %v3862 = vld [vmem:[%s3456 + $0x4c] sm:$0xf]
      %v3863 = vld [vmem:[%s3456 + $0x50] sm:$0x1]
      %v3864 = vld [vmem:[%s3456 + $0x54] sm:$0xf]
      %v3865 = vld [vmem:[%s3456 + $0x58] sm:$0xf]
      %v3866 = vld [vmem:[%s3456 + $0x5c] sm:$0x1]
      %v3867 = vld [vmem:[%s3456 + $0x60] sm:$0xf]
      %v3868 = vld [vmem:[%s3456 + $0x64] sm:$0xf]
      %v3869 = vld [vmem:[%s3456 + $0x68] sm:$0x1]
      %v3870 = vld [vmem:[%s3456 + $0x6c] sm:$0xf]
      %v3871 = vld [vmem:[%s3456 + $0x70] sm:$0xf]
      %v3872 = vld [vmem:[%s3456 + $0x74] sm:$0x1]
      %v3873 = vld [vmem:[%s3456 + $0x78] sm:$0xf]
      %v3874 = vld [vmem:[%s3456 + $0x7c] sm:$0xf]
      %v3875 = vld [vmem:[%s3456 + $0x80] sm:$0x1]
      %v3876 = vld [vmem:[%s3456 + $0x84] sm:$0xf]
      %v3877 = vld [vmem:[%s3456 + $0x88] sm:$0xf]
      %v3878 = vld [vmem:[%s3456 + $0x8c] sm:$0x1]
      %v3879 = vld [vmem:[%s3456 + $0x90] sm:$0xf]
      %v3880 = vld [vmem:[%s3456 + $0x94] sm:$0xf]
      %v3881 = vld [vmem:[%s3456 + $0x98] sm:$0x1]
      %v3882 = vld [vmem:[%s3456 + $0x9c] sm:$0xf]
      %v3883 = vld [vmem:[%s3456 + $0xa0] sm:$0xf]
      %v3884 = vld [vmem:[%s3456 + $0xa4] sm:$0x1]
      %v3885 = vld [vmem:[%s3456 + $0xa8] sm:$0xf]
      %v3886 = vld [vmem:[%s3456 + $0xac] sm:$0xf]
      %v3887 = vld [vmem:[%s3456 + $0xb0] sm:$0x1]
      %v3888 = vld [vmem:[%s3456 + $0xb4] sm:$0xf]
      %v3889 = vld [vmem:[%s3456 + $0xb8] sm:$0xf]
      %v3890 = vld [vmem:[%s3456 + $0xbc] sm:$0x1]
      %v3892 = vshrl.u32 %v3843, 16
      %v3894 = vrot.slane %v3892, 4
      %v3895 = vshll.u32 %v3843, 16
      %v3897 = vrot.slane %v3895, 5
      %v3898 = vor.u32 %v3894, %v3897
      %v3899 = vrot.slane %v3898, 4
      %v3901 = vshll.u32 %v3844, 16
      %v3903 = vrot.slane %v3901, 5
      %v3904 = vsel %vm352, %v3899, %v3903
      %v3905 = vshrl.u32 %v3844, 16
      %v3907 = vrot.slane %v3905, 4
      %v3908 = vor.u32 %v3907, %v3903
      %v3909 = vrot.slane %v3908, 4
      %v3911 = vshll.u32 %v3845, 16
      %v3913 = vrot.slane %v3911, 5
      %v3914 = vsel %vm352, %v3909, %v3913
      %v3916 = vshrl.u32 %v3846, 16
      %v3918 = vrot.slane %v3916, 4
      %v3919 = vshll.u32 %v3846, 16
      %v3921 = vrot.slane %v3919, 5
      %v3922 = vor.u32 %v3918, %v3921
      %v3923 = vrot.slane %v3922, 4
      %v3925 = vshll.u32 %v3847, 16
      %v3927 = vrot.slane %v3925, 5
      %v3928 = vsel %vm352, %v3923, %v3927
      %v3929 = vshrl.u32 %v3847, 16
      %v3931 = vrot.slane %v3929, 4
      %v3932 = vor.u32 %v3931, %v3927
      %v3933 = vrot.slane %v3932, 4
      %v3935 = vshll.u32 %v3848, 16
      %v3937 = vrot.slane %v3935, 5
      %v3938 = vsel %vm352, %v3933, %v3937
      %v3940 = vshrl.u32 %v3849, 16
      %v3942 = vrot.slane %v3940, 4
      %v3943 = vshll.u32 %v3849, 16
      %v3945 = vrot.slane %v3943, 5
      %v3946 = vor.u32 %v3942, %v3945
      %v3947 = vrot.slane %v3946, 4
      %v3949 = vshll.u32 %v3850, 16
      %v3951 = vrot.slane %v3949, 5
      %v3952 = vsel %vm352, %v3947, %v3951
      %v3953 = vshrl.u32 %v3850, 16
      %v3955 = vrot.slane %v3953, 4
      %v3956 = vor.u32 %v3955, %v3951
      %v3957 = vrot.slane %v3956, 4
      %v3959 = vshll.u32 %v3851, 16
      %v3961 = vrot.slane %v3959, 5
      %v3962 = vsel %vm352, %v3957, %v3961
      %v3964 = vshrl.u32 %v3852, 16
      %v3966 = vrot.slane %v3964, 4
      %v3967 = vshll.u32 %v3852, 16
      %v3969 = vrot.slane %v3967, 5
      %v3970 = vor.u32 %v3966, %v3969
      %v3971 = vrot.slane %v3970, 4
      %v3973 = vshll.u32 %v3853, 16
      %v3975 = vrot.slane %v3973, 5
      %v3976 = vsel %vm352, %v3971, %v3975
      %v3977 = vshrl.u32 %v3853, 16
      %v3979 = vrot.slane %v3977, 4
      %v3980 = vor.u32 %v3979, %v3975
      %v3981 = vrot.slane %v3980, 4
      %v3983 = vshll.u32 %v3854, 16
      %v3985 = vrot.slane %v3983, 5
      %v3986 = vsel %vm352, %v3981, %v3985
      %v3988 = vshrl.u32 %v3855, 16
      %v3990 = vrot.slane %v3988, 4
      %v3991 = vshll.u32 %v3855, 16
      %v3993 = vrot.slane %v3991, 5
      %v3994 = vor.u32 %v3990, %v3993
      %v3995 = vrot.slane %v3994, 4
      %v3997 = vshll.u32 %v3856, 16
      %v3999 = vrot.slane %v3997, 5
      %v4000 = vsel %vm352, %v3995, %v3999
      %v4001 = vshrl.u32 %v3856, 16
      %v4003 = vrot.slane %v4001, 4
      %v4004 = vor.u32 %v4003, %v3999
      %v4005 = vrot.slane %v4004, 4
      %v4007 = vshll.u32 %v3857, 16
      %v4009 = vrot.slane %v4007, 5
      %v4010 = vsel %vm352, %v4005, %v4009
      %v4012 = vshrl.u32 %v3858, 16
      %v4014 = vrot.slane %v4012, 4
      %v4015 = vshll.u32 %v3858, 16
      %v4017 = vrot.slane %v4015, 5
      %v4018 = vor.u32 %v4014, %v4017
      %v4019 = vrot.slane %v4018, 4
      %v4021 = vshll.u32 %v3859, 16
      %v4023 = vrot.slane %v4021, 5
      %v4024 = vsel %vm352, %v4019, %v4023
      %v4025 = vshrl.u32 %v3859, 16
      %v4027 = vrot.slane %v4025, 4
      %v4028 = vor.u32 %v4027, %v4023
      %v4029 = vrot.slane %v4028, 4
      %v4031 = vshll.u32 %v3860, 16
      %v4033 = vrot.slane %v4031, 5
      %v4034 = vsel %vm352, %v4029, %v4033
      %v4036 = vshrl.u32 %v3861, 16
      %v4038 = vrot.slane %v4036, 4
      %v4039 = vshll.u32 %v3861, 16
      %v4041 = vrot.slane %v4039, 5
      %v4042 = vor.u32 %v4038, %v4041
      %v4043 = vrot.slane %v4042, 4
      %v4045 = vshll.u32 %v3862, 16
      %v4047 = vrot.slane %v4045, 5
      %v4048 = vsel %vm352, %v4043, %v4047
      %v4049 = vshrl.u32 %v3862, 16
      %v4051 = vrot.slane %v4049, 4
      %v4052 = vor.u32 %v4051, %v4047
      %v4053 = vrot.slane %v4052, 4
      %v4055 = vshll.u32 %v3863, 16
      %v4057 = vrot.slane %v4055, 5
      %v4058 = vsel %vm352, %v4053, %v4057
      %v4060 = vshrl.u32 %v3864, 16
      %v4062 = vrot.slane %v4060, 4
      %v4063 = vshll.u32 %v3864, 16
      %v4065 = vrot.slane %v4063, 5
      %v4066 = vor.u32 %v4062, %v4065
      %v4067 = vrot.slane %v4066, 4
      %v4069 = vshll.u32 %v3865, 16
      %v4071 = vrot.slane %v4069, 5
      %v4072 = vsel %vm352, %v4067, %v4071
      %v4073 = vshrl.u32 %v3865, 16
      %v4075 = vrot.slane %v4073, 4
      %v4076 = vor.u32 %v4075, %v4071
      %v4077 = vrot.slane %v4076, 4
      %v4079 = vshll.u32 %v3866, 16
      %v4081 = vrot.slane %v4079, 5
      %v4082 = vsel %vm352, %v4077, %v4081
      %v4084 = vshrl.u32 %v3867, 16
      %v4086 = vrot.slane %v4084, 4
      %v4087 = vshll.u32 %v3867, 16
      %v4089 = vrot.slane %v4087, 5
      %v4090 = vor.u32 %v4086, %v4089
      %v4091 = vrot.slane %v4090, 4
      %v4093 = vshll.u32 %v3868, 16
      %v4095 = vrot.slane %v4093, 5
      %v4096 = vsel %vm352, %v4091, %v4095
      %v4097 = vshrl.u32 %v3868, 16
      %v4099 = vrot.slane %v4097, 4
      %v4100 = vor.u32 %v4099, %v4095
      %v4101 = vrot.slane %v4100, 4
      %v4103 = vshll.u32 %v3869, 16
      %v4105 = vrot.slane %v4103, 5
      %v4106 = vsel %vm352, %v4101, %v4105
      %v4108 = vshrl.u32 %v3870, 16
      %v4110 = vrot.slane %v4108, 4
      %v4111 = vshll.u32 %v3870, 16
      %v4113 = vrot.slane %v4111, 5
      %v4114 = vor.u32 %v4110, %v4113
      %v4115 = vrot.slane %v4114, 4
      %v4117 = vshll.u32 %v3871, 16
      %v4119 = vrot.slane %v4117, 5
      %v4120 = vsel %vm352, %v4115, %v4119
      %v4121 = vshrl.u32 %v3871, 16
      %v4123 = vrot.slane %v4121, 4
      %v4124 = vor.u32 %v4123, %v4119
      %v4125 = vrot.slane %v4124, 4
      %v4127 = vshll.u32 %v3872, 16
      %v4129 = vrot.slane %v4127, 5
      %v4130 = vsel %vm352, %v4125, %v4129
      %v4132 = vshrl.u32 %v3873, 16
      %v4134 = vrot.slane %v4132, 4
      %v4135 = vshll.u32 %v3873, 16
      %v4137 = vrot.slane %v4135, 5
      %v4138 = vor.u32 %v4134, %v4137
      %v4139 = vrot.slane %v4138, 4
      %v4141 = vshll.u32 %v3874, 16
      %v4143 = vrot.slane %v4141, 5
      %v4144 = vsel %vm352, %v4139, %v4143
      %v4145 = vshrl.u32 %v3874, 16
      %v4147 = vrot.slane %v4145, 4
      %v4148 = vor.u32 %v4147, %v4143
      %v4149 = vrot.slane %v4148, 4
      %v4151 = vshll.u32 %v3875, 16
      %v4153 = vrot.slane %v4151, 5
      %v4154 = vsel %vm352, %v4149, %v4153
      %v4156 = vshrl.u32 %v3876, 16
      %v4158 = vrot.slane %v4156, 4
      %v4159 = vshll.u32 %v3876, 16
      %v4161 = vrot.slane %v4159, 5
      %v4162 = vor.u32 %v4158, %v4161
      %v4163 = vrot.slane %v4162, 4
      %v4165 = vshll.u32 %v3877, 16
      %v4167 = vrot.slane %v4165, 5
      %v4168 = vsel %vm352, %v4163, %v4167
      %v4169 = vshrl.u32 %v3877, 16
      %v4171 = vrot.slane %v4169, 4
      %v4172 = vor.u32 %v4171, %v4167
      %v4173 = vrot.slane %v4172, 4
      %v4175 = vshll.u32 %v3878, 16
      %v4177 = vrot.slane %v4175, 5
      %v4178 = vsel %vm352, %v4173, %v4177
      %v4180 = vshrl.u32 %v3879, 16
      %v4182 = vrot.slane %v4180, 4
      %v4183 = vshll.u32 %v3879, 16
      %v4185 = vrot.slane %v4183, 5
      %v4186 = vor.u32 %v4182, %v4185
      %v4187 = vrot.slane %v4186, 4
      %v4189 = vshll.u32 %v3880, 16
      %v4191 = vrot.slane %v4189, 5
      %v4192 = vsel %vm352, %v4187, %v4191
      %v4193 = vshrl.u32 %v3880, 16
      %v4195 = vrot.slane %v4193, 4
      %v4196 = vor.u32 %v4195, %v4191
      %v4197 = vrot.slane %v4196, 4
      %v4199 = vshll.u32 %v3881, 16
      %v4201 = vrot.slane %v4199, 5
      %v4202 = vsel %vm352, %v4197, %v4201
      %v4204 = vshrl.u32 %v3882, 16
      %v4206 = vrot.slane %v4204, 4
      %v4207 = vshll.u32 %v3882, 16
      %v4209 = vrot.slane %v4207, 5
      %v4210 = vor.u32 %v4206, %v4209
      %v4211 = vrot.slane %v4210, 4
      %v4213 = vshll.u32 %v3883, 16
      %v4215 = vrot.slane %v4213, 5
      %v4216 = vsel %vm352, %v4211, %v4215
      %v4217 = vshrl.u32 %v3883, 16
      %v4219 = vrot.slane %v4217, 4
      %v4220 = vor.u32 %v4219, %v4215
      %v4221 = vrot.slane %v4220, 4
      %v4223 = vshll.u32 %v3884, 16
      %v4225 = vrot.slane %v4223, 5
      %v4226 = vsel %vm352, %v4221, %v4225
      %v4228 = vshrl.u32 %v3885, 16
      %v4230 = vrot.slane %v4228, 4
      %v4231 = vshll.u32 %v3885, 16
      %v4233 = vrot.slane %v4231, 5
      %v4234 = vor.u32 %v4230, %v4233
      %v4235 = vrot.slane %v4234, 4
      %v4237 = vshll.u32 %v3886, 16
      %v4239 = vrot.slane %v4237, 5
      %v4240 = vsel %vm352, %v4235, %v4239
      %v4241 = vshrl.u32 %v3886, 16
      %v4243 = vrot.slane %v4241, 4
      %v4244 = vor.u32 %v4243, %v4239
      %v4245 = vrot.slane %v4244, 4
      %v4247 = vshll.u32 %v3887, 16
      %v4249 = vrot.slane %v4247, 5
      %v4250 = vsel %vm352, %v4245, %v4249
      %v4252 = vshrl.u32 %v3888, 16
      %v4254 = vrot.slane %v4252, 4
      %v4255 = vshll.u32 %v3888, 16
      %v4257 = vrot.slane %v4255, 5
      %v4258 = vor.u32 %v4254, %v4257
      %v4259 = vrot.slane %v4258, 4
      %v4261 = vshll.u32 %v3889, 16
      %v4263 = vrot.slane %v4261, 5
      %v4264 = vsel %vm352, %v4259, %v4263
      %v4265 = vshrl.u32 %v3889, 16
      %v4267 = vrot.slane %v4265, 4
      %v4268 = vor.u32 %v4267, %v4263
      %v4269 = vrot.slane %v4268, 4
      %v4271 = vshll.u32 %v3890, 16
      %v4273 = vrot.slane %v4271, 5
      %v4274 = vsel %vm352, %v4269, %v4273
      %s4275 = scalar_lea.vmem %s1, 448
      %v4276 = vld [vmem:[%s4275] sm:$0xf]
      %v4277 = vld [vmem:[%s4275 + $0x4] sm:$0xf]
      %v4278 = vld [vmem:[%s4275 + $0x8] sm:$0xf]
      %v4279 = vld [vmem:[%s4275 + $0xc] sm:$0xf]
      %v4280 = vld [vmem:[%s4275 + $0x10] sm:$0xf]
      %v4281 = vld [vmem:[%s4275 + $0x14] sm:$0xf]
      %v4282 = vld [vmem:[%s4275 + $0x18] sm:$0xf]
      %v4283 = vld [vmem:[%s4275 + $0x1c] sm:$0xf]
      %v4284 = vld [vmem:[%s4275 + $0x20] sm:$0xf]
      %v4285 = vld [vmem:[%s4275 + $0x24] sm:$0xf]
      %v4286 = vld [vmem:[%s4275 + $0x28] sm:$0xf]
      %v4287 = vld [vmem:[%s4275 + $0x2c] sm:$0xf]
      %v4288 = vld [vmem:[%s4275 + $0x30] sm:$0xf]
      %v4289 = vld [vmem:[%s4275 + $0x34] sm:$0xf]
      %v4290 = vld [vmem:[%s4275 + $0x38] sm:$0xf]
      %v4291 = vld [vmem:[%s4275 + $0x3c] sm:$0xf]
      %v4292 = vunpack.c.l.b16 %v3904
      %v4293 = vunpack.c.l.b16 %v3914
      %v4294 = vunpack.c.l.b16 %v3928
      %v4295 = vunpack.c.l.b16 %v3938
      %v4296 = vunpack.c.l.b16 %v3952
      %v4297 = vunpack.c.l.b16 %v3962
      %v4298 = vunpack.c.l.b16 %v3976
      %v4299 = vunpack.c.l.b16 %v3986
      %v4300 = vunpack.c.l.b16 %v4000
      %v4301 = vunpack.c.l.b16 %v4010
      %v4302 = vunpack.c.l.b16 %v4024
      %v4303 = vunpack.c.l.b16 %v4034
      %v4304 = vunpack.c.l.b16 %v4048
      %v4305 = vunpack.c.l.b16 %v4058
      %v4306 = vunpack.c.l.b16 %v4072
      %v4307 = vunpack.c.l.b16 %v4082
      %v4308 = vunpack.c.l.b16 %v4096
      %v4309 = vunpack.c.l.b16 %v4106
      %v4310 = vunpack.c.l.b16 %v4120
      %v4311 = vunpack.c.l.b16 %v4130
      %v4312 = vunpack.c.l.b16 %v4144
      %v4313 = vunpack.c.l.b16 %v4154
      %v4314 = vunpack.c.l.b16 %v4168
      %v4315 = vunpack.c.l.b16 %v4178
      %v4316 = vunpack.c.l.b16 %v4192
      %v4317 = vunpack.c.l.b16 %v4202
      %v4318 = vunpack.c.l.b16 %v4216
      %v4319 = vunpack.c.l.b16 %v4226
      %v4320 = vunpack.c.l.b16 %v4240
      %v4321 = vunpack.c.l.b16 %v4250
      %v4322 = vunpack.c.l.b16 %v4264
      %v4323 = vunpack.c.l.b16 %v4274
      %v4324 = vpack.c.b16 %v4293, %v4292
      %v4325 = vpack.c.b16 %v4295, %v4294
      %v4326 = vpack.c.b16 %v4297, %v4296
      %v4327 = vpack.c.b16 %v4299, %v4298
      %v4328 = vpack.c.b16 %v4301, %v4300
      %v4329 = vpack.c.b16 %v4303, %v4302
      %v4330 = vpack.c.b16 %v4305, %v4304
      %v4331 = vpack.c.b16 %v4307, %v4306
      %v4332 = vpack.c.b16 %v4309, %v4308
      %v4333 = vpack.c.b16 %v4311, %v4310
      %v4334 = vpack.c.b16 %v4313, %v4312
      %v4335 = vpack.c.b16 %v4315, %v4314
      %v4336 = vpack.c.b16 %v4317, %v4316
      %v4337 = vpack.c.b16 %v4319, %v4318
      %v4338 = vpack.c.b16 %v4321, %v4320
      %v4339 = vpack.c.b16 %v4323, %v4322
      %v4372 = vunpack.c.l.b16 %v4276
      %v4373 = vunpack.c.l.b16 %v4277
      %v4374 = vunpack.c.l.b16 %v4278
      %v4375 = vunpack.c.l.b16 %v4279
      %v4376 = vunpack.c.l.b16 %v4280
      %v4377 = vunpack.c.l.b16 %v4281
      %v4378 = vunpack.c.l.b16 %v4282
      %v4379 = vunpack.c.l.b16 %v4283
      %v4380 = vunpack.c.l.b16 %v4284
      %v4381 = vunpack.c.l.b16 %v4285
      %v4382 = vunpack.c.l.b16 %v4286
      %v4383 = vunpack.c.l.b16 %v4287
      %v4384 = vunpack.c.l.b16 %v4288
      %v4385 = vunpack.c.l.b16 %v4289
      %v4386 = vunpack.c.l.b16 %v4290
      %v4387 = vunpack.c.l.b16 %v4291
      %v4388 = vpack.c.b16 %v4373, %v4372
      %v4389 = vpack.c.b16 %v4375, %v4374
      %v4390 = vpack.c.b16 %v4377, %v4376
      %v4391 = vpack.c.b16 %v4379, %v4378
      %v4392 = vpack.c.b16 %v4381, %v4380
      %v4393 = vpack.c.b16 %v4383, %v4382
      %v4394 = vpack.c.b16 %v4385, %v4384
      %v4395 = vpack.c.b16 %v4387, %v4386
      %4404 = vmatprep.subr.bf16.mxu0 0
      %4405 = vmatpush1.bf16.msra.mxu0 %v4395
      %4406 = vmatprep.subr.bf16.mxu0 0
      %4407 = vmatpush1.bf16.msra.mxu0 %v4394
      %4408 = vmatprep.subr.bf16.mxu0 0
      %4409 = vmatpush1.bf16.msra.mxu0 %v4393
      %4410 = vmatprep.subr.bf16.mxu0 0
      %4411 = vmatpush1.bf16.msra.mxu0 %v4392
      %4412 = vmatprep.subr.bf16.mxu0 0
      %4413 = vmatpush1.bf16.msra.mxu0 %v4391
      %4414 = vmatprep.subr.bf16.mxu0 0
      %4415 = vmatpush1.bf16.msra.mxu0 %v4390
      %4416 = vmatprep.subr.bf16.mxu0 0
      %4417 = vmatpush1.bf16.msra.mxu0 %v4389
      %4418 = vmatprep.subr.bf16.mxu0 0
      %4419 = vmatpush1.bf16.msra.mxu0 %v4388
      %4420 = vmatprep.subr.bf16.mxu0 0
      %4421 = vmatpush2.bf16.msra.mxu0 0
      %4422 = vmatprep.subr.bf16.mxu0 0
      %4423 = vmatpush2.bf16.msra.mxu0 0
      %4424 = vmatprep.subr.bf16.mxu0 0
      %4425 = vmatpush2.bf16.msra.mxu0 0
      %4426 = vmatprep.subr.bf16.mxu0 0
      %4427 = vmatpush2.bf16.msra.mxu0 0
      %4428 = vmatprep.subr.bf16.mxu0 0
      %4429 = vmatpush2.bf16.msra.mxu0 0
      %4430 = vmatprep.subr.bf16.mxu0 0
      %4431 = vmatpush2.bf16.msra.mxu0 0
      %4432 = vmatprep.subr.bf16.mxu0 0
      %4433 = vmatpush2.bf16.msra.mxu0 0
      %4434 = vmatprep.subr.bf16.mxu0 0
      %4435 = vmatpush2.bf16.msra.mxu0 0
      %4436 = vmatprep.mubr.bf16.mxu0 0
      %4437 = vmatmul.mubr.bf16.gmra.mxu0 %v4324
      %v4438 = vpop.f32.mrf.mxu0
      %v4439 = vadd.f32 0.0, %v4438
      %v4440 = vpop.f32.mrf.mxu0
      %v4441 = vpop.f32.mrf.mxu0
      %v4442 = vadd.f32 0.0, %v4441
      %v4443 = vpop.f32.mrf.mxu0
      %4444 = vmatprep.mubr.bf16.mxu0 0
      %4445 = vmatmul.mubr.bf16.gmra.mxu0 %v4325
      %v4446 = vpop.f32.mrf.mxu0
      %v4447 = vadd.f32 0.0, %v4446
      %v4448 = vpop.f32.mrf.mxu0
      %v4449 = vpop.f32.mrf.mxu0
      %v4450 = vadd.f32 0.0, %v4449
      %v4451 = vpop.f32.mrf.mxu0
      %4452 = vmatprep.mubr.bf16.mxu0 0
      %4453 = vmatmul.mubr.bf16.gmra.mxu0 %v4326
      %v4454 = vpop.f32.mrf.mxu0
      %v4455 = vadd.f32 0.0, %v4454
      %v4456 = vpop.f32.mrf.mxu0
      %v4457 = vpop.f32.mrf.mxu0
      %v4458 = vadd.f32 0.0, %v4457
      %v4459 = vpop.f32.mrf.mxu0
      %4460 = vmatprep.mubr.bf16.mxu0 0
      %4461 = vmatmul.mubr.bf16.gmra.mxu0 %v4327
      %v4462 = vpop.f32.mrf.mxu0
      %v4463 = vadd.f32 0.0, %v4462
      %v4464 = vpop.f32.mrf.mxu0
      %v4465 = vpop.f32.mrf.mxu0
      %v4466 = vadd.f32 0.0, %v4465
      %v4467 = vpop.f32.mrf.mxu0
      %4468 = vmatprep.mubr.bf16.mxu0 0
      %4469 = vmatmul.mubr.bf16.gmra.mxu0 %v4328
      %v4470 = vpop.f32.mrf.mxu0
      %v4471 = vadd.f32 0.0, %v4470
      %v4472 = vpop.f32.mrf.mxu0
      %v4473 = vpop.f32.mrf.mxu0
      %v4474 = vadd.f32 0.0, %v4473
      %v4475 = vpop.f32.mrf.mxu0
      %4476 = vmatprep.mubr.bf16.mxu0 0
      %4477 = vmatmul.mubr.bf16.gmra.mxu0 %v4329
      %v4478 = vpop.f32.mrf.mxu0
      %v4479 = vadd.f32 0.0, %v4478
      %v4480 = vpop.f32.mrf.mxu0
      %v4481 = vpop.f32.mrf.mxu0
      %v4482 = vadd.f32 0.0, %v4481
      %v4483 = vpop.f32.mrf.mxu0
      %4484 = vmatprep.mubr.bf16.mxu0 0
      %4485 = vmatmul.mubr.bf16.gmra.mxu0 %v4330
      %v4486 = vpop.f32.mrf.mxu0
      %v4487 = vadd.f32 0.0, %v4486
      %v4488 = vpop.f32.mrf.mxu0
      %v4489 = vpop.f32.mrf.mxu0
      %v4490 = vadd.f32 0.0, %v4489
      %v4491 = vpop.f32.mrf.mxu0
      %4492 = vmatprep.mubr.bf16.mxu0 0
      %4493 = vmatmul.mubr.bf16.gmra.mxu0 %v4331
      %v4494 = vpop.f32.mrf.mxu0
      %v4495 = vadd.f32 0.0, %v4494
      %v4496 = vpop.f32.mrf.mxu0
      %v4497 = vpop.f32.mrf.mxu0
      %v4498 = vadd.f32 0.0, %v4497
      %v4499 = vpop.f32.mrf.mxu0
      %4500 = vmatprep.mubr.bf16.mxu0 0
      %4501 = vmatmul.mubr.bf16.gmra.mxu0 %v4332
      %v4502 = vpop.f32.mrf.mxu0
      %v4503 = vadd.f32 0.0, %v4502
      %v4504 = vpop.f32.mrf.mxu0
      %v4505 = vpop.f32.mrf.mxu0
      %v4506 = vadd.f32 0.0, %v4505
      %v4507 = vpop.f32.mrf.mxu0
      %4508 = vmatprep.mubr.bf16.mxu0 0
      %4509 = vmatmul.mubr.bf16.gmra.mxu0 %v4333
      %v4510 = vpop.f32.mrf.mxu0
      %v4511 = vadd.f32 0.0, %v4510
      %v4512 = vpop.f32.mrf.mxu0
      %v4513 = vpop.f32.mrf.mxu0
      %v4514 = vadd.f32 0.0, %v4513
      %v4515 = vpop.f32.mrf.mxu0
      %4516 = vmatprep.mubr.bf16.mxu0 0
      %4517 = vmatmul.mubr.bf16.gmra.mxu0 %v4334
      %v4518 = vpop.f32.mrf.mxu0
      %v4519 = vadd.f32 0.0, %v4518
      %v4520 = vpop.f32.mrf.mxu0
      %v4521 = vpop.f32.mrf.mxu0
      %v4522 = vadd.f32 0.0, %v4521
      %v4523 = vpop.f32.mrf.mxu0
      %4524 = vmatprep.mubr.bf16.mxu0 0
      %4525 = vmatmul.mubr.bf16.gmra.mxu0 %v4335
      %v4526 = vpop.f32.mrf.mxu0
      %v4527 = vadd.f32 0.0, %v4526
      %v4528 = vpop.f32.mrf.mxu0
      %v4529 = vpop.f32.mrf.mxu0
      %v4530 = vadd.f32 0.0, %v4529
      %v4531 = vpop.f32.mrf.mxu0
      %4532 = vmatprep.mubr.bf16.mxu0 0
      %4533 = vmatmul.mubr.bf16.gmra.mxu0 %v4336
      %v4534 = vpop.f32.mrf.mxu0
      %v4535 = vadd.f32 0.0, %v4534
      %v4536 = vpop.f32.mrf.mxu0
      %v4537 = vpop.f32.mrf.mxu0
      %v4538 = vadd.f32 0.0, %v4537
      %v4539 = vpop.f32.mrf.mxu0
      %4540 = vmatprep.mubr.bf16.mxu0 0
      %4541 = vmatmul.mubr.bf16.gmra.mxu0 %v4337
      %v4542 = vpop.f32.mrf.mxu0
      %v4543 = vadd.f32 0.0, %v4542
      %v4544 = vpop.f32.mrf.mxu0
      %v4545 = vpop.f32.mrf.mxu0
      %v4546 = vadd.f32 0.0, %v4545
      %v4547 = vpop.f32.mrf.mxu0
      %4548 = vmatprep.mubr.bf16.mxu0 0
      %4549 = vmatmul.mubr.bf16.gmra.mxu0 %v4338
      %v4550 = vpop.f32.mrf.mxu0
      %v4551 = vadd.f32 0.0, %v4550
      %v4552 = vpop.f32.mrf.mxu0
      %v4553 = vpop.f32.mrf.mxu0
      %v4554 = vadd.f32 0.0, %v4553
      %v4555 = vpop.f32.mrf.mxu0
      %4556 = vmatprep.mubr.bf16.mxu0 0
      %4557 = vmatmul.mubr.bf16.gmra.mxu0 %v4339
      %v4558 = vpop.f32.mrf.mxu0
      %v4559 = vadd.f32 0.0, %v4558
      %v4560 = vpop.f32.mrf.mxu0
      %v4561 = vpop.f32.mrf.mxu0
      %v4562 = vadd.f32 0.0, %v4561
      %v4563 = vpop.f32.mrf.mxu0
      %4564 = vdwg.mxu0
      %v4565 = vadd.f32 %v3811, %v4439
      %v4566 = vadd.f32 %v3812, %v4442
      %v4567 = vadd.f32 %v3813, %v4447
      %v4568 = vadd.f32 %v3814, %v4450
      %v4569 = vadd.f32 %v3815, %v4455
      %v4570 = vadd.f32 %v3816, %v4458
      %v4571 = vadd.f32 %v3817, %v4463
      %v4572 = vadd.f32 %v3818, %v4466
      %v4573 = vadd.f32 %v3819, %v4471
      %v4574 = vadd.f32 %v3820, %v4474
      %v4575 = vadd.f32 %v3821, %v4479
      %v4576 = vadd.f32 %v3822, %v4482
      %v4577 = vadd.f32 %v3823, %v4487
      %v4578 = vadd.f32 %v3824, %v4490
      %v4579 = vadd.f32 %v3825, %v4495
      %v4580 = vadd.f32 %v3826, %v4498
      %v4581 = vadd.f32 %v3827, %v4503
      %v4582 = vadd.f32 %v3828, %v4506
      %v4583 = vadd.f32 %v3829, %v4511
      %v4584 = vadd.f32 %v3830, %v4514
      %v4585 = vadd.f32 %v3831, %v4519
      %v4586 = vadd.f32 %v3832, %v4522
      %v4587 = vadd.f32 %v3833, %v4527
      %v4588 = vadd.f32 %v3834, %v4530
      %v4589 = vadd.f32 %v3835, %v4535
      %v4590 = vadd.f32 %v3836, %v4538
      %v4591 = vadd.f32 %v3837, %v4543
      %v4592 = vadd.f32 %v3838, %v4546
      %v4593 = vadd.f32 %v3839, %v4551
      %v4594 = vadd.f32 %v3840, %v4554
      %v4595 = vadd.f32 %v3841, %v4559
      %v4596 = vadd.f32 %v3842, %v4562
      %v4597 = vld [vmem:[%s3456] sm:$0xe]
      %v4598 = vld [vmem:[%s3456 + $0xc] sm:$0xe]
      %v4599 = vld [vmem:[%s3456 + $0x18] sm:$0xe]
      %v4600 = vld [vmem:[%s3456 + $0x24] sm:$0xe]
      %v4601 = vld [vmem:[%s3456 + $0x30] sm:$0xe]
      %v4602 = vld [vmem:[%s3456 + $0x3c] sm:$0xe]
      %v4603 = vld [vmem:[%s3456 + $0x48] sm:$0xe]
      %v4604 = vld [vmem:[%s3456 + $0x54] sm:$0xe]
      %v4605 = vld [vmem:[%s3456 + $0x60] sm:$0xe]
      %v4606 = vld [vmem:[%s3456 + $0x6c] sm:$0xe]
      %v4607 = vld [vmem:[%s3456 + $0x78] sm:$0xe]
      %v4608 = vld [vmem:[%s3456 + $0x84] sm:$0xe]
      %v4609 = vld [vmem:[%s3456 + $0x90] sm:$0xe]
      %v4610 = vld [vmem:[%s3456 + $0x9c] sm:$0xe]
      %v4611 = vld [vmem:[%s3456 + $0xa8] sm:$0xe]
      %v4612 = vld [vmem:[%s3456 + $0xb4] sm:$0xe]
      %v4661 = vrot.slane %v4597, 5
      %v4662 = vrot.slane %v4661, 4
      %v4663 = vrot.slane %v3844, 5
      %v4664 = vsel %vm1382, %v4662, %v4663
      %v4665 = vrot.slane %v4663, 4
      %v4666 = vrot.slane %v3845, 5
      %v4667 = vsel %vm1382, %v4665, %v4666
      %v4668 = vrot.slane %v4598, 5
      %v4669 = vrot.slane %v4668, 4
      %v4670 = vrot.slane %v3847, 5
      %v4671 = vsel %vm1382, %v4669, %v4670
      %v4672 = vrot.slane %v4670, 4
      %v4673 = vrot.slane %v3848, 5
      %v4674 = vsel %vm1382, %v4672, %v4673
      %v4675 = vrot.slane %v4599, 5
      %v4676 = vrot.slane %v4675, 4
      %v4677 = vrot.slane %v3850, 5
      %v4678 = vsel %vm1382, %v4676, %v4677
      %v4679 = vrot.slane %v4677, 4
      %v4680 = vrot.slane %v3851, 5
      %v4681 = vsel %vm1382, %v4679, %v4680
      %v4682 = vrot.slane %v4600, 5
      %v4683 = vrot.slane %v4682, 4
      %v4684 = vrot.slane %v3853, 5
      %v4685 = vsel %vm1382, %v4683, %v4684
      %v4686 = vrot.slane %v4684, 4
      %v4687 = vrot.slane %v3854, 5
      %v4688 = vsel %vm1382, %v4686, %v4687
      %v4689 = vrot.slane %v4601, 5
      %v4690 = vrot.slane %v4689, 4
      %v4691 = vrot.slane %v3856, 5
      %v4692 = vsel %vm1382, %v4690, %v4691
      %v4693 = vrot.slane %v4691, 4
      %v4694 = vrot.slane %v3857, 5
      %v4695 = vsel %vm1382, %v4693, %v4694
      %v4696 = vrot.slane %v4602, 5
      %v4697 = vrot.slane %v4696, 4
      %v4698 = vrot.slane %v3859, 5
      %v4699 = vsel %vm1382, %v4697, %v4698
      %v4700 = vrot.slane %v4698, 4
      %v4701 = vrot.slane %v3860, 5
      %v4702 = vsel %vm1382, %v4700, %v4701
      %v4703 = vrot.slane %v4603, 5
      %v4704 = vrot.slane %v4703, 4
      %v4705 = vrot.slane %v3862, 5
      %v4706 = vsel %vm1382, %v4704, %v4705
      %v4707 = vrot.slane %v4705, 4
      %v4708 = vrot.slane %v3863, 5
      %v4709 = vsel %vm1382, %v4707, %v4708
      %v4710 = vrot.slane %v4604, 5
      %v4711 = vrot.slane %v4710, 4
      %v4712 = vrot.slane %v3865, 5
      %v4713 = vsel %vm1382, %v4711, %v4712
      %v4714 = vrot.slane %v4712, 4
      %v4715 = vrot.slane %v3866, 5
      %v4716 = vsel %vm1382, %v4714, %v4715
      %v4717 = vrot.slane %v4605, 5
      %v4718 = vrot.slane %v4717, 4
      %v4719 = vrot.slane %v3868, 5
      %v4720 = vsel %vm1382, %v4718, %v4719
      %v4721 = vrot.slane %v4719, 4
      %v4722 = vrot.slane %v3869, 5
      %v4723 = vsel %vm1382, %v4721, %v4722
      %v4724 = vrot.slane %v4606, 5
      %v4725 = vrot.slane %v4724, 4
      %v4726 = vrot.slane %v3871, 5
      %v4727 = vsel %vm1382, %v4725, %v4726
      %v4728 = vrot.slane %v4726, 4
      %v4729 = vrot.slane %v3872, 5
      %v4730 = vsel %vm1382, %v4728, %v4729
      %v4731 = vrot.slane %v4607, 5
      %v4732 = vrot.slane %v4731, 4
      %v4733 = vrot.slane %v3874, 5
      %v4734 = vsel %vm1382, %v4732, %v4733
      %v4735 = vrot.slane %v4733, 4
      %v4736 = vrot.slane %v3875, 5
      %v4737 = vsel %vm1382, %v4735, %v4736
      %v4738 = vrot.slane %v4608, 5
      %v4739 = vrot.slane %v4738, 4
      %v4740 = vrot.slane %v3877, 5
      %v4741 = vsel %vm1382, %v4739, %v4740
      %v4742 = vrot.slane %v4740, 4
      %v4743 = vrot.slane %v3878, 5
      %v4744 = vsel %vm1382, %v4742, %v4743
      %v4745 = vrot.slane %v4609, 5
      %v4746 = vrot.slane %v4745, 4
      %v4747 = vrot.slane %v3880, 5
      %v4748 = vsel %vm1382, %v4746, %v4747
      %v4749 = vrot.slane %v4747, 4
      %v4750 = vrot.slane %v3881, 5
      %v4751 = vsel %vm1382, %v4749, %v4750
      %v4752 = vrot.slane %v4610, 5
      %v4753 = vrot.slane %v4752, 4
      %v4754 = vrot.slane %v3883, 5
      %v4755 = vsel %vm1382, %v4753, %v4754
      %v4756 = vrot.slane %v4754, 4
      %v4757 = vrot.slane %v3884, 5
      %v4758 = vsel %vm1382, %v4756, %v4757
      %v4759 = vrot.slane %v4611, 5
      %v4760 = vrot.slane %v4759, 4
      %v4761 = vrot.slane %v3886, 5
      %v4762 = vsel %vm1382, %v4760, %v4761
      %v4763 = vrot.slane %v4761, 4
      %v4764 = vrot.slane %v3887, 5
      %v4765 = vsel %vm1382, %v4763, %v4764
      %v4766 = vrot.slane %v4612, 5
      %v4767 = vrot.slane %v4766, 4
      %v4768 = vrot.slane %v3889, 5
      %v4769 = vsel %vm1382, %v4767, %v4768
      %v4770 = vrot.slane %v4768, 4
      %v4771 = vrot.slane %v3890, 5
      %v4772 = vsel %vm1382, %v4770, %v4771
      %s4773 = scalar_lea.vmem %s1, 512
      %v4774 = vld [vmem:[%s4773] sm:$0xf]
      %v4775 = vld [vmem:[%s4773 + $0x4] sm:$0xf]
      %v4776 = vld [vmem:[%s4773 + $0x8] sm:$0xf]
      %v4777 = vld [vmem:[%s4773 + $0xc] sm:$0xf]
      %v4778 = vld [vmem:[%s4773 + $0x10] sm:$0xf]
      %v4779 = vld [vmem:[%s4773 + $0x14] sm:$0xf]
      %v4780 = vld [vmem:[%s4773 + $0x18] sm:$0xf]
      %v4781 = vld [vmem:[%s4773 + $0x1c] sm:$0xf]
      %v4782 = vld [vmem:[%s4773 + $0x20] sm:$0xf]
      %v4783 = vld [vmem:[%s4773 + $0x24] sm:$0xf]
      %v4784 = vld [vmem:[%s4773 + $0x28] sm:$0xf]
      %v4785 = vld [vmem:[%s4773 + $0x2c] sm:$0xf]
      %v4786 = vld [vmem:[%s4773 + $0x30] sm:$0xf]
      %v4787 = vld [vmem:[%s4773 + $0x34] sm:$0xf]
      %v4788 = vld [vmem:[%s4773 + $0x38] sm:$0xf]
      %v4789 = vld [vmem:[%s4773 + $0x3c] sm:$0xf]
      %v4790 = vunpack.c.l.b16 %v4664
      %v4791 = vunpack.c.l.b16 %v4667
      %v4792 = vunpack.c.l.b16 %v4671
      %v4793 = vunpack.c.l.b16 %v4674
      %v4794 = vunpack.c.l.b16 %v4678
      %v4795 = vunpack.c.l.b16 %v4681
      %v4796 = vunpack.c.l.b16 %v4685
      %v4797 = vunpack.c.l.b16 %v4688
      %v4798 = vunpack.c.l.b16 %v4692
      %v4799 = vunpack.c.l.b16 %v4695
      %v4800 = vunpack.c.l.b16 %v4699
      %v4801 = vunpack.c.l.b16 %v4702
      %v4802 = vunpack.c.l.b16 %v4706
      %v4803 = vunpack.c.l.b16 %v4709
      %v4804 = vunpack.c.l.b16 %v4713
      %v4805 = vunpack.c.l.b16 %v4716
      %v4806 = vunpack.c.l.b16 %v4720
      %v4807 = vunpack.c.l.b16 %v4723
      %v4808 = vunpack.c.l.b16 %v4727
      %v4809 = vunpack.c.l.b16 %v4730
      %v4810 = vunpack.c.l.b16 %v4734
      %v4811 = vunpack.c.l.b16 %v4737
      %v4812 = vunpack.c.l.b16 %v4741
      %v4813 = vunpack.c.l.b16 %v4744
      %v4814 = vunpack.c.l.b16 %v4748
      %v4815 = vunpack.c.l.b16 %v4751
      %v4816 = vunpack.c.l.b16 %v4755
      %v4817 = vunpack.c.l.b16 %v4758
      %v4818 = vunpack.c.l.b16 %v4762
      %v4819 = vunpack.c.l.b16 %v4765
      %v4820 = vunpack.c.l.b16 %v4769
      %v4821 = vunpack.c.l.b16 %v4772
      %v4822 = vpack.c.b16 %v4791, %v4790
      %v4823 = vpack.c.b16 %v4793, %v4792
      %v4824 = vpack.c.b16 %v4795, %v4794
      %v4825 = vpack.c.b16 %v4797, %v4796
      %v4826 = vpack.c.b16 %v4799, %v4798
      %v4827 = vpack.c.b16 %v4801, %v4800
      %v4828 = vpack.c.b16 %v4803, %v4802
      %v4829 = vpack.c.b16 %v4805, %v4804
      %v4830 = vpack.c.b16 %v4807, %v4806
      %v4831 = vpack.c.b16 %v4809, %v4808
      %v4832 = vpack.c.b16 %v4811, %v4810
      %v4833 = vpack.c.b16 %v4813, %v4812
      %v4834 = vpack.c.b16 %v4815, %v4814
      %v4835 = vpack.c.b16 %v4817, %v4816
      %v4836 = vpack.c.b16 %v4819, %v4818
      %v4837 = vpack.c.b16 %v4821, %v4820
      %v4870 = vunpack.c.l.b16 %v4774
      %v4871 = vunpack.c.l.b16 %v4775
      %v4872 = vunpack.c.l.b16 %v4776
      %v4873 = vunpack.c.l.b16 %v4777
      %v4874 = vunpack.c.l.b16 %v4778
      %v4875 = vunpack.c.l.b16 %v4779
      %v4876 = vunpack.c.l.b16 %v4780
      %v4877 = vunpack.c.l.b16 %v4781
      %v4878 = vunpack.c.l.b16 %v4782
      %v4879 = vunpack.c.l.b16 %v4783
      %v4880 = vunpack.c.l.b16 %v4784
      %v4881 = vunpack.c.l.b16 %v4785
      %v4882 = vunpack.c.l.b16 %v4786
      %v4883 = vunpack.c.l.b16 %v4787
      %v4884 = vunpack.c.l.b16 %v4788
      %v4885 = vunpack.c.l.b16 %v4789
      %v4886 = vpack.c.b16 %v4871, %v4870
      %v4887 = vpack.c.b16 %v4873, %v4872
      %v4888 = vpack.c.b16 %v4875, %v4874
      %v4889 = vpack.c.b16 %v4877, %v4876
      %v4890 = vpack.c.b16 %v4879, %v4878
      %v4891 = vpack.c.b16 %v4881, %v4880
      %v4892 = vpack.c.b16 %v4883, %v4882
      %v4893 = vpack.c.b16 %v4885, %v4884
      %4902 = vmatprep.subr.bf16.mxu0 0
      %4903 = vmatpush1.bf16.msra.mxu0 %v4893
      %4904 = vmatprep.subr.bf16.mxu0 0
      %4905 = vmatpush1.bf16.msra.mxu0 %v4892
      %4906 = vmatprep.subr.bf16.mxu0 0
      %4907 = vmatpush1.bf16.msra.mxu0 %v4891
      %4908 = vmatprep.subr.bf16.mxu0 0
      %4909 = vmatpush1.bf16.msra.mxu0 %v4890
      %4910 = vmatprep.subr.bf16.mxu0 0
      %4911 = vmatpush1.bf16.msra.mxu0 %v4889
      %4912 = vmatprep.subr.bf16.mxu0 0
      %4913 = vmatpush1.bf16.msra.mxu0 %v4888
      %4914 = vmatprep.subr.bf16.mxu0 0
      %4915 = vmatpush1.bf16.msra.mxu0 %v4887
      %4916 = vmatprep.subr.bf16.mxu0 0
      %4917 = vmatpush1.bf16.msra.mxu0 %v4886
      %4918 = vmatprep.subr.bf16.mxu0 0
      %4919 = vmatpush2.bf16.msra.mxu0 0
      %4920 = vmatprep.subr.bf16.mxu0 0
      %4921 = vmatpush2.bf16.msra.mxu0 0
      %4922 = vmatprep.subr.bf16.mxu0 0
      %4923 = vmatpush2.bf16.msra.mxu0 0
      %4924 = vmatprep.subr.bf16.mxu0 0
      %4925 = vmatpush2.bf16.msra.mxu0 0
      %4926 = vmatprep.subr.bf16.mxu0 0
      %4927 = vmatpush2.bf16.msra.mxu0 0
      %4928 = vmatprep.subr.bf16.mxu0 0
      %4929 = vmatpush2.bf16.msra.mxu0 0
      %4930 = vmatprep.subr.bf16.mxu0 0
      %4931 = vmatpush2.bf16.msra.mxu0 0
      %4932 = vmatprep.subr.bf16.mxu0 0
      %4933 = vmatpush2.bf16.msra.mxu0 0
      %4934 = vmatprep.mubr.bf16.mxu0 0
      %4935 = vmatmul.mubr.bf16.gmra.mxu0 %v4822
      %v4936 = vpop.f32.mrf.mxu0
      %v4937 = vadd.f32 0.0, %v4936
      %v4938 = vpop.f32.mrf.mxu0
      %v4939 = vpop.f32.mrf.mxu0
      %v4940 = vadd.f32 0.0, %v4939
      %v4941 = vpop.f32.mrf.mxu0
      %4942 = vmatprep.mubr.bf16.mxu0 0
      %4943 = vmatmul.mubr.bf16.gmra.mxu0 %v4823
      %v4944 = vpop.f32.mrf.mxu0
      %v4945 = vadd.f32 0.0, %v4944
      %v4946 = vpop.f32.mrf.mxu0
      %v4947 = vpop.f32.mrf.mxu0
      %v4948 = vadd.f32 0.0, %v4947
      %v4949 = vpop.f32.mrf.mxu0
      %4950 = vmatprep.mubr.bf16.mxu0 0
      %4951 = vmatmul.mubr.bf16.gmra.mxu0 %v4824
      %v4952 = vpop.f32.mrf.mxu0
      %v4953 = vadd.f32 0.0, %v4952
      %v4954 = vpop.f32.mrf.mxu0
      %v4955 = vpop.f32.mrf.mxu0
      %v4956 = vadd.f32 0.0, %v4955
      %v4957 = vpop.f32.mrf.mxu0
      %4958 = vmatprep.mubr.bf16.mxu0 0
      %4959 = vmatmul.mubr.bf16.gmra.mxu0 %v4825
      %v4960 = vpop.f32.mrf.mxu0
      %v4961 = vadd.f32 0.0, %v4960
      %v4962 = vpop.f32.mrf.mxu0
      %v4963 = vpop.f32.mrf.mxu0
      %v4964 = vadd.f32 0.0, %v4963
      %v4965 = vpop.f32.mrf.mxu0
      %4966 = vmatprep.mubr.bf16.mxu0 0
      %4967 = vmatmul.mubr.bf16.gmra.mxu0 %v4826
      %v4968 = vpop.f32.mrf.mxu0
      %v4969 = vadd.f32 0.0, %v4968
      %v4970 = vpop.f32.mrf.mxu0
      %v4971 = vpop.f32.mrf.mxu0
      %v4972 = vadd.f32 0.0, %v4971
      %v4973 = vpop.f32.mrf.mxu0
      %4974 = vmatprep.mubr.bf16.mxu0 0
      %4975 = vmatmul.mubr.bf16.gmra.mxu0 %v4827
      %v4976 = vpop.f32.mrf.mxu0
      %v4977 = vadd.f32 0.0, %v4976
      %v4978 = vpop.f32.mrf.mxu0
      %v4979 = vpop.f32.mrf.mxu0
      %v4980 = vadd.f32 0.0, %v4979
      %v4981 = vpop.f32.mrf.mxu0
      %4982 = vmatprep.mubr.bf16.mxu0 0
      %4983 = vmatmul.mubr.bf16.gmra.mxu0 %v4828
      %v4984 = vpop.f32.mrf.mxu0
      %v4985 = vadd.f32 0.0, %v4984
      %v4986 = vpop.f32.mrf.mxu0
      %v4987 = vpop.f32.mrf.mxu0
      %v4988 = vadd.f32 0.0, %v4987
      %v4989 = vpop.f32.mrf.mxu0
      %4990 = vmatprep.mubr.bf16.mxu0 0
      %4991 = vmatmul.mubr.bf16.gmra.mxu0 %v4829
      %v4992 = vpop.f32.mrf.mxu0
      %v4993 = vadd.f32 0.0, %v4992
      %v4994 = vpop.f32.mrf.mxu0
      %v4995 = vpop.f32.mrf.mxu0
      %v4996 = vadd.f32 0.0, %v4995
      %v4997 = vpop.f32.mrf.mxu0
      %4998 = vmatprep.mubr.bf16.mxu0 0
      %4999 = vmatmul.mubr.bf16.gmra.mxu0 %v4830
      %v5000 = vpop.f32.mrf.mxu0
      %v5001 = vadd.f32 0.0, %v5000
      %v5002 = vpop.f32.mrf.mxu0
      %v5003 = vpop.f32.mrf.mxu0
      %v5004 = vadd.f32 0.0, %v5003
      %v5005 = vpop.f32.mrf.mxu0
      %5006 = vmatprep.mubr.bf16.mxu0 0
      %5007 = vmatmul.mubr.bf16.gmra.mxu0 %v4831
      %v5008 = vpop.f32.mrf.mxu0
      %v5009 = vadd.f32 0.0, %v5008
      %v5010 = vpop.f32.mrf.mxu0
      %v5011 = vpop.f32.mrf.mxu0
      %v5012 = vadd.f32 0.0, %v5011
      %v5013 = vpop.f32.mrf.mxu0
      %5014 = vmatprep.mubr.bf16.mxu0 0
      %5015 = vmatmul.mubr.bf16.gmra.mxu0 %v4832
      %v5016 = vpop.f32.mrf.mxu0
      %v5017 = vadd.f32 0.0, %v5016
      %v5018 = vpop.f32.mrf.mxu0
      %v5019 = vpop.f32.mrf.mxu0
      %v5020 = vadd.f32 0.0, %v5019
      %v5021 = vpop.f32.mrf.mxu0
      %5022 = vmatprep.mubr.bf16.mxu0 0
      %5023 = vmatmul.mubr.bf16.gmra.mxu0 %v4833
      %v5024 = vpop.f32.mrf.mxu0
      %v5025 = vadd.f32 0.0, %v5024
      %v5026 = vpop.f32.mrf.mxu0
      %v5027 = vpop.f32.mrf.mxu0
      %v5028 = vadd.f32 0.0, %v5027
      %v5029 = vpop.f32.mrf.mxu0
      %5030 = vmatprep.mubr.bf16.mxu0 0
      %5031 = vmatmul.mubr.bf16.gmra.mxu0 %v4834
      %v5032 = vpop.f32.mrf.mxu0
      %v5033 = vadd.f32 0.0, %v5032
      %v5034 = vpop.f32.mrf.mxu0
      %v5035 = vpop.f32.mrf.mxu0
      %v5036 = vadd.f32 0.0, %v5035
      %v5037 = vpop.f32.mrf.mxu0
      %5038 = vmatprep.mubr.bf16.mxu0 0
      %5039 = vmatmul.mubr.bf16.gmra.mxu0 %v4835
      %v5040 = vpop.f32.mrf.mxu0
      %v5041 = vadd.f32 0.0, %v5040
      %v5042 = vpop.f32.mrf.mxu0
      %v5043 = vpop.f32.mrf.mxu0
      %v5044 = vadd.f32 0.0, %v5043
      %v5045 = vpop.f32.mrf.mxu0
      %5046 = vmatprep.mubr.bf16.mxu0 0
      %5047 = vmatmul.mubr.bf16.gmra.mxu0 %v4836
      %v5048 = vpop.f32.mrf.mxu0
      %v5049 = vadd.f32 0.0, %v5048
      %v5050 = vpop.f32.mrf.mxu0
      %v5051 = vpop.f32.mrf.mxu0
      %v5052 = vadd.f32 0.0, %v5051
      %v5053 = vpop.f32.mrf.mxu0
      %5054 = vmatprep.mubr.bf16.mxu0 0
      %5055 = vmatmul.mubr.bf16.gmra.mxu0 %v4837
      %v5056 = vpop.f32.mrf.mxu0
      %v5057 = vadd.f32 0.0, %v5056
      %v5058 = vpop.f32.mrf.mxu0
      %v5059 = vpop.f32.mrf.mxu0
      %v5060 = vadd.f32 0.0, %v5059
      %v5061 = vpop.f32.mrf.mxu0
      %5062 = vdwg.mxu0
      %v5063 = vadd.f32 %v4565, %v4937
      %v5064 = vadd.f32 %v4566, %v4940
      %v5065 = vadd.f32 %v4567, %v4945
      %v5066 = vadd.f32 %v4568, %v4948
      %v5067 = vadd.f32 %v4569, %v4953
      %v5068 = vadd.f32 %v4570, %v4956
      %v5069 = vadd.f32 %v4571, %v4961
      %v5070 = vadd.f32 %v4572, %v4964
      %v5071 = vadd.f32 %v4573, %v4969
      %v5072 = vadd.f32 %v4574, %v4972
      %v5073 = vadd.f32 %v4575, %v4977
      %v5074 = vadd.f32 %v4576, %v4980
      %v5075 = vadd.f32 %v4577, %v4985
      %v5076 = vadd.f32 %v4578, %v4988
      %v5077 = vadd.f32 %v4579, %v4993
      %v5078 = vadd.f32 %v4580, %v4996
      %v5079 = vadd.f32 %v4581, %v5001
      %v5080 = vadd.f32 %v4582, %v5004
      %v5081 = vadd.f32 %v4583, %v5009
      %v5082 = vadd.f32 %v4584, %v5012
      %v5083 = vadd.f32 %v4585, %v5017
      %v5084 = vadd.f32 %v4586, %v5020
      %v5085 = vadd.f32 %v4587, %v5025
      %v5086 = vadd.f32 %v4588, %v5028
      %v5087 = vadd.f32 %v4589, %v5033
      %v5088 = vadd.f32 %v4590, %v5036
      %v5089 = vadd.f32 %v4591, %v5041
      %v5090 = vadd.f32 %v4592, %v5044
      %v5091 = vadd.f32 %v4593, %v5049
      %v5092 = vadd.f32 %v4594, %v5052
      %v5093 = vadd.f32 %v4595, %v5057
      %v5094 = vadd.f32 %v4596, %v5060
      %5095 = vst [vmem:[%s271] sm:$0xff] %v5063
      %5096 = vst [vmem:[%s271 + $0x8] sm:$0xff] %v5064
      %5097 = vst [vmem:[%s271 + $0x10] sm:$0xff] %v5065
      %5098 = vst [vmem:[%s271 + $0x18] sm:$0xff] %v5066
      %5099 = vst [vmem:[%s271 + $0x20] sm:$0xff] %v5067
      %5100 = vst [vmem:[%s271 + $0x28] sm:$0xff] %v5068
      %5101 = vst [vmem:[%s271 + $0x30] sm:$0xff] %v5069
      %5102 = vst [vmem:[%s271 + $0x38] sm:$0xff] %v5070
      %5103 = vst [vmem:[%s271 + $0x40] sm:$0xff] %v5071
      %5104 = vst [vmem:[%s271 + $0x48] sm:$0xff] %v5072
      %5105 = vst [vmem:[%s271 + $0x50] sm:$0xff] %v5073
      %5106 = vst [vmem:[%s271 + $0x58] sm:$0xff] %v5074
      %5107 = vst [vmem:[%s271 + $0x60] sm:$0xff] %v5075
      %5108 = vst [vmem:[%s271 + $0x68] sm:$0xff] %v5076
      %5109 = vst [vmem:[%s271 + $0x70] sm:$0xff] %v5077
      %5110 = vst [vmem:[%s271 + $0x78] sm:$0xff] %v5078
      %5111 = vst [vmem:[%s271 + $0x80] sm:$0xff] %v5079
      %5112 = vst [vmem:[%s271 + $0x88] sm:$0xff] %v5080
      %5113 = vst [vmem:[%s271 + $0x90] sm:$0xff] %v5081
      %5114 = vst [vmem:[%s271 + $0x98] sm:$0xff] %v5082
      %5115 = vst [vmem:[%s271 + $0xa0] sm:$0xff] %v5083
      %5116 = vst [vmem:[%s271 + $0xa8] sm:$0xff] %v5084
      %5117 = vst [vmem:[%s271 + $0xb0] sm:$0xff] %v5085
      %5118 = vst [vmem:[%s271 + $0xb8] sm:$0xff] %v5086
      %5119 = vst [vmem:[%s271 + $0xc0] sm:$0xff] %v5087
      %5120 = vst [vmem:[%s271 + $0xc8] sm:$0xff] %v5088
      %5121 = vst [vmem:[%s271 + $0xd0] sm:$0xff] %v5089
      %5122 = vst [vmem:[%s271 + $0xd8] sm:$0xff] %v5090
      %5123 = vst [vmem:[%s271 + $0xe0] sm:$0xff] %v5091
      %5124 = vst [vmem:[%s271 + $0xe8] sm:$0xff] %v5092
      %5125 = vst [vmem:[%s271 + $0xf0] sm:$0xff] %v5093
      %5126 = vst [vmem:[%s271 + $0xf8] sm:$0xff] %v5094
      %v5127 = vadd.f32 %v5063, %v5064
      %v5128 = vadd.f32 %v5127, %v5065
      %v5129 = vadd.f32 %v5128, %v5066
      %v5130 = vadd.f32 %v5129, %v5067
      %v5131 = vadd.f32 %v5130, %v5068
      %v5132 = vadd.f32 %v5131, %v5069
      %v5133 = vadd.f32 %v5132, %v5070
      %v5134 = vadd.f32 %v5133, %v5071
      %v5135 = vadd.f32 %v5134, %v5072
      %v5136 = vadd.f32 %v5135, %v5073
      %v5137 = vadd.f32 %v5136, %v5074
      %v5138 = vadd.f32 %v5137, %v5075
      %v5139 = vadd.f32 %v5138, %v5076
      %v5140 = vadd.f32 %v5139, %v5077
      %v5141 = vadd.f32 %v5140, %v5078
      %v5142 = vadd.f32 %v5141, %v5079
      %v5143 = vadd.f32 %v5142, %v5080
      %v5144 = vadd.f32 %v5143, %v5081
      %v5145 = vadd.f32 %v5144, %v5082
      %v5146 = vadd.f32 %v5145, %v5083
      %v5147 = vadd.f32 %v5146, %v5084
      %v5148 = vadd.f32 %v5147, %v5085
      %v5149 = vadd.f32 %v5148, %v5086
      %v5150 = vadd.f32 %v5149, %v5087
      %v5151 = vadd.f32 %v5150, %v5088
      %v5152 = vadd.f32 %v5151, %v5089
      %v5153 = vadd.f32 %v5152, %v5090
      %v5154 = vadd.f32 %v5153, %v5091
      %v5155 = vadd.f32 %v5154, %v5092
      %v5156 = vadd.f32 %v5155, %v5093
      %v5157 = vadd.f32 %v5156, %v5094
      %v5158 = vrot.slane %v5157, 4
      %v5159 = vadd.f32 %v5157, %v5158
      %v5160 = vrot.slane %v5159, 2
      %v5161 = vadd.f32 %v5159, %v5160
      %v5162 = vrot.slane %v5161, 1
      %v5163 = vadd.f32 %v5161, %v5162
      %v5164 = vmul.f32 %v5063, %v5063
      %v5165 = vmul.f32 %v5064, %v5064
      %v5166 = vmul.f32 %v5065, %v5065
      %v5167 = vmul.f32 %v5066, %v5066
      %v5168 = vmul.f32 %v5067, %v5067
      %v5169 = vmul.f32 %v5068, %v5068
      %v5170 = vmul.f32 %v5069, %v5069
      %v5171 = vmul.f32 %v5070, %v5070
      %v5172 = vmul.f32 %v5071, %v5071
      %v5173 = vmul.f32 %v5072, %v5072
      %v5174 = vmul.f32 %v5073, %v5073
      %v5175 = vmul.f32 %v5074, %v5074
      %v5176 = vmul.f32 %v5075, %v5075
      %v5177 = vmul.f32 %v5076, %v5076
      %v5178 = vmul.f32 %v5077, %v5077
      %v5179 = vmul.f32 %v5078, %v5078
      %v5180 = vmul.f32 %v5079, %v5079
      %v5181 = vmul.f32 %v5080, %v5080
      %v5182 = vmul.f32 %v5081, %v5081
      %v5183 = vmul.f32 %v5082, %v5082
      %v5184 = vmul.f32 %v5083, %v5083
      %v5185 = vmul.f32 %v5084, %v5084
      %v5186 = vmul.f32 %v5085, %v5085
      %v5187 = vmul.f32 %v5086, %v5086
      %v5188 = vmul.f32 %v5087, %v5087
      %v5189 = vmul.f32 %v5088, %v5088
      %v5190 = vmul.f32 %v5089, %v5089
      %v5191 = vmul.f32 %v5090, %v5090
      %v5192 = vmul.f32 %v5091, %v5091
      %v5193 = vmul.f32 %v5092, %v5092
      %v5194 = vmul.f32 %v5093, %v5093
      %v5195 = vmul.f32 %v5094, %v5094
      %v5196 = vadd.f32 %v5164, %v5165
      %v5197 = vadd.f32 %v5196, %v5166
      %v5198 = vadd.f32 %v5197, %v5167
      %v5199 = vadd.f32 %v5198, %v5168
      %v5200 = vadd.f32 %v5199, %v5169
      %v5201 = vadd.f32 %v5200, %v5170
      %v5202 = vadd.f32 %v5201, %v5171
      %v5203 = vadd.f32 %v5202, %v5172
      %v5204 = vadd.f32 %v5203, %v5173
      %v5205 = vadd.f32 %v5204, %v5174
      %v5206 = vadd.f32 %v5205, %v5175
      %v5207 = vadd.f32 %v5206, %v5176
      %v5208 = vadd.f32 %v5207, %v5177
      %v5209 = vadd.f32 %v5208, %v5178
      %v5210 = vadd.f32 %v5209, %v5179
      %v5211 = vadd.f32 %v5210, %v5180
      %v5212 = vadd.f32 %v5211, %v5181
      %v5213 = vadd.f32 %v5212, %v5182
      %v5214 = vadd.f32 %v5213, %v5183
      %v5215 = vadd.f32 %v5214, %v5184
      %v5216 = vadd.f32 %v5215, %v5185
      %v5217 = vadd.f32 %v5216, %v5186
      %v5218 = vadd.f32 %v5217, %v5187
      %v5219 = vadd.f32 %v5218, %v5188
      %v5220 = vadd.f32 %v5219, %v5189
      %v5221 = vadd.f32 %v5220, %v5190
      %v5222 = vadd.f32 %v5221, %v5191
      %v5223 = vadd.f32 %v5222, %v5192
      %v5224 = vadd.f32 %v5223, %v5193
      %v5225 = vadd.f32 %v5224, %v5194
      %v5226 = vadd.f32 %v5225, %v5195
      %v5227 = vrot.slane %v5226, 4
      %v5228 = vadd.f32 %v5226, %v5227
      %v5229 = vrot.slane %v5228, 2
      %v5230 = vadd.f32 %v5228, %v5229
      %v5231 = vrot.slane %v5230, 1
      %v5232 = vadd.f32 %v5230, %v5231
      %vm5233 = vcmask 1040384
      %v5234 = vsel %vm5233, %v5163, %v5232
      %5235 = vst [vmem:[%s280] sm:$0x3] %v5234
      %v5236 = vld [vmem:[%s1817] sm:$0xf]
      %v5237 = vld [vmem:[%s1817 + $0x4] sm:$0xf]
      %v5238 = vld [vmem:[%s1817 + $0x8] sm:$0x1]
      %v5239 = vld [vmem:[%s1817 + $0xc] sm:$0xf]
      %v5240 = vld [vmem:[%s1817 + $0x10] sm:$0xf]
      %v5241 = vld [vmem:[%s1817 + $0x14] sm:$0x1]
      %v5242 = vld [vmem:[%s1817 + $0x18] sm:$0xf]
      %v5243 = vld [vmem:[%s1817 + $0x1c] sm:$0xf]
      %v5244 = vld [vmem:[%s1817 + $0x20] sm:$0x1]
      %v5245 = vld [vmem:[%s1817 + $0x24] sm:$0xf]
      %v5246 = vld [vmem:[%s1817 + $0x28] sm:$0xf]
      %v5247 = vld [vmem:[%s1817 + $0x2c] sm:$0x1]
      %v5248 = vld [vmem:[%s1817 + $0x30] sm:$0xf]
      %v5249 = vld [vmem:[%s1817 + $0x34] sm:$0xf]
      %v5250 = vld [vmem:[%s1817 + $0x38] sm:$0x1]
      %v5251 = vld [vmem:[%s1817 + $0x3c] sm:$0xf]
      %v5252 = vld [vmem:[%s1817 + $0x40] sm:$0xf]
      %v5253 = vld [vmem:[%s1817 + $0x44] sm:$0x1]
      %v5254 = vld [vmem:[%s1817 + $0x48] sm:$0xf]
      %v5255 = vld [vmem:[%s1817 + $0x4c] sm:$0xf]
      %v5256 = vld [vmem:[%s1817 + $0x50] sm:$0x1]
      %v5257 = vld [vmem:[%s1817 + $0x54] sm:$0xf]
      %v5258 = vld [vmem:[%s1817 + $0x58] sm:$0xf]
      %v5259 = vld [vmem:[%s1817 + $0x5c] sm:$0x1]
      %v5260 = vld [vmem:[%s1817 + $0x60] sm:$0xf]
      %v5261 = vld [vmem:[%s1817 + $0x64] sm:$0xf]
      %v5262 = vld [vmem:[%s1817 + $0x68] sm:$0x1]
      %v5263 = vld [vmem:[%s1817 + $0x6c] sm:$0xf]
      %v5264 = vld [vmem:[%s1817 + $0x70] sm:$0xf]
      %v5265 = vld [vmem:[%s1817 + $0x74] sm:$0x1]
      %v5266 = vld [vmem:[%s1817 + $0x78] sm:$0xf]
      %v5267 = vld [vmem:[%s1817 + $0x7c] sm:$0xf]
      %v5268 = vld [vmem:[%s1817 + $0x80] sm:$0x1]
      %v5269 = vld [vmem:[%s1817 + $0x84] sm:$0xf]
      %v5270 = vld [vmem:[%s1817 + $0x88] sm:$0xf]
      %v5271 = vld [vmem:[%s1817 + $0x8c] sm:$0x1]
      %v5272 = vld [vmem:[%s1817 + $0x90] sm:$0xf]
      %v5273 = vld [vmem:[%s1817 + $0x94] sm:$0xf]
      %v5274 = vld [vmem:[%s1817 + $0x98] sm:$0x1]
      %v5275 = vld [vmem:[%s1817 + $0x9c] sm:$0xf]
      %v5276 = vld [vmem:[%s1817 + $0xa0] sm:$0xf]
      %v5277 = vld [vmem:[%s1817 + $0xa4] sm:$0x1]
      %v5278 = vld [vmem:[%s1817 + $0xa8] sm:$0xf]
      %v5279 = vld [vmem:[%s1817 + $0xac] sm:$0xf]
      %v5280 = vld [vmem:[%s1817 + $0xb0] sm:$0x1]
      %v5281 = vld [vmem:[%s1817 + $0xb4] sm:$0xf]
      %v5282 = vld [vmem:[%s1817 + $0xb8] sm:$0xf]
      %v5283 = vld [vmem:[%s1817 + $0xbc] sm:$0x1]
      %v5285 = vshrl.u32 %v5236, 16
      %v5287 = vrot.slane %v5285, 4
      %v5288 = vshll.u32 %v5236, 16
      %v5290 = vrot.slane %v5288, 5
      %v5291 = vor.u32 %v5287, %v5290
      %v5292 = vrot.slane %v5291, 4
      %v5294 = vshll.u32 %v5237, 16
      %v5296 = vrot.slane %v5294, 5
      %v5297 = vsel %vm352, %v5292, %v5296
      %v5298 = vshrl.u32 %v5237, 16
      %v5300 = vrot.slane %v5298, 4
      %v5301 = vor.u32 %v5300, %v5296
      %v5302 = vrot.slane %v5301, 4
      %v5304 = vshll.u32 %v5238, 16
      %v5306 = vrot.slane %v5304, 5
      %v5307 = vsel %vm352, %v5302, %v5306
      %v5309 = vshrl.u32 %v5239, 16
      %v5311 = vrot.slane %v5309, 4
      %v5312 = vshll.u32 %v5239, 16
      %v5314 = vrot.slane %v5312, 5
      %v5315 = vor.u32 %v5311, %v5314
      %v5316 = vrot.slane %v5315, 4
      %v5318 = vshll.u32 %v5240, 16
      %v5320 = vrot.slane %v5318, 5
      %v5321 = vsel %vm352, %v5316, %v5320
      %v5322 = vshrl.u32 %v5240, 16
      %v5324 = vrot.slane %v5322, 4
      %v5325 = vor.u32 %v5324, %v5320
      %v5326 = vrot.slane %v5325, 4
      %v5328 = vshll.u32 %v5241, 16
      %v5330 = vrot.slane %v5328, 5
      %v5331 = vsel %vm352, %v5326, %v5330
      %v5333 = vshrl.u32 %v5242, 16
      %v5335 = vrot.slane %v5333, 4
      %v5336 = vshll.u32 %v5242, 16
      %v5338 = vrot.slane %v5336, 5
      %v5339 = vor.u32 %v5335, %v5338
      %v5340 = vrot.slane %v5339, 4
      %v5342 = vshll.u32 %v5243, 16
      %v5344 = vrot.slane %v5342, 5
      %v5345 = vsel %vm352, %v5340, %v5344
      %v5346 = vshrl.u32 %v5243, 16
      %v5348 = vrot.slane %v5346, 4
      %v5349 = vor.u32 %v5348, %v5344
      %v5350 = vrot.slane %v5349, 4
      %v5352 = vshll.u32 %v5244, 16
      %v5354 = vrot.slane %v5352, 5
      %v5355 = vsel %vm352, %v5350, %v5354
      %v5357 = vshrl.u32 %v5245, 16
      %v5359 = vrot.slane %v5357, 4
      %v5360 = vshll.u32 %v5245, 16
      %v5362 = vrot.slane %v5360, 5
      %v5363 = vor.u32 %v5359, %v5362
      %v5364 = vrot.slane %v5363, 4
      %v5366 = vshll.u32 %v5246, 16
      %v5368 = vrot.slane %v5366, 5
      %v5369 = vsel %vm352, %v5364, %v5368
      %v5370 = vshrl.u32 %v5246, 16
      %v5372 = vrot.slane %v5370, 4
      %v5373 = vor.u32 %v5372, %v5368
      %v5374 = vrot.slane %v5373, 4
      %v5376 = vshll.u32 %v5247, 16
      %v5378 = vrot.slane %v5376, 5
      %v5379 = vsel %vm352, %v5374, %v5378
      %v5381 = vshrl.u32 %v5248, 16
      %v5383 = vrot.slane %v5381, 4
      %v5384 = vshll.u32 %v5248, 16
      %v5386 = vrot.slane %v5384, 5
      %v5387 = vor.u32 %v5383, %v5386
      %v5388 = vrot.slane %v5387, 4
      %v5390 = vshll.u32 %v5249, 16
      %v5392 = vrot.slane %v5390, 5
      %v5393 = vsel %vm352, %v5388, %v5392
      %v5394 = vshrl.u32 %v5249, 16
      %v5396 = vrot.slane %v5394, 4
      %v5397 = vor.u32 %v5396, %v5392
      %v5398 = vrot.slane %v5397, 4
      %v5400 = vshll.u32 %v5250, 16
      %v5402 = vrot.slane %v5400, 5
      %v5403 = vsel %vm352, %v5398, %v5402
      %v5405 = vshrl.u32 %v5251, 16
      %v5407 = vrot.slane %v5405, 4
      %v5408 = vshll.u32 %v5251, 16
      %v5410 = vrot.slane %v5408, 5
      %v5411 = vor.u32 %v5407, %v5410
      %v5412 = vrot.slane %v5411, 4
      %v5414 = vshll.u32 %v5252, 16
      %v5416 = vrot.slane %v5414, 5
      %v5417 = vsel %vm352, %v5412, %v5416
      %v5418 = vshrl.u32 %v5252, 16
      %v5420 = vrot.slane %v5418, 4
      %v5421 = vor.u32 %v5420, %v5416
      %v5422 = vrot.slane %v5421, 4
      %v5424 = vshll.u32 %v5253, 16
      %v5426 = vrot.slane %v5424, 5
      %v5427 = vsel %vm352, %v5422, %v5426
      %v5429 = vshrl.u32 %v5254, 16
      %v5431 = vrot.slane %v5429, 4
      %v5432 = vshll.u32 %v5254, 16
      %v5434 = vrot.slane %v5432, 5
      %v5435 = vor.u32 %v5431, %v5434
      %v5436 = vrot.slane %v5435, 4
      %v5438 = vshll.u32 %v5255, 16
      %v5440 = vrot.slane %v5438, 5
      %v5441 = vsel %vm352, %v5436, %v5440
      %v5442 = vshrl.u32 %v5255, 16
      %v5444 = vrot.slane %v5442, 4
      %v5445 = vor.u32 %v5444, %v5440
      %v5446 = vrot.slane %v5445, 4
      %v5448 = vshll.u32 %v5256, 16
      %v5450 = vrot.slane %v5448, 5
      %v5451 = vsel %vm352, %v5446, %v5450
      %v5453 = vshrl.u32 %v5257, 16
      %v5455 = vrot.slane %v5453, 4
      %v5456 = vshll.u32 %v5257, 16
      %v5458 = vrot.slane %v5456, 5
      %v5459 = vor.u32 %v5455, %v5458
      %v5460 = vrot.slane %v5459, 4
      %v5462 = vshll.u32 %v5258, 16
      %v5464 = vrot.slane %v5462, 5
      %v5465 = vsel %vm352, %v5460, %v5464
      %v5466 = vshrl.u32 %v5258, 16
      %v5468 = vrot.slane %v5466, 4
      %v5469 = vor.u32 %v5468, %v5464
      %v5470 = vrot.slane %v5469, 4
      %v5472 = vshll.u32 %v5259, 16
      %v5474 = vrot.slane %v5472, 5
      %v5475 = vsel %vm352, %v5470, %v5474
      %v5477 = vshrl.u32 %v5260, 16
      %v5479 = vrot.slane %v5477, 4
      %v5480 = vshll.u32 %v5260, 16
      %v5482 = vrot.slane %v5480, 5
      %v5483 = vor.u32 %v5479, %v5482
      %v5484 = vrot.slane %v5483, 4
      %v5486 = vshll.u32 %v5261, 16
      %v5488 = vrot.slane %v5486, 5
      %v5489 = vsel %vm352, %v5484, %v5488
      %v5490 = vshrl.u32 %v5261, 16
      %v5492 = vrot.slane %v5490, 4
      %v5493 = vor.u32 %v5492, %v5488
      %v5494 = vrot.slane %v5493, 4
      %v5496 = vshll.u32 %v5262, 16
      %v5498 = vrot.slane %v5496, 5
      %v5499 = vsel %vm352, %v5494, %v5498
      %v5501 = vshrl.u32 %v5263, 16
      %v5503 = vrot.slane %v5501, 4
      %v5504 = vshll.u32 %v5263, 16
      %v5506 = vrot.slane %v5504, 5
      %v5507 = vor.u32 %v5503, %v5506
      %v5508 = vrot.slane %v5507, 4
      %v5510 = vshll.u32 %v5264, 16
      %v5512 = vrot.slane %v5510, 5
      %v5513 = vsel %vm352, %v5508, %v5512
      %v5514 = vshrl.u32 %v5264, 16
      %v5516 = vrot.slane %v5514, 4
      %v5517 = vor.u32 %v5516, %v5512
      %v5518 = vrot.slane %v5517, 4
      %v5520 = vshll.u32 %v5265, 16
      %v5522 = vrot.slane %v5520, 5
      %v5523 = vsel %vm352, %v5518, %v5522
      %v5525 = vshrl.u32 %v5266, 16
      %v5527 = vrot.slane %v5525, 4
      %v5528 = vshll.u32 %v5266, 16
      %v5530 = vrot.slane %v5528, 5
      %v5531 = vor.u32 %v5527, %v5530
      %v5532 = vrot.slane %v5531, 4
      %v5534 = vshll.u32 %v5267, 16
      %v5536 = vrot.slane %v5534, 5
      %v5537 = vsel %vm352, %v5532, %v5536
      %v5538 = vshrl.u32 %v5267, 16
      %v5540 = vrot.slane %v5538, 4
      %v5541 = vor.u32 %v5540, %v5536
      %v5542 = vrot.slane %v5541, 4
      %v5544 = vshll.u32 %v5268, 16
      %v5546 = vrot.slane %v5544, 5
      %v5547 = vsel %vm352, %v5542, %v5546
      %v5549 = vshrl.u32 %v5269, 16
      %v5551 = vrot.slane %v5549, 4
      %v5552 = vshll.u32 %v5269, 16
      %v5554 = vrot.slane %v5552, 5
      %v5555 = vor.u32 %v5551, %v5554
      %v5556 = vrot.slane %v5555, 4
      %v5558 = vshll.u32 %v5270, 16
      %v5560 = vrot.slane %v5558, 5
      %v5561 = vsel %vm352, %v5556, %v5560
      %v5562 = vshrl.u32 %v5270, 16
      %v5564 = vrot.slane %v5562, 4
      %v5565 = vor.u32 %v5564, %v5560
      %v5566 = vrot.slane %v5565, 4
      %v5568 = vshll.u32 %v5271, 16
      %v5570 = vrot.slane %v5568, 5
      %v5571 = vsel %vm352, %v5566, %v5570
      %v5573 = vshrl.u32 %v5272, 16
      %v5575 = vrot.slane %v5573, 4
      %v5576 = vshll.u32 %v5272, 16
      %v5578 = vrot.slane %v5576, 5
      %v5579 = vor.u32 %v5575, %v5578
      %v5580 = vrot.slane %v5579, 4
      %v5582 = vshll.u32 %v5273, 16
      %v5584 = vrot.slane %v5582, 5
      %v5585 = vsel %vm352, %v5580, %v5584
      %v5586 = vshrl.u32 %v5273, 16
      %v5588 = vrot.slane %v5586, 4
      %v5589 = vor.u32 %v5588, %v5584
      %v5590 = vrot.slane %v5589, 4
      %v5592 = vshll.u32 %v5274, 16
      %v5594 = vrot.slane %v5592, 5
      %v5595 = vsel %vm352, %v5590, %v5594
      %v5597 = vshrl.u32 %v5275, 16
      %v5599 = vrot.slane %v5597, 4
      %v5600 = vshll.u32 %v5275, 16
      %v5602 = vrot.slane %v5600, 5
      %v5603 = vor.u32 %v5599, %v5602
      %v5604 = vrot.slane %v5603, 4
      %v5606 = vshll.u32 %v5276, 16
      %v5608 = vrot.slane %v5606, 5
      %v5609 = vsel %vm352, %v5604, %v5608
      %v5610 = vshrl.u32 %v5276, 16
      %v5612 = vrot.slane %v5610, 4
      %v5613 = vor.u32 %v5612, %v5608
      %v5614 = vrot.slane %v5613, 4
      %v5616 = vshll.u32 %v5277, 16
      %v5618 = vrot.slane %v5616, 5
      %v5619 = vsel %vm352, %v5614, %v5618
      %v5621 = vshrl.u32 %v5278, 16
      %v5623 = vrot.slane %v5621, 4
      %v5624 = vshll.u32 %v5278, 16
      %v5626 = vrot.slane %v5624, 5
      %v5627 = vor.u32 %v5623, %v5626
      %v5628 = vrot.slane %v5627, 4
      %v5630 = vshll.u32 %v5279, 16
      %v5632 = vrot.slane %v5630, 5
      %v5633 = vsel %vm352, %v5628, %v5632
      %v5634 = vshrl.u32 %v5279, 16
      %v5636 = vrot.slane %v5634, 4
      %v5637 = vor.u32 %v5636, %v5632
      %v5638 = vrot.slane %v5637, 4
      %v5640 = vshll.u32 %v5280, 16
      %v5642 = vrot.slane %v5640, 5
      %v5643 = vsel %vm352, %v5638, %v5642
      %v5645 = vshrl.u32 %v5281, 16
      %v5647 = vrot.slane %v5645, 4
      %v5648 = vshll.u32 %v5281, 16
      %v5650 = vrot.slane %v5648, 5
      %v5651 = vor.u32 %v5647, %v5650
      %v5652 = vrot.slane %v5651, 4
      %v5654 = vshll.u32 %v5282, 16
      %v5656 = vrot.slane %v5654, 5
      %v5657 = vsel %vm352, %v5652, %v5656
      %v5658 = vshrl.u32 %v5282, 16
      %v5660 = vrot.slane %v5658, 4
      %v5661 = vor.u32 %v5660, %v5656
      %v5662 = vrot.slane %v5661, 4
      %v5664 = vshll.u32 %v5283, 16
      %v5666 = vrot.slane %v5664, 5
      %v5667 = vsel %vm352, %v5662, %v5666
      %v5668 = vld [vmem:[%s2] sm:$0xf]
      %v5669 = vld [vmem:[%s2 + $0x4] sm:$0xf]
      %v5670 = vld [vmem:[%s2 + $0x8] sm:$0xf]
      %v5671 = vld [vmem:[%s2 + $0xc] sm:$0xf]
      %v5672 = vld [vmem:[%s2 + $0x10] sm:$0xf]
      %v5673 = vld [vmem:[%s2 + $0x14] sm:$0xf]
      %v5674 = vld [vmem:[%s2 + $0x18] sm:$0xf]
      %v5675 = vld [vmem:[%s2 + $0x1c] sm:$0xf]
      %v5676 = vld [vmem:[%s2 + $0x20] sm:$0xf]
      %v5677 = vld [vmem:[%s2 + $0x24] sm:$0xf]
      %v5678 = vld [vmem:[%s2 + $0x28] sm:$0xf]
      %v5679 = vld [vmem:[%s2 + $0x2c] sm:$0xf]
      %v5680 = vld [vmem:[%s2 + $0x30] sm:$0xf]
      %v5681 = vld [vmem:[%s2 + $0x34] sm:$0xf]
      %v5682 = vld [vmem:[%s2 + $0x38] sm:$0xf]
      %v5683 = vld [vmem:[%s2 + $0x3c] sm:$0xf]
      %v5684 = vunpack.c.l.b16 %v5297
      %v5685 = vunpack.c.l.b16 %v5307
      %v5686 = vunpack.c.l.b16 %v5321
      %v5687 = vunpack.c.l.b16 %v5331
      %v5688 = vunpack.c.l.b16 %v5345
      %v5689 = vunpack.c.l.b16 %v5355
      %v5690 = vunpack.c.l.b16 %v5369
      %v5691 = vunpack.c.l.b16 %v5379
      %v5692 = vunpack.c.l.b16 %v5393
      %v5693 = vunpack.c.l.b16 %v5403
      %v5694 = vunpack.c.l.b16 %v5417
      %v5695 = vunpack.c.l.b16 %v5427
      %v5696 = vunpack.c.l.b16 %v5441
      %v5697 = vunpack.c.l.b16 %v5451
      %v5698 = vunpack.c.l.b16 %v5465
      %v5699 = vunpack.c.l.b16 %v5475
      %v5700 = vunpack.c.l.b16 %v5489
      %v5701 = vunpack.c.l.b16 %v5499
      %v5702 = vunpack.c.l.b16 %v5513
      %v5703 = vunpack.c.l.b16 %v5523
      %v5704 = vunpack.c.l.b16 %v5537
      %v5705 = vunpack.c.l.b16 %v5547
      %v5706 = vunpack.c.l.b16 %v5561
      %v5707 = vunpack.c.l.b16 %v5571
      %v5708 = vunpack.c.l.b16 %v5585
      %v5709 = vunpack.c.l.b16 %v5595
      %v5710 = vunpack.c.l.b16 %v5609
      %v5711 = vunpack.c.l.b16 %v5619
      %v5712 = vunpack.c.l.b16 %v5633
      %v5713 = vunpack.c.l.b16 %v5643
      %v5714 = vunpack.c.l.b16 %v5657
      %v5715 = vunpack.c.l.b16 %v5667
      %v5716 = vpack.c.b16 %v5685, %v5684
      %v5717 = vpack.c.b16 %v5687, %v5686
      %v5718 = vpack.c.b16 %v5689, %v5688
      %v5719 = vpack.c.b16 %v5691, %v5690
      %v5720 = vpack.c.b16 %v5693, %v5692
      %v5721 = vpack.c.b16 %v5695, %v5694
      %v5722 = vpack.c.b16 %v5697, %v5696
      %v5723 = vpack.c.b16 %v5699, %v5698
      %v5724 = vpack.c.b16 %v5701, %v5700
      %v5725 = vpack.c.b16 %v5703, %v5702
      %v5726 = vpack.c.b16 %v5705, %v5704
      %v5727 = vpack.c.b16 %v5707, %v5706
      %v5728 = vpack.c.b16 %v5709, %v5708
      %v5729 = vpack.c.b16 %v5711, %v5710
      %v5730 = vpack.c.b16 %v5713, %v5712
      %v5731 = vpack.c.b16 %v5715, %v5714
      %v5764 = vunpack.c.l.b16 %v5668
      %v5765 = vunpack.c.l.b16 %v5669
      %v5766 = vunpack.c.l.b16 %v5670
      %v5767 = vunpack.c.l.b16 %v5671
      %v5768 = vunpack.c.l.b16 %v5672
      %v5769 = vunpack.c.l.b16 %v5673
      %v5770 = vunpack.c.l.b16 %v5674
      %v5771 = vunpack.c.l.b16 %v5675
      %v5772 = vunpack.c.l.b16 %v5676
      %v5773 = vunpack.c.l.b16 %v5677
      %v5774 = vunpack.c.l.b16 %v5678
      %v5775 = vunpack.c.l.b16 %v5679
      %v5776 = vunpack.c.l.b16 %v5680
      %v5777 = vunpack.c.l.b16 %v5681
      %v5778 = vunpack.c.l.b16 %v5682
      %v5779 = vunpack.c.l.b16 %v5683
      %v5780 = vpack.c.b16 %v5765, %v5764
      %v5781 = vpack.c.b16 %v5767, %v5766
      %v5782 = vpack.c.b16 %v5769, %v5768
      %v5783 = vpack.c.b16 %v5771, %v5770
      %v5784 = vpack.c.b16 %v5773, %v5772
      %v5785 = vpack.c.b16 %v5775, %v5774
      %v5786 = vpack.c.b16 %v5777, %v5776
      %v5787 = vpack.c.b16 %v5779, %v5778
      %5796 = vmatprep.subr.bf16.mxu0 0
      %5797 = vmatpush1.bf16.msra.mxu0 %v5787
      %5798 = vmatprep.subr.bf16.mxu0 0
      %5799 = vmatpush1.bf16.msra.mxu0 %v5786
      %5800 = vmatprep.subr.bf16.mxu0 0
      %5801 = vmatpush1.bf16.msra.mxu0 %v5785
      %5802 = vmatprep.subr.bf16.mxu0 0
      %5803 = vmatpush1.bf16.msra.mxu0 %v5784
      %5804 = vmatprep.subr.bf16.mxu0 0
      %5805 = vmatpush1.bf16.msra.mxu0 %v5783
      %5806 = vmatprep.subr.bf16.mxu0 0
      %5807 = vmatpush1.bf16.msra.mxu0 %v5782
      %5808 = vmatprep.subr.bf16.mxu0 0
      %5809 = vmatpush1.bf16.msra.mxu0 %v5781
      %5810 = vmatprep.subr.bf16.mxu0 0
      %5811 = vmatpush1.bf16.msra.mxu0 %v5780
      %5812 = vmatprep.subr.bf16.mxu0 0
      %5813 = vmatpush2.bf16.msra.mxu0 0
      %5814 = vmatprep.subr.bf16.mxu0 0
      %5815 = vmatpush2.bf16.msra.mxu0 0
      %5816 = vmatprep.subr.bf16.mxu0 0
      %5817 = vmatpush2.bf16.msra.mxu0 0
      %5818 = vmatprep.subr.bf16.mxu0 0
      %5819 = vmatpush2.bf16.msra.mxu0 0
      %5820 = vmatprep.subr.bf16.mxu0 0
      %5821 = vmatpush2.bf16.msra.mxu0 0
      %5822 = vmatprep.subr.bf16.mxu0 0
      %5823 = vmatpush2.bf16.msra.mxu0 0
      %5824 = vmatprep.subr.bf16.mxu0 0
      %5825 = vmatpush2.bf16.msra.mxu0 0
      %5826 = vmatprep.subr.bf16.mxu0 0
      %5827 = vmatpush2.bf16.msra.mxu0 0
      %5828 = vmatprep.mubr.bf16.mxu0 0
      %5829 = vmatmul.mubr.bf16.gmra.mxu0 %v5716
      %v5830 = vpop.f32.mrf.mxu0
      %v5831 = vadd.f32 0.0, %v5830
      %v5832 = vpop.f32.mrf.mxu0
      %v5833 = vpop.f32.mrf.mxu0
      %v5834 = vadd.f32 0.0, %v5833
      %v5835 = vpop.f32.mrf.mxu0
      %5836 = vmatprep.mubr.bf16.mxu0 0
      %5837 = vmatmul.mubr.bf16.gmra.mxu0 %v5717
      %v5838 = vpop.f32.mrf.mxu0
      %v5839 = vadd.f32 0.0, %v5838
      %v5840 = vpop.f32.mrf.mxu0
      %v5841 = vpop.f32.mrf.mxu0
      %v5842 = vadd.f32 0.0, %v5841
      %v5843 = vpop.f32.mrf.mxu0
      %5844 = vmatprep.mubr.bf16.mxu0 0
      %5845 = vmatmul.mubr.bf16.gmra.mxu0 %v5718
      %v5846 = vpop.f32.mrf.mxu0
      %v5847 = vadd.f32 0.0, %v5846
      %v5848 = vpop.f32.mrf.mxu0
      %v5849 = vpop.f32.mrf.mxu0
      %v5850 = vadd.f32 0.0, %v5849
      %v5851 = vpop.f32.mrf.mxu0
      %5852 = vmatprep.mubr.bf16.mxu0 0
      %5853 = vmatmul.mubr.bf16.gmra.mxu0 %v5719
      %v5854 = vpop.f32.mrf.mxu0
      %v5855 = vadd.f32 0.0, %v5854
      %v5856 = vpop.f32.mrf.mxu0
      %v5857 = vpop.f32.mrf.mxu0
      %v5858 = vadd.f32 0.0, %v5857
      %v5859 = vpop.f32.mrf.mxu0
      %5860 = vmatprep.mubr.bf16.mxu0 0
      %5861 = vmatmul.mubr.bf16.gmra.mxu0 %v5720
      %v5862 = vpop.f32.mrf.mxu0
      %v5863 = vadd.f32 0.0, %v5862
      %v5864 = vpop.f32.mrf.mxu0
      %v5865 = vpop.f32.mrf.mxu0
      %v5866 = vadd.f32 0.0, %v5865
      %v5867 = vpop.f32.mrf.mxu0
      %5868 = vmatprep.mubr.bf16.mxu0 0
      %5869 = vmatmul.mubr.bf16.gmra.mxu0 %v5721
      %v5870 = vpop.f32.mrf.mxu0
      %v5871 = vadd.f32 0.0, %v5870
      %v5872 = vpop.f32.mrf.mxu0
      %v5873 = vpop.f32.mrf.mxu0
      %v5874 = vadd.f32 0.0, %v5873
      %v5875 = vpop.f32.mrf.mxu0
      %5876 = vmatprep.mubr.bf16.mxu0 0
      %5877 = vmatmul.mubr.bf16.gmra.mxu0 %v5722
      %v5878 = vpop.f32.mrf.mxu0
      %v5879 = vadd.f32 0.0, %v5878
      %v5880 = vpop.f32.mrf.mxu0
      %v5881 = vpop.f32.mrf.mxu0
      %v5882 = vadd.f32 0.0, %v5881
      %v5883 = vpop.f32.mrf.mxu0
      %5884 = vmatprep.mubr.bf16.mxu0 0
      %5885 = vmatmul.mubr.bf16.gmra.mxu0 %v5723
      %v5886 = vpop.f32.mrf.mxu0
      %v5887 = vadd.f32 0.0, %v5886
      %v5888 = vpop.f32.mrf.mxu0
      %v5889 = vpop.f32.mrf.mxu0
      %v5890 = vadd.f32 0.0, %v5889
      %v5891 = vpop.f32.mrf.mxu0
      %5892 = vmatprep.mubr.bf16.mxu0 0
      %5893 = vmatmul.mubr.bf16.gmra.mxu0 %v5724
      %v5894 = vpop.f32.mrf.mxu0
      %v5895 = vadd.f32 0.0, %v5894
      %v5896 = vpop.f32.mrf.mxu0
      %v5897 = vpop.f32.mrf.mxu0
      %v5898 = vadd.f32 0.0, %v5897
      %v5899 = vpop.f32.mrf.mxu0
      %5900 = vmatprep.mubr.bf16.mxu0 0
      %5901 = vmatmul.mubr.bf16.gmra.mxu0 %v5725
      %v5902 = vpop.f32.mrf.mxu0
      %v5903 = vadd.f32 0.0, %v5902
      %v5904 = vpop.f32.mrf.mxu0
      %v5905 = vpop.f32.mrf.mxu0
      %v5906 = vadd.f32 0.0, %v5905
      %v5907 = vpop.f32.mrf.mxu0
      %5908 = vmatprep.mubr.bf16.mxu0 0
      %5909 = vmatmul.mubr.bf16.gmra.mxu0 %v5726
      %v5910 = vpop.f32.mrf.mxu0
      %v5911 = vadd.f32 0.0, %v5910
      %v5912 = vpop.f32.mrf.mxu0
      %v5913 = vpop.f32.mrf.mxu0
      %v5914 = vadd.f32 0.0, %v5913
      %v5915 = vpop.f32.mrf.mxu0
      %5916 = vmatprep.mubr.bf16.mxu0 0
      %5917 = vmatmul.mubr.bf16.gmra.mxu0 %v5727
      %v5918 = vpop.f32.mrf.mxu0
      %v5919 = vadd.f32 0.0, %v5918
      %v5920 = vpop.f32.mrf.mxu0
      %v5921 = vpop.f32.mrf.mxu0
      %v5922 = vadd.f32 0.0, %v5921
      %v5923 = vpop.f32.mrf.mxu0
      %5924 = vmatprep.mubr.bf16.mxu0 0
      %5925 = vmatmul.mubr.bf16.gmra.mxu0 %v5728
      %v5926 = vpop.f32.mrf.mxu0
      %v5927 = vadd.f32 0.0, %v5926
      %v5928 = vpop.f32.mrf.mxu0
      %v5929 = vpop.f32.mrf.mxu0
      %v5930 = vadd.f32 0.0, %v5929
      %v5931 = vpop.f32.mrf.mxu0
      %5932 = vmatprep.mubr.bf16.mxu0 0
      %5933 = vmatmul.mubr.bf16.gmra.mxu0 %v5729
      %v5934 = vpop.f32.mrf.mxu0
      %v5935 = vadd.f32 0.0, %v5934
      %v5936 = vpop.f32.mrf.mxu0
      %v5937 = vpop.f32.mrf.mxu0
      %v5938 = vadd.f32 0.0, %v5937
      %v5939 = vpop.f32.mrf.mxu0
      %5940 = vmatprep.mubr.bf16.mxu0 0
      %5941 = vmatmul.mubr.bf16.gmra.mxu0 %v5730
      %v5942 = vpop.f32.mrf.mxu0
      %v5943 = vadd.f32 0.0, %v5942
      %v5944 = vpop.f32.mrf.mxu0
      %v5945 = vpop.f32.mrf.mxu0
      %v5946 = vadd.f32 0.0, %v5945
      %v5947 = vpop.f32.mrf.mxu0
      %5948 = vmatprep.mubr.bf16.mxu0 0
      %5949 = vmatmul.mubr.bf16.gmra.mxu0 %v5731
      %v5950 = vpop.f32.mrf.mxu0
      %v5951 = vadd.f32 0.0, %v5950
      %v5952 = vpop.f32.mrf.mxu0
      %v5953 = vpop.f32.mrf.mxu0
      %v5954 = vadd.f32 0.0, %v5953
      %v5955 = vpop.f32.mrf.mxu0
      %5956 = vdwg.mxu0
      %5957 = vst [vmem:[%s276] sm:$0xff] %v5831
      %5958 = vst [vmem:[%s276 + $0x8] sm:$0xff] %v5834
      %5959 = vst [vmem:[%s276 + $0x10] sm:$0xff] %v5839
      %5960 = vst [vmem:[%s276 + $0x18] sm:$0xff] %v5842
      %5961 = vst [vmem:[%s276 + $0x20] sm:$0xff] %v5847
      %5962 = vst [vmem:[%s276 + $0x28] sm:$0xff] %v5850
      %5963 = vst [vmem:[%s276 + $0x30] sm:$0xff] %v5855
      %5964 = vst [vmem:[%s276 + $0x38] sm:$0xff] %v5858
      %5965 = vst [vmem:[%s276 + $0x40] sm:$0xff] %v5863
      %5966 = vst [vmem:[%s276 + $0x48] sm:$0xff] %v5866
      %5967 = vst [vmem:[%s276 + $0x50] sm:$0xff] %v5871
      %5968 = vst [vmem:[%s276 + $0x58] sm:$0xff] %v5874
      %5969 = vst [vmem:[%s276 + $0x60] sm:$0xff] %v5879
      %5970 = vst [vmem:[%s276 + $0x68] sm:$0xff] %v5882
      %5971 = vst [vmem:[%s276 + $0x70] sm:$0xff] %v5887
      %5972 = vst [vmem:[%s276 + $0x78] sm:$0xff] %v5890
      %5973 = vst [vmem:[%s276 + $0x80] sm:$0xff] %v5895
      %5974 = vst [vmem:[%s276 + $0x88] sm:$0xff] %v5898
      %5975 = vst [vmem:[%s276 + $0x90] sm:$0xff] %v5903
      %5976 = vst [vmem:[%s276 + $0x98] sm:$0xff] %v5906
      %5977 = vst [vmem:[%s276 + $0xa0] sm:$0xff] %v5911
      %5978 = vst [vmem:[%s276 + $0xa8] sm:$0xff] %v5914
      %5979 = vst [vmem:[%s276 + $0xb0] sm:$0xff] %v5919
      %5980 = vst [vmem:[%s276 + $0xb8] sm:$0xff] %v5922
      %5981 = vst [vmem:[%s276 + $0xc0] sm:$0xff] %v5927
      %5982 = vst [vmem:[%s276 + $0xc8] sm:$0xff] %v5930
      %5983 = vst [vmem:[%s276 + $0xd0] sm:$0xff] %v5935
      %5984 = vst [vmem:[%s276 + $0xd8] sm:$0xff] %v5938
      %5985 = vst [vmem:[%s276 + $0xe0] sm:$0xff] %v5943
      %5986 = vst [vmem:[%s276 + $0xe8] sm:$0xff] %v5946
      %5987 = vst [vmem:[%s276 + $0xf0] sm:$0xff] %v5951
      %5988 = vst [vmem:[%s276 + $0xf8] sm:$0xff] %v5954
      %v5989 = vadd.f32 %v5831, %v5834
      %v5990 = vadd.f32 %v5989, %v5839
      %v5991 = vadd.f32 %v5990, %v5842
      %v5992 = vadd.f32 %v5991, %v5847
      %v5993 = vadd.f32 %v5992, %v5850
      %v5994 = vadd.f32 %v5993, %v5855
      %v5995 = vadd.f32 %v5994, %v5858
      %v5996 = vadd.f32 %v5995, %v5863
      %v5997 = vadd.f32 %v5996, %v5866
      %v5998 = vadd.f32 %v5997, %v5871
      %v5999 = vadd.f32 %v5998, %v5874
      %v6000 = vadd.f32 %v5999, %v5879
      %v6001 = vadd.f32 %v6000, %v5882
      %v6002 = vadd.f32 %v6001, %v5887
      %v6003 = vadd.f32 %v6002, %v5890
      %v6004 = vadd.f32 %v6003, %v5895
      %v6005 = vadd.f32 %v6004, %v5898
      %v6006 = vadd.f32 %v6005, %v5903
      %v6007 = vadd.f32 %v6006, %v5906
      %v6008 = vadd.f32 %v6007, %v5911
      %v6009 = vadd.f32 %v6008, %v5914
      %v6010 = vadd.f32 %v6009, %v5919
      %v6011 = vadd.f32 %v6010, %v5922
      %v6012 = vadd.f32 %v6011, %v5927
      %v6013 = vadd.f32 %v6012, %v5930
      %v6014 = vadd.f32 %v6013, %v5935
      %v6015 = vadd.f32 %v6014, %v5938
      %v6016 = vadd.f32 %v6015, %v5943
      %v6017 = vadd.f32 %v6016, %v5946
      %v6018 = vadd.f32 %v6017, %v5951
      %v6019 = vadd.f32 %v6018, %v5954
      %v6020 = vrot.slane %v6019, 4
      %v6021 = vadd.f32 %v6019, %v6020
      %v6022 = vrot.slane %v6021, 2
      %v6023 = vadd.f32 %v6021, %v6022
      %v6024 = vrot.slane %v6023, 1
      %v6025 = vadd.f32 %v6023, %v6024
      %v6026 = vmul.f32 %v5831, %v5831
      %v6027 = vmul.f32 %v5834, %v5834
      %v6028 = vmul.f32 %v5839, %v5839
      %v6029 = vmul.f32 %v5842, %v5842
      %v6030 = vmul.f32 %v5847, %v5847
      %v6031 = vmul.f32 %v5850, %v5850
      %v6032 = vmul.f32 %v5855, %v5855
      %v6033 = vmul.f32 %v5858, %v5858
      %v6034 = vmul.f32 %v5863, %v5863
      %v6035 = vmul.f32 %v5866, %v5866
      %v6036 = vmul.f32 %v5871, %v5871
      %v6037 = vmul.f32 %v5874, %v5874
      %v6038 = vmul.f32 %v5879, %v5879
      %v6039 = vmul.f32 %v5882, %v5882
      %v6040 = vmul.f32 %v5887, %v5887
      %v6041 = vmul.f32 %v5890, %v5890
      %v6042 = vmul.f32 %v5895, %v5895
      %v6043 = vmul.f32 %v5898, %v5898
      %v6044 = vmul.f32 %v5903, %v5903
      %v6045 = vmul.f32 %v5906, %v5906
      %v6046 = vmul.f32 %v5911, %v5911
      %v6047 = vmul.f32 %v5914, %v5914
      %v6048 = vmul.f32 %v5919, %v5919
      %v6049 = vmul.f32 %v5922, %v5922
      %v6050 = vmul.f32 %v5927, %v5927
      %v6051 = vmul.f32 %v5930, %v5930
      %v6052 = vmul.f32 %v5935, %v5935
      %v6053 = vmul.f32 %v5938, %v5938
      %v6054 = vmul.f32 %v5943, %v5943
      %v6055 = vmul.f32 %v5946, %v5946
      %v6056 = vmul.f32 %v5951, %v5951
      %v6057 = vmul.f32 %v5954, %v5954
      %v6058 = vadd.f32 %v6026, %v6027
      %v6059 = vadd.f32 %v6058, %v6028
      %v6060 = vadd.f32 %v6059, %v6029
      %v6061 = vadd.f32 %v6060, %v6030
      %v6062 = vadd.f32 %v6061, %v6031
      %v6063 = vadd.f32 %v6062, %v6032
      %v6064 = vadd.f32 %v6063, %v6033
      %v6065 = vadd.f32 %v6064, %v6034
      %v6066 = vadd.f32 %v6065, %v6035
      %v6067 = vadd.f32 %v6066, %v6036
      %v6068 = vadd.f32 %v6067, %v6037
      %v6069 = vadd.f32 %v6068, %v6038
      %v6070 = vadd.f32 %v6069, %v6039
      %v6071 = vadd.f32 %v6070, %v6040
      %v6072 = vadd.f32 %v6071, %v6041
      %v6073 = vadd.f32 %v6072, %v6042
      %v6074 = vadd.f32 %v6073, %v6043
      %v6075 = vadd.f32 %v6074, %v6044
      %v6076 = vadd.f32 %v6075, %v6045
      %v6077 = vadd.f32 %v6076, %v6046
      %v6078 = vadd.f32 %v6077, %v6047
      %v6079 = vadd.f32 %v6078, %v6048
      %v6080 = vadd.f32 %v6079, %v6049
      %v6081 = vadd.f32 %v6080, %v6050
      %v6082 = vadd.f32 %v6081, %v6051
      %v6083 = vadd.f32 %v6082, %v6052
      %v6084 = vadd.f32 %v6083, %v6053
      %v6085 = vadd.f32 %v6084, %v6054
      %v6086 = vadd.f32 %v6085, %v6055
      %v6087 = vadd.f32 %v6086, %v6056
      %v6088 = vadd.f32 %v6087, %v6057
      %v6089 = vrot.slane %v6088, 4
      %v6090 = vadd.f32 %v6088, %v6089
      %v6091 = vrot.slane %v6090, 2
      %v6092 = vadd.f32 %v6090, %v6091
      %v6093 = vrot.slane %v6092, 1
      %v6094 = vadd.f32 %v6092, %v6093
      %v6095 = vsel %vm5233, %v6025, %v6094
      %6096 = vst [vmem:[%s284] sm:$0x3] %v6095
      %p6097 = scmp.lt.s32.totalorder %s18, 1
      %s6098 = scalar_select %p6097, %s18, 1
      %s6099 = smul.addr %s6098, 32
      %s6100 = smul.addr %s6099, 8
      %s6101 = scalar_lea.vmem %s3, %s6100
      %p6102 = scmp.lt.s32.totalorder %s18, 1
      %s6103 = scalar_select %p6102, %s18, 1
      %s6104 = smul.addr %s6103, 32
      %s6105 = smul.addr %s6104, 8
      %s6106 = scalar_lea.vmem %s4, %s6105
      %p6107 = scmp.lt.s32.totalorder %s18, 1
      %s6108 = scalar_select %p6107, %s18, 1
      %s6109 = smul.addr %s6108, 2
      %s6110 = scalar_lea.vmem %s5, %s6109
      %p6111 = scmp.lt.s32.totalorder %s18, 1
      %s6112 = scalar_select %p6111, %s18, 1
      %s6113 = smul.addr %s6112, 2
      %s6114 = scalar_lea.vmem %s6, %s6113
      // Predicated region
      $region33: #{resnet_forward.3} parent=31 // pred_check
        %p6115 = pneg %p104
      $region34: #{resnet_forward.3} parent=31 // pred_check_branch
        %6117 = sbr.rel (%p6115) target = $region36
      $region35: #{resnet_forward.3} parent=31 // pred_region
        _
      $region36: #{resnet_forward.3} parent=31 // pred_fallthru
        _
      // Predicated region
      $region37: #{resnet_forward.3} parent=31 // pred_check
        %p6118 = pneg %p130
      $region38: #{resnet_forward.3} parent=31 // pred_check_branch
        %6120 = sbr.rel (%p6118) target = $region40
      $region39: #{resnet_forward.3} parent=31 // pred_region
        _
      $region40: #{resnet_forward.3} parent=31 // pred_fallthru
        _
      // Predicated region
      $region41: #{resnet_forward.3} parent=31 // pred_check
        %p6121 = pneg %p156
      $region42: #{resnet_forward.3} parent=31 // pred_check_branch
        %6123 = sbr.rel (%p6121) target = $region44
      $region43: #{resnet_forward.3} parent=31 // pred_region
        _
      $region44: #{resnet_forward.3} parent=31 // pred_fallthru
        _
      // Predicated region
      $region45: #{resnet_forward.3} parent=31 // pred_check
        %p6124 = pneg %p182
      $region46: #{resnet_forward.3} parent=31 // pred_check_branch
        %6126 = sbr.rel (%p6124) target = $region48
      $region47: #{resnet_forward.3} parent=31 // pred_region
        _
      $region48: #{resnet_forward.3} parent=31 // pred_fallthru
        _
    $region32: #{resnet_forward.3} parent=5 // pred_fallthru
      _
    %p6127 = scmp.le.s32.totalorder 2, %s13
    // Predicated region
    $region49: #{resnet_forward.3} parent=5 // pred_check
      %p6128 = pneg %p6127
    $region50: #{resnet_forward.3} parent=5 // pred_check_branch
      %6130 = sbr.rel (%p6128) target = $region52
    $region51: #{resnet_forward.3} parent=5 // pred_region
      %s6131 = ssub.s32 %s13, 2
      // Predicated region
      $region53: #{resnet_forward.3} parent=51 // pred_check
        %p6132 = pneg %p110
      $region54: #{resnet_forward.3} parent=51 // pred_check_branch
        %6134 = sbr.rel (%p6132) target = $region56
      $region55: #{resnet_forward.3} parent=51 // pred_region
        %p6135 = scmp.lt.s32.totalorder %s19, 1
        %s6136 = scalar_select %p6135, %s19, 1
        %s6137 = smul.addr %s6136, 32
        %s6138 = smul.addr %s6137, 8
        %s6139 = scalar_lea.vmem %s3, %s6138
      $region56: #{resnet_forward.3} parent=51 // pred_fallthru
        _
      // Predicated region
      $region57: #{resnet_forward.3} parent=51 // pred_check
        %p6140 = pneg %p136
      $region58: #{resnet_forward.3} parent=51 // pred_check_branch
        %6142 = sbr.rel (%p6140) target = $region60
      $region59: #{resnet_forward.3} parent=51 // pred_region
        %p6143 = scmp.lt.s32.totalorder %s19, 1
        %s6144 = scalar_select %p6143, %s19, 1
        %s6145 = smul.addr %s6144, 32
        %s6146 = smul.addr %s6145, 8
        %s6147 = scalar_lea.vmem %s4, %s6146
      $region60: #{resnet_forward.3} parent=51 // pred_fallthru
        _
      // Predicated region
      $region61: #{resnet_forward.3} parent=51 // pred_check
        %p6148 = pneg %p162
      $region62: #{resnet_forward.3} parent=51 // pred_check_branch
        %6150 = sbr.rel (%p6148) target = $region64
      $region63: #{resnet_forward.3} parent=51 // pred_region
        %p6151 = scmp.lt.s32.totalorder %s19, 1
        %s6152 = scalar_select %p6151, %s19, 1
        %s6153 = smul.addr %s6152, 2
        %s6154 = scalar_lea.vmem %s5, %s6153
      $region64: #{resnet_forward.3} parent=51 // pred_fallthru
        _
      // Predicated region
      $region65: #{resnet_forward.3} parent=51 // pred_check
        %p6155 = pneg %p188
      $region66: #{resnet_forward.3} parent=51 // pred_check_branch
        %6157 = sbr.rel (%p6155) target = $region68
      $region67: #{resnet_forward.3} parent=51 // pred_region
        %p6158 = scmp.lt.s32.totalorder %s19, 1
        %s6159 = scalar_select %p6158, %s19, 1
        %s6160 = smul.addr %s6159, 2
        %s6161 = scalar_lea.vmem %s6, %s6160
      $region68: #{resnet_forward.3} parent=51 // pred_fallthru
        _
    $region52: #{resnet_forward.3} parent=5 // pred_fallthru
      _
  $region6: #{resnet_forward.3} parent=0 // loop_footer
    %s17 = sadd.s32 1, %s13
  $region7: #{resnet_forward.3} parent=0 // loop_footer_branch
    %12 = sbr.rel target = $region3
  $region8: #{resnet_forward.3} parent=0 // loop_exit
    _

</llo_original>
